<compile_context>
chip_gen: v7x
topology: tpu7x:2x2x1
jax: 0.10.0
libtpu: 0.0.40
codegen_flags: <defaults>
</compile_context>

<pallas_src>
import functools

import numpy as np

import jax
import jax.numpy as jnp
from jax.experimental import pallas as pl
from jax.experimental.pallas import tpu as pltpu


# ---------------------------------------------------------------------------
# helpers (layout plumbing, identical to the PyTorch reference functions)
# ---------------------------------------------------------------------------
def get_window_size(x_size, window_size, shift_size=None):
    use_window_size = list(window_size)
    use_shift_size = list(shift_size) if shift_size is not None else None
    for i in range(len(x_size)):
        if x_size[i] <= window_size[i]:
            use_window_size[i] = x_size[i]
            if shift_size is not None:
                use_shift_size[i] = 0
    if shift_size is None:
        return tuple(use_window_size)
    return tuple(use_window_size), tuple(use_shift_size)


def window_partition_jax(x, ws):
    B, D, H, W, C = x.shape
    x = x.reshape(B, D // ws[0], ws[0], H // ws[1], ws[1], W // ws[2], ws[2], C)
    x = x.transpose(0, 1, 3, 5, 2, 4, 6, 7)
    return x.reshape(-1, ws[0] * ws[1] * ws[2], C)


def window_reverse_jax(windows, ws, B, D, H, W):
    x = windows.reshape(B, D // ws[0], H // ws[1], W // ws[2],
                        ws[0], ws[1], ws[2], -1)
    x = x.transpose(0, 1, 4, 2, 5, 3, 6, 7)
    return x.reshape(B, D, H, W, -1)


def _relative_position_index(window_size):
    """Replicates WindowAttention.get_position_index (torch.meshgrid is 'ij')."""
    wd, wh, ww = window_size
    coords = np.stack(np.meshgrid(np.arange(wd), np.arange(wh), np.arange(ww),
                                  indexing="ij"))                     # (3,wd,wh,ww)
    coords_flat = coords.reshape(3, -1)                               # (3, N)
    rel = coords_flat[:, :, None] - coords_flat[:, None, :]           # (3, N, N)
    rel = rel.transpose(1, 2, 0).astype(np.int64)                     # (N, N, 3)
    rel[:, :, 0] += wd - 1
    rel[:, :, 1] += wh - 1
    rel[:, :, 2] += ww - 1
    rel[:, :, 0] *= (2 * wh - 1) * (2 * ww - 1)
    rel[:, :, 1] *= (2 * ww - 1)
    return rel.sum(-1)                                                # (N, N)


def _make_rel_bias(rel_table, window_size_cfg, N, M, num_heads):
    # Parameter-only gather: mirrors relative_position_index[:N, :M] slicing.
    idx = _relative_position_index(window_size_cfg)[:N, :M].reshape(-1)
    bias = jnp.asarray(rel_table)[jnp.asarray(idx)]                   # (N*M, H)
    return bias.reshape(N, M, num_heads).transpose(2, 0, 1).astype(jnp.float32)


def _pad_to_window(t, ws):
    _, d0, h0, w0, _ = t.shape
    pd = (ws[0] - d0 % ws[0]) % ws[0]
    ph = (ws[1] - h0 % ws[1]) % ws[1]
    pw = (ws[2] - w0 % ws[2]) % ws[2]
    if pd or ph or pw:
        t = jnp.pad(t, ((0, 0), (0, pd), (0, ph), (0, pw), (0, 0)))
    return t


# ---------------------------------------------------------------------------
# tiling heuristics
# ---------------------------------------------------------------------------
def _largest_divisor_leq(n, cap):
    cap = max(1, min(n, cap))
    for cand in range(cap, 0, -1):
        if n % cand == 0:
            return cand
    return 1


def _pick_row_block(n_rows, target=1024):
    tb = _largest_divisor_leq(n_rows, target)
    # keep >= 2 grid steps when possible so v7x's 2 TensorCores both get work
    if tb == n_rows and n_rows > 1:
        tb = _largest_divisor_leq(n_rows, max(1, n_rows // 2))
    return tb


def _pick_window_block(n_windows, n_tok, m_tok, target_rows=2048,
                       score_budget_bytes=8 * 1024 * 1024):
    cap_rows = max(1, target_rows // max(n_tok, m_tok, 1))
    cap_score = max(1, score_budget_bytes // max(4 * n_tok * m_tok, 1))
    wb = _largest_divisor_leq(n_windows, min(cap_rows, cap_score))
    if wb == n_windows and n_windows > 1:
        wb = _largest_divisor_leq(n_windows, max(1, n_windows // 2))
    return wb


@functools.lru_cache(maxsize=1)
def _vmem_limit_bytes():
    # Raise the scoped-VMEM limit (default 16/32 MiB) but stay generation-safe:
    # ~96 MiB on v5e/v6e (128 MiB physical), ~48 MiB on v7x (64 MiB physical).
    cap = 64 * 1024 * 1024
    try:
        cap = int(pltpu.get_tpu_info().vmem_capacity_bytes)
    except Exception:
        pass
    return int(min(cap * 3 // 4, 96 * 1024 * 1024))


# ---------------------------------------------------------------------------
# in-kernel math helpers
# ---------------------------------------------------------------------------
def _ln(x, g, b, eps):
    mu = jnp.mean(x, axis=-1, keepdims=True)
    xc = x - mu
    var = jnp.mean(xc * xc, axis=-1, keepdims=True)
    return xc * jax.lax.rsqrt(var + eps) * g + b


def _gelu_tanh(a):
    # TODO(synk): PyTorch nn.GELU() is the exact (erf) form; tanh approximation
    # used in-kernel (max elementwise deviation ~1e-3, EUP-friendly on TPU).
    return 0.5 * a * (1.0 + jnp.tanh(0.7978845608028654 *
                                     (a + 0.044715 * a * a * a)))


def _per_head_attention(q3, k3, v3, bias_ref, num_heads, d, mm_dtype, C_off_k,
                        C_off_v):
    """q3: (WB,N,Cq) ; k3/v3 share one (WB,M,*) array sliced at C_off_k/C_off_v."""
    WB, N, _ = q3.shape
    head_outs = []
    for h in range(num_heads):            # static unroll over heads
        qh = q3[:, :, h * d:(h + 1) * d].astype(mm_dtype)
        kh = k3[:, :, C_off_k + h * d:C_off_k + (h + 1) * d].astype(mm_dtype)
        vh = v3[:, :, C_off_v + h * d:C_off_v + (h + 1) * d].astype(mm_dtype)
        s = jnp.einsum("wnd,wmd->wnm", qh, kh,
                       preferred_element_type=jnp.float32)
        s = s + bias_ref[h][None, :, :]
        s = s - jnp.max(s, axis=-1, keepdims=True)
        p = jnp.exp(s)
        # divide on the EUP slot (effectively free) instead of the VPU
        p = p * pl.reciprocal(jnp.sum(p, axis=-1, keepdims=True), approx=True)
        head_outs.append(jnp.einsum("wnm,wmd->wnd", p.astype(mm_dtype), vh,
                                    preferred_element_type=jnp.float32))
    return jnp.concatenate(head_outs, axis=-1)      # (WB, N, num_heads*d)


# ---------------------------------------------------------------------------
# Pallas kernels
# ---------------------------------------------------------------------------
def _self_attn_kernel(x_ref, g_ref, b_ref, wqkv_ref, bqkv_ref, wp_ref, bp_ref,
                      bias_ref, o_ref, *, num_heads, eps, mm_dtype):
    WB, N, C = x_ref.shape
    d = C // num_heads

    # fused norm1 on the raw window block (residual source kept in f32)
    x = x_ref[...].astype(jnp.float32).reshape(WB * N, C)
    xn = _ln(x, g_ref[...], b_ref[...], eps)

    # single fused QKV projection (scale pre-folded into the Q slice)
    qkv = jnp.dot(xn.astype(mm_dtype), wqkv_ref[...],
                  preferred_element_type=jnp.float32) + bqkv_ref[...]
    qkv = qkv.reshape(WB, N, 3 * C)

    attn = _per_head_attention(qkv[:, :, :C], qkv, qkv, bias_ref, num_heads, d,
                               mm_dtype, C_off_k=C, C_off_v=2 * C)
    attn = attn.reshape(WB * N, C)

    y = jnp.dot(attn.astype(mm_dtype), wp_ref[...],
                preferred_element_type=jnp.float32) + bp_ref[...]
    o_ref[...] = (x + y).reshape(WB, N, C).astype(o_ref.dtype)   # fused residual


def _cross_attn_kernel(xq_ref, xkv_ref, gq_ref, bq_ref, gk_ref, bk_ref,
                       wq_ref, bql_ref, wkv_ref, bkvl_ref, wp_ref, bp_ref,
                       bias_ref, o_ref, *, num_heads, eps, mm_dtype):
    WB, N, C = xq_ref.shape
    _, M, _ = xkv_ref.shape
    d = C // num_heads

    xq = xq_ref[...].astype(jnp.float32).reshape(WB * N, C)
    xkv = xkv_ref[...].astype(jnp.float32).reshape(WB * M, C)
    xqn = _ln(xq, gq_ref[...], bq_ref[...], eps)     # norm2
    xkn = _ln(xkv, gk_ref[...], bk_ref[...], eps)    # norm_kv

    q = jnp.dot(xqn.astype(mm_dtype), wq_ref[...],
                preferred_element_type=jnp.float32) + bql_ref[...]
    kv = jnp.dot(xkn.astype(mm_dtype), wkv_ref[...],
                 preferred_element_type=jnp.float32) + bkvl_ref[...]
    q = q.reshape(WB, N, C)
    kv = kv.reshape(WB, M, 2 * C)

    attn = _per_head_attention(q, kv, kv, bias_ref, num_heads, d, mm_dtype,
                               C_off_k=0, C_off_v=C)
    attn = attn.reshape(WB * N, C)

    y = jnp.dot(attn.astype(mm_dtype), wp_ref[...],
                preferred_element_type=jnp.float32) + bp_ref[...]
    o_ref[...] = (xq + y).reshape(WB, N, C).astype(o_ref.dtype)  # fused residual


def _mlp_kernel(x_ref, g_ref, b_ref, w1_ref, b1_ref, w2_ref, b2_ref, o_ref, *,
                eps, mm_dtype):
    x = x_ref[...].astype(jnp.float32)
    h = _ln(x, g_ref[...], b_ref[...], eps)
    a = jnp.dot(h.astype(mm_dtype), w1_ref[...],
                preferred_element_type=jnp.float32) + b1_ref[...]
    a = _gelu_tanh(a)
    y = jnp.dot(a.astype(mm_dtype), w2_ref[...],
                preferred_element_type=jnp.float32) + b2_ref[...]
    o_ref[...] = (x + y).astype(o_ref.dtype)          # fused residual


# ---------------------------------------------------------------------------
# Pallas wrappers
# ---------------------------------------------------------------------------
_LN_EPS = 1e-5


def window_self_attention(x_w, ln, ap, rel_bias, num_heads, scale, mm_dtype):
    Bw, N, C = x_w.shape
    WB = _pick_window_block(Bw, N, N)

    wq = ap["q_w"].T * scale                         # scale folded into Wq / bq
    wk = ap["kv_w"][:C].T
    wv = ap["kv_w"][C:].T
    wqkv = jnp.concatenate([wq, wk, wv], axis=1).astype(mm_dtype)      # (C, 3C)
    bqkv = jnp.concatenate([ap["q_b"] * scale, ap["kv_b"]],
                           axis=0).reshape(1, 3 * C).astype(jnp.float32)
    wp = ap["proj_w"].T.astype(mm_dtype)
    bp = ap["proj_b"].reshape(1, C).astype(jnp.float32)
    g = ln["g"].reshape(1, C).astype(jnp.float32)
    b = ln["b"].reshape(1, C).astype(jnp.float32)

    itemsize = jnp.dtype(mm_dtype).itemsize
    cost = pl.CostEstimate(
        flops=int(Bw * (8 * N * C * C + 4 * N * N * C)),
        transcendentals=int(Bw * num_heads * N * N),
        bytes_accessed=int(8 * Bw * N * C + itemsize * 4 * C * C
                           + 4 * num_heads * N * N))

    kernel = functools.partial(_self_attn_kernel, num_heads=num_heads,
                               eps=_LN_EPS, mm_dtype=mm_dtype)
    return pl.pallas_call(
        kernel,
        out_shape=jax.ShapeDtypeStruct((Bw, N, C), x_w.dtype),
        grid_spec=pltpu.PrefetchScalarGridSpec(
            num_scalar_prefetch=0,
            grid=(Bw // WB,),
            in_specs=[
                pl.BlockSpec((WB, N, C), lambda i: (i, 0, 0)),
                pl.BlockSpec((1, C), lambda i: (0, 0)),
                pl.BlockSpec((1, C), lambda i: (0, 0)),
                pl.BlockSpec((C, 3 * C), lambda i: (0, 0)),
                pl.BlockSpec((1, 3 * C), lambda i: (0, 0)),
                pl.BlockSpec((C, C), lambda i: (0, 0)),
                pl.BlockSpec((1, C), lambda i: (0, 0)),
                pl.BlockSpec((num_heads, N, N), lambda i: (0, 0, 0)),
            ],
            out_specs=pl.BlockSpec((WB, N, C), lambda i: (i, 0, 0)),
        ),
        compiler_params=pltpu.CompilerParams(
            dimension_semantics=("parallel",),
            vmem_limit_bytes=_vmem_limit_bytes()),
        cost_estimate=cost,
    )(x_w, g, b, wqkv, bqkv, wp, bp, rel_bias)


def window_cross_attention(xq_w, xkv_w, ln_q, ln_kv, ap, rel_bias, num_heads,
                           scale, mm_dtype):
    Bw, N, C = xq_w.shape
    _, M, _ = xkv_w.shape
    WB = _pick_window_block(Bw, N, M)

    wq = (ap["q_w"].T * scale).astype(mm_dtype)                        # (C, C)
    bql = (ap["q_b"] * scale).reshape(1, C).astype(jnp.float32)
    wkv = ap["kv_w"].T.astype(mm_dtype)                                # (C, 2C)
    bkvl = ap["kv_b"].reshape(1, 2 * C).astype(jnp.float32)
    wp = ap["proj_w"].T.astype(mm_dtype)
    bp = ap["proj_b"].reshape(1, C).astype(jnp.float32)
    gq = ln_q["g"].reshape(1, C).astype(jnp.float32)
    bq = ln_q["b"].reshape(1, C).astype(jnp.float32)
    gk = ln_kv["g"].reshape(1, C).astype(jnp.float32)
    bk = ln_kv["b"].reshape(1, C).astype(jnp.float32)

    itemsize = jnp.dtype(mm_dtype).itemsize
    cost = pl.CostEstimate(
        flops=int(Bw * (4 * N * C * C + 4 * M * C * C + 4 * N * M * C)),
        transcendentals=int(Bw * num_heads * N * M),
        bytes_accessed=int(8 * Bw * N * C + 4 * Bw * M * C
                           + itemsize * 4 * C * C + 4 * num_heads * N * M))

    kernel = functools.partial(_cross_attn_kernel, num_heads=num_heads,
                               eps=_LN_EPS, mm_dtype=mm_dtype)
    return pl.pallas_call(
        kernel,
        out_shape=jax.ShapeDtypeStruct((Bw, N, C), xq_w.dtype),
        grid_spec=pltpu.PrefetchScalarGridSpec(
            num_scalar_prefetch=0,
            grid=(Bw // WB,),
            in_specs=[
                pl.BlockSpec((WB, N, C), lambda i: (i, 0, 0)),
                pl.BlockSpec((WB, M, C), lambda i: (i, 0, 0)),
                pl.BlockSpec((1, C), lambda i: (0, 0)),
                pl.BlockSpec((1, C), lambda i: (0, 0)),
                pl.BlockSpec((1, C), lambda i: (0, 0)),
                pl.BlockSpec((1, C), lambda i: (0, 0)),
                pl.BlockSpec((C, C), lambda i: (0, 0)),
                pl.BlockSpec((1, C), lambda i: (0, 0)),
                pl.BlockSpec((C, 2 * C), lambda i: (0, 0)),
                pl.BlockSpec((1, 2 * C), lambda i: (0, 0)),
                pl.BlockSpec((C, C), lambda i: (0, 0)),
                pl.BlockSpec((1, C), lambda i: (0, 0)),
                pl.BlockSpec((num_heads, N, M), lambda i: (0, 0, 0)),
            ],
            out_specs=pl.BlockSpec((WB, N, C), lambda i: (i, 0, 0)),
        ),
        compiler_params=pltpu.CompilerParams(
            dimension_semantics=("parallel",),
            vmem_limit_bytes=_vmem_limit_bytes()),
        cost_estimate=cost,
    )(xq_w, xkv_w, gq, bq, gk, bk, wq, bql, wkv, bkvl, wp, bp, rel_bias)


def mlp_residual(x2d, params, mm_dtype):
    T, C = x2d.shape
    Ch = params["mlp"]["fc1_w"].shape[0]
    TB = _pick_row_block(T)

    g = params["norm3"]["g"].reshape(1, C).astype(jnp.float32)
    b = params["norm3"]["b"].reshape(1, C).astype(jnp.float32)
    w1 = params["mlp"]["fc1_w"].T.astype(mm_dtype)
    b1 = params["mlp"]["fc1_b"].reshape(1, Ch).astype(jnp.float32)
    w2 = params["mlp"]["fc2_w"].T.astype(mm_dtype)
    b2 = params["mlp"]["fc2_b"].reshape(1, C).astype(jnp.float32)

    itemsize = jnp.dtype(mm_dtype).itemsize
    cost = pl.CostEstimate(
        flops=int(4 * T * C * Ch),
        transcendentals=int(2 * T * Ch),
        bytes_accessed=int(8 * T * C + itemsize * 2 * C * Ch))

    return pl.pallas_call(
        functools.partial(_mlp_kernel, eps=_LN_EPS, mm_dtype=mm_dtype),
        out_shape=jax.ShapeDtypeStruct((T, C), x2d.dtype),
        grid_spec=pltpu.PrefetchScalarGridSpec(
            num_scalar_prefetch=0,
            grid=(T // TB,),
            in_specs=[
                pl.BlockSpec((TB, C), lambda i: (i, 0)),
                pl.BlockSpec((1, C), lambda i: (0, 0)),
                pl.BlockSpec((1, C), lambda i: (0, 0)),
                pl.BlockSpec((C, Ch), lambda i: (0, 0)),
                pl.BlockSpec((1, Ch), lambda i: (0, 0)),
                pl.BlockSpec((Ch, C), lambda i: (0, 0)),
                pl.BlockSpec((1, C), lambda i: (0, 0)),
            ],
            out_specs=pl.BlockSpec((TB, C), lambda i: (i, 0)),
        ),
        compiler_params=pltpu.CompilerParams(
            dimension_semantics=("parallel",),
            vmem_limit_bytes=_vmem_limit_bytes()),
        cost_estimate=cost,
    )(x2d, g, b, w1, b1, w2, b2)


# ---------------------------------------------------------------------------
# block forward (Pallas path)
# ---------------------------------------------------------------------------
def _pallas_attention_part(xq, xkv, ln_q, ln_kv, ap, num_heads,
                           window_size_cfg, shift_size_cfg, mm_dtype):
    """Returns xq + WindowAttention(norm(xq), norm(xkv)) (residual fused)."""
    B, D, H, W, C = xq.shape
    _, D_, H_, W_, _ = xkv.shape
    ws, ss = get_window_size((D, H, W), window_size_cfg, shift_size_cfg)
    ws_, ss_ = get_window_size((D_, H_, W_), window_size_cfg, shift_size_cfg)
    if any(s > 0 for s in ss) or any(s > 0 for s in ss_):
        # TODO(synk): shifted-window attention mask path not implemented.
        raise NotImplementedError("shift_size > 0 is not supported")

    # TODO(synk): window partition/reverse stay as XLA reshape/transpose; the
    # BlockSpec form needs last-two block dims (ww, C) to satisfy the (8,128)
    # tiling constraint, which small ww / C do not.
    xq_p = _pad_to_window(xq, ws)                 # raw (un-normalized) x
    _, Dp, Hp, Wp, _ = xq_p.shape
    q_w = window_partition_jax(xq_p, ws)          # (Bw, N, C)
    N = q_w.shape[1]
    scale = float(C // num_heads) ** (-0.5)

    if ln_kv is None:
        # self-attention: single input block DMA'd once, QKV fused in-kernel
        rel_bias = _make_rel_bias(ap["rel_table"], window_size_cfg, N, N,
                                  num_heads)
        out_w = window_self_attention(q_w, ln_q, ap, rel_bias, num_heads,
                                      scale, mm_dtype)
    else:
        xkv_p = _pad_to_window(xkv, ws_)
        kv_w = window_partition_jax(xkv_p, ws_)   # (Bw, M, C)
        assert kv_w.shape[0] == q_w.shape[0], (
            "q and kv must produce the same number of windows")
        M = kv_w.shape[1]
        rel_bias = _make_rel_bias(ap["rel_table"], window_size_cfg, N, M,
                                  num_heads)
        out_w = window_cross_attention(q_w, kv_w, ln_q, ln_kv, ap, rel_bias,
                                       num_heads, scale, mm_dtype)

    out = window_reverse_jax(out_w, ws, B, Dp, Hp, Wp)
    return out[:, :D, :H, :W, :]                  # crop pad; residual already in


def vstsr_decoder_block_forward(x, attn_kv, params, *, num_heads, window_size,
                                shift_size=(0, 0, 0), mask_matrix=None,
                                mask_matrix_=None,
                                matmul_dtype=jnp.bfloat16):
    """Pallas forward. masks are only used when shift_size > 0 (not supported)."""
    del mask_matrix, mask_matrix_
    x = _pallas_attention_part(x, x, params["norm1"], None, params["attn"],
                               num_heads, window_size, shift_size, matmul_dtype)
    x = _pallas_attention_part(x, attn_kv, params["norm2"], params["norm_kv"],
                               params["attn_"], num_heads, window_size,
                               shift_size, matmul_dtype)
    B, D, H, W, C = x.shape
    y = mlp_residual(x.reshape(-1, C), params, matmul_dtype)
    return y.reshape(B, D, H, W, C)


# ---------------------------------------------------------------------------
# pure-JAX reference (mirrors the PyTorch forward, exact erf GELU)
# ---------------------------------------------------------------------------
def _ref_layernorm(x, g, b, eps=_LN_EPS):
    mu = jnp.mean(x, axis=-1, keepdims=True)
    var = jnp.mean(jnp.square(x - mu), axis=-1, keepdims=True)
    return (x - mu) / jnp.sqrt(var + eps) * g + b


def _ref_window_attention(xq_w, xkv_w, ap, rel_bias, num_heads, scale):
    B_, N, C = xq_w.shape
    _, M, _ = xkv_w.shape
    d = C // num_heads
    q = xq_w @ ap["q_w"].T + ap["q_b"]
    kv = xkv_w @ ap["kv_w"].T + ap["kv_b"]
    k, v = kv[..., :C], kv[..., C:]
    q = q.reshape(B_, N, num_heads, d).transpose(0, 2, 1, 3)
    k = k.reshape(B_, M, num_heads, d).transpose(0, 2, 1, 3)
    v = v.reshape(B_, M, num_heads, d).transpose(0, 2, 1, 3)
    attn = (q * scale) @ jnp.swapaxes(k, -1, -2) + rel_bias[None]
    attn = jax.nn.softmax(attn, axis=-1)
    out = (attn @ v).transpose(0, 2, 1, 3).reshape(B_, N, C)
    return out @ ap["proj_w"].T + ap["proj_b"]


def _ref_attention_part(xq, xkv, ln_q, ln_kv, ap, num_heads, window_size_cfg,
                        shift_size_cfg):
    B, D, H, W, C = xq.shape
    _, D_, H_, W_, _ = xkv.shape
    ws, _ = get_window_size((D, H, W), window_size_cfg, shift_size_cfg)
    ws_, _ = get_window_size((D_, H_, W_), window_size_cfg, shift_size_cfg)

    q_n = _ref_layernorm(xq, ln_q["g"], ln_q["b"])
    kv_n = q_n if ln_kv is None else _ref_layernorm(xkv, ln_kv["g"], ln_kv["b"])

    q_p = _pad_to_window(q_n, ws)
    kv_p = _pad_to_window(kv_n, ws_)
    _, Dp, Hp, Wp, _ = q_p.shape
    q_w = window_partition_jax(q_p, ws)
    kv_w = window_partition_jax(kv_p, ws_)
    N, M = q_w.shape[1], kv_w.shape[1]
    rel_bias = _make_rel_bias(ap["rel_table"], window_size_cfg, N, M, num_heads)
    scale = float(C // num_heads) ** (-0.5)
    attn_w = _ref_window_attention(q_w, kv_w, ap, rel_bias, num_heads, scale)
    out = window_reverse_jax(attn_w, ws, B, Dp, Hp, Wp)
    return out[:, :D, :H, :W, :]


def reference_forward(x, attn_kv, params, *, num_heads, window_size,
                      shift_size=(0, 0, 0)):
    C = x.shape[-1]
    x = x + _ref_attention_part(x, x, params["norm1"], None, params["attn"],
                                num_heads, window_size, shift_size)
    x = x + _ref_attention_part(x, attn_kv, params["norm2"], params["norm_kv"],
                                params["attn_"], num_heads, window_size,
                                shift_size)
    h = _ref_layernorm(x, params["norm3"]["g"], params["norm3"]["b"])
    a = h.reshape(-1, C) @ params["mlp"]["fc1_w"].T + params["mlp"]["fc1_b"]
    a = 0.5 * a * (1.0 + jax.scipy.special.erf(a / jnp.sqrt(2.0)))
    y = a @ params["mlp"]["fc2_w"].T + params["mlp"]["fc2_b"]
    return x + y.reshape(x.shape)


# ---------------------------------------------------------------------------
# test
# ---------------------------------------------------------------------------
if __name__ == "__main__":
    key = jax.random.PRNGKey(0)
    B, D, H, W, C = 1, 4, 8, 8, 32
    num_heads = 2
    window_size = (2, 4, 4)
    shift_size = (0, 0, 0)
    mlp_ratio = 2.0
    hidden = int(C * mlp_ratio)
    tbl = ((2 * window_size[0] - 1) * (2 * window_size[1] - 1)
           * (2 * window_size[2] - 1))

    ks = list(jax.random.split(key, 32))
    nk = iter(ks)

    def nrm(shape, std=1.0):
        return jax.random.normal(next(nk), shape, jnp.float32) * std

    x = nrm((B, D, H, W, C))
    attn_kv = nrm((B, D, H, W, C))

    def make_ln():
        return {"g": 1.0 + nrm((C,), 0.1), "b": nrm((C,), 0.05)}

    def make_attn():
        return {
            "q_w": nrm((C, C), 0.1), "q_b": nrm((C,), 0.02),
            "kv_w": nrm((2 * C, C), 0.1), "kv_b": nrm((2 * C,), 0.02),
            "proj_w": nrm((C, C), 0.1), "proj_b": nrm((C,), 0.02),
            "rel_table": nrm((tbl, num_heads), 0.02),
        }

    params = {
        "norm1": make_ln(), "norm2": make_ln(), "norm_kv": make_ln(),
        "norm3": make_ln(),
        "attn": make_attn(), "attn_": make_attn(),
        "mlp": {"fc1_w": nrm((hidden, C), 0.1), "fc1_b": nrm((hidden,), 0.02),
                "fc2_w": nrm((C, hidden), 0.1), "fc2_b": nrm((C,), 0.02)},
    }

    fwd_f32 = jax.jit(lambda a, b: vstsr_decoder_block_forward(
        a, b, params, num_heads=num_heads, window_size=window_size,
        shift_size=shift_size, mask_matrix=None, mask_matrix_=None,
        matmul_dtype=jnp.float32))
    fwd_bf16 = jax.jit(lambda a, b: vstsr_decoder_block_forward(
        a, b, params, num_heads=num_heads, window_size=window_size,
        shift_size=shift_size, mask_matrix=None, mask_matrix_=None,
        matmul_dtype=jnp.bfloat16))

    out32 = jax.block_until_ready(fwd_f32(x, attn_kv))
    out16 = jax.block_until_ready(fwd_bf16(x, attn_kv))

    ref = reference_forward(x, attn_kv, params, num_heads=num_heads,
                            window_size=window_size, shift_size=shift_size)

    assert out32.shape == x.shape and out32.dtype == x.dtype
    assert out16.shape == x.shape and out16.dtype == x.dtype
    err32 = float(jnp.max(jnp.abs(out32 - ref)))
    err16 = float(jnp.max(jnp.abs(out16 - ref)))
    assert err32 < 3e-3, f"f32-matmul mismatch vs reference: {err32}"
    assert err16 < 5e-2, f"bf16-matmul mismatch vs reference: {err16}"

    print("KERNEL_OK")
</pallas_src>

<mosaic_0001>
module attributes {stable_mosaic.version = 11 : i64} {
  func.func @_cross_attn_kernel(%arg0: i32, %arg1: memref<4x32x32xf32, #tpu.memory_space<vmem>>, %arg2: memref<4x32x32xf32, #tpu.memory_space<vmem>>, %arg3: memref<1x32xf32, #tpu.memory_space<vmem>>, %arg4: memref<1x32xf32, #tpu.memory_space<vmem>>, %arg5: memref<1x32xf32, #tpu.memory_space<vmem>>, %arg6: memref<1x32xf32, #tpu.memory_space<vmem>>, %arg7: memref<32x32xf32, #tpu.memory_space<vmem>>, %arg8: memref<1x32xf32, #tpu.memory_space<vmem>>, %arg9: memref<32x64xf32, #tpu.memory_space<vmem>>, %arg10: memref<1x64xf32, #tpu.memory_space<vmem>>, %arg11: memref<32x32xf32, #tpu.memory_space<vmem>>, %arg12: memref<1x32xf32, #tpu.memory_space<vmem>>, %arg13: memref<2x32x32xf32, #tpu.memory_space<vmem>>, %arg14: memref<4x32x32xf32, #tpu.memory_space<vmem>>) attributes {dimension_semantics = [#tpu.dimension_semantics<parallel>], iteration_bounds = array<i64: 2>, scalar_prefetch = 0 : i64, scratch_operands = 0 : i64, tpu.core_type = #tpu.core_type<tc>, window_params = [{transform_indices = @transform_0, window_bounds = array<i64: 4, 32, 32>}, {transform_indices = @transform_1, window_bounds = array<i64: 4, 32, 32>}, {pipeline_mode = #tpu.pipeline_mode<synchronous>, transform_indices = @transform_2, window_bounds = array<i64: 1, 32>}, {pipeline_mode = #tpu.pipeline_mode<synchronous>, transform_indices = @transform_3, window_bounds = array<i64: 1, 32>}, {pipeline_mode = #tpu.pipeline_mode<synchronous>, transform_indices = @transform_4, window_bounds = array<i64: 1, 32>}, {pipeline_mode = #tpu.pipeline_mode<synchronous>, transform_indices = @transform_5, window_bounds = array<i64: 1, 32>}, {pipeline_mode = #tpu.pipeline_mode<synchronous>, transform_indices = @transform_6, window_bounds = array<i64: 32, 32>}, {pipeline_mode = #tpu.pipeline_mode<synchronous>, transform_indices = @transform_7, window_bounds = array<i64: 1, 32>}, {pipeline_mode = #tpu.pipeline_mode<synchronous>, transform_indices = @transform_8, window_bounds = array<i64: 32, 64>}, {pipeline_mode = #tpu.pipeline_mode<synchronous>, transform_indices = @transform_9, window_bounds = array<i64: 1, 64>}, {pipeline_mode = #tpu.pipeline_mode<synchronous>, transform_indices = @transform_10, window_bounds = array<i64: 32, 32>}, {pipeline_mode = #tpu.pipeline_mode<synchronous>, transform_indices = @transform_11, window_bounds = array<i64: 1, 32>}, {pipeline_mode = #tpu.pipeline_mode<synchronous>, transform_indices = @transform_12, window_bounds = array<i64: 2, 32, 32>}, {transform_indices = @transform_13, window_bounds = array<i64: 4, 32, 32>}]} {
    %c0 = arith.constant 0 : index
    %c0_0 = arith.constant 0 : index
    %c0_1 = arith.constant 0 : index
    %0 = vector.load %arg1[%c0, %c0_0, %c0_1] : memref<4x32x32xf32, #tpu.memory_space<vmem>>, vector<4x32x32xf32>
    %1 = vector.shape_cast %0 : vector<4x32x32xf32> to vector<128x32xf32>
    %c0_2 = arith.constant 0 : index
    %c0_3 = arith.constant 0 : index
    %c0_4 = arith.constant 0 : index
    %2 = vector.load %arg2[%c0_2, %c0_3, %c0_4] : memref<4x32x32xf32, #tpu.memory_space<vmem>>, vector<4x32x32xf32>
    %3 = vector.shape_cast %2 : vector<4x32x32xf32> to vector<128x32xf32>
    %c0_5 = arith.constant 0 : index
    %c0_6 = arith.constant 0 : index
    %4 = vector.load %arg3[%c0_5, %c0_6] : memref<1x32xf32, #tpu.memory_space<vmem>>, vector<1x32xf32>
    %c0_7 = arith.constant 0 : index
    %c0_8 = arith.constant 0 : index
    %5 = vector.load %arg4[%c0_7, %c0_8] : memref<1x32xf32, #tpu.memory_space<vmem>>, vector<1x32xf32>
    %cst = arith.constant dense<0.000000e+00> : vector<128xf32>
    %6 = vector.multi_reduction <add>, %1, %cst [1] : vector<128x32xf32> to vector<128xf32>
    %7 = vector.shape_cast %6 : vector<128xf32> to vector<128x1xf32>
    %cst_9 = arith.constant 3.200000e+01 : f32
    %8 = vector.broadcast %cst_9 : f32 to vector<128x1xf32>
    %9 = arith.divf %7, %8 : vector<128x1xf32>
    %10 = vector.broadcast %9 : vector<128x1xf32> to vector<128x32xf32>
    %11 = arith.subf %1, %10 : vector<128x32xf32>
    %12 = arith.mulf %11, %11 : vector<128x32xf32>
    %cst_10 = arith.constant dense<0.000000e+00> : vector<128xf32>
    %13 = vector.multi_reduction <add>, %12, %cst_10 [1] : vector<128x32xf32> to vector<128xf32>
    %14 = vector.shape_cast %13 : vector<128xf32> to vector<128x1xf32>
    %cst_11 = arith.constant 3.200000e+01 : f32
    %15 = vector.broadcast %cst_11 : f32 to vector<128x1xf32>
    %16 = arith.divf %14, %15 : vector<128x1xf32>
    %cst_12 = arith.constant 9.99999974E-6 : f32
    %17 = vector.broadcast %cst_12 : f32 to vector<128x1xf32>
    %18 = arith.addf %16, %17 : vector<128x1xf32>
    %19 = math.rsqrt %18 : vector<128x1xf32>
    %20 = vector.broadcast %19 : vector<128x1xf32> to vector<128x32xf32>
    %21 = arith.mulf %11, %20 : vector<128x32xf32>
    %22 = vector.broadcast %4 : vector<1x32xf32> to vector<128x32xf32>
    %23 = arith.mulf %21, %22 : vector<128x32xf32>
    %24 = vector.broadcast %5 : vector<1x32xf32> to vector<128x32xf32>
    %25 = arith.addf %23, %24 : vector<128x32xf32>
    %c0_13 = arith.constant 0 : index
    %c0_14 = arith.constant 0 : index
    %26 = vector.load %arg5[%c0_13, %c0_14] : memref<1x32xf32, #tpu.memory_space<vmem>>, vector<1x32xf32>
    %c0_15 = arith.constant 0 : index
    %c0_16 = arith.constant 0 : index
    %27 = vector.load %arg6[%c0_15, %c0_16] : memref<1x32xf32, #tpu.memory_space<vmem>>, vector<1x32xf32>
    %cst_17 = arith.constant dense<0.000000e+00> : vector<128xf32>
    %28 = vector.multi_reduction <add>, %3, %cst_17 [1] : vector<128x32xf32> to vector<128xf32>
    %29 = vector.shape_cast %28 : vector<128xf32> to vector<128x1xf32>
    %cst_18 = arith.constant 3.200000e+01 : f32
    %30 = vector.broadcast %cst_18 : f32 to vector<128x1xf32>
    %31 = arith.divf %29, %30 : vector<128x1xf32>
    %32 = vector.broadcast %31 : vector<128x1xf32> to vector<128x32xf32>
    %33 = arith.subf %3, %32 : vector<128x32xf32>
    %34 = arith.mulf %33, %33 : vector<128x32xf32>
    %cst_19 = arith.constant dense<0.000000e+00> : vector<128xf32>
    %35 = vector.multi_reduction <add>, %34, %cst_19 [1] : vector<128x32xf32> to vector<128xf32>
    %36 = vector.shape_cast %35 : vector<128xf32> to vector<128x1xf32>
    %cst_20 = arith.constant 3.200000e+01 : f32
    %37 = vector.broadcast %cst_20 : f32 to vector<128x1xf32>
    %38 = arith.divf %36, %37 : vector<128x1xf32>
    %cst_21 = arith.constant 9.99999974E-6 : f32
    %39 = vector.broadcast %cst_21 : f32 to vector<128x1xf32>
    %40 = arith.addf %38, %39 : vector<128x1xf32>
    %41 = math.rsqrt %40 : vector<128x1xf32>
    %42 = vector.broadcast %41 : vector<128x1xf32> to vector<128x32xf32>
    %43 = arith.mulf %33, %42 : vector<128x32xf32>
    %44 = vector.broadcast %26 : vector<1x32xf32> to vector<128x32xf32>
    %45 = arith.mulf %43, %44 : vector<128x32xf32>
    %46 = vector.broadcast %27 : vector<1x32xf32> to vector<128x32xf32>
    %47 = arith.addf %45, %46 : vector<128x32xf32>
    %c0_22 = arith.constant 0 : index
    %c0_23 = arith.constant 0 : index
    %48 = vector.load %arg7[%c0_22, %c0_23] : memref<32x32xf32, #tpu.memory_space<vmem>>, vector<32x32xf32>
    %cst_24 = arith.constant dense<0.000000e+00> : vector<128x32xf32>
    %49 = tpu.matmul %25, %48, %cst_24 {dimension_numbers = #tpu.dot_dimension_numbers<[1], [0], [0], [1], [0, 0, 1, 1], [], []>} : vector<128x32xf32>, vector<32x32xf32>, vector<128x32xf32> -> vector<128x32xf32>
    %c0_25 = arith.constant 0 : index
    %c0_26 = arith.constant 0 : index
    %50 = vector.load %arg8[%c0_25, %c0_26] : memref<1x32xf32, #tpu.memory_space<vmem>>, vector<1x32xf32>
    %51 = vector.broadcast %50 : vector<1x32xf32> to vector<128x32xf32>
    %52 = arith.addf %49, %51 : vector<128x32xf32>
    %c0_27 = arith.constant 0 : index
    %c0_28 = arith.constant 0 : index
    %53 = vector.load %arg9[%c0_27, %c0_28] : memref<32x64xf32, #tpu.memory_space<vmem>>, vector<32x64xf32>
    %cst_29 = arith.constant dense<0.000000e+00> : vector<128x64xf32>
    %54 = tpu.matmul %47, %53, %cst_29 {dimension_numbers = #tpu.dot_dimension_numbers<[1], [0], [0], [1], [0, 0, 1, 1], [], []>} : vector<128x32xf32>, vector<32x64xf32>, vector<128x64xf32> -> vector<128x64xf32>
    %c0_30 = arith.constant 0 : index
    %c0_31 = arith.constant 0 : index
    %55 = vector.load %arg10[%c0_30, %c0_31] : memref<1x64xf32, #tpu.memory_space<vmem>>, vector<1x64xf32>
    %56 = vector.broadcast %55 : vector<1x64xf32> to vector<128x64xf32>
    %57 = arith.addf %54, %56 : vector<128x64xf32>
    %58 = vector.shape_cast %52 : vector<128x32xf32> to vector<4x32x32xf32>
    %59 = vector.shape_cast %57 : vector<128x64xf32> to vector<4x32x64xf32>
    %60 = vector.extract_strided_slice %58 {offsets = [0, 0, 0], sizes = [4, 32, 16], strides = [1, 1, 1]} : vector<4x32x32xf32> to vector<4x32x16xf32>
    %61 = vector.extract_strided_slice %59 {offsets = [0, 0, 0], sizes = [4, 32, 16], strides = [1, 1, 1]} : vector<4x32x64xf32> to vector<4x32x16xf32>
    %62 = vector.extract_strided_slice %59 {offsets = [0, 0, 32], sizes = [4, 32, 16], strides = [1, 1, 1]} : vector<4x32x64xf32> to vector<4x32x16xf32>
    "tpu.trace_start"() <{level = 10 : i32, message = "wnd,wmd->wnm"}> : () -> ()
    %cst_32 = arith.constant dense<0.000000e+00> : vector<4x32x32xf32>
    %63 = tpu.matmul %60, %61, %cst_32 {dimension_numbers = #tpu.dot_dimension_numbers<[2], [2], [1], [1], [0, 0, 0, 1, 1, 1], [0], [0]>} : vector<4x32x16xf32>, vector<4x32x16xf32>, vector<4x32x32xf32> -> vector<4x32x32xf32>
    "tpu.trace_stop"() : () -> ()
    %c0_33 = arith.constant 0 : index
    %c0_34 = arith.constant 0 : index
    %c0_35 = arith.constant 0 : index
    %64 = vector.load %arg13[%c0_33, %c0_34, %c0_35] : memref<2x32x32xf32, #tpu.memory_space<vmem>>, vector<1x32x32xf32>
    %65 = vector.shape_cast %64 : vector<1x32x32xf32> to vector<32x32xf32>
    %66 = vector.shape_cast %65 : vector<32x32xf32> to vector<1x32x32xf32>
    %67 = vector.broadcast %66 : vector<1x32x32xf32> to vector<4x32x32xf32>
    %68 = arith.addf %63, %67 : vector<4x32x32xf32>
    %cst_36 = arith.constant dense<0xFF800000> : vector<4x32xf32>
    %69 = vector.multi_reduction <maximumf>, %68, %cst_36 [2] : vector<4x32x32xf32> to vector<4x32xf32>
    %70 = vector.shape_cast %69 : vector<4x32xf32> to vector<4x32x1xf32>
    %71 = vector.broadcast %70 : vector<4x32x1xf32> to vector<4x32x32xf32>
    %72 = arith.subf %68, %71 : vector<4x32x32xf32>
    %73 = math.exp %72 : vector<4x32x32xf32>
    %cst_37 = arith.constant dense<0.000000e+00> : vector<4x32xf32>
    %74 = vector.multi_reduction <add>, %73, %cst_37 [2] : vector<4x32x32xf32> to vector<4x32xf32>
    %75 = vector.shape_cast %74 : vector<4x32xf32> to vector<4x32x1xf32>
    %76 = tpu.reciprocal %75 {approx = true} : vector<4x32x1xf32> -> vector<4x32x1xf32>
    %77 = vector.broadcast %76 : vector<4x32x1xf32> to vector<4x32x32xf32>
    %78 = arith.mulf %73, %77 : vector<4x32x32xf32>
    "tpu.trace_start"() <{level = 10 : i32, message = "wnm,wmd->wnd"}> : () -> ()
    %cst_38 = arith.constant dense<0.000000e+00> : vector<4x32x16xf32>
    %79 = tpu.matmul %78, %62, %cst_38 {dimension_numbers = #tpu.dot_dimension_numbers<[2], [1], [1], [2], [0, 0, 0, 1, 1, 2], [0], [0]>} : vector<4x32x32xf32>, vector<4x32x16xf32>, vector<4x32x16xf32> -> vector<4x32x16xf32>
    "tpu.trace_stop"() : () -> ()
    %80 = vector.extract_strided_slice %58 {offsets = [0, 0, 16], sizes = [4, 32, 16], strides = [1, 1, 1]} : vector<4x32x32xf32> to vector<4x32x16xf32>
    %81 = vector.extract_strided_slice %59 {offsets = [0, 0, 16], sizes = [4, 32, 16], strides = [1, 1, 1]} : vector<4x32x64xf32> to vector<4x32x16xf32>
    %82 = vector.extract_strided_slice %59 {offsets = [0, 0, 48], sizes = [4, 32, 16], strides = [1, 1, 1]} : vector<4x32x64xf32> to vector<4x32x16xf32>
    "tpu.trace_start"() <{level = 10 : i32, message = "wnd,wmd->wnm"}> : () -> ()
    %cst_39 = arith.constant dense<0.000000e+00> : vector<4x32x32xf32>
    %83 = tpu.matmul %80, %81, %cst_39 {dimension_numbers = #tpu.dot_dimension_numbers<[2], [2], [1], [1], [0, 0, 0, 1, 1, 1], [0], [0]>} : vector<4x32x16xf32>, vector<4x32x16xf32>, vector<4x32x32xf32> -> vector<4x32x32xf32>
    "tpu.trace_stop"() : () -> ()
    %c1 = arith.constant 1 : index
    %c0_40 = arith.constant 0 : index
    %c0_41 = arith.constant 0 : index
    %84 = vector.load %arg13[%c1, %c0_40, %c0_41] : memref<2x32x32xf32, #tpu.memory_space<vmem>>, vector<1x32x32xf32>
    %85 = vector.shape_cast %84 : vector<1x32x32xf32> to vector<32x32xf32>
    %86 = vector.shape_cast %85 : vector<32x32xf32> to vector<1x32x32xf32>
    %87 = vector.broadcast %86 : vector<1x32x32xf32> to vector<4x32x32xf32>
    %88 = arith.addf %83, %87 : vector<4x32x32xf32>
    %cst_42 = arith.constant dense<0xFF800000> : vector<4x32xf32>
    %89 = vector.multi_reduction <maximumf>, %88, %cst_42 [2] : vector<4x32x32xf32> to vector<4x32xf32>
    %90 = vector.shape_cast %89 : vector<4x32xf32> to vector<4x32x1xf32>
    %91 = vector.broadcast %90 : vector<4x32x1xf32> to vector<4x32x32xf32>
    %92 = arith.subf %88, %91 : vector<4x32x32xf32>
    %93 = math.exp %92 : vector<4x32x32xf32>
    %cst_43 = arith.constant dense<0.000000e+00> : vector<4x32xf32>
    %94 = vector.multi_reduction <add>, %93, %cst_43 [2] : vector<4x32x32xf32> to vector<4x32xf32>
    %95 = vector.shape_cast %94 : vector<4x32xf32> to vector<4x32x1xf32>
    %96 = tpu.reciprocal %95 {approx = true} : vector<4x32x1xf32> -> vector<4x32x1xf32>
    %97 = vector.broadcast %96 : vector<4x32x1xf32> to vector<4x32x32xf32>
    %98 = arith.mulf %93, %97 : vector<4x32x32xf32>
    "tpu.trace_start"() <{level = 10 : i32, message = "wnm,wmd->wnd"}> : () -> ()
    %cst_44 = arith.constant dense<0.000000e+00> : vector<4x32x16xf32>
    %99 = tpu.matmul %98, %82, %cst_44 {dimension_numbers = #tpu.dot_dimension_numbers<[2], [1], [1], [2], [0, 0, 0, 1, 1, 2], [0], [0]>} : vector<4x32x32xf32>, vector<4x32x16xf32>, vector<4x32x16xf32> -> vector<4x32x16xf32>
    "tpu.trace_stop"() : () -> ()
    %100 = tpu.concatenate %79, %99 in 2 : vector<4x32x16xf32>, vector<4x32x16xf32> -> vector<4x32x32xf32>
    %101 = vector.shape_cast %100 : vector<4x32x32xf32> to vector<128x32xf32>
    %c0_45 = arith.constant 0 : index
    %c0_46 = arith.constant 0 : index
    %102 = vector.load %arg11[%c0_45, %c0_46] : memref<32x32xf32, #tpu.memory_space<vmem>>, vector<32x32xf32>
    %cst_47 = arith.constant dense<0.000000e+00> : vector<128x32xf32>
    %103 = tpu.matmul %101, %102, %cst_47 {dimension_numbers = #tpu.dot_dimension_numbers<[1], [0], [0], [1], [0, 0, 1, 1], [], []>} : vector<128x32xf32>, vector<32x32xf32>, vector<128x32xf32> -> vector<128x32xf32>
    %c0_48 = arith.constant 0 : index
    %c0_49 = arith.constant 0 : index
    %104 = vector.load %arg12[%c0_48, %c0_49] : memref<1x32xf32, #tpu.memory_space<vmem>>, vector<1x32xf32>
    %105 = vector.broadcast %104 : vector<1x32xf32> to vector<128x32xf32>
    %106 = arith.addf %103, %105 : vector<128x32xf32>
    %107 = arith.addf %1, %106 : vector<128x32xf32>
    %108 = vector.shape_cast %107 : vector<128x32xf32> to vector<4x32x32xf32>
    %c0_50 = arith.constant 0 : index
    %c0_51 = arith.constant 0 : index
    %c0_52 = arith.constant 0 : index
    %109 = vector.load %arg14[%c0_50, %c0_51, %c0_52] : memref<4x32x32xf32, #tpu.memory_space<vmem>>, vector<4x32x32xf32>
    tpu.vector_store %arg14[%c0_50, %c0_51, %c0_52], %108 {strides = array<i32>} : memref<4x32x32xf32, #tpu.memory_space<vmem>>, vector<4x32x32xf32>,
    return
  }
  func.func @transform_0(%arg0: i32) -> (i32, i32, i32) {
    %c0_i32 = arith.constant 0 : i32
    %c0_i32_0 = arith.constant 0 : i32
    %c0_i32_1 = arith.constant 0 : i32
    return %arg0, %c0_i32, %c0_i32_0 : i32, i32, i32
  }
  func.func @transform_1(%arg0: i32) -> (i32, i32, i32) {
    %c0_i32 = arith.constant 0 : i32
    %c0_i32_0 = arith.constant 0 : i32
    %c0_i32_1 = arith.constant 0 : i32
    return %arg0, %c0_i32, %c0_i32_0 : i32, i32, i32
  }
  func.func @transform_2(%arg0: i32) -> (i32, i32) {
    %c0_i32 = arith.constant 0 : i32
    %c0_i32_0 = arith.constant 0 : i32
    %c0_i32_1 = arith.constant 0 : i32
    return %c0_i32, %c0_i32_0 : i32, i32
  }
  func.func @transform_3(%arg0: i32) -> (i32, i32) {
    %c0_i32 = arith.constant 0 : i32
    %c0_i32_0 = arith.constant 0 : i32
    %c0_i32_1 = arith.constant 0 : i32
    return %c0_i32, %c0_i32_0 : i32, i32
  }
  func.func @transform_4(%arg0: i32) -> (i32, i32) {
    %c0_i32 = arith.constant 0 : i32
    %c0_i32_0 = arith.constant 0 : i32
    %c0_i32_1 = arith.constant 0 : i32
    return %c0_i32, %c0_i32_0 : i32, i32
  }
  func.func @transform_5(%arg0: i32) -> (i32, i32) {
    %c0_i32 = arith.constant 0 : i32
    %c0_i32_0 = arith.constant 0 : i32
    %c0_i32_1 = arith.constant 0 : i32
    return %c0_i32, %c0_i32_0 : i32, i32
  }
  func.func @transform_6(%arg0: i32) -> (i32, i32) {
    %c0_i32 = arith.constant 0 : i32
    %c0_i32_0 = arith.constant 0 : i32
    %c0_i32_1 = arith.constant 0 : i32
    return %c0_i32, %c0_i32_0 : i32, i32
  }
  func.func @transform_7(%arg0: i32) -> (i32, i32) {
    %c0_i32 = arith.constant 0 : i32
    %c0_i32_0 = arith.constant 0 : i32
    %c0_i32_1 = arith.constant 0 : i32
    return %c0_i32, %c0_i32_0 : i32, i32
  }
  func.func @transform_8(%arg0: i32) -> (i32, i32) {
    %c0_i32 = arith.constant 0 : i32
    %c0_i32_0 = arith.constant 0 : i32
    %c0_i32_1 = arith.constant 0 : i32
    return %c0_i32, %c0_i32_0 : i32, i32
  }
  func.func @transform_9(%arg0: i32) -> (i32, i32) {
    %c0_i32 = arith.constant 0 : i32
    %c0_i32_0 = arith.constant 0 : i32
    %c0_i32_1 = arith.constant 0 : i32
    return %c0_i32, %c0_i32_0 : i32, i32
  }
  func.func @transform_10(%arg0: i32) -> (i32, i32) {
    %c0_i32 = arith.constant 0 : i32
    %c0_i32_0 = arith.constant 0 : i32
    %c0_i32_1 = arith.constant 0 : i32
    return %c0_i32, %c0_i32_0 : i32, i32
  }
  func.func @transform_11(%arg0: i32) -> (i32, i32) {
    %c0_i32 = arith.constant 0 : i32
    %c0_i32_0 = arith.constant 0 : i32
    %c0_i32_1 = arith.constant 0 : i32
    return %c0_i32, %c0_i32_0 : i32, i32
  }
  func.func @transform_12(%arg0: i32) -> (i32, i32, i32) {
    %c0_i32 = arith.constant 0 : i32
    %c0_i32_0 = arith.constant 0 : i32
    %c0_i32_1 = arith.constant 0 : i32
    %c0_i32_2 = arith.constant 0 : i32
    return %c0_i32, %c0_i32_0, %c0_i32_1 : i32, i32, i32
  }
  func.func @transform_13(%arg0: i32) -> (i32, i32, i32) {
    %c0_i32 = arith.constant 0 : i32
    %c0_i32_0 = arith.constant 0 : i32
    %c0_i32_1 = arith.constant 0 : i32
    return %arg0, %c0_i32, %c0_i32_0 : i32, i32, i32
  }
}

module attributes {stable_mosaic.version = 11 : i64} {
  func.func @_self_attn_kernel(%arg0: i32, %arg1: memref<4x32x32xf32, #tpu.memory_space<vmem>>, %arg2: memref<1x32xf32, #tpu.memory_space<vmem>>, %arg3: memref<1x32xf32, #tpu.memory_space<vmem>>, %arg4: memref<32x96xf32, #tpu.memory_space<vmem>>, %arg5: memref<1x96xf32, #tpu.memory_space<vmem>>, %arg6: memref<32x32xf32, #tpu.memory_space<vmem>>, %arg7: memref<1x32xf32, #tpu.memory_space<vmem>>, %arg8: memref<2x32x32xf32, #tpu.memory_space<vmem>>, %arg9: memref<4x32x32xf32, #tpu.memory_space<vmem>>) attributes {dimension_semantics = [#tpu.dimension_semantics<parallel>], iteration_bounds = array<i64: 2>, scalar_prefetch = 0 : i64, scratch_operands = 0 : i64, tpu.core_type = #tpu.core_type<tc>, window_params = [{transform_indices = @transform_0, window_bounds = array<i64: 4, 32, 32>}, {pipeline_mode = #tpu.pipeline_mode<synchronous>, transform_indices = @transform_1, window_bounds = array<i64: 1, 32>}, {pipeline_mode = #tpu.pipeline_mode<synchronous>, transform_indices = @transform_2, window_bounds = array<i64: 1, 32>}, {pipeline_mode = #tpu.pipeline_mode<synchronous>, transform_indices = @transform_3, window_bounds = array<i64: 32, 96>}, {pipeline_mode = #tpu.pipeline_mode<synchronous>, transform_indices = @transform_4, window_bounds = array<i64: 1, 96>}, {pipeline_mode = #tpu.pipeline_mode<synchronous>, transform_indices = @transform_5, window_bounds = array<i64: 32, 32>}, {pipeline_mode = #tpu.pipeline_mode<synchronous>, transform_indices = @transform_6, window_bounds = array<i64: 1, 32>}, {pipeline_mode = #tpu.pipeline_mode<synchronous>, transform_indices = @transform_7, window_bounds = array<i64: 2, 32, 32>}, {transform_indices = @transform_8, window_bounds = array<i64: 4, 32, 32>}]} {
    %c0 = arith.constant 0 : index
    %c0_0 = arith.constant 0 : index
    %c0_1 = arith.constant 0 : index
    %0 = vector.load %arg1[%c0, %c0_0, %c0_1] : memref<4x32x32xf32, #tpu.memory_space<vmem>>, vector<4x32x32xf32>
    %1 = vector.shape_cast %0 : vector<4x32x32xf32> to vector<128x32xf32>
    %c0_2 = arith.constant 0 : index
    %c0_3 = arith.constant 0 : index
    %2 = vector.load %arg2[%c0_2, %c0_3] : memref<1x32xf32, #tpu.memory_space<vmem>>, vector<1x32xf32>
    %c0_4 = arith.constant 0 : index
    %c0_5 = arith.constant 0 : index
    %3 = vector.load %arg3[%c0_4, %c0_5] : memref<1x32xf32, #tpu.memory_space<vmem>>, vector<1x32xf32>
    %cst = arith.constant dense<0.000000e+00> : vector<128xf32>
    %4 = vector.multi_reduction <add>, %1, %cst [1] : vector<128x32xf32> to vector<128xf32>
    %5 = vector.shape_cast %4 : vector<128xf32> to vector<128x1xf32>
    %cst_6 = arith.constant 3.200000e+01 : f32
    %6 = vector.broadcast %cst_6 : f32 to vector<128x1xf32>
    %7 = arith.divf %5, %6 : vector<128x1xf32>
    %8 = vector.broadcast %7 : vector<128x1xf32> to vector<128x32xf32>
    %9 = arith.subf %1, %8 : vector<128x32xf32>
    %10 = arith.mulf %9, %9 : vector<128x32xf32>
    %cst_7 = arith.constant dense<0.000000e+00> : vector<128xf32>
    %11 = vector.multi_reduction <add>, %10, %cst_7 [1] : vector<128x32xf32> to vector<128xf32>
    %12 = vector.shape_cast %11 : vector<128xf32> to vector<128x1xf32>
    %cst_8 = arith.constant 3.200000e+01 : f32
    %13 = vector.broadcast %cst_8 : f32 to vector<128x1xf32>
    %14 = arith.divf %12, %13 : vector<128x1xf32>
    %cst_9 = arith.constant 9.99999974E-6 : f32
    %15 = vector.broadcast %cst_9 : f32 to vector<128x1xf32>
    %16 = arith.addf %14, %15 : vector<128x1xf32>
    %17 = math.rsqrt %16 : vector<128x1xf32>
    %18 = vector.broadcast %17 : vector<128x1xf32> to vector<128x32xf32>
    %19 = arith.mulf %9, %18 : vector<128x32xf32>
    %20 = vector.broadcast %2 : vector<1x32xf32> to vector<128x32xf32>
    %21 = arith.mulf %19, %20 : vector<128x32xf32>
    %22 = vector.broadcast %3 : vector<1x32xf32> to vector<128x32xf32>
    %23 = arith.addf %21, %22 : vector<128x32xf32>
    %c0_10 = arith.constant 0 : index
    %c0_11 = arith.constant 0 : index
    %24 = vector.load %arg4[%c0_10, %c0_11] : memref<32x96xf32, #tpu.memory_space<vmem>>, vector<32x96xf32>
    %cst_12 = arith.constant dense<0.000000e+00> : vector<128x96xf32>
    %25 = tpu.matmul %23, %24, %cst_12 {dimension_numbers = #tpu.dot_dimension_numbers<[1], [0], [0], [1], [0, 0, 1, 1], [], []>} : vector<128x32xf32>, vector<32x96xf32>, vector<128x96xf32> -> vector<128x96xf32>
    %c0_13 = arith.constant 0 : index
    %c0_14 = arith.constant 0 : index
    %26 = vector.load %arg5[%c0_13, %c0_14] : memref<1x96xf32, #tpu.memory_space<vmem>>, vector<1x96xf32>
    %27 = vector.broadcast %26 : vector<1x96xf32> to vector<128x96xf32>
    %28 = arith.addf %25, %27 : vector<128x96xf32>
    %29 = vector.shape_cast %28 : vector<128x96xf32> to vector<4x32x96xf32>
    %30 = vector.extract_strided_slice %29 {offsets = [0, 0, 0], sizes = [4, 32, 32], strides = [1, 1, 1]} : vector<4x32x96xf32> to vector<4x32x32xf32>
    %31 = vector.extract_strided_slice %30 {offsets = [0, 0, 0], sizes = [4, 32, 16], strides = [1, 1, 1]} : vector<4x32x32xf32> to vector<4x32x16xf32>
    %32 = vector.extract_strided_slice %29 {offsets = [0, 0, 32], sizes = [4, 32, 16], strides = [1, 1, 1]} : vector<4x32x96xf32> to vector<4x32x16xf32>
    %33 = vector.extract_strided_slice %29 {offsets = [0, 0, 64], sizes = [4, 32, 16], strides = [1, 1, 1]} : vector<4x32x96xf32> to vector<4x32x16xf32>
    "tpu.trace_start"() <{level = 10 : i32, message = "wnd,wmd->wnm"}> : () -> ()
    %cst_15 = arith.constant dense<0.000000e+00> : vector<4x32x32xf32>
    %34 = tpu.matmul %31, %32, %cst_15 {dimension_numbers = #tpu.dot_dimension_numbers<[2], [2], [1], [1], [0, 0, 0, 1, 1, 1], [0], [0]>} : vector<4x32x16xf32>, vector<4x32x16xf32>, vector<4x32x32xf32> -> vector<4x32x32xf32>
    "tpu.trace_stop"() : () -> ()
    %c0_16 = arith.constant 0 : index
    %c0_17 = arith.constant 0 : index
    %c0_18 = arith.constant 0 : index
    %35 = vector.load %arg8[%c0_16, %c0_17, %c0_18] : memref<2x32x32xf32, #tpu.memory_space<vmem>>, vector<1x32x32xf32>
    %36 = vector.shape_cast %35 : vector<1x32x32xf32> to vector<32x32xf32>
    %37 = vector.shape_cast %36 : vector<32x32xf32> to vector<1x32x32xf32>
    %38 = vector.broadcast %37 : vector<1x32x32xf32> to vector<4x32x32xf32>
    %39 = arith.addf %34, %38 : vector<4x32x32xf32>
    %cst_19 = arith.constant dense<0xFF800000> : vector<4x32xf32>
    %40 = vector.multi_reduction <maximumf>, %39, %cst_19 [2] : vector<4x32x32xf32> to vector<4x32xf32>
    %41 = vector.shape_cast %40 : vector<4x32xf32> to vector<4x32x1xf32>
    %42 = vector.broadcast %41 : vector<4x32x1xf32> to vector<4x32x32xf32>
    %43 = arith.subf %39, %42 : vector<4x32x32xf32>
    %44 = math.exp %43 : vector<4x32x32xf32>
    %cst_20 = arith.constant dense<0.000000e+00> : vector<4x32xf32>
    %45 = vector.multi_reduction <add>, %44, %cst_20 [2] : vector<4x32x32xf32> to vector<4x32xf32>
    %46 = vector.shape_cast %45 : vector<4x32xf32> to vector<4x32x1xf32>
    %47 = tpu.reciprocal %46 {approx = true} : vector<4x32x1xf32> -> vector<4x32x1xf32>
    %48 = vector.broadcast %47 : vector<4x32x1xf32> to vector<4x32x32xf32>
    %49 = arith.mulf %44, %48 : vector<4x32x32xf32>
    "tpu.trace_start"() <{level = 10 : i32, message = "wnm,wmd->wnd"}> : () -> ()
    %cst_21 = arith.constant dense<0.000000e+00> : vector<4x32x16xf32>
    %50 = tpu.matmul %49, %33, %cst_21 {dimension_numbers = #tpu.dot_dimension_numbers<[2], [1], [1], [2], [0, 0, 0, 1, 1, 2], [0], [0]>} : vector<4x32x32xf32>, vector<4x32x16xf32>, vector<4x32x16xf32> -> vector<4x32x16xf32>
    "tpu.trace_stop"() : () -> ()
    %51 = vector.extract_strided_slice %30 {offsets = [0, 0, 16], sizes = [4, 32, 16], strides = [1, 1, 1]} : vector<4x32x32xf32> to vector<4x32x16xf32>
    %52 = vector.extract_strided_slice %29 {offsets = [0, 0, 48], sizes = [4, 32, 16], strides = [1, 1, 1]} : vector<4x32x96xf32> to vector<4x32x16xf32>
    %53 = vector.extract_strided_slice %29 {offsets = [0, 0, 80], sizes = [4, 32, 16], strides = [1, 1, 1]} : vector<4x32x96xf32> to vector<4x32x16xf32>
    "tpu.trace_start"() <{level = 10 : i32, message = "wnd,wmd->wnm"}> : () -> ()
    %cst_22 = arith.constant dense<0.000000e+00> : vector<4x32x32xf32>
    %54 = tpu.matmul %51, %52, %cst_22 {dimension_numbers = #tpu.dot_dimension_numbers<[2], [2], [1], [1], [0, 0, 0, 1, 1, 1], [0], [0]>} : vector<4x32x16xf32>, vector<4x32x16xf32>, vector<4x32x32xf32> -> vector<4x32x32xf32>
    "tpu.trace_stop"() : () -> ()
    %c1 = arith.constant 1 : index
    %c0_23 = arith.constant 0 : index
    %c0_24 = arith.constant 0 : index
    %55 = vector.load %arg8[%c1, %c0_23, %c0_24] : memref<2x32x32xf32, #tpu.memory_space<vmem>>, vector<1x32x32xf32>
    %56 = vector.shape_cast %55 : vector<1x32x32xf32> to vector<32x32xf32>
    %57 = vector.shape_cast %56 : vector<32x32xf32> to vector<1x32x32xf32>
    %58 = vector.broadcast %57 : vector<1x32x32xf32> to vector<4x32x32xf32>
    %59 = arith.addf %54, %58 : vector<4x32x32xf32>
    %cst_25 = arith.constant dense<0xFF800000> : vector<4x32xf32>
    %60 = vector.multi_reduction <maximumf>, %59, %cst_25 [2] : vector<4x32x32xf32> to vector<4x32xf32>
    %61 = vector.shape_cast %60 : vector<4x32xf32> to vector<4x32x1xf32>
    %62 = vector.broadcast %61 : vector<4x32x1xf32> to vector<4x32x32xf32>
    %63 = arith.subf %59, %62 : vector<4x32x32xf32>
    %64 = math.exp %63 : vector<4x32x32xf32>
    %cst_26 = arith.constant dense<0.000000e+00> : vector<4x32xf32>
    %65 = vector.multi_reduction <add>, %64, %cst_26 [2] : vector<4x32x32xf32> to vector<4x32xf32>
    %66 = vector.shape_cast %65 : vector<4x32xf32> to vector<4x32x1xf32>
    %67 = tpu.reciprocal %66 {approx = true} : vector<4x32x1xf32> -> vector<4x32x1xf32>
    %68 = vector.broadcast %67 : vector<4x32x1xf32> to vector<4x32x32xf32>
    %69 = arith.mulf %64, %68 : vector<4x32x32xf32>
    "tpu.trace_start"() <{level = 10 : i32, message = "wnm,wmd->wnd"}> : () -> ()
    %cst_27 = arith.constant dense<0.000000e+00> : vector<4x32x16xf32>
    %70 = tpu.matmul %69, %53, %cst_27 {dimension_numbers = #tpu.dot_dimension_numbers<[2], [1], [1], [2], [0, 0, 0, 1, 1, 2], [0], [0]>} : vector<4x32x32xf32>, vector<4x32x16xf32>, vector<4x32x16xf32> -> vector<4x32x16xf32>
    "tpu.trace_stop"() : () -> ()
    %71 = tpu.concatenate %50, %70 in 2 : vector<4x32x16xf32>, vector<4x32x16xf32> -> vector<4x32x32xf32>
    %72 = vector.shape_cast %71 : vector<4x32x32xf32> to vector<128x32xf32>
    %c0_28 = arith.constant 0 : index
    %c0_29 = arith.constant 0 : index
    %73 = vector.load %arg6[%c0_28, %c0_29] : memref<32x32xf32, #tpu.memory_space<vmem>>, vector<32x32xf32>
    %cst_30 = arith.constant dense<0.000000e+00> : vector<128x32xf32>
    %74 = tpu.matmul %72, %73, %cst_30 {dimension_numbers = #tpu.dot_dimension_numbers<[1], [0], [0], [1], [0, 0, 1, 1], [], []>} : vector<128x32xf32>, vector<32x32xf32>, vector<128x32xf32> -> vector<128x32xf32>
    %c0_31 = arith.constant 0 : index
    %c0_32 = arith.constant 0 : index
    %75 = vector.load %arg7[%c0_31, %c0_32] : memref<1x32xf32, #tpu.memory_space<vmem>>, vector<1x32xf32>
    %76 = vector.broadcast %75 : vector<1x32xf32> to vector<128x32xf32>
    %77 = arith.addf %74, %76 : vector<128x32xf32>
    %78 = arith.addf %1, %77 : vector<128x32xf32>
    %79 = vector.shape_cast %78 : vector<128x32xf32> to vector<4x32x32xf32>
    %c0_33 = arith.constant 0 : index
    %c0_34 = arith.constant 0 : index
    %c0_35 = arith.constant 0 : index
    %80 = vector.load %arg9[%c0_33, %c0_34, %c0_35] : memref<4x32x32xf32, #tpu.memory_space<vmem>>, vector<4x32x32xf32>
    tpu.vector_store %arg9[%c0_33, %c0_34, %c0_35], %79 {strides = array<i32>} : memref<4x32x32xf32, #tpu.memory_space<vmem>>, vector<4x32x32xf32>,
    return
  }
  func.func @transform_0(%arg0: i32) -> (i32, i32, i32) {
    %c0_i32 = arith.constant 0 : i32
    %c0_i32_0 = arith.constant 0 : i32
    %c0_i32_1 = arith.constant 0 : i32
    return %arg0, %c0_i32, %c0_i32_0 : i32, i32, i32
  }
  func.func @transform_1(%arg0: i32) -> (i32, i32) {
    %c0_i32 = arith.constant 0 : i32
    %c0_i32_0 = arith.constant 0 : i32
    %c0_i32_1 = arith.constant 0 : i32
    return %c0_i32, %c0_i32_0 : i32, i32
  }
  func.func @transform_2(%arg0: i32) -> (i32, i32) {
    %c0_i32 = arith.constant 0 : i32
    %c0_i32_0 = arith.constant 0 : i32
    %c0_i32_1 = arith.constant 0 : i32
    return %c0_i32, %c0_i32_0 : i32, i32
  }
  func.func @transform_3(%arg0: i32) -> (i32, i32) {
    %c0_i32 = arith.constant 0 : i32
    %c0_i32_0 = arith.constant 0 : i32
    %c0_i32_1 = arith.constant 0 : i32
    return %c0_i32, %c0_i32_0 : i32, i32
  }
  func.func @transform_4(%arg0: i32) -> (i32, i32) {
    %c0_i32 = arith.constant 0 : i32
    %c0_i32_0 = arith.constant 0 : i32
    %c0_i32_1 = arith.constant 0 : i32
    return %c0_i32, %c0_i32_0 : i32, i32
  }
  func.func @transform_5(%arg0: i32) -> (i32, i32) {
    %c0_i32 = arith.constant 0 : i32
    %c0_i32_0 = arith.constant 0 : i32
    %c0_i32_1 = arith.constant 0 : i32
    return %c0_i32, %c0_i32_0 : i32, i32
  }
  func.func @transform_6(%arg0: i32) -> (i32, i32) {
    %c0_i32 = arith.constant 0 : i32
    %c0_i32_0 = arith.constant 0 : i32
    %c0_i32_1 = arith.constant 0 : i32
    return %c0_i32, %c0_i32_0 : i32, i32
  }
  func.func @transform_7(%arg0: i32) -> (i32, i32, i32) {
    %c0_i32 = arith.constant 0 : i32
    %c0_i32_0 = arith.constant 0 : i32
    %c0_i32_1 = arith.constant 0 : i32
    %c0_i32_2 = arith.constant 0 : i32
    return %c0_i32, %c0_i32_0, %c0_i32_1 : i32, i32, i32
  }
  func.func @transform_8(%arg0: i32) -> (i32, i32, i32) {
    %c0_i32 = arith.constant 0 : i32
    %c0_i32_0 = arith.constant 0 : i32
    %c0_i32_1 = arith.constant 0 : i32
    return %arg0, %c0_i32, %c0_i32_0 : i32, i32, i32
  }
}

module attributes {stable_mosaic.version = 11 : i64} {
  func.func @_mlp_kernel(%arg0: i32, %arg1: memref<128x32xf32, #tpu.memory_space<vmem>>, %arg2: memref<1x32xf32, #tpu.memory_space<vmem>>, %arg3: memref<1x32xf32, #tpu.memory_space<vmem>>, %arg4: memref<32x64xf32, #tpu.memory_space<vmem>>, %arg5: memref<1x64xf32, #tpu.memory_space<vmem>>, %arg6: memref<64x32xf32, #tpu.memory_space<vmem>>, %arg7: memref<1x32xf32, #tpu.memory_space<vmem>>, %arg8: memref<128x32xf32, #tpu.memory_space<vmem>>) attributes {dimension_semantics = [#tpu.dimension_semantics<parallel>], iteration_bounds = array<i64: 2>, scalar_prefetch = 0 : i64, scratch_operands = 0 : i64, tpu.core_type = #tpu.core_type<tc>, window_params = [{transform_indices = @transform_0, window_bounds = array<i64: 128, 32>}, {pipeline_mode = #tpu.pipeline_mode<synchronous>, transform_indices = @transform_1, window_bounds = array<i64: 1, 32>}, {pipeline_mode = #tpu.pipeline_mode<synchronous>, transform_indices = @transform_2, window_bounds = array<i64: 1, 32>}, {pipeline_mode = #tpu.pipeline_mode<synchronous>, transform_indices = @transform_3, window_bounds = array<i64: 32, 64>}, {pipeline_mode = #tpu.pipeline_mode<synchronous>, transform_indices = @transform_4, window_bounds = array<i64: 1, 64>}, {pipeline_mode = #tpu.pipeline_mode<synchronous>, transform_indices = @transform_5, window_bounds = array<i64: 64, 32>}, {pipeline_mode = #tpu.pipeline_mode<synchronous>, transform_indices = @transform_6, window_bounds = array<i64: 1, 32>}, {transform_indices = @transform_7, window_bounds = array<i64: 128, 32>}]} {
    %c0 = arith.constant 0 : index
    %c0_0 = arith.constant 0 : index
    %0 = vector.load %arg1[%c0, %c0_0] : memref<128x32xf32, #tpu.memory_space<vmem>>, vector<128x32xf32>
    %c0_1 = arith.constant 0 : index
    %c0_2 = arith.constant 0 : index
    %1 = vector.load %arg2[%c0_1, %c0_2] : memref<1x32xf32, #tpu.memory_space<vmem>>, vector<1x32xf32>
    %c0_3 = arith.constant 0 : index
    %c0_4 = arith.constant 0 : index
    %2 = vector.load %arg3[%c0_3, %c0_4] : memref<1x32xf32, #tpu.memory_space<vmem>>, vector<1x32xf32>
    %cst = arith.constant dense<0.000000e+00> : vector<128xf32>
    %3 = vector.multi_reduction <add>, %0, %cst [1] : vector<128x32xf32> to vector<128xf32>
    %4 = vector.shape_cast %3 : vector<128xf32> to vector<128x1xf32>
    %cst_5 = arith.constant 3.200000e+01 : f32
    %5 = vector.broadcast %cst_5 : f32 to vector<128x1xf32>
    %6 = arith.divf %4, %5 : vector<128x1xf32>
    %7 = vector.broadcast %6 : vector<128x1xf32> to vector<128x32xf32>
    %8 = arith.subf %0, %7 : vector<128x32xf32>
    %9 = arith.mulf %8, %8 : vector<128x32xf32>
    %cst_6 = arith.constant dense<0.000000e+00> : vector<128xf32>
    %10 = vector.multi_reduction <add>, %9, %cst_6 [1] : vector<128x32xf32> to vector<128xf32>
    %11 = vector.shape_cast %10 : vector<128xf32> to vector<128x1xf32>
    %cst_7 = arith.constant 3.200000e+01 : f32
    %12 = vector.broadcast %cst_7 : f32 to vector<128x1xf32>
    %13 = arith.divf %11, %12 : vector<128x1xf32>
    %cst_8 = arith.constant 9.99999974E-6 : f32
    %14 = vector.broadcast %cst_8 : f32 to vector<128x1xf32>
    %15 = arith.addf %13, %14 : vector<128x1xf32>
    %16 = math.rsqrt %15 : vector<128x1xf32>
    %17 = vector.broadcast %16 : vector<128x1xf32> to vector<128x32xf32>
    %18 = arith.mulf %8, %17 : vector<128x32xf32>
    %19 = vector.broadcast %1 : vector<1x32xf32> to vector<128x32xf32>
    %20 = arith.mulf %18, %19 : vector<128x32xf32>
    %21 = vector.broadcast %2 : vector<1x32xf32> to vector<128x32xf32>
    %22 = arith.addf %20, %21 : vector<128x32xf32>
    %c0_9 = arith.constant 0 : index
    %c0_10 = arith.constant 0 : index
    %23 = vector.load %arg4[%c0_9, %c0_10] : memref<32x64xf32, #tpu.memory_space<vmem>>, vector<32x64xf32>
    %cst_11 = arith.constant dense<0.000000e+00> : vector<128x64xf32>
    %24 = tpu.matmul %22, %23, %cst_11 {dimension_numbers = #tpu.dot_dimension_numbers<[1], [0], [0], [1], [0, 0, 1, 1], [], []>} : vector<128x32xf32>, vector<32x64xf32>, vector<128x64xf32> -> vector<128x64xf32>
    %c0_12 = arith.constant 0 : index
    %c0_13 = arith.constant 0 : index
    %25 = vector.load %arg5[%c0_12, %c0_13] : memref<1x64xf32, #tpu.memory_space<vmem>>, vector<1x64xf32>
    %26 = vector.broadcast %25 : vector<1x64xf32> to vector<128x64xf32>
    %27 = arith.addf %24, %26 : vector<128x64xf32>
    %cst_14 = arith.constant 5.000000e-01 : f32
    %28 = vector.broadcast %cst_14 : f32 to vector<128x64xf32>
    %29 = arith.mulf %28, %27 : vector<128x64xf32>
    %cst_15 = arith.constant 4.471500e-02 : f32
    %30 = vector.broadcast %cst_15 : f32 to vector<128x64xf32>
    %31 = arith.mulf %30, %27 : vector<128x64xf32>
    %32 = arith.mulf %31, %27 : vector<128x64xf32>
    %33 = arith.mulf %32, %27 : vector<128x64xf32>
    %34 = arith.addf %27, %33 : vector<128x64xf32>
    %cst_16 = arith.constant 0.797884583 : f32
    %35 = vector.broadcast %cst_16 : f32 to vector<128x64xf32>
    %36 = arith.mulf %35, %34 : vector<128x64xf32>
    %37 = math.tanh %36 : vector<128x64xf32>
    %cst_17 = arith.constant 1.000000e+00 : f32
    %38 = vector.broadcast %cst_17 : f32 to vector<128x64xf32>
    %39 = arith.addf %38, %37 : vector<128x64xf32>
    %40 = arith.mulf %29, %39 : vector<128x64xf32>
    %c0_18 = arith.constant 0 : index
    %c0_19 = arith.constant 0 : index
    %41 = vector.load %arg6[%c0_18, %c0_19] : memref<64x32xf32, #tpu.memory_space<vmem>>, vector<64x32xf32>
    %cst_20 = arith.constant dense<0.000000e+00> : vector<128x32xf32>
    %42 = tpu.matmul %40, %41, %cst_20 {dimension_numbers = #tpu.dot_dimension_numbers<[1], [0], [0], [1], [0, 0, 1, 1], [], []>} : vector<128x64xf32>, vector<64x32xf32>, vector<128x32xf32> -> vector<128x32xf32>
    %c0_21 = arith.constant 0 : index
    %c0_22 = arith.constant 0 : index
    %43 = vector.load %arg7[%c0_21, %c0_22] : memref<1x32xf32, #tpu.memory_space<vmem>>, vector<1x32xf32>
    %44 = vector.broadcast %43 : vector<1x32xf32> to vector<128x32xf32>
    %45 = arith.addf %42, %44 : vector<128x32xf32>
    %46 = arith.addf %0, %45 : vector<128x32xf32>
    %c0_23 = arith.constant 0 : index
    %c0_24 = arith.constant 0 : index
    %47 = vector.load %arg8[%c0_23, %c0_24] : memref<128x32xf32, #tpu.memory_space<vmem>>, vector<128x32xf32>
    tpu.vector_store %arg8[%c0_23, %c0_24], %46 {strides = array<i32>} : memref<128x32xf32, #tpu.memory_space<vmem>>, vector<128x32xf32>,
    return
  }
  func.func @transform_0(%arg0: i32) -> (i32, i32) {
    %c0_i32 = arith.constant 0 : i32
    %c0_i32_0 = arith.constant 0 : i32
    return %arg0, %c0_i32 : i32, i32
  }
  func.func @transform_1(%arg0: i32) -> (i32, i32) {
    %c0_i32 = arith.constant 0 : i32
    %c0_i32_0 = arith.constant 0 : i32
    %c0_i32_1 = arith.constant 0 : i32
    return %c0_i32, %c0_i32_0 : i32, i32
  }
  func.func @transform_2(%arg0: i32) -> (i32, i32) {
    %c0_i32 = arith.constant 0 : i32
    %c0_i32_0 = arith.constant 0 : i32
    %c0_i32_1 = arith.constant 0 : i32
    return %c0_i32, %c0_i32_0 : i32, i32
  }
  func.func @transform_3(%arg0: i32) -> (i32, i32) {
    %c0_i32 = arith.constant 0 : i32
    %c0_i32_0 = arith.constant 0 : i32
    %c0_i32_1 = arith.constant 0 : i32
    return %c0_i32, %c0_i32_0 : i32, i32
  }
  func.func @transform_4(%arg0: i32) -> (i32, i32) {
    %c0_i32 = arith.constant 0 : i32
    %c0_i32_0 = arith.constant 0 : i32
    %c0_i32_1 = arith.constant 0 : i32
    return %c0_i32, %c0_i32_0 : i32, i32
  }
  func.func @transform_5(%arg0: i32) -> (i32, i32) {
    %c0_i32 = arith.constant 0 : i32
    %c0_i32_0 = arith.constant 0 : i32
    %c0_i32_1 = arith.constant 0 : i32
    return %c0_i32, %c0_i32_0 : i32, i32
  }
  func.func @transform_6(%arg0: i32) -> (i32, i32) {
    %c0_i32 = arith.constant 0 : i32
    %c0_i32_0 = arith.constant 0 : i32
    %c0_i32_1 = arith.constant 0 : i32
    return %c0_i32, %c0_i32_0 : i32, i32
  }
  func.func @transform_7(%arg0: i32) -> (i32, i32) {
    %c0_i32 = arith.constant 0 : i32
    %c0_i32_0 = arith.constant 0 : i32
    return %arg0, %c0_i32 : i32, i32
  }
}

</mosaic_0001>

<llo_original>
// kernel: _lambda_.4
$region0: #{_lambda_.4}
  #allocation0 [shape = 'u32[]', space=smem, size = 0x4, offset = 0x4, fixed_abs, tag = 'smem constant byte address 0x4 - core index']
  #allocation1 [shape = 'u32[144,128]{1,0:T(1,128)}', space=vmem, size = 0x12000, scoped, tag = 'internal scratch']
  %s0 = inlined_call_operand.vmem [shape: f32[8,32,32], index: 0, kind: input, shape index: {}]
  %s1 = inlined_call_operand.vmem [shape: f32[8,32,32], index: 1, kind: input, shape index: {}]
  %s2 = inlined_call_operand.vmem [shape: f32[1,32], index: 2, kind: input, shape index: {}]
  %s3 = inlined_call_operand.vmem [shape: f32[1,32], index: 3, kind: input, shape index: {}]
  %s4 = inlined_call_operand.vmem [shape: f32[1,32], index: 4, kind: input, shape index: {}]
  %s5 = inlined_call_operand.vmem [shape: f32[1,32], index: 5, kind: input, shape index: {}]
  %s6 = inlined_call_operand.vmem [shape: f32[32,32], index: 6, kind: input, shape index: {}]
  %s7 = inlined_call_operand.vmem [shape: f32[1,32], index: 7, kind: input, shape index: {}]
  %s8 = inlined_call_operand.vmem [shape: f32[32,64], index: 8, kind: input, shape index: {}]
  %s9 = inlined_call_operand.vmem [shape: f32[1,64], index: 9, kind: input, shape index: {}]
  %s10 = inlined_call_operand.vmem [shape: f32[32,32], index: 10, kind: input, shape index: {}]
  %s11 = inlined_call_operand.vmem [shape: f32[1,32], index: 11, kind: input, shape index: {}]
  %s12 = inlined_call_operand.vmem [shape: f32[2,32,32], index: 12, kind: input, shape index: {}]
  %s13 = inlined_call_operand.vmem [shape: f32[8,32,32], index: 13, kind: output, shape index: {}]
  %s14 = sld [smem:[#allocation0]]
  $region85: #{_lambda_.4} parent=0
    _
  %s16 = ssub.s32 1, %s14
  %s17 = scalar_select 0, %s16, %s14
  loop: start=0, step=1, limit=4
  $region2: #{_lambda_.4} parent=0 // loop_pre_header
    _
  $region3: #{_lambda_.4} parent=0 // loop_header
    %s19 = sphi 0, %s23
    %p20 = scmp.ge.s32.totalorder %s19, 4
    %s29 = sphi 0, %s31
    %s32 = sphi 0, %s29
    %s33 = sphi 0, %s32
    %s49 = sphi 0, %s33
    %s55 = sphi 0, %s57
    %s58 = sphi 0, %s55
    %s59 = sphi 0, %s58
    %s75 = sphi 0, %s59
    %s79 = sphi 0, %s79
    %s81 = sphi 0, %s79
    %s82 = sphi 0, %s81
    %s96 = sphi 0, %s82
    %s100 = sphi 0, %s100
    %s102 = sphi 0, %s100
    %s103 = sphi 0, %s102
    %s117 = sphi 0, %s103
    %s121 = sphi 0, %s121
    %s123 = sphi 0, %s121
    %s124 = sphi 0, %s123
    %s138 = sphi 0, %s124
    %s142 = sphi 0, %s142
    %s144 = sphi 0, %s142
    %s145 = sphi 0, %s144
    %s159 = sphi 0, %s145
    %s163 = sphi 0, %s163
    %s165 = sphi 0, %s163
    %s166 = sphi 0, %s165
    %s180 = sphi 0, %s166
    %s184 = sphi 0, %s184
    %s186 = sphi 0, %s184
    %s187 = sphi 0, %s186
    %s201 = sphi 0, %s187
    %s205 = sphi 0, %s205
    %s207 = sphi 0, %s205
    %s208 = sphi 0, %s207
    %s222 = sphi 0, %s208
    %s226 = sphi 0, %s226
    %s228 = sphi 0, %s226
    %s229 = sphi 0, %s228
    %s243 = sphi 0, %s229
    %s247 = sphi 0, %s247
    %s249 = sphi 0, %s247
    %s250 = sphi 0, %s249
    %s264 = sphi 0, %s250
    %s268 = sphi 0, %s268
    %s270 = sphi 0, %s268
    %s271 = sphi 0, %s270
    %s285 = sphi 0, %s271
    %s289 = sphi 0, %s289
    %s291 = sphi 0, %s289
    %s292 = sphi 0, %s291
    %s306 = sphi 0, %s292
    %s312 = sphi 0, %s314
    %s315 = sphi 0, %s312
    %s316 = sphi 0, %s315
    %s332 = sphi 0, %s316
  $region4: #{_lambda_.4} parent=0 // loop_header_branch
    %22 = sbr.rel (%p20) target = $region8
  $region5: #{_lambda_.4} parent=0 // loop_body
    %s24 = ssub.s32 %s19, 1
    %s25 = ssub.s32 %s19, 2
    %s26 = sadd.s32 %s19, 1
    %s27 = ssub.s32 %s19, %s26
    %p28 = scmp.eq.s32.totalorder %s27, 0
    %s30 = sadd.s32 %s29, 1
    %s31 = scalar_select %p28, %s29, %s30
    %p34 = pneg %p28
    %p35 = scmp.eq.s32.totalorder %s19, 1
    %p36 = por %p34, %p35
    %p37 = scmp.ne.s32.totalorder %s29, %s32
    %p38 = scmp.eq.s32.totalorder %s19, 0
    %p39 = por %p37, %p38
    %p40 = scmp.ne.s32.totalorder %s29, %s32
    %p41 = scmp.eq.s32.totalorder %s24, 1
    %p42 = por %p40, %p41
    %p43 = scmp.ne.s32.totalorder %s32, %s33
    %p44 = scmp.eq.s32.totalorder %s24, 0
    %p45 = por %p43, %p44
    %p46 = scmp.ne.s32.totalorder %s32, %s33
    %p47 = scmp.eq.s32.totalorder %s25, 1
    %p48 = por %p46, %p47
    %p50 = scmp.ne.s32.totalorder %s33, %s49
    %p51 = scmp.eq.s32.totalorder %s25, 0
    %p52 = por %p50, %p51
    %s53 = ssub.s32 %s19, %s26
    %p54 = scmp.eq.s32.totalorder %s53, 0
    %s56 = sadd.s32 %s55, 1
    %s57 = scalar_select %p54, %s55, %s56
    %p60 = pneg %p54
    %p61 = scmp.eq.s32.totalorder %s19, 1
    %p62 = por %p60, %p61
    %p63 = scmp.ne.s32.totalorder %s55, %s58
    %p64 = scmp.eq.s32.totalorder %s19, 0
    %p65 = por %p63, %p64
    %p66 = scmp.ne.s32.totalorder %s55, %s58
    %p67 = scmp.eq.s32.totalorder %s24, 1
    %p68 = por %p66, %p67
    %p69 = scmp.ne.s32.totalorder %s58, %s59
    %p70 = scmp.eq.s32.totalorder %s24, 0
    %p71 = por %p69, %p70
    %p72 = scmp.ne.s32.totalorder %s58, %s59
    %p73 = scmp.eq.s32.totalorder %s25, 1
    %p74 = por %p72, %p73
    %p76 = scmp.ne.s32.totalorder %s59, %s75
    %p77 = scmp.eq.s32.totalorder %s25, 0
    %p78 = por %p76, %p77
    %s80 = sadd.s32 %s79, 1
    %p83 = scmp.eq.s32.totalorder %s19, 1
    %p84 = scmp.ne.s32.totalorder %s79, %s81
    %p85 = scmp.eq.s32.totalorder %s19, 0
    %p86 = por %p84, %p85
    %p87 = scmp.ne.s32.totalorder %s79, %s81
    %p88 = scmp.eq.s32.totalorder %s24, 1
    %p89 = por %p87, %p88
    %p90 = scmp.ne.s32.totalorder %s81, %s82
    %p91 = scmp.eq.s32.totalorder %s24, 0
    %p92 = por %p90, %p91
    %p93 = scmp.ne.s32.totalorder %s81, %s82
    %p94 = scmp.eq.s32.totalorder %s25, 1
    %p95 = por %p93, %p94
    %p97 = scmp.ne.s32.totalorder %s82, %s96
    %p98 = scmp.eq.s32.totalorder %s25, 0
    %p99 = por %p97, %p98
    %s101 = sadd.s32 %s100, 1
    %p104 = scmp.eq.s32.totalorder %s19, 1
    %p105 = scmp.ne.s32.totalorder %s100, %s102
    %p106 = scmp.eq.s32.totalorder %s19, 0
    %p107 = por %p105, %p106
    %p108 = scmp.ne.s32.totalorder %s100, %s102
    %p109 = scmp.eq.s32.totalorder %s24, 1
    %p110 = por %p108, %p109
    %p111 = scmp.ne.s32.totalorder %s102, %s103
    %p112 = scmp.eq.s32.totalorder %s24, 0
    %p113 = por %p111, %p112
    %p114 = scmp.ne.s32.totalorder %s102, %s103
    %p115 = scmp.eq.s32.totalorder %s25, 1
    %p116 = por %p114, %p115
    %p118 = scmp.ne.s32.totalorder %s103, %s117
    %p119 = scmp.eq.s32.totalorder %s25, 0
    %p120 = por %p118, %p119
    %s122 = sadd.s32 %s121, 1
    %p125 = scmp.eq.s32.totalorder %s19, 1
    %p126 = scmp.ne.s32.totalorder %s121, %s123
    %p127 = scmp.eq.s32.totalorder %s19, 0
    %p128 = por %p126, %p127
    %p129 = scmp.ne.s32.totalorder %s121, %s123
    %p130 = scmp.eq.s32.totalorder %s24, 1
    %p131 = por %p129, %p130
    %p132 = scmp.ne.s32.totalorder %s123, %s124
    %p133 = scmp.eq.s32.totalorder %s24, 0
    %p134 = por %p132, %p133
    %p135 = scmp.ne.s32.totalorder %s123, %s124
    %p136 = scmp.eq.s32.totalorder %s25, 1
    %p137 = por %p135, %p136
    %p139 = scmp.ne.s32.totalorder %s124, %s138
    %p140 = scmp.eq.s32.totalorder %s25, 0
    %p141 = por %p139, %p140
    %s143 = sadd.s32 %s142, 1
    %p146 = scmp.eq.s32.totalorder %s19, 1
    %p147 = scmp.ne.s32.totalorder %s142, %s144
    %p148 = scmp.eq.s32.totalorder %s19, 0
    %p149 = por %p147, %p148
    %p150 = scmp.ne.s32.totalorder %s142, %s144
    %p151 = scmp.eq.s32.totalorder %s24, 1
    %p152 = por %p150, %p151
    %p153 = scmp.ne.s32.totalorder %s144, %s145
    %p154 = scmp.eq.s32.totalorder %s24, 0
    %p155 = por %p153, %p154
    %p156 = scmp.ne.s32.totalorder %s144, %s145
    %p157 = scmp.eq.s32.totalorder %s25, 1
    %p158 = por %p156, %p157
    %p160 = scmp.ne.s32.totalorder %s145, %s159
    %p161 = scmp.eq.s32.totalorder %s25, 0
    %p162 = por %p160, %p161
    %s164 = sadd.s32 %s163, 1
    %p167 = scmp.eq.s32.totalorder %s19, 1
    %p168 = scmp.ne.s32.totalorder %s163, %s165
    %p169 = scmp.eq.s32.totalorder %s19, 0
    %p170 = por %p168, %p169
    %p171 = scmp.ne.s32.totalorder %s163, %s165
    %p172 = scmp.eq.s32.totalorder %s24, 1
    %p173 = por %p171, %p172
    %p174 = scmp.ne.s32.totalorder %s165, %s166
    %p175 = scmp.eq.s32.totalorder %s24, 0
    %p176 = por %p174, %p175
    %p177 = scmp.ne.s32.totalorder %s165, %s166
    %p178 = scmp.eq.s32.totalorder %s25, 1
    %p179 = por %p177, %p178
    %p181 = scmp.ne.s32.totalorder %s166, %s180
    %p182 = scmp.eq.s32.totalorder %s25, 0
    %p183 = por %p181, %p182
    %s185 = sadd.s32 %s184, 1
    %p188 = scmp.eq.s32.totalorder %s19, 1
    %p189 = scmp.ne.s32.totalorder %s184, %s186
    %p190 = scmp.eq.s32.totalorder %s19, 0
    %p191 = por %p189, %p190
    %p192 = scmp.ne.s32.totalorder %s184, %s186
    %p193 = scmp.eq.s32.totalorder %s24, 1
    %p194 = por %p192, %p193
    %p195 = scmp.ne.s32.totalorder %s186, %s187
    %p196 = scmp.eq.s32.totalorder %s24, 0
    %p197 = por %p195, %p196
    %p198 = scmp.ne.s32.totalorder %s186, %s187
    %p199 = scmp.eq.s32.totalorder %s25, 1
    %p200 = por %p198, %p199
    %p202 = scmp.ne.s32.totalorder %s187, %s201
    %p203 = scmp.eq.s32.totalorder %s25, 0
    %p204 = por %p202, %p203
    %s206 = sadd.s32 %s205, 1
    %p209 = scmp.eq.s32.totalorder %s19, 1
    %p210 = scmp.ne.s32.totalorder %s205, %s207
    %p211 = scmp.eq.s32.totalorder %s19, 0
    %p212 = por %p210, %p211
    %p213 = scmp.ne.s32.totalorder %s205, %s207
    %p214 = scmp.eq.s32.totalorder %s24, 1
    %p215 = por %p213, %p214
    %p216 = scmp.ne.s32.totalorder %s207, %s208
    %p217 = scmp.eq.s32.totalorder %s24, 0
    %p218 = por %p216, %p217
    %p219 = scmp.ne.s32.totalorder %s207, %s208
    %p220 = scmp.eq.s32.totalorder %s25, 1
    %p221 = por %p219, %p220
    %p223 = scmp.ne.s32.totalorder %s208, %s222
    %p224 = scmp.eq.s32.totalorder %s25, 0
    %p225 = por %p223, %p224
    %s227 = sadd.s32 %s226, 1
    %p230 = scmp.eq.s32.totalorder %s19, 1
    %p231 = scmp.ne.s32.totalorder %s226, %s228
    %p232 = scmp.eq.s32.totalorder %s19, 0
    %p233 = por %p231, %p232
    %p234 = scmp.ne.s32.totalorder %s226, %s228
    %p235 = scmp.eq.s32.totalorder %s24, 1
    %p236 = por %p234, %p235
    %p237 = scmp.ne.s32.totalorder %s228, %s229
    %p238 = scmp.eq.s32.totalorder %s24, 0
    %p239 = por %p237, %p238
    %p240 = scmp.ne.s32.totalorder %s228, %s229
    %p241 = scmp.eq.s32.totalorder %s25, 1
    %p242 = por %p240, %p241
    %p244 = scmp.ne.s32.totalorder %s229, %s243
    %p245 = scmp.eq.s32.totalorder %s25, 0
    %p246 = por %p244, %p245
    %s248 = sadd.s32 %s247, 1
    %p251 = scmp.eq.s32.totalorder %s19, 1
    %p252 = scmp.ne.s32.totalorder %s247, %s249
    %p253 = scmp.eq.s32.totalorder %s19, 0
    %p254 = por %p252, %p253
    %p255 = scmp.ne.s32.totalorder %s247, %s249
    %p256 = scmp.eq.s32.totalorder %s24, 1
    %p257 = por %p255, %p256
    %p258 = scmp.ne.s32.totalorder %s249, %s250
    %p259 = scmp.eq.s32.totalorder %s24, 0
    %p260 = por %p258, %p259
    %p261 = scmp.ne.s32.totalorder %s249, %s250
    %p262 = scmp.eq.s32.totalorder %s25, 1
    %p263 = por %p261, %p262
    %p265 = scmp.ne.s32.totalorder %s250, %s264
    %p266 = scmp.eq.s32.totalorder %s25, 0
    %p267 = por %p265, %p266
    %s269 = sadd.s32 %s268, 1
    %p272 = scmp.eq.s32.totalorder %s19, 1
    %p273 = scmp.ne.s32.totalorder %s268, %s270
    %p274 = scmp.eq.s32.totalorder %s19, 0
    %p275 = por %p273, %p274
    %p276 = scmp.ne.s32.totalorder %s268, %s270
    %p277 = scmp.eq.s32.totalorder %s24, 1
    %p278 = por %p276, %p277
    %p279 = scmp.ne.s32.totalorder %s270, %s271
    %p280 = scmp.eq.s32.totalorder %s24, 0
    %p281 = por %p279, %p280
    %p282 = scmp.ne.s32.totalorder %s270, %s271
    %p283 = scmp.eq.s32.totalorder %s25, 1
    %p284 = por %p282, %p283
    %p286 = scmp.ne.s32.totalorder %s271, %s285
    %p287 = scmp.eq.s32.totalorder %s25, 0
    %p288 = por %p286, %p287
    %s290 = sadd.s32 %s289, 1
    %p293 = scmp.eq.s32.totalorder %s19, 1
    %p294 = scmp.ne.s32.totalorder %s289, %s291
    %p295 = scmp.eq.s32.totalorder %s19, 0
    %p296 = por %p294, %p295
    %p297 = scmp.ne.s32.totalorder %s289, %s291
    %p298 = scmp.eq.s32.totalorder %s24, 1
    %p299 = por %p297, %p298
    %p300 = scmp.ne.s32.totalorder %s291, %s292
    %p301 = scmp.eq.s32.totalorder %s24, 0
    %p302 = por %p300, %p301
    %p303 = scmp.ne.s32.totalorder %s291, %s292
    %p304 = scmp.eq.s32.totalorder %s25, 1
    %p305 = por %p303, %p304
    %p307 = scmp.ne.s32.totalorder %s292, %s306
    %p308 = scmp.eq.s32.totalorder %s25, 0
    %p309 = por %p307, %p308
    %s310 = ssub.s32 %s19, %s26
    %p311 = scmp.eq.s32.totalorder %s310, 0
    %s313 = sadd.s32 %s312, 1
    %s314 = scalar_select %p311, %s312, %s313
    %p317 = pneg %p311
    %p318 = scmp.eq.s32.totalorder %s19, 1
    %p319 = por %p317, %p318
    %p320 = scmp.ne.s32.totalorder %s312, %s315
    %p321 = scmp.eq.s32.totalorder %s19, 0
    %p322 = por %p320, %p321
    %p323 = scmp.ne.s32.totalorder %s312, %s315
    %p324 = scmp.eq.s32.totalorder %s24, 1
    %p325 = por %p323, %p324
    %p326 = scmp.ne.s32.totalorder %s315, %s316
    %p327 = scmp.eq.s32.totalorder %s24, 0
    %p328 = por %p326, %p327
    %p329 = scmp.ne.s32.totalorder %s315, %s316
    %p330 = scmp.eq.s32.totalorder %s25, 1
    %p331 = por %p329, %p330
    %p333 = scmp.ne.s32.totalorder %s316, %s332
    %p334 = scmp.eq.s32.totalorder %s25, 0
    %p335 = por %p333, %p334
    %p336 = scmp.le.s32.totalorder 1, %s19
    %p337 = scmp.lt.s32.totalorder %s19, 3
    %p338 = pnand %p336, %p337
    %p339 = pneg %p338
    // Predicated region
    $region9: #{_lambda_.4} parent=5 // pred_check
      _
    $region10: #{_lambda_.4} parent=5 // pred_check_branch
      %341 = sbr.rel (%p338) target = $region12
    $region11: #{_lambda_.4} parent=5 // pred_region
      %s342 = ssub.s32 %s19, 1
      // Predicated region
      $region13: #{_lambda_.4} parent=11 // pred_check
        %p343 = pneg %p92
      $region14: #{_lambda_.4} parent=11 // pred_check_branch
        %345 = sbr.rel (%p343) target = $region16
      $region15: #{_lambda_.4} parent=11 // pred_region
        _
      $region16: #{_lambda_.4} parent=11 // pred_fallthru
        _
      // Predicated region
      $region17: #{_lambda_.4} parent=11 // pred_check
        %p346 = pneg %p113
      $region18: #{_lambda_.4} parent=11 // pred_check_branch
        %348 = sbr.rel (%p346) target = $region20
      $region19: #{_lambda_.4} parent=11 // pred_region
        _
      $region20: #{_lambda_.4} parent=11 // pred_fallthru
        _
      // Predicated region
      $region21: #{_lambda_.4} parent=11 // pred_check
        %p349 = pneg %p134
      $region22: #{_lambda_.4} parent=11 // pred_check_branch
        %351 = sbr.rel (%p349) target = $region24
      $region23: #{_lambda_.4} parent=11 // pred_region
        _
      $region24: #{_lambda_.4} parent=11 // pred_fallthru
        _
      // Predicated region
      $region25: #{_lambda_.4} parent=11 // pred_check
        %p352 = pneg %p155
      $region26: #{_lambda_.4} parent=11 // pred_check_branch
        %354 = sbr.rel (%p352) target = $region28
      $region27: #{_lambda_.4} parent=11 // pred_region
        _
      $region28: #{_lambda_.4} parent=11 // pred_fallthru
        _
      // Predicated region
      $region29: #{_lambda_.4} parent=11 // pred_check
        %p355 = pneg %p176
      $region30: #{_lambda_.4} parent=11 // pred_check_branch
        %357 = sbr.rel (%p355) target = $region32
      $region31: #{_lambda_.4} parent=11 // pred_region
        _
      $region32: #{_lambda_.4} parent=11 // pred_fallthru
        _
      // Predicated region
      $region33: #{_lambda_.4} parent=11 // pred_check
        %p358 = pneg %p197
      $region34: #{_lambda_.4} parent=11 // pred_check_branch
        %360 = sbr.rel (%p358) target = $region36
      $region35: #{_lambda_.4} parent=11 // pred_region
        _
      $region36: #{_lambda_.4} parent=11 // pred_fallthru
        _
      // Predicated region
      $region37: #{_lambda_.4} parent=11 // pred_check
        %p361 = pneg %p218
      $region38: #{_lambda_.4} parent=11 // pred_check_branch
        %363 = sbr.rel (%p361) target = $region40
      $region39: #{_lambda_.4} parent=11 // pred_region
        _
      $region40: #{_lambda_.4} parent=11 // pred_fallthru
        _
      // Predicated region
      $region41: #{_lambda_.4} parent=11 // pred_check
        %p364 = pneg %p239
      $region42: #{_lambda_.4} parent=11 // pred_check_branch
        %366 = sbr.rel (%p364) target = $region44
      $region43: #{_lambda_.4} parent=11 // pred_region
        _
      $region44: #{_lambda_.4} parent=11 // pred_fallthru
        _
      // Predicated region
      $region45: #{_lambda_.4} parent=11 // pred_check
        %p367 = pneg %p260
      $region46: #{_lambda_.4} parent=11 // pred_check_branch
        %369 = sbr.rel (%p367) target = $region48
      $region47: #{_lambda_.4} parent=11 // pred_region
        _
      $region48: #{_lambda_.4} parent=11 // pred_fallthru
        _
      // Predicated region
      $region49: #{_lambda_.4} parent=11 // pred_check
        %p370 = pneg %p281
      $region50: #{_lambda_.4} parent=11 // pred_check_branch
        %372 = sbr.rel (%p370) target = $region52
      $region51: #{_lambda_.4} parent=11 // pred_region
        _
      $region52: #{_lambda_.4} parent=11 // pred_fallthru
        _
      // Predicated region
      $region53: #{_lambda_.4} parent=11 // pred_check
        %p373 = pneg %p302
      $region54: #{_lambda_.4} parent=11 // pred_check_branch
        %375 = sbr.rel (%p373) target = $region56
      $region55: #{_lambda_.4} parent=11 // pred_region
        _
      $region56: #{_lambda_.4} parent=11 // pred_fallthru
        _
    $region12: #{_lambda_.4} parent=5 // pred_fallthru
      _
    %p376 = scmp.lt.s32.totalorder %s19, 2
    // Predicated region
    $region57: #{_lambda_.4} parent=5 // pred_check
      %p377 = pneg %p376
    $region58: #{_lambda_.4} parent=5 // pred_check_branch
      %379 = sbr.rel (%p377) target = $region60
    $region59: #{_lambda_.4} parent=5 // pred_region
      // Predicated region
      $region61: #{_lambda_.4} parent=59 // pred_check
        %p380 = pneg %p39
      $region62: #{_lambda_.4} parent=59 // pred_check_branch
        %382 = sbr.rel (%p380) target = $region64
      $region63: #{_lambda_.4} parent=59 // pred_region
        %s383 = smul.u32 4, %s19
        %p384 = scmp.lt.s32.totalorder %s383, 7
        %s385 = scalar_select %p384, %s383, 7
        %s386 = smul.addr %s385, 4
        %s387 = smul.addr %s386, 8
        %s388 = scalar_lea.vmem %s0, %s387
        %s389 = smul.u32 4, %s19
      $region64: #{_lambda_.4} parent=59 // pred_fallthru
        _
      // Predicated region
      $region65: #{_lambda_.4} parent=59 // pred_check
        %p390 = pneg %p65
      $region66: #{_lambda_.4} parent=59 // pred_check_branch
        %392 = sbr.rel (%p390) target = $region68
      $region67: #{_lambda_.4} parent=59 // pred_region
        %s393 = smul.u32 4, %s19
        %p394 = scmp.lt.s32.totalorder %s393, 7
        %s395 = scalar_select %p394, %s393, 7
        %s396 = smul.addr %s395, 4
        %s397 = smul.addr %s396, 8
        %s398 = scalar_lea.vmem %s1, %s397
        %s399 = smul.u32 4, %s19
      $region68: #{_lambda_.4} parent=59 // pred_fallthru
        _
    $region60: #{_lambda_.4} parent=5 // pred_fallthru
      _
    %p400 = scmp.le.s32.totalorder 1, %s19
    %p401 = scmp.lt.s32.totalorder %s19, 3
    %p402 = pnand %p400, %p401
    %p403 = pneg %p402
    // Predicated region
    $region69: #{_lambda_.4} parent=5 // pred_check
      _
    $region70: #{_lambda_.4} parent=5 // pred_check_branch
      %405 = sbr.rel (%p402) target = $region72
    $region71: #{_lambda_.4} parent=5 // pred_region
      %s406 = ssub.s32 %s19, 1
      %s407 = smul.u32 4, %s24
      %p408 = scmp.lt.s32.totalorder %s407, 7
      %s409 = scalar_select %p408, %s407, 7
      %s410 = smul.addr %s409, 4
      %s411 = smul.addr %s410, 8
      %s412 = scalar_lea.vmem %s0, %s411
      %p413 = pneg %p45
      %p414 = pneg %p42
      %s415 = smul.u32 4, %s24
      %p416 = scmp.lt.s32.totalorder %s415, 7
      %s417 = scalar_select %p416, %s415, 7
      %s418 = smul.addr %s417, 4
      %s419 = smul.addr %s418, 8
      %s420 = scalar_lea.vmem %s1, %s419
      %p421 = pneg %p71
      %p422 = pneg %p68
      %p423 = pneg %p92
      %p424 = pneg %p89
      %p425 = pneg %p113
      %p426 = pneg %p110
      %p427 = pneg %p134
      %p428 = pneg %p131
      %p429 = pneg %p155
      %p430 = pneg %p152
      %p431 = pneg %p176
      %p432 = pneg %p173
      %p433 = pneg %p197
      %p434 = pneg %p194
      %p435 = pneg %p218
      %p436 = pneg %p215
      %p437 = pneg %p239
      %p438 = pneg %p236
      %p439 = pneg %p260
      %p440 = pneg %p257
      %p441 = pneg %p281
      %p442 = pneg %p278
      %p443 = pneg %p302
      %p444 = pneg %p299
      %p445 = pneg %p328
      %p446 = pneg %p325
      %s447 = smul.u32 4, %s24
      %p448 = scmp.lt.s32.totalorder %s447, 7
      %s449 = scalar_select %p448, %s447, 7
      %s450 = smul.addr %s449, 4
      %s451 = smul.addr %s450, 8
      %s452 = scalar_lea.vmem %s13, %s451
      %s453 = smul.u32 4, %s24
      %p454 = scmp.lt.s32.totalorder %s453, 7
      %s455 = scalar_select %p454, %s453, 7
      %s456 = smul.addr %s455, 4
      %s457 = smul.addr %s456, 8
      %s458 = scalar_lea.vmem %s0, %s457
      %s459 = smul.u32 4, %s24
      %s460 = smul.u32 4, %s24
      %p461 = scmp.lt.s32.totalorder %s460, 7
      %s462 = scalar_select %p461, %s460, 7
      %s463 = smul.addr %s462, 4
      %s464 = smul.addr %s463, 8
      %s465 = scalar_lea.vmem %s1, %s464
      %s466 = smul.u32 4, %s24
      %s467 = smul.u32 4, %s24
      %p468 = scmp.lt.s32.totalorder %s467, 7
      %s469 = scalar_select %p468, %s467, 7
      %s470 = smul.addr %s469, 4
      %s471 = smul.addr %s470, 8
      %s472 = scalar_lea.vmem %s13, %s471
      %s473 = smul.u32 4, %s24
      %v474 = vld [vmem:[%s458] sm:$0xff]
      %v475 = vld [vmem:[%s458 + $0x8] sm:$0xff]
      %v476 = vld [vmem:[%s458 + $0x10] sm:$0xff]
      %v477 = vld [vmem:[%s458 + $0x18] sm:$0xff]
      %v478 = vld [vmem:[%s458 + $0x20] sm:$0xff]
      %v479 = vld [vmem:[%s458 + $0x28] sm:$0xff]
      %v480 = vld [vmem:[%s458 + $0x30] sm:$0xff]
      %v481 = vld [vmem:[%s458 + $0x38] sm:$0xff]
      %v482 = vld [vmem:[%s458 + $0x40] sm:$0xff]
      %v483 = vld [vmem:[%s458 + $0x48] sm:$0xff]
      %v484 = vld [vmem:[%s458 + $0x50] sm:$0xff]
      %v485 = vld [vmem:[%s458 + $0x58] sm:$0xff]
      %v486 = vld [vmem:[%s458 + $0x60] sm:$0xff]
      %v487 = vld [vmem:[%s458 + $0x68] sm:$0xff]
      %v488 = vld [vmem:[%s458 + $0x70] sm:$0xff]
      %v489 = vld [vmem:[%s458 + $0x78] sm:$0xff]
      %v490 = vld [vmem:[%s465] sm:$0xff]
      %v491 = vld [vmem:[%s465 + $0x8] sm:$0xff]
      %v492 = vld [vmem:[%s465 + $0x10] sm:$0xff]
      %v493 = vld [vmem:[%s465 + $0x18] sm:$0xff]
      %v494 = vld [vmem:[%s465 + $0x20] sm:$0xff]
      %v495 = vld [vmem:[%s465 + $0x28] sm:$0xff]
      %v496 = vld [vmem:[%s465 + $0x30] sm:$0xff]
      %v497 = vld [vmem:[%s465 + $0x38] sm:$0xff]
      %v498 = vld [vmem:[%s465 + $0x40] sm:$0xff]
      %v499 = vld [vmem:[%s465 + $0x48] sm:$0xff]
      %v500 = vld [vmem:[%s465 + $0x50] sm:$0xff]
      %v501 = vld [vmem:[%s465 + $0x58] sm:$0xff]
      %v502 = vld [vmem:[%s465 + $0x60] sm:$0xff]
      %v503 = vld [vmem:[%s465 + $0x68] sm:$0xff]
      %v504 = vld [vmem:[%s465 + $0x70] sm:$0xff]
      %v505 = vld [vmem:[%s465 + $0x78] sm:$0xff]
      %v506 = vld [vmem:[%s2] sm:$0x1]
      %v507 = vld [vmem:[%s3] sm:$0x1]
      %vm508 = vcmask 261120
      %v509 = vsel %vm508, %v474, 0.0
      %510 = vadd.xlane.f32.xlu0 %v509
      %v511 = vpop.xlane.xlu0 %510
      %v512 = vsel %vm508, %v475, 0.0
      %513 = vadd.xlane.f32.xlu0 %v512
      %v514 = vpop.xlane.xlu0 %513
      %v515 = vsel %vm508, %v476, 0.0
      %516 = vadd.xlane.f32.xlu0 %v515
      %v517 = vpop.xlane.xlu0 %516
      %v518 = vsel %vm508, %v477, 0.0
      %519 = vadd.xlane.f32.xlu0 %v518
      %v520 = vpop.xlane.xlu0 %519
      %v521 = vsel %vm508, %v478, 0.0
      %522 = vadd.xlane.f32.xlu0 %v521
      %v523 = vpop.xlane.xlu0 %522
      %v524 = vsel %vm508, %v479, 0.0
      %525 = vadd.xlane.f32.xlu0 %v524
      %v526 = vpop.xlane.xlu0 %525
      %v527 = vsel %vm508, %v480, 0.0
      %528 = vadd.xlane.f32.xlu0 %v527
      %v529 = vpop.xlane.xlu0 %528
      %v530 = vsel %vm508, %v481, 0.0
      %531 = vadd.xlane.f32.xlu0 %v530
      %v532 = vpop.xlane.xlu0 %531
      %v533 = vsel %vm508, %v482, 0.0
      %534 = vadd.xlane.f32.xlu0 %v533
      %v535 = vpop.xlane.xlu0 %534
      %v536 = vsel %vm508, %v483, 0.0
      %537 = vadd.xlane.f32.xlu0 %v536
      %v538 = vpop.xlane.xlu0 %537
      %v539 = vsel %vm508, %v484, 0.0
      %540 = vadd.xlane.f32.xlu0 %v539
      %v541 = vpop.xlane.xlu0 %540
      %v542 = vsel %vm508, %v485, 0.0
      %543 = vadd.xlane.f32.xlu0 %v542
      %v544 = vpop.xlane.xlu0 %543
      %v545 = vsel %vm508, %v486, 0.0
      %546 = vadd.xlane.f32.xlu0 %v545
      %v547 = vpop.xlane.xlu0 %546
      %v548 = vsel %vm508, %v487, 0.0
      %549 = vadd.xlane.f32.xlu0 %v548
      %v550 = vpop.xlane.xlu0 %549
      %v551 = vsel %vm508, %v488, 0.0
      %552 = vadd.xlane.f32.xlu0 %v551
      %v553 = vpop.xlane.xlu0 %552
      %v554 = vsel %vm508, %v489, 0.0
      %555 = vadd.xlane.f32.xlu0 %v554
      %v556 = vpop.xlane.xlu0 %555
      %v557 = vrcp.pop 32.0
      %v558 = vmul.f32 %v511, %v557
      %v559 = vmul.f32 %v514, %v557
      %v560 = vmul.f32 %v517, %v557
      %v561 = vmul.f32 %v520, %v557
      %v562 = vmul.f32 %v523, %v557
      %v563 = vmul.f32 %v526, %v557
      %v564 = vmul.f32 %v529, %v557
      %v565 = vmul.f32 %v532, %v557
      %v566 = vmul.f32 %v535, %v557
      %v567 = vmul.f32 %v538, %v557
      %v568 = vmul.f32 %v541, %v557
      %v569 = vmul.f32 %v544, %v557
      %v570 = vmul.f32 %v547, %v557
      %v571 = vmul.f32 %v550, %v557
      %v572 = vmul.f32 %v553, %v557
      %v573 = vmul.f32 %v556, %v557
      %v574 = vsub.f32 %v474, %v558
      %v575 = vsub.f32 %v475, %v559
      %v576 = vsub.f32 %v476, %v560
      %v577 = vsub.f32 %v477, %v561
      %v578 = vsub.f32 %v478, %v562
      %v579 = vsub.f32 %v479, %v563
      %v580 = vsub.f32 %v480, %v564
      %v581 = vsub.f32 %v481, %v565
      %v582 = vsub.f32 %v482, %v566
      %v583 = vsub.f32 %v483, %v567
      %v584 = vsub.f32 %v484, %v568
      %v585 = vsub.f32 %v485, %v569
      %v586 = vsub.f32 %v486, %v570
      %v587 = vsub.f32 %v487, %v571
      %v588 = vsub.f32 %v488, %v572
      %v589 = vsub.f32 %v489, %v573
      %v590 = vmul.f32 %v574, %v574
      %v591 = vmul.f32 %v575, %v575
      %v592 = vmul.f32 %v576, %v576
      %v593 = vmul.f32 %v577, %v577
      %v594 = vmul.f32 %v578, %v578
      %v595 = vmul.f32 %v579, %v579
      %v596 = vmul.f32 %v580, %v580
      %v597 = vmul.f32 %v581, %v581
      %v598 = vmul.f32 %v582, %v582
      %v599 = vmul.f32 %v583, %v583
      %v600 = vmul.f32 %v584, %v584
      %v601 = vmul.f32 %v585, %v585
      %v602 = vmul.f32 %v586, %v586
      %v603 = vmul.f32 %v587, %v587
      %v604 = vmul.f32 %v588, %v588
      %v605 = vmul.f32 %v589, %v589
      %v606 = vsel %vm508, %v590, 0.0
      %607 = vadd.xlane.f32.xlu0 %v606
      %v608 = vpop.xlane.xlu0 %607
      %v609 = vsel %vm508, %v591, 0.0
      %610 = vadd.xlane.f32.xlu0 %v609
      %v611 = vpop.xlane.xlu0 %610
      %v612 = vsel %vm508, %v592, 0.0
      %613 = vadd.xlane.f32.xlu0 %v612
      %v614 = vpop.xlane.xlu0 %613
      %v615 = vsel %vm508, %v593, 0.0
      %616 = vadd.xlane.f32.xlu0 %v615
      %v617 = vpop.xlane.xlu0 %616
      %v618 = vsel %vm508, %v594, 0.0
      %619 = vadd.xlane.f32.xlu0 %v618
      %v620 = vpop.xlane.xlu0 %619
      %v621 = vsel %vm508, %v595, 0.0
      %622 = vadd.xlane.f32.xlu0 %v621
      %v623 = vpop.xlane.xlu0 %622
      %v624 = vsel %vm508, %v596, 0.0
      %625 = vadd.xlane.f32.xlu0 %v624
      %v626 = vpop.xlane.xlu0 %625
      %v627 = vsel %vm508, %v597, 0.0
      %628 = vadd.xlane.f32.xlu0 %v627
      %v629 = vpop.xlane.xlu0 %628
      %v630 = vsel %vm508, %v598, 0.0
      %631 = vadd.xlane.f32.xlu0 %v630
      %v632 = vpop.xlane.xlu0 %631
      %v633 = vsel %vm508, %v599, 0.0
      %634 = vadd.xlane.f32.xlu0 %v633
      %v635 = vpop.xlane.xlu0 %634
      %v636 = vsel %vm508, %v600, 0.0
      %637 = vadd.xlane.f32.xlu0 %v636
      %v638 = vpop.xlane.xlu0 %637
      %v639 = vsel %vm508, %v601, 0.0
      %640 = vadd.xlane.f32.xlu0 %v639
      %v641 = vpop.xlane.xlu0 %640
      %v642 = vsel %vm508, %v602, 0.0
      %643 = vadd.xlane.f32.xlu0 %v642
      %v644 = vpop.xlane.xlu0 %643
      %v645 = vsel %vm508, %v603, 0.0
      %646 = vadd.xlane.f32.xlu0 %v645
      %v647 = vpop.xlane.xlu0 %646
      %v648 = vsel %vm508, %v604, 0.0
      %649 = vadd.xlane.f32.xlu0 %v648
      %v650 = vpop.xlane.xlu0 %649
      %v651 = vsel %vm508, %v605, 0.0
      %652 = vadd.xlane.f32.xlu0 %v651
      %v653 = vpop.xlane.xlu0 %652
      %v654 = vmul.f32 %v608, %v557
      %v655 = vmul.f32 %v611, %v557
      %v656 = vmul.f32 %v614, %v557
      %v657 = vmul.f32 %v617, %v557
      %v658 = vmul.f32 %v620, %v557
      %v659 = vmul.f32 %v623, %v557
      %v660 = vmul.f32 %v626, %v557
      %v661 = vmul.f32 %v629, %v557
      %v662 = vmul.f32 %v632, %v557
      %v663 = vmul.f32 %v635, %v557
      %v664 = vmul.f32 %v638, %v557
      %v665 = vmul.f32 %v641, %v557
      %v666 = vmul.f32 %v644, %v557
      %v667 = vmul.f32 %v647, %v557
      %v668 = vmul.f32 %v650, %v557
      %v669 = vmul.f32 %v653, %v557
      %v670 = vadd.f32 %v654, 1e-05
      %v671 = vadd.f32 %v655, 1e-05
      %v672 = vadd.f32 %v656, 1e-05
      %v673 = vadd.f32 %v657, 1e-05
      %v674 = vadd.f32 %v658, 1e-05
      %v675 = vadd.f32 %v659, 1e-05
      %v676 = vadd.f32 %v660, 1e-05
      %v677 = vadd.f32 %v661, 1e-05
      %v678 = vadd.f32 %v662, 1e-05
      %v679 = vadd.f32 %v663, 1e-05
      %v680 = vadd.f32 %v664, 1e-05
      %v681 = vadd.f32 %v665, 1e-05
      %v682 = vadd.f32 %v666, 1e-05
      %v683 = vadd.f32 %v667, 1e-05
      %v684 = vadd.f32 %v668, 1e-05
      %v685 = vadd.f32 %v669, 1e-05
      %v686 = vrsqrt.pop %v670
      %v687 = vrsqrt.pop %v671
      %v688 = vrsqrt.pop %v672
      %v689 = vrsqrt.pop %v673
      %v690 = vrsqrt.pop %v674
      %v691 = vrsqrt.pop %v675
      %v692 = vrsqrt.pop %v676
      %v693 = vrsqrt.pop %v677
      %v694 = vrsqrt.pop %v678
      %v695 = vrsqrt.pop %v679
      %v696 = vrsqrt.pop %v680
      %v697 = vrsqrt.pop %v681
      %v698 = vrsqrt.pop %v682
      %v699 = vrsqrt.pop %v683
      %v700 = vrsqrt.pop %v684
      %v701 = vrsqrt.pop %v685
      %v702 = vmul.f32 %v574, %v686
      %v703 = vmul.f32 %v575, %v687
      %v704 = vmul.f32 %v576, %v688
      %v705 = vmul.f32 %v577, %v689
      %v706 = vmul.f32 %v578, %v690
      %v707 = vmul.f32 %v579, %v691
      %v708 = vmul.f32 %v580, %v692
      %v709 = vmul.f32 %v581, %v693
      %v710 = vmul.f32 %v582, %v694
      %v711 = vmul.f32 %v583, %v695
      %v712 = vmul.f32 %v584, %v696
      %v713 = vmul.f32 %v585, %v697
      %v714 = vmul.f32 %v586, %v698
      %v715 = vmul.f32 %v587, %v699
      %v716 = vmul.f32 %v588, %v700
      %v717 = vmul.f32 %v589, %v701
      %v719 = vlaneseq
      %v720 = vshrl.u32 %v719, 7
      %v721 = vsub.s32 0, %v720
      %v722 = vrot.slane %v506, %v721
      %v724 = vmul.f32 %v702, %v722
      %v725 = vmul.f32 %v703, %v722
      %v726 = vmul.f32 %v704, %v722
      %v727 = vmul.f32 %v705, %v722
      %v728 = vmul.f32 %v706, %v722
      %v729 = vmul.f32 %v707, %v722
      %v730 = vmul.f32 %v708, %v722
      %v731 = vmul.f32 %v709, %v722
      %v732 = vmul.f32 %v710, %v722
      %v733 = vmul.f32 %v711, %v722
      %v734 = vmul.f32 %v712, %v722
      %v735 = vmul.f32 %v713, %v722
      %v736 = vmul.f32 %v714, %v722
      %v737 = vmul.f32 %v715, %v722
      %v738 = vmul.f32 %v716, %v722
      %v739 = vmul.f32 %v717, %v722
      %v741 = vlaneseq
      %v742 = vshrl.u32 %v741, 7
      %v743 = vsub.s32 0, %v742
      %v744 = vrot.slane %v507, %v743
      %v746 = vadd.f32 %v724, %v744
      %v747 = vadd.f32 %v725, %v744
      %v748 = vadd.f32 %v726, %v744
      %v749 = vadd.f32 %v727, %v744
      %v750 = vadd.f32 %v728, %v744
      %v751 = vadd.f32 %v729, %v744
      %v752 = vadd.f32 %v730, %v744
      %v753 = vadd.f32 %v731, %v744
      %v754 = vadd.f32 %v732, %v744
      %v755 = vadd.f32 %v733, %v744
      %v756 = vadd.f32 %v734, %v744
      %v757 = vadd.f32 %v735, %v744
      %v758 = vadd.f32 %v736, %v744
      %v759 = vadd.f32 %v737, %v744
      %v760 = vadd.f32 %v738, %v744
      %v761 = vadd.f32 %v739, %v744
      %v762 = vld [vmem:[%s4] sm:$0x1]
      %v763 = vld [vmem:[%s5] sm:$0x1]
      %v764 = vsel %vm508, %v490, 0.0
      %765 = vadd.xlane.f32.xlu0 %v764
      %v766 = vpop.xlane.xlu0 %765
      %v767 = vsel %vm508, %v491, 0.0
      %768 = vadd.xlane.f32.xlu0 %v767
      %v769 = vpop.xlane.xlu0 %768
      %v770 = vsel %vm508, %v492, 0.0
      %771 = vadd.xlane.f32.xlu0 %v770
      %v772 = vpop.xlane.xlu0 %771
      %v773 = vsel %vm508, %v493, 0.0
      %774 = vadd.xlane.f32.xlu0 %v773
      %v775 = vpop.xlane.xlu0 %774
      %v776 = vsel %vm508, %v494, 0.0
      %777 = vadd.xlane.f32.xlu0 %v776
      %v778 = vpop.xlane.xlu0 %777
      %v779 = vsel %vm508, %v495, 0.0
      %780 = vadd.xlane.f32.xlu0 %v779
      %v781 = vpop.xlane.xlu0 %780
      %v782 = vsel %vm508, %v496, 0.0
      %783 = vadd.xlane.f32.xlu0 %v782
      %v784 = vpop.xlane.xlu0 %783
      %v785 = vsel %vm508, %v497, 0.0
      %786 = vadd.xlane.f32.xlu0 %v785
      %v787 = vpop.xlane.xlu0 %786
      %v788 = vsel %vm508, %v498, 0.0
      %789 = vadd.xlane.f32.xlu0 %v788
      %v790 = vpop.xlane.xlu0 %789
      %v791 = vsel %vm508, %v499, 0.0
      %792 = vadd.xlane.f32.xlu0 %v791
      %v793 = vpop.xlane.xlu0 %792
      %v794 = vsel %vm508, %v500, 0.0
      %795 = vadd.xlane.f32.xlu0 %v794
      %v796 = vpop.xlane.xlu0 %795
      %v797 = vsel %vm508, %v501, 0.0
      %798 = vadd.xlane.f32.xlu0 %v797
      %v799 = vpop.xlane.xlu0 %798
      %v800 = vsel %vm508, %v502, 0.0
      %801 = vadd.xlane.f32.xlu0 %v800
      %v802 = vpop.xlane.xlu0 %801
      %v803 = vsel %vm508, %v503, 0.0
      %804 = vadd.xlane.f32.xlu0 %v803
      %v805 = vpop.xlane.xlu0 %804
      %v806 = vsel %vm508, %v504, 0.0
      %807 = vadd.xlane.f32.xlu0 %v806
      %v808 = vpop.xlane.xlu0 %807
      %v809 = vsel %vm508, %v505, 0.0
      %810 = vadd.xlane.f32.xlu0 %v809
      %v811 = vpop.xlane.xlu0 %810
      %v812 = vmul.f32 %v766, %v557
      %v813 = vmul.f32 %v769, %v557
      %v814 = vmul.f32 %v772, %v557
      %v815 = vmul.f32 %v775, %v557
      %v816 = vmul.f32 %v778, %v557
      %v817 = vmul.f32 %v781, %v557
      %v818 = vmul.f32 %v784, %v557
      %v819 = vmul.f32 %v787, %v557
      %v820 = vmul.f32 %v790, %v557
      %v821 = vmul.f32 %v793, %v557
      %v822 = vmul.f32 %v796, %v557
      %v823 = vmul.f32 %v799, %v557
      %v824 = vmul.f32 %v802, %v557
      %v825 = vmul.f32 %v805, %v557
      %v826 = vmul.f32 %v808, %v557
      %v827 = vmul.f32 %v811, %v557
      %v828 = vsub.f32 %v490, %v812
      %v829 = vsub.f32 %v491, %v813
      %v830 = vsub.f32 %v492, %v814
      %v831 = vsub.f32 %v493, %v815
      %v832 = vsub.f32 %v494, %v816
      %v833 = vsub.f32 %v495, %v817
      %v834 = vsub.f32 %v496, %v818
      %v835 = vsub.f32 %v497, %v819
      %v836 = vsub.f32 %v498, %v820
      %v837 = vsub.f32 %v499, %v821
      %v838 = vsub.f32 %v500, %v822
      %v839 = vsub.f32 %v501, %v823
      %v840 = vsub.f32 %v502, %v824
      %v841 = vsub.f32 %v503, %v825
      %v842 = vsub.f32 %v504, %v826
      %v843 = vsub.f32 %v505, %v827
      %v844 = vmul.f32 %v828, %v828
      %v845 = vmul.f32 %v829, %v829
      %v846 = vmul.f32 %v830, %v830
      %v847 = vmul.f32 %v831, %v831
      %v848 = vmul.f32 %v832, %v832
      %v849 = vmul.f32 %v833, %v833
      %v850 = vmul.f32 %v834, %v834
      %v851 = vmul.f32 %v835, %v835
      %v852 = vmul.f32 %v836, %v836
      %v853 = vmul.f32 %v837, %v837
      %v854 = vmul.f32 %v838, %v838
      %v855 = vmul.f32 %v839, %v839
      %v856 = vmul.f32 %v840, %v840
      %v857 = vmul.f32 %v841, %v841
      %v858 = vmul.f32 %v842, %v842
      %v859 = vmul.f32 %v843, %v843
      %v860 = vsel %vm508, %v844, 0.0
      %861 = vadd.xlane.f32.xlu0 %v860
      %v862 = vpop.xlane.xlu0 %861
      %v863 = vsel %vm508, %v845, 0.0
      %864 = vadd.xlane.f32.xlu0 %v863
      %v865 = vpop.xlane.xlu0 %864
      %v866 = vsel %vm508, %v846, 0.0
      %867 = vadd.xlane.f32.xlu0 %v866
      %v868 = vpop.xlane.xlu0 %867
      %v869 = vsel %vm508, %v847, 0.0
      %870 = vadd.xlane.f32.xlu0 %v869
      %v871 = vpop.xlane.xlu0 %870
      %v872 = vsel %vm508, %v848, 0.0
      %873 = vadd.xlane.f32.xlu0 %v872
      %v874 = vpop.xlane.xlu0 %873
      %v875 = vsel %vm508, %v849, 0.0
      %876 = vadd.xlane.f32.xlu0 %v875
      %v877 = vpop.xlane.xlu0 %876
      %v878 = vsel %vm508, %v850, 0.0
      %879 = vadd.xlane.f32.xlu0 %v878
      %v880 = vpop.xlane.xlu0 %879
      %v881 = vsel %vm508, %v851, 0.0
      %882 = vadd.xlane.f32.xlu0 %v881
      %v883 = vpop.xlane.xlu0 %882
      %v884 = vsel %vm508, %v852, 0.0
      %885 = vadd.xlane.f32.xlu0 %v884
      %v886 = vpop.xlane.xlu0 %885
      %v887 = vsel %vm508, %v853, 0.0
      %888 = vadd.xlane.f32.xlu0 %v887
      %v889 = vpop.xlane.xlu0 %888
      %v890 = vsel %vm508, %v854, 0.0
      %891 = vadd.xlane.f32.xlu0 %v890
      %v892 = vpop.xlane.xlu0 %891
      %v893 = vsel %vm508, %v855, 0.0
      %894 = vadd.xlane.f32.xlu0 %v893
      %v895 = vpop.xlane.xlu0 %894
      %v896 = vsel %vm508, %v856, 0.0
      %897 = vadd.xlane.f32.xlu0 %v896
      %v898 = vpop.xlane.xlu0 %897
      %v899 = vsel %vm508, %v857, 0.0
      %900 = vadd.xlane.f32.xlu0 %v899
      %v901 = vpop.xlane.xlu0 %900
      %v902 = vsel %vm508, %v858, 0.0
      %903 = vadd.xlane.f32.xlu0 %v902
      %v904 = vpop.xlane.xlu0 %903
      %v905 = vsel %vm508, %v859, 0.0
      %906 = vadd.xlane.f32.xlu0 %v905
      %v907 = vpop.xlane.xlu0 %906
      %v908 = vmul.f32 %v862, %v557
      %v909 = vmul.f32 %v865, %v557
      %v910 = vmul.f32 %v868, %v557
      %v911 = vmul.f32 %v871, %v557
      %v912 = vmul.f32 %v874, %v557
      %v913 = vmul.f32 %v877, %v557
      %v914 = vmul.f32 %v880, %v557
      %v915 = vmul.f32 %v883, %v557
      %v916 = vmul.f32 %v886, %v557
      %v917 = vmul.f32 %v889, %v557
      %v918 = vmul.f32 %v892, %v557
      %v919 = vmul.f32 %v895, %v557
      %v920 = vmul.f32 %v898, %v557
      %v921 = vmul.f32 %v901, %v557
      %v922 = vmul.f32 %v904, %v557
      %v923 = vmul.f32 %v907, %v557
      %v924 = vadd.f32 %v908, 1e-05
      %v925 = vadd.f32 %v909, 1e-05
      %v926 = vadd.f32 %v910, 1e-05
      %v927 = vadd.f32 %v911, 1e-05
      %v928 = vadd.f32 %v912, 1e-05
      %v929 = vadd.f32 %v913, 1e-05
      %v930 = vadd.f32 %v914, 1e-05
      %v931 = vadd.f32 %v915, 1e-05
      %v932 = vadd.f32 %v916, 1e-05
      %v933 = vadd.f32 %v917, 1e-05
      %v934 = vadd.f32 %v918, 1e-05
      %v935 = vadd.f32 %v919, 1e-05
      %v936 = vadd.f32 %v920, 1e-05
      %v937 = vadd.f32 %v921, 1e-05
      %v938 = vadd.f32 %v922, 1e-05
      %v939 = vadd.f32 %v923, 1e-05
      %v940 = vrsqrt.pop %v924
      %v941 = vrsqrt.pop %v925
      %v942 = vrsqrt.pop %v926
      %v943 = vrsqrt.pop %v927
      %v944 = vrsqrt.pop %v928
      %v945 = vrsqrt.pop %v929
      %v946 = vrsqrt.pop %v930
      %v947 = vrsqrt.pop %v931
      %v948 = vrsqrt.pop %v932
      %v949 = vrsqrt.pop %v933
      %v950 = vrsqrt.pop %v934
      %v951 = vrsqrt.pop %v935
      %v952 = vrsqrt.pop %v936
      %v953 = vrsqrt.pop %v937
      %v954 = vrsqrt.pop %v938
      %v955 = vrsqrt.pop %v939
      %v956 = vmul.f32 %v828, %v940
      %v957 = vmul.f32 %v829, %v941
      %v958 = vmul.f32 %v830, %v942
      %v959 = vmul.f32 %v831, %v943
      %v960 = vmul.f32 %v832, %v944
      %v961 = vmul.f32 %v833, %v945
      %v962 = vmul.f32 %v834, %v946
      %v963 = vmul.f32 %v835, %v947
      %v964 = vmul.f32 %v836, %v948
      %v965 = vmul.f32 %v837, %v949
      %v966 = vmul.f32 %v838, %v950
      %v967 = vmul.f32 %v839, %v951
      %v968 = vmul.f32 %v840, %v952
      %v969 = vmul.f32 %v841, %v953
      %v970 = vmul.f32 %v842, %v954
      %v971 = vmul.f32 %v843, %v955
      %v973 = vlaneseq
      %v974 = vshrl.u32 %v973, 7
      %v975 = vsub.s32 0, %v974
      %v976 = vrot.slane %v762, %v975
      %v978 = vmul.f32 %v956, %v976
      %v979 = vmul.f32 %v957, %v976
      %v980 = vmul.f32 %v958, %v976
      %v981 = vmul.f32 %v959, %v976
      %v982 = vmul.f32 %v960, %v976
      %v983 = vmul.f32 %v961, %v976
      %v984 = vmul.f32 %v962, %v976
      %v985 = vmul.f32 %v963, %v976
      %v986 = vmul.f32 %v964, %v976
      %v987 = vmul.f32 %v965, %v976
      %v988 = vmul.f32 %v966, %v976
      %v989 = vmul.f32 %v967, %v976
      %v990 = vmul.f32 %v968, %v976
      %v991 = vmul.f32 %v969, %v976
      %v992 = vmul.f32 %v970, %v976
      %v993 = vmul.f32 %v971, %v976
      %v995 = vlaneseq
      %v996 = vshrl.u32 %v995, 7
      %v997 = vsub.s32 0, %v996
      %v998 = vrot.slane %v763, %v997
      %v1000 = vadd.f32 %v978, %v998
      %v1001 = vadd.f32 %v979, %v998
      %v1002 = vadd.f32 %v980, %v998
      %v1003 = vadd.f32 %v981, %v998
      %v1004 = vadd.f32 %v982, %v998
      %v1005 = vadd.f32 %v983, %v998
      %v1006 = vadd.f32 %v984, %v998
      %v1007 = vadd.f32 %v985, %v998
      %v1008 = vadd.f32 %v986, %v998
      %v1009 = vadd.f32 %v987, %v998
      %v1010 = vadd.f32 %v988, %v998
      %v1011 = vadd.f32 %v989, %v998
      %v1012 = vadd.f32 %v990, %v998
      %v1013 = vadd.f32 %v991, %v998
      %v1014 = vadd.f32 %v992, %v998
      %v1015 = vadd.f32 %v993, %v998
      %v1016 = vld [vmem:[%s6] sm:$0xff]
      %v1017 = vld [vmem:[%s6 + $0x8] sm:$0xff]
      %v1018 = vld [vmem:[%s6 + $0x10] sm:$0xff]
      %v1019 = vld [vmem:[%s6 + $0x18] sm:$0xff]
      %v1020 = vld [vmem:[%s7] sm:$0x1]
      %v1022 = vlaneseq
      %v1023 = vshrl.u32 %v1022, 7
      %v1024 = vsub.s32 0, %v1023
      %v1025 = vrot.slane %v1020, %v1024
      %v1028 = vsel %vm508, %v746, 0
      %v1031 = vsel %vm508, %v747, 0
      %v1034 = vsel %vm508, %v748, 0
      %v1037 = vsel %vm508, %v749, 0
      %v1040 = vsel %vm508, %v750, 0
      %v1043 = vsel %vm508, %v751, 0
      %v1046 = vsel %vm508, %v752, 0
      %v1049 = vsel %vm508, %v753, 0
      %v1052 = vsel %vm508, %v754, 0
      %v1055 = vsel %vm508, %v755, 0
      %v1058 = vsel %vm508, %v756, 0
      %v1061 = vsel %vm508, %v757, 0
      %v1064 = vsel %vm508, %v758, 0
      %v1067 = vsel %vm508, %v759, 0
      %v1070 = vsel %vm508, %v760, 0
      %v1073 = vsel %vm508, %v761, 0
      %1075 = vmatprep.subr.mxu0 0.0
      %1076 = vmatpush1.msra.mxu0 %v1016
      %1077 = vmatprep.subr.mxu0 0.0
      %1078 = vmatpush1.msra.mxu0 %v1017
      %1079 = vmatprep.subr.mxu0 0.0
      %1080 = vmatpush1.msra.mxu0 %v1018
      %1081 = vmatprep.subr.mxu0 0.0
      %1082 = vmatpush1.msra.mxu0 %v1019
      %1083 = vmatprep.subr.mxu0 0.0
      %1084 = vmatpush1.msra.mxu0 0.0
      %1085 = vmatprep.subr.mxu0 0.0
      %1086 = vmatpush1.msra.mxu0 0.0
      %1087 = vmatprep.subr.mxu0 0.0
      %1088 = vmatpush1.msra.mxu0 0.0
      %1089 = vmatprep.subr.mxu0 0.0
      %1090 = vmatpush1.msra.mxu0 0.0
      %1091 = vmatprep.subr.mxu0 0.0
      %1092 = vmatpush1.msra.mxu0 0.0
      %1093 = vmatprep.subr.mxu0 0.0
      %1094 = vmatpush1.msra.mxu0 0.0
      %1095 = vmatprep.subr.mxu0 0.0
      %1096 = vmatpush1.msra.mxu0 0.0
      %1097 = vmatprep.subr.mxu0 0.0
      %1098 = vmatpush1.msra.mxu0 0.0
      %1099 = vmatprep.subr.mxu0 0.0
      %1100 = vmatpush1.msra.mxu0 0.0
      %1101 = vmatprep.subr.mxu0 0.0
      %1102 = vmatpush1.msra.mxu0 0.0
      %1103 = vmatprep.subr.mxu0 0.0
      %1104 = vmatpush1.msra.mxu0 0.0
      %1105 = vmatprep.subr.mxu0 0.0
      %1106 = vmatpush1.msra.mxu0 0.0
      %1107 = vmatprep.subr.mxu0 0.0
      %1108 = vmatpush1.msra.mxu0 0.0
      %1109 = vmatprep.subr.mxu0 0.0
      %1110 = vmatpush1.msra.mxu0 0.0
      %1111 = vmatprep.subr.mxu0 0.0
      %1112 = vmatpush1.msra.mxu0 0.0
      %1113 = vmatprep.subr.mxu0 0.0
      %1114 = vmatpush1.msra.mxu0 0.0
      %1115 = vmatprep.subr.mxu0 0.0
      %1116 = vmatpush1.msra.mxu0 0.0
      %1117 = vmatprep.subr.mxu0 0.0
      %1118 = vmatpush1.msra.mxu0 0.0
      %1119 = vmatprep.subr.mxu0 0.0
      %1120 = vmatpush1.msra.mxu0 0.0
      %1121 = vmatprep.subr.mxu0 0.0
      %1122 = vmatpush1.msra.mxu0 0.0
      %1123 = vmatprep.subr.mxu0 0.0
      %1124 = vmatpush1.msra.mxu0 0.0
      %1125 = vmatprep.subr.mxu0 0.0
      %1126 = vmatpush1.msra.mxu0 0.0
      %1127 = vmatprep.subr.mxu0 0.0
      %1128 = vmatpush1.msra.mxu0 0.0
      %1129 = vmatprep.subr.mxu0 0.0
      %1130 = vmatpush1.msra.mxu0 0.0
      %1131 = vmatprep.subr.mxu0 0.0
      %1132 = vmatpush1.msra.mxu0 0.0
      %1133 = vmatprep.subr.mxu0 0.0
      %1134 = vmatpush1.msra.mxu0 0.0
      %1135 = vmatprep.subr.mxu0 0.0
      %1136 = vmatpush1.msra.mxu0 0.0
      %1137 = vmatprep.subr.mxu0 0.0
      %1138 = vmatpush1.msra.mxu0 0.0
      %1139 = vmatprep.mubr.f32.mxu0 0.0
      %1140 = vmatmul.mubr.f32.gmra.mrb[0].mxu0 %v1028
      %v1141 = vpop.f32.mrb[0].mxu0
      %v1142 = vadd.f32 %v1025, %v1141
      %v1143 = vpop.f32.mrb[0].mxu0
      %1144 = vmatprep.mubr.f32.mxu0 0.0
      %1145 = vmatmul.mubr.f32.gmra.mrb[0].mxu0 %v1031
      %v1146 = vpop.f32.mrb[0].mxu0
      %v1147 = vadd.f32 %v1025, %v1146
      %v1148 = vpop.f32.mrb[0].mxu0
      %1149 = vmatprep.mubr.f32.mxu0 0.0
      %1150 = vmatmul.mubr.f32.gmra.mrb[0].mxu0 %v1034
      %v1151 = vpop.f32.mrb[0].mxu0
      %v1152 = vadd.f32 %v1025, %v1151
      %v1153 = vpop.f32.mrb[0].mxu0
      %1154 = vmatprep.mubr.f32.mxu0 0.0
      %1155 = vmatmul.mubr.f32.gmra.mrb[0].mxu0 %v1037
      %v1156 = vpop.f32.mrb[0].mxu0
      %v1157 = vadd.f32 %v1025, %v1156
      %v1158 = vpop.f32.mrb[0].mxu0
      %1159 = vmatprep.mubr.f32.mxu0 0.0
      %1160 = vmatmul.mubr.f32.gmra.mrb[0].mxu0 %v1040
      %v1161 = vpop.f32.mrb[0].mxu0
      %v1162 = vadd.f32 %v1025, %v1161
      %v1163 = vpop.f32.mrb[0].mxu0
      %1164 = vmatprep.mubr.f32.mxu0 0.0
      %1165 = vmatmul.mubr.f32.gmra.mrb[0].mxu0 %v1043
      %v1166 = vpop.f32.mrb[0].mxu0
      %v1167 = vadd.f32 %v1025, %v1166
      %v1168 = vpop.f32.mrb[0].mxu0
      %1169 = vmatprep.mubr.f32.mxu0 0.0
      %1170 = vmatmul.mubr.f32.gmra.mrb[0].mxu0 %v1046
      %v1171 = vpop.f32.mrb[0].mxu0
      %v1172 = vadd.f32 %v1025, %v1171
      %v1173 = vpop.f32.mrb[0].mxu0
      %1174 = vmatprep.mubr.f32.mxu0 0.0
      %1175 = vmatmul.mubr.f32.gmra.mrb[0].mxu0 %v1049
      %v1176 = vpop.f32.mrb[0].mxu0
      %v1177 = vadd.f32 %v1025, %v1176
      %v1178 = vpop.f32.mrb[0].mxu0
      %1179 = vmatprep.mubr.f32.mxu0 0.0
      %1180 = vmatmul.mubr.f32.gmra.mrb[0].mxu0 %v1052
      %v1181 = vpop.f32.mrb[0].mxu0
      %v1182 = vadd.f32 %v1025, %v1181
      %v1183 = vpop.f32.mrb[0].mxu0
      %1184 = vmatprep.mubr.f32.mxu0 0.0
      %1185 = vmatmul.mubr.f32.gmra.mrb[0].mxu0 %v1055
      %v1186 = vpop.f32.mrb[0].mxu0
      %v1187 = vadd.f32 %v1025, %v1186
      %v1188 = vpop.f32.mrb[0].mxu0
      %1189 = vmatprep.mubr.f32.mxu0 0.0
      %1190 = vmatmul.mubr.f32.gmra.mrb[0].mxu0 %v1058
      %v1191 = vpop.f32.mrb[0].mxu0
      %v1192 = vadd.f32 %v1025, %v1191
      %v1193 = vpop.f32.mrb[0].mxu0
      %1194 = vmatprep.mubr.f32.mxu0 0.0
      %1195 = vmatmul.mubr.f32.gmra.mrb[0].mxu0 %v1061
      %v1196 = vpop.f32.mrb[0].mxu0
      %v1197 = vadd.f32 %v1025, %v1196
      %v1198 = vpop.f32.mrb[0].mxu0
      %1199 = vmatprep.mubr.f32.mxu0 0.0
      %1200 = vmatmul.mubr.f32.gmra.mrb[0].mxu0 %v1064
      %v1201 = vpop.f32.mrb[0].mxu0
      %v1202 = vadd.f32 %v1025, %v1201
      %v1203 = vpop.f32.mrb[0].mxu0
      %1204 = vmatprep.mubr.f32.mxu0 0.0
      %1205 = vmatmul.mubr.f32.gmra.mrb[0].mxu0 %v1067
      %v1206 = vpop.f32.mrb[0].mxu0
      %v1207 = vadd.f32 %v1025, %v1206
      %v1208 = vpop.f32.mrb[0].mxu0
      %1209 = vmatprep.mubr.f32.mxu0 0.0
      %1210 = vmatmul.mubr.f32.gmra.mrb[0].mxu0 %v1070
      %v1211 = vpop.f32.mrb[0].mxu0
      %v1212 = vadd.f32 %v1025, %v1211
      %v1213 = vpop.f32.mrb[0].mxu0
      %1214 = vmatprep.mubr.f32.mxu0 0.0
      %1215 = vmatmul.mubr.f32.gmra.mrb[0].mxu0 %v1073
      %v1216 = vpop.f32.mrb[0].mxu0
      %v1217 = vadd.f32 %v1025, %v1216
      %v1218 = vpop.f32.mrb[0].mxu0
      %1219 = vdwg.mxu0
      %v1220 = vld [vmem:[%s8] sm:$0xff]
      %v1221 = vld [vmem:[%s8 + $0x8] sm:$0xff]
      %v1222 = vld [vmem:[%s8 + $0x10] sm:$0xff]
      %v1223 = vld [vmem:[%s8 + $0x18] sm:$0xff]
      %v1224 = vld [vmem:[%s9] sm:$0x1]
      %v1226 = vlaneseq
      %v1227 = vshrl.u32 %v1226, 7
      %v1228 = vsub.s32 0, %v1227
      %v1229 = vrot.slane %v1224, %v1228
      %v1232 = vsel %vm508, %v1000, 0
      %v1235 = vsel %vm508, %v1001, 0
      %v1238 = vsel %vm508, %v1002, 0
      %v1241 = vsel %vm508, %v1003, 0
      %v1244 = vsel %vm508, %v1004, 0
      %v1247 = vsel %vm508, %v1005, 0
      %v1250 = vsel %vm508, %v1006, 0
      %v1253 = vsel %vm508, %v1007, 0
      %v1256 = vsel %vm508, %v1008, 0
      %v1259 = vsel %vm508, %v1009, 0
      %v1262 = vsel %vm508, %v1010, 0
      %v1265 = vsel %vm508, %v1011, 0
      %v1268 = vsel %vm508, %v1012, 0
      %v1271 = vsel %vm508, %v1013, 0
      %v1274 = vsel %vm508, %v1014, 0
      %v1277 = vsel %vm508, %v1015, 0
      %1279 = vmatprep.subr.mxu0 0.0
      %1280 = vmatpush1.msra.mxu0 %v1220
      %1281 = vmatprep.subr.mxu0 0.0
      %1282 = vmatpush1.msra.mxu0 %v1221
      %1283 = vmatprep.subr.mxu0 0.0
      %1284 = vmatpush1.msra.mxu0 %v1222
      %1285 = vmatprep.subr.mxu0 0.0
      %1286 = vmatpush1.msra.mxu0 %v1223
      %1287 = vmatprep.subr.mxu0 0.0
      %1288 = vmatpush1.msra.mxu0 0.0
      %1289 = vmatprep.subr.mxu0 0.0
      %1290 = vmatpush1.msra.mxu0 0.0
      %1291 = vmatprep.subr.mxu0 0.0
      %1292 = vmatpush1.msra.mxu0 0.0
      %1293 = vmatprep.subr.mxu0 0.0
      %1294 = vmatpush1.msra.mxu0 0.0
      %1295 = vmatprep.subr.mxu0 0.0
      %1296 = vmatpush1.msra.mxu0 0.0
      %1297 = vmatprep.subr.mxu0 0.0
      %1298 = vmatpush1.msra.mxu0 0.0
      %1299 = vmatprep.subr.mxu0 0.0
      %1300 = vmatpush1.msra.mxu0 0.0
      %1301 = vmatprep.subr.mxu0 0.0
      %1302 = vmatpush1.msra.mxu0 0.0
      %1303 = vmatprep.subr.mxu0 0.0
      %1304 = vmatpush1.msra.mxu0 0.0
      %1305 = vmatprep.subr.mxu0 0.0
      %1306 = vmatpush1.msra.mxu0 0.0
      %1307 = vmatprep.subr.mxu0 0.0
      %1308 = vmatpush1.msra.mxu0 0.0
      %1309 = vmatprep.subr.mxu0 0.0
      %1310 = vmatpush1.msra.mxu0 0.0
      %1311 = vmatprep.subr.mxu0 0.0
      %1312 = vmatpush1.msra.mxu0 0.0
      %1313 = vmatprep.subr.mxu0 0.0
      %1314 = vmatpush1.msra.mxu0 0.0
      %1315 = vmatprep.subr.mxu0 0.0
      %1316 = vmatpush1.msra.mxu0 0.0
      %1317 = vmatprep.subr.mxu0 0.0
      %1318 = vmatpush1.msra.mxu0 0.0
      %1319 = vmatprep.subr.mxu0 0.0
      %1320 = vmatpush1.msra.mxu0 0.0
      %1321 = vmatprep.subr.mxu0 0.0
      %1322 = vmatpush1.msra.mxu0 0.0
      %1323 = vmatprep.subr.mxu0 0.0
      %1324 = vmatpush1.msra.mxu0 0.0
      %1325 = vmatprep.subr.mxu0 0.0
      %1326 = vmatpush1.msra.mxu0 0.0
      %1327 = vmatprep.subr.mxu0 0.0
      %1328 = vmatpush1.msra.mxu0 0.0
      %1329 = vmatprep.subr.mxu0 0.0
      %1330 = vmatpush1.msra.mxu0 0.0
      %1331 = vmatprep.subr.mxu0 0.0
      %1332 = vmatpush1.msra.mxu0 0.0
      %1333 = vmatprep.subr.mxu0 0.0
      %1334 = vmatpush1.msra.mxu0 0.0
      %1335 = vmatprep.subr.mxu0 0.0
      %1336 = vmatpush1.msra.mxu0 0.0
      %1337 = vmatprep.subr.mxu0 0.0
      %1338 = vmatpush1.msra.mxu0 0.0
      %1339 = vmatprep.subr.mxu0 0.0
      %1340 = vmatpush1.msra.mxu0 0.0
      %1341 = vmatprep.subr.mxu0 0.0
      %1342 = vmatpush1.msra.mxu0 0.0
      %1343 = vmatprep.mubr.f32.mxu0 0.0
      %1344 = vmatmul.mubr.f32.gmra.mrb[0].mxu0 %v1232
      %v1345 = vpop.f32.mrb[0].mxu0
      %v1346 = vadd.f32 %v1229, %v1345
      %v1347 = vpop.f32.mrb[0].mxu0
      %1348 = vmatprep.mubr.f32.mxu0 0.0
      %1349 = vmatmul.mubr.f32.gmra.mrb[0].mxu0 %v1235
      %v1350 = vpop.f32.mrb[0].mxu0
      %v1351 = vadd.f32 %v1229, %v1350
      %v1352 = vpop.f32.mrb[0].mxu0
      %1353 = vmatprep.mubr.f32.mxu0 0.0
      %1354 = vmatmul.mubr.f32.gmra.mrb[0].mxu0 %v1238
      %v1355 = vpop.f32.mrb[0].mxu0
      %v1356 = vadd.f32 %v1229, %v1355
      %v1357 = vpop.f32.mrb[0].mxu0
      %1358 = vmatprep.mubr.f32.mxu0 0.0
      %1359 = vmatmul.mubr.f32.gmra.mrb[0].mxu0 %v1241
      %v1360 = vpop.f32.mrb[0].mxu0
      %v1361 = vadd.f32 %v1229, %v1360
      %v1362 = vpop.f32.mrb[0].mxu0
      %1363 = vmatprep.mubr.f32.mxu0 0.0
      %1364 = vmatmul.mubr.f32.gmra.mrb[0].mxu0 %v1244
      %v1365 = vpop.f32.mrb[0].mxu0
      %v1366 = vadd.f32 %v1229, %v1365
      %v1367 = vpop.f32.mrb[0].mxu0
      %1368 = vmatprep.mubr.f32.mxu0 0.0
      %1369 = vmatmul.mubr.f32.gmra.mrb[0].mxu0 %v1247
      %v1370 = vpop.f32.mrb[0].mxu0
      %v1371 = vadd.f32 %v1229, %v1370
      %v1372 = vpop.f32.mrb[0].mxu0
      %1373 = vmatprep.mubr.f32.mxu0 0.0
      %1374 = vmatmul.mubr.f32.gmra.mrb[0].mxu0 %v1250
      %v1375 = vpop.f32.mrb[0].mxu0
      %v1376 = vadd.f32 %v1229, %v1375
      %v1377 = vpop.f32.mrb[0].mxu0
      %1378 = vmatprep.mubr.f32.mxu0 0.0
      %1379 = vmatmul.mubr.f32.gmra.mrb[0].mxu0 %v1253
      %v1380 = vpop.f32.mrb[0].mxu0
      %v1381 = vadd.f32 %v1229, %v1380
      %v1382 = vpop.f32.mrb[0].mxu0
      %1383 = vmatprep.mubr.f32.mxu0 0.0
      %1384 = vmatmul.mubr.f32.gmra.mrb[0].mxu0 %v1256
      %v1385 = vpop.f32.mrb[0].mxu0
      %v1386 = vadd.f32 %v1229, %v1385
      %v1387 = vpop.f32.mrb[0].mxu0
      %1388 = vmatprep.mubr.f32.mxu0 0.0
      %1389 = vmatmul.mubr.f32.gmra.mrb[0].mxu0 %v1259
      %v1390 = vpop.f32.mrb[0].mxu0
      %v1391 = vadd.f32 %v1229, %v1390
      %v1392 = vpop.f32.mrb[0].mxu0
      %1393 = vmatprep.mubr.f32.mxu0 0.0
      %1394 = vmatmul.mubr.f32.gmra.mrb[0].mxu0 %v1262
      %v1395 = vpop.f32.mrb[0].mxu0
      %v1396 = vadd.f32 %v1229, %v1395
      %v1397 = vpop.f32.mrb[0].mxu0
      %1398 = vmatprep.mubr.f32.mxu0 0.0
      %1399 = vmatmul.mubr.f32.gmra.mrb[0].mxu0 %v1265
      %v1400 = vpop.f32.mrb[0].mxu0
      %v1401 = vadd.f32 %v1229, %v1400
      %v1402 = vpop.f32.mrb[0].mxu0
      %1403 = vmatprep.mubr.f32.mxu0 0.0
      %1404 = vmatmul.mubr.f32.gmra.mrb[0].mxu0 %v1268
      %v1405 = vpop.f32.mrb[0].mxu0
      %v1406 = vadd.f32 %v1229, %v1405
      %v1407 = vpop.f32.mrb[0].mxu0
      %1408 = vmatprep.mubr.f32.mxu0 0.0
      %1409 = vmatmul.mubr.f32.gmra.mrb[0].mxu0 %v1271
      %v1410 = vpop.f32.mrb[0].mxu0
      %v1411 = vadd.f32 %v1229, %v1410
      %v1412 = vpop.f32.mrb[0].mxu0
      %1413 = vmatprep.mubr.f32.mxu0 0.0
      %1414 = vmatmul.mubr.f32.gmra.mrb[0].mxu0 %v1274
      %v1415 = vpop.f32.mrb[0].mxu0
      %v1416 = vadd.f32 %v1229, %v1415
      %v1417 = vpop.f32.mrb[0].mxu0
      %1418 = vmatprep.mubr.f32.mxu0 0.0
      %1419 = vmatmul.mubr.f32.gmra.mrb[0].mxu0 %v1277
      %v1420 = vpop.f32.mrb[0].mxu0
      %v1421 = vadd.f32 %v1229, %v1420
      %v1422 = vpop.f32.mrb[0].mxu0
      %1423 = vdwg.mxu0
      %v1424 = vld [vmem:[%s12] sm:$0xff]
      %v1425 = vld [vmem:[%s12 + $0x8] sm:$0xff]
      %v1426 = vld [vmem:[%s12 + $0x10] sm:$0xff]
      %v1427 = vld [vmem:[%s12 + $0x18] sm:$0xff]
      %vm1428 = vcmask 130048
      %v1430 = vsel %vm1428, %v1142, 0
      %v1433 = vsel %vm1428, %v1147, 0
      %v1436 = vsel %vm1428, %v1152, 0
      %v1439 = vsel %vm1428, %v1157, 0
      %v1442 = vsel %vm1428, %v1346, 0
      %v1445 = vsel %vm1428, %v1351, 0
      %v1448 = vsel %vm1428, %v1356, 0
      %v1451 = vsel %vm1428, %v1361, 0
      %1453 = vmatprep.subr.mxu0 0.0
      %1454 = vmatpush1.xpose.msra.mxu0 %v1442
      %1455 = vmatprep.subr.mxu0 0.0
      %1456 = vmatpush1.xpose.msra.mxu0 %v1445
      %1457 = vmatprep.subr.mxu0 0.0
      %1458 = vmatpush1.xpose.msra.mxu0 %v1448
      %1459 = vmatprep.subr.mxu0 0.0
      %1460 = vmatpush1.xpose.msra.mxu0 %v1451
      %1461 = vmatprep.subr.mxu0 0.0
      %1462 = vmatpush1.xpose.msra.mxu0 0.0
      %1463 = vmatprep.subr.mxu0 0.0
      %1464 = vmatpush1.xpose.msra.mxu0 0.0
      %1465 = vmatprep.subr.mxu0 0.0
      %1466 = vmatpush1.xpose.msra.mxu0 0.0
      %1467 = vmatprep.subr.mxu0 0.0
      %1468 = vmatpush1.xpose.msra.mxu0 0.0
      %1469 = vmatprep.subr.mxu0 0.0
      %1470 = vmatpush1.xpose.msra.mxu0 0.0
      %1471 = vmatprep.subr.mxu0 0.0
      %1472 = vmatpush1.xpose.msra.mxu0 0.0
      %1473 = vmatprep.subr.mxu0 0.0
      %1474 = vmatpush1.xpose.msra.mxu0 0.0
      %1475 = vmatprep.subr.mxu0 0.0
      %1476 = vmatpush1.xpose.msra.mxu0 0.0
      %1477 = vmatprep.subr.mxu0 0.0
      %1478 = vmatpush1.xpose.msra.mxu0 0.0
      %1479 = vmatprep.subr.mxu0 0.0
      %1480 = vmatpush1.xpose.msra.mxu0 0.0
      %1481 = vmatprep.subr.mxu0 0.0
      %1482 = vmatpush1.xpose.msra.mxu0 0.0
      %1483 = vmatprep.subr.mxu0 0.0
      %1484 = vmatpush1.xpose.msra.mxu0 0.0
      %1485 = vmatprep.subr.mxu0 0.0
      %1486 = vmatpush1.xpose.msra.mxu0 0.0
      %1487 = vmatprep.subr.mxu0 0.0
      %1488 = vmatpush1.xpose.msra.mxu0 0.0
      %1489 = vmatprep.subr.mxu0 0.0
      %1490 = vmatpush1.xpose.msra.mxu0 0.0
      %1491 = vmatprep.subr.mxu0 0.0
      %1492 = vmatpush1.xpose.msra.mxu0 0.0
      %1493 = vmatprep.subr.mxu0 0.0
      %1494 = vmatpush1.xpose.msra.mxu0 0.0
      %1495 = vmatprep.subr.mxu0 0.0
      %1496 = vmatpush1.xpose.msra.mxu0 0.0
      %1497 = vmatprep.subr.mxu0 0.0
      %1498 = vmatpush1.xpose.msra.mxu0 0.0
      %1499 = vmatprep.subr.mxu0 0.0
      %1500 = vmatpush1.xpose.msra.mxu0 0.0
      %1501 = vmatprep.subr.mxu0 0.0
      %1502 = vmatpush1.xpose.msra.mxu0 0.0
      %1503 = vmatprep.subr.mxu0 0.0
      %1504 = vmatpush1.xpose.msra.mxu0 0.0
      %1505 = vmatprep.subr.mxu0 0.0
      %1506 = vmatpush1.xpose.msra.mxu0 0.0
      %1507 = vmatprep.subr.mxu0 0.0
      %1508 = vmatpush1.xpose.msra.mxu0 0.0
      %1509 = vmatprep.subr.mxu0 0.0
      %1510 = vmatpush1.xpose.msra.mxu0 0.0
      %1511 = vmatprep.subr.mxu0 0.0
      %1512 = vmatpush1.xpose.msra.mxu0 0.0
      %1513 = vmatprep.subr.mxu0 0.0
      %1514 = vmatpush1.xpose.msra.mxu0 0.0
      %1515 = vmatprep.subr.mxu0 0.0
      %1516 = vmatpush1.xpose.msra.mxu0 0.0
      %1517 = vmatprep.mubr.f32.mxu0 0.0
      %1518 = vmatmul.mubr.f32.gmra.mrb[0].mxu0 %v1430
      %v1519 = vpop.f32.mrb[0].mxu0
      %v1520 = vadd.f32 %v1424, %v1519
      %v1521 = vpop.f32.mrb[0].mxu0
      %1522 = vmatprep.mubr.f32.mxu0 0.0
      %1523 = vmatmul.mubr.f32.gmra.mrb[0].mxu0 %v1433
      %v1524 = vpop.f32.mrb[0].mxu0
      %v1525 = vadd.f32 %v1425, %v1524
      %v1526 = vpop.f32.mrb[0].mxu0
      %1527 = vmatprep.mubr.f32.mxu0 0.0
      %1528 = vmatmul.mubr.f32.gmra.mrb[0].mxu0 %v1436
      %v1529 = vpop.f32.mrb[0].mxu0
      %v1530 = vadd.f32 %v1426, %v1529
      %v1531 = vpop.f32.mrb[0].mxu0
      %1532 = vmatprep.mubr.f32.mxu0 0.0
      %1533 = vmatmul.mubr.f32.gmra.mrb[0].mxu0 %v1439
      %v1534 = vpop.f32.mrb[0].mxu0
      %v1535 = vadd.f32 %v1427, %v1534
      %v1536 = vpop.f32.mrb[0].mxu0
      %1537 = vdwg.mxu0
      %v1539 = vsel %vm1428, %v1162, 0
      %v1542 = vsel %vm1428, %v1167, 0
      %v1545 = vsel %vm1428, %v1172, 0
      %v1548 = vsel %vm1428, %v1177, 0
      %v1551 = vsel %vm1428, %v1366, 0
      %v1554 = vsel %vm1428, %v1371, 0
      %v1557 = vsel %vm1428, %v1376, 0
      %v1560 = vsel %vm1428, %v1381, 0
      %1562 = vmatprep.subr.mxu0 0.0
      %1563 = vmatpush1.xpose.msra.mxu0 %v1551
      %1564 = vmatprep.subr.mxu0 0.0
      %1565 = vmatpush1.xpose.msra.mxu0 %v1554
      %1566 = vmatprep.subr.mxu0 0.0
      %1567 = vmatpush1.xpose.msra.mxu0 %v1557
      %1568 = vmatprep.subr.mxu0 0.0
      %1569 = vmatpush1.xpose.msra.mxu0 %v1560
      %1570 = vmatprep.subr.mxu0 0.0
      %1571 = vmatpush1.xpose.msra.mxu0 0.0
      %1572 = vmatprep.subr.mxu0 0.0
      %1573 = vmatpush1.xpose.msra.mxu0 0.0
      %1574 = vmatprep.subr.mxu0 0.0
      %1575 = vmatpush1.xpose.msra.mxu0 0.0
      %1576 = vmatprep.subr.mxu0 0.0
      %1577 = vmatpush1.xpose.msra.mxu0 0.0
      %1578 = vmatprep.subr.mxu0 0.0
      %1579 = vmatpush1.xpose.msra.mxu0 0.0
      %1580 = vmatprep.subr.mxu0 0.0
      %1581 = vmatpush1.xpose.msra.mxu0 0.0
      %1582 = vmatprep.subr.mxu0 0.0
      %1583 = vmatpush1.xpose.msra.mxu0 0.0
      %1584 = vmatprep.subr.mxu0 0.0
      %1585 = vmatpush1.xpose.msra.mxu0 0.0
      %1586 = vmatprep.subr.mxu0 0.0
      %1587 = vmatpush1.xpose.msra.mxu0 0.0
      %1588 = vmatprep.subr.mxu0 0.0
      %1589 = vmatpush1.xpose.msra.mxu0 0.0
      %1590 = vmatprep.subr.mxu0 0.0
      %1591 = vmatpush1.xpose.msra.mxu0 0.0
      %1592 = vmatprep.subr.mxu0 0.0
      %1593 = vmatpush1.xpose.msra.mxu0 0.0
      %1594 = vmatprep.subr.mxu0 0.0
      %1595 = vmatpush1.xpose.msra.mxu0 0.0
      %1596 = vmatprep.subr.mxu0 0.0
      %1597 = vmatpush1.xpose.msra.mxu0 0.0
      %1598 = vmatprep.subr.mxu0 0.0
      %1599 = vmatpush1.xpose.msra.mxu0 0.0
      %1600 = vmatprep.subr.mxu0 0.0
      %1601 = vmatpush1.xpose.msra.mxu0 0.0
      %1602 = vmatprep.subr.mxu0 0.0
      %1603 = vmatpush1.xpose.msra.mxu0 0.0
      %1604 = vmatprep.subr.mxu0 0.0
      %1605 = vmatpush1.xpose.msra.mxu0 0.0
      %1606 = vmatprep.subr.mxu0 0.0
      %1607 = vmatpush1.xpose.msra.mxu0 0.0
      %1608 = vmatprep.subr.mxu0 0.0
      %1609 = vmatpush1.xpose.msra.mxu0 0.0
      %1610 = vmatprep.subr.mxu0 0.0
      %1611 = vmatpush1.xpose.msra.mxu0 0.0
      %1612 = vmatprep.subr.mxu0 0.0
      %1613 = vmatpush1.xpose.msra.mxu0 0.0
      %1614 = vmatprep.subr.mxu0 0.0
      %1615 = vmatpush1.xpose.msra.mxu0 0.0
      %1616 = vmatprep.subr.mxu0 0.0
      %1617 = vmatpush1.xpose.msra.mxu0 0.0
      %1618 = vmatprep.subr.mxu0 0.0
      %1619 = vmatpush1.xpose.msra.mxu0 0.0
      %1620 = vmatprep.subr.mxu0 0.0
      %1621 = vmatpush1.xpose.msra.mxu0 0.0
      %1622 = vmatprep.subr.mxu0 0.0
      %1623 = vmatpush1.xpose.msra.mxu0 0.0
      %1624 = vmatprep.subr.mxu0 0.0
      %1625 = vmatpush1.xpose.msra.mxu0 0.0
      %1626 = vmatprep.mubr.f32.mxu0 0.0
      %1627 = vmatmul.mubr.f32.gmra.mrb[0].mxu0 %v1539
      %v1628 = vpop.f32.mrb[0].mxu0
      %v1629 = vadd.f32 %v1424, %v1628
      %v1630 = vpop.f32.mrb[0].mxu0
      %1631 = vmatprep.mubr.f32.mxu0 0.0
      %1632 = vmatmul.mubr.f32.gmra.mrb[0].mxu0 %v1542
      %v1633 = vpop.f32.mrb[0].mxu0
      %v1634 = vadd.f32 %v1425, %v1633
      %v1635 = vpop.f32.mrb[0].mxu0
      %1636 = vmatprep.mubr.f32.mxu0 0.0
      %1637 = vmatmul.mubr.f32.gmra.mrb[0].mxu0 %v1545
      %v1638 = vpop.f32.mrb[0].mxu0
      %v1639 = vadd.f32 %v1426, %v1638
      %v1640 = vpop.f32.mrb[0].mxu0
      %1641 = vmatprep.mubr.f32.mxu0 0.0
      %1642 = vmatmul.mubr.f32.gmra.mrb[0].mxu0 %v1548
      %v1643 = vpop.f32.mrb[0].mxu0
      %v1644 = vadd.f32 %v1427, %v1643
      %v1645 = vpop.f32.mrb[0].mxu0
      %1646 = vdwg.mxu0
      %v1648 = vsel %vm1428, %v1182, 0
      %v1651 = vsel %vm1428, %v1187, 0
      %v1654 = vsel %vm1428, %v1192, 0
      %v1657 = vsel %vm1428, %v1197, 0
      %v1660 = vsel %vm1428, %v1386, 0
      %v1663 = vsel %vm1428, %v1391, 0
      %v1666 = vsel %vm1428, %v1396, 0
      %v1669 = vsel %vm1428, %v1401, 0
      %1671 = vmatprep.subr.mxu0 0.0
      %1672 = vmatpush1.xpose.msra.mxu0 %v1660
      %1673 = vmatprep.subr.mxu0 0.0
      %1674 = vmatpush1.xpose.msra.mxu0 %v1663
      %1675 = vmatprep.subr.mxu0 0.0
      %1676 = vmatpush1.xpose.msra.mxu0 %v1666
      %1677 = vmatprep.subr.mxu0 0.0
      %1678 = vmatpush1.xpose.msra.mxu0 %v1669
      %1679 = vmatprep.subr.mxu0 0.0
      %1680 = vmatpush1.xpose.msra.mxu0 0.0
      %1681 = vmatprep.subr.mxu0 0.0
      %1682 = vmatpush1.xpose.msra.mxu0 0.0
      %1683 = vmatprep.subr.mxu0 0.0
      %1684 = vmatpush1.xpose.msra.mxu0 0.0
      %1685 = vmatprep.subr.mxu0 0.0
      %1686 = vmatpush1.xpose.msra.mxu0 0.0
      %1687 = vmatprep.subr.mxu0 0.0
      %1688 = vmatpush1.xpose.msra.mxu0 0.0
      %1689 = vmatprep.subr.mxu0 0.0
      %1690 = vmatpush1.xpose.msra.mxu0 0.0
      %1691 = vmatprep.subr.mxu0 0.0
      %1692 = vmatpush1.xpose.msra.mxu0 0.0
      %1693 = vmatprep.subr.mxu0 0.0
      %1694 = vmatpush1.xpose.msra.mxu0 0.0
      %1695 = vmatprep.subr.mxu0 0.0
      %1696 = vmatpush1.xpose.msra.mxu0 0.0
      %1697 = vmatprep.subr.mxu0 0.0
      %1698 = vmatpush1.xpose.msra.mxu0 0.0
      %1699 = vmatprep.subr.mxu0 0.0
      %1700 = vmatpush1.xpose.msra.mxu0 0.0
      %1701 = vmatprep.subr.mxu0 0.0
      %1702 = vmatpush1.xpose.msra.mxu0 0.0
      %1703 = vmatprep.subr.mxu0 0.0
      %1704 = vmatpush1.xpose.msra.mxu0 0.0
      %1705 = vmatprep.subr.mxu0 0.0
      %1706 = vmatpush1.xpose.msra.mxu0 0.0
      %1707 = vmatprep.subr.mxu0 0.0
      %1708 = vmatpush1.xpose.msra.mxu0 0.0
      %1709 = vmatprep.subr.mxu0 0.0
      %1710 = vmatpush1.xpose.msra.mxu0 0.0
      %1711 = vmatprep.subr.mxu0 0.0
      %1712 = vmatpush1.xpose.msra.mxu0 0.0
      %1713 = vmatprep.subr.mxu0 0.0
      %1714 = vmatpush1.xpose.msra.mxu0 0.0
      %1715 = vmatprep.subr.mxu0 0.0
      %1716 = vmatpush1.xpose.msra.mxu0 0.0
      %1717 = vmatprep.subr.mxu0 0.0
      %1718 = vmatpush1.xpose.msra.mxu0 0.0
      %1719 = vmatprep.subr.mxu0 0.0
      %1720 = vmatpush1.xpose.msra.mxu0 0.0
      %1721 = vmatprep.subr.mxu0 0.0
      %1722 = vmatpush1.xpose.msra.mxu0 0.0
      %1723 = vmatprep.subr.mxu0 0.0
      %1724 = vmatpush1.xpose.msra.mxu0 0.0
      %1725 = vmatprep.subr.mxu0 0.0
      %1726 = vmatpush1.xpose.msra.mxu0 0.0
      %1727 = vmatprep.subr.mxu0 0.0
      %1728 = vmatpush1.xpose.msra.mxu0 0.0
      %1729 = vmatprep.subr.mxu0 0.0
      %1730 = vmatpush1.xpose.msra.mxu0 0.0
      %1731 = vmatprep.subr.mxu0 0.0
      %1732 = vmatpush1.xpose.msra.mxu0 0.0
      %1733 = vmatprep.subr.mxu0 0.0
      %1734 = vmatpush1.xpose.msra.mxu0 0.0
      %1735 = vmatprep.mubr.f32.mxu0 0.0
      %1736 = vmatmul.mubr.f32.gmra.mrb[0].mxu0 %v1648
      %v1737 = vpop.f32.mrb[0].mxu0
      %v1738 = vadd.f32 %v1424, %v1737
      %v1739 = vpop.f32.mrb[0].mxu0
      %1740 = vmatprep.mubr.f32.mxu0 0.0
      %1741 = vmatmul.mubr.f32.gmra.mrb[0].mxu0 %v1651
      %v1742 = vpop.f32.mrb[0].mxu0
      %v1743 = vadd.f32 %v1425, %v1742
      %v1744 = vpop.f32.mrb[0].mxu0
      %1745 = vmatprep.mubr.f32.mxu0 0.0
      %1746 = vmatmul.mubr.f32.gmra.mrb[0].mxu0 %v1654
      %v1747 = vpop.f32.mrb[0].mxu0
      %v1748 = vadd.f32 %v1426, %v1747
      %v1749 = vpop.f32.mrb[0].mxu0
      %1750 = vmatprep.mubr.f32.mxu0 0.0
      %1751 = vmatmul.mubr.f32.gmra.mrb[0].mxu0 %v1657
      %v1752 = vpop.f32.mrb[0].mxu0
      %v1753 = vadd.f32 %v1427, %v1752
      %v1754 = vpop.f32.mrb[0].mxu0
      %1755 = vdwg.mxu0
      %v1757 = vsel %vm1428, %v1202, 0
      %v1760 = vsel %vm1428, %v1207, 0
      %v1763 = vsel %vm1428, %v1212, 0
      %v1766 = vsel %vm1428, %v1217, 0
      %v1769 = vsel %vm1428, %v1406, 0
      %v1772 = vsel %vm1428, %v1411, 0
      %v1775 = vsel %vm1428, %v1416, 0
      %v1778 = vsel %vm1428, %v1421, 0
      %1780 = vmatprep.subr.mxu0 0.0
      %1781 = vmatpush1.xpose.msra.mxu0 %v1769
      %1782 = vmatprep.subr.mxu0 0.0
      %1783 = vmatpush1.xpose.msra.mxu0 %v1772
      %1784 = vmatprep.subr.mxu0 0.0
      %1785 = vmatpush1.xpose.msra.mxu0 %v1775
      %1786 = vmatprep.subr.mxu0 0.0
      %1787 = vmatpush1.xpose.msra.mxu0 %v1778
      %1788 = vmatprep.subr.mxu0 0.0
      %1789 = vmatpush1.xpose.msra.mxu0 0.0
      %1790 = vmatprep.subr.mxu0 0.0
      %1791 = vmatpush1.xpose.msra.mxu0 0.0
      %1792 = vmatprep.subr.mxu0 0.0
      %1793 = vmatpush1.xpose.msra.mxu0 0.0
      %1794 = vmatprep.subr.mxu0 0.0
      %1795 = vmatpush1.xpose.msra.mxu0 0.0
      %1796 = vmatprep.subr.mxu0 0.0
      %1797 = vmatpush1.xpose.msra.mxu0 0.0
      %1798 = vmatprep.subr.mxu0 0.0
      %1799 = vmatpush1.xpose.msra.mxu0 0.0
      %1800 = vmatprep.subr.mxu0 0.0
      %1801 = vmatpush1.xpose.msra.mxu0 0.0
      %1802 = vmatprep.subr.mxu0 0.0
      %1803 = vmatpush1.xpose.msra.mxu0 0.0
      %1804 = vmatprep.subr.mxu0 0.0
      %1805 = vmatpush1.xpose.msra.mxu0 0.0
      %1806 = vmatprep.subr.mxu0 0.0
      %1807 = vmatpush1.xpose.msra.mxu0 0.0
      %1808 = vmatprep.subr.mxu0 0.0
      %1809 = vmatpush1.xpose.msra.mxu0 0.0
      %1810 = vmatprep.subr.mxu0 0.0
      %1811 = vmatpush1.xpose.msra.mxu0 0.0
      %1812 = vmatprep.subr.mxu0 0.0
      %1813 = vmatpush1.xpose.msra.mxu0 0.0
      %1814 = vmatprep.subr.mxu0 0.0
      %1815 = vmatpush1.xpose.msra.mxu0 0.0
      %1816 = vmatprep.subr.mxu0 0.0
      %1817 = vmatpush1.xpose.msra.mxu0 0.0
      %1818 = vmatprep.subr.mxu0 0.0
      %1819 = vmatpush1.xpose.msra.mxu0 0.0
      %1820 = vmatprep.subr.mxu0 0.0
      %1821 = vmatpush1.xpose.msra.mxu0 0.0
      %1822 = vmatprep.subr.mxu0 0.0
      %1823 = vmatpush1.xpose.msra.mxu0 0.0
      %1824 = vmatprep.subr.mxu0 0.0
      %1825 = vmatpush1.xpose.msra.mxu0 0.0
      %1826 = vmatprep.subr.mxu0 0.0
      %1827 = vmatpush1.xpose.msra.mxu0 0.0
      %1828 = vmatprep.subr.mxu0 0.0
      %1829 = vmatpush1.xpose.msra.mxu0 0.0
      %1830 = vmatprep.subr.mxu0 0.0
      %1831 = vmatpush1.xpose.msra.mxu0 0.0
      %1832 = vmatprep.subr.mxu0 0.0
      %1833 = vmatpush1.xpose.msra.mxu0 0.0
      %1834 = vmatprep.subr.mxu0 0.0
      %1835 = vmatpush1.xpose.msra.mxu0 0.0
      %1836 = vmatprep.subr.mxu0 0.0
      %1837 = vmatpush1.xpose.msra.mxu0 0.0
      %1838 = vmatprep.subr.mxu0 0.0
      %1839 = vmatpush1.xpose.msra.mxu0 0.0
      %1840 = vmatprep.subr.mxu0 0.0
      %1841 = vmatpush1.xpose.msra.mxu0 0.0
      %1842 = vmatprep.subr.mxu0 0.0
      %1843 = vmatpush1.xpose.msra.mxu0 0.0
      %1844 = vmatprep.mubr.f32.mxu0 0.0
      %1845 = vmatmul.mubr.f32.gmra.mrb[0].mxu0 %v1757
      %v1846 = vpop.f32.mrb[0].mxu0
      %v1847 = vadd.f32 %v1424, %v1846
      %v1848 = vpop.f32.mrb[0].mxu0
      %1849 = vmatprep.mubr.f32.mxu0 0.0
      %1850 = vmatmul.mubr.f32.gmra.mrb[0].mxu0 %v1760
      %v1851 = vpop.f32.mrb[0].mxu0
      %v1852 = vadd.f32 %v1425, %v1851
      %v1853 = vpop.f32.mrb[0].mxu0
      %1854 = vmatprep.mubr.f32.mxu0 0.0
      %1855 = vmatmul.mubr.f32.gmra.mrb[0].mxu0 %v1763
      %v1856 = vpop.f32.mrb[0].mxu0
      %v1857 = vadd.f32 %v1426, %v1856
      %v1858 = vpop.f32.mrb[0].mxu0
      %1859 = vmatprep.mubr.f32.mxu0 0.0
      %1860 = vmatmul.mubr.f32.gmra.mrb[0].mxu0 %v1766
      %v1861 = vpop.f32.mrb[0].mxu0
      %v1862 = vadd.f32 %v1427, %v1861
      %v1863 = vpop.f32.mrb[0].mxu0
      %1864 = vdwg.mxu0
      %v1865 = vsel %vm508, %v1520, -inf
      %1866 = vmax.xlane.f32.xlu0 %v1865
      %v1867 = vpop.xlane.xlu0 %1866
      %v1868 = vsel %vm508, %v1525, -inf
      %1869 = vmax.xlane.f32.xlu0 %v1868
      %v1870 = vpop.xlane.xlu0 %1869
      %v1871 = vsel %vm508, %v1530, -inf
      %1872 = vmax.xlane.f32.xlu0 %v1871
      %v1873 = vpop.xlane.xlu0 %1872
      %v1874 = vsel %vm508, %v1535, -inf
      %1875 = vmax.xlane.f32.xlu0 %v1874
      %v1876 = vpop.xlane.xlu0 %1875
      %v1877 = vsel %vm508, %v1629, -inf
      %1878 = vmax.xlane.f32.xlu0 %v1877
      %v1879 = vpop.xlane.xlu0 %1878
      %v1880 = vsel %vm508, %v1634, -inf
      %1881 = vmax.xlane.f32.xlu0 %v1880
      %v1882 = vpop.xlane.xlu0 %1881
      %v1883 = vsel %vm508, %v1639, -inf
      %1884 = vmax.xlane.f32.xlu0 %v1883
      %v1885 = vpop.xlane.xlu0 %1884
      %v1886 = vsel %vm508, %v1644, -inf
      %1887 = vmax.xlane.f32.xlu0 %v1886
      %v1888 = vpop.xlane.xlu0 %1887
      %v1889 = vsel %vm508, %v1738, -inf
      %1890 = vmax.xlane.f32.xlu0 %v1889
      %v1891 = vpop.xlane.xlu0 %1890
      %v1892 = vsel %vm508, %v1743, -inf
      %1893 = vmax.xlane.f32.xlu0 %v1892
      %v1894 = vpop.xlane.xlu0 %1893
      %v1895 = vsel %vm508, %v1748, -inf
      %1896 = vmax.xlane.f32.xlu0 %v1895
      %v1897 = vpop.xlane.xlu0 %1896
      %v1898 = vsel %vm508, %v1753, -inf
      %1899 = vmax.xlane.f32.xlu0 %v1898
      %v1900 = vpop.xlane.xlu0 %1899
      %v1901 = vsel %vm508, %v1847, -inf
      %1902 = vmax.xlane.f32.xlu0 %v1901
      %v1903 = vpop.xlane.xlu0 %1902
      %v1904 = vsel %vm508, %v1852, -inf
      %1905 = vmax.xlane.f32.xlu0 %v1904
      %v1906 = vpop.xlane.xlu0 %1905
      %v1907 = vsel %vm508, %v1857, -inf
      %1908 = vmax.xlane.f32.xlu0 %v1907
      %v1909 = vpop.xlane.xlu0 %1908
      %v1910 = vsel %vm508, %v1862, -inf
      %1911 = vmax.xlane.f32.xlu0 %v1910
      %v1912 = vpop.xlane.xlu0 %1911
      %v1913 = vsub.f32 %v1520, %v1867
      %v1914 = vsub.f32 %v1525, %v1870
      %v1915 = vsub.f32 %v1530, %v1873
      %v1916 = vsub.f32 %v1535, %v1876
      %v1917 = vsub.f32 %v1629, %v1879
      %v1918 = vsub.f32 %v1634, %v1882
      %v1919 = vsub.f32 %v1639, %v1885
      %v1920 = vsub.f32 %v1644, %v1888
      %v1921 = vsub.f32 %v1738, %v1891
      %v1922 = vsub.f32 %v1743, %v1894
      %v1923 = vsub.f32 %v1748, %v1897
      %v1924 = vsub.f32 %v1753, %v1900
      %v1925 = vsub.f32 %v1847, %v1903
      %v1926 = vsub.f32 %v1852, %v1906
      %v1927 = vsub.f32 %v1857, %v1909
      %v1928 = vsub.f32 %v1862, %v1912
      %v1929 = vmul.f32 %v1913, 1.442695
      %v1930 = vpow.pop %v1929
      %v1931 = vmul.f32 %v1914, 1.442695
      %v1932 = vpow.pop %v1931
      %v1933 = vmul.f32 %v1915, 1.442695
      %v1934 = vpow.pop %v1933
      %v1935 = vmul.f32 %v1916, 1.442695
      %v1936 = vpow.pop %v1935
      %v1937 = vmul.f32 %v1917, 1.442695
      %v1938 = vpow.pop %v1937
      %v1939 = vmul.f32 %v1918, 1.442695
      %v1940 = vpow.pop %v1939
      %v1941 = vmul.f32 %v1919, 1.442695
      %v1942 = vpow.pop %v1941
      %v1943 = vmul.f32 %v1920, 1.442695
      %v1944 = vpow.pop %v1943
      %v1945 = vmul.f32 %v1921, 1.442695
      %v1946 = vpow.pop %v1945
      %v1947 = vmul.f32 %v1922, 1.442695
      %v1948 = vpow.pop %v1947
      %v1949 = vmul.f32 %v1923, 1.442695
      %v1950 = vpow.pop %v1949
      %v1951 = vmul.f32 %v1924, 1.442695
      %v1952 = vpow.pop %v1951
      %v1953 = vmul.f32 %v1925, 1.442695
      %v1954 = vpow.pop %v1953
      %v1955 = vmul.f32 %v1926, 1.442695
      %v1956 = vpow.pop %v1955
      %v1957 = vmul.f32 %v1927, 1.442695
      %v1958 = vpow.pop %v1957
      %v1959 = vmul.f32 %v1928, 1.442695
      %v1960 = vpow.pop %v1959
      %v1961 = vsel %vm508, %v1930, 0.0
      %1962 = vadd.xlane.f32.xlu0 %v1961
      %v1963 = vpop.xlane.xlu0 %1962
      %v1964 = vsel %vm508, %v1932, 0.0
      %1965 = vadd.xlane.f32.xlu0 %v1964
      %v1966 = vpop.xlane.xlu0 %1965
      %v1967 = vsel %vm508, %v1934, 0.0
      %1968 = vadd.xlane.f32.xlu0 %v1967
      %v1969 = vpop.xlane.xlu0 %1968
      %v1970 = vsel %vm508, %v1936, 0.0
      %1971 = vadd.xlane.f32.xlu0 %v1970
      %v1972 = vpop.xlane.xlu0 %1971
      %v1973 = vsel %vm508, %v1938, 0.0
      %1974 = vadd.xlane.f32.xlu0 %v1973
      %v1975 = vpop.xlane.xlu0 %1974
      %v1976 = vsel %vm508, %v1940, 0.0
      %1977 = vadd.xlane.f32.xlu0 %v1976
      %v1978 = vpop.xlane.xlu0 %1977
      %v1979 = vsel %vm508, %v1942, 0.0
      %1980 = vadd.xlane.f32.xlu0 %v1979
      %v1981 = vpop.xlane.xlu0 %1980
      %v1982 = vsel %vm508, %v1944, 0.0
      %1983 = vadd.xlane.f32.xlu0 %v1982
      %v1984 = vpop.xlane.xlu0 %1983
      %v1985 = vsel %vm508, %v1946, 0.0
      %1986 = vadd.xlane.f32.xlu0 %v1985
      %v1987 = vpop.xlane.xlu0 %1986
      %v1988 = vsel %vm508, %v1948, 0.0
      %1989 = vadd.xlane.f32.xlu0 %v1988
      %v1990 = vpop.xlane.xlu0 %1989
      %v1991 = vsel %vm508, %v1950, 0.0
      %1992 = vadd.xlane.f32.xlu0 %v1991
      %v1993 = vpop.xlane.xlu0 %1992
      %v1994 = vsel %vm508, %v1952, 0.0
      %1995 = vadd.xlane.f32.xlu0 %v1994
      %v1996 = vpop.xlane.xlu0 %1995
      %v1997 = vsel %vm508, %v1954, 0.0
      %1998 = vadd.xlane.f32.xlu0 %v1997
      %v1999 = vpop.xlane.xlu0 %1998
      %v2000 = vsel %vm508, %v1956, 0.0
      %2001 = vadd.xlane.f32.xlu0 %v2000
      %v2002 = vpop.xlane.xlu0 %2001
      %v2003 = vsel %vm508, %v1958, 0.0
      %2004 = vadd.xlane.f32.xlu0 %v2003
      %v2005 = vpop.xlane.xlu0 %2004
      %v2006 = vsel %vm508, %v1960, 0.0
      %2007 = vadd.xlane.f32.xlu0 %v2006
      %v2008 = vpop.xlane.xlu0 %2007
      %v2009 = vrcp.pop %v1963
      %v2010 = vrcp.pop %v1966
      %v2011 = vrcp.pop %v1969
      %v2012 = vrcp.pop %v1972
      %v2013 = vrcp.pop %v1975
      %v2014 = vrcp.pop %v1978
      %v2015 = vrcp.pop %v1981
      %v2016 = vrcp.pop %v1984
      %v2017 = vrcp.pop %v1987
      %v2018 = vrcp.pop %v1990
      %v2019 = vrcp.pop %v1993
      %v2020 = vrcp.pop %v1996
      %v2021 = vrcp.pop %v1999
      %v2022 = vrcp.pop %v2002
      %v2023 = vrcp.pop %v2005
      %v2024 = vrcp.pop %v2008
      %v2025 = vmul.f32 %v1930, %v2009
      %v2026 = vmul.f32 %v1932, %v2010
      %v2027 = vmul.f32 %v1934, %v2011
      %v2028 = vmul.f32 %v1936, %v2012
      %v2029 = vmul.f32 %v1938, %v2013
      %v2030 = vmul.f32 %v1940, %v2014
      %v2031 = vmul.f32 %v1942, %v2015
      %v2032 = vmul.f32 %v1944, %v2016
      %v2033 = vmul.f32 %v1946, %v2017
      %v2034 = vmul.f32 %v1948, %v2018
      %v2035 = vmul.f32 %v1950, %v2019
      %v2036 = vmul.f32 %v1952, %v2020
      %v2037 = vmul.f32 %v1954, %v2021
      %v2038 = vmul.f32 %v1956, %v2022
      %v2039 = vmul.f32 %v1958, %v2023
      %v2040 = vmul.f32 %v1960, %v2024
      %2041 = vrot.lane.b32.xlu0 %v1346, 96
      %v2042 = vpop.permute.xlu0 %2041
      %2043 = vrot.lane.b32.xlu0 %v1351, 96
      %v2044 = vpop.permute.xlu0 %2043
      %2045 = vrot.lane.b32.xlu0 %v1356, 96
      %v2046 = vpop.permute.xlu0 %2045
      %2047 = vrot.lane.b32.xlu0 %v1361, 96
      %v2048 = vpop.permute.xlu0 %2047
      %v2054 = vsel %vm508, %v2025, 0
      %v2057 = vsel %vm508, %v2026, 0
      %v2060 = vsel %vm508, %v2027, 0
      %v2063 = vsel %vm508, %v2028, 0
      %2065 = vmatprep.subr.mxu0 0.0
      %2066 = vmatpush1.msra.mxu0 %v2042
      %2067 = vmatprep.subr.mxu0 0.0
      %2068 = vmatpush1.msra.mxu0 %v2044
      %2069 = vmatprep.subr.mxu0 0.0
      %2070 = vmatpush1.msra.mxu0 %v2046
      %2071 = vmatprep.subr.mxu0 0.0
      %2072 = vmatpush1.msra.mxu0 %v2048
      %2073 = vmatprep.subr.mxu0 0.0
      %2074 = vmatpush1.msra.mxu0 0.0
      %2075 = vmatprep.subr.mxu0 0.0
      %2076 = vmatpush1.msra.mxu0 0.0
      %2077 = vmatprep.subr.mxu0 0.0
      %2078 = vmatpush1.msra.mxu0 0.0
      %2079 = vmatprep.subr.mxu0 0.0
      %2080 = vmatpush1.msra.mxu0 0.0
      %2081 = vmatprep.subr.mxu0 0.0
      %2082 = vmatpush1.msra.mxu0 0.0
      %2083 = vmatprep.subr.mxu0 0.0
      %2084 = vmatpush1.msra.mxu0 0.0
      %2085 = vmatprep.subr.mxu0 0.0
      %2086 = vmatpush1.msra.mxu0 0.0
      %2087 = vmatprep.subr.mxu0 0.0
      %2088 = vmatpush1.msra.mxu0 0.0
      %2089 = vmatprep.subr.mxu0 0.0
      %2090 = vmatpush1.msra.mxu0 0.0
      %2091 = vmatprep.subr.mxu0 0.0
      %2092 = vmatpush1.msra.mxu0 0.0
      %2093 = vmatprep.subr.mxu0 0.0
      %2094 = vmatpush1.msra.mxu0 0.0
      %2095 = vmatprep.subr.mxu0 0.0
      %2096 = vmatpush1.msra.mxu0 0.0
      %2097 = vmatprep.subr.mxu0 0.0
      %2098 = vmatpush1.msra.mxu0 0.0
      %2099 = vmatprep.subr.mxu0 0.0
      %2100 = vmatpush1.msra.mxu0 0.0
      %2101 = vmatprep.subr.mxu0 0.0
      %2102 = vmatpush1.msra.mxu0 0.0
      %2103 = vmatprep.subr.mxu0 0.0
      %2104 = vmatpush1.msra.mxu0 0.0
      %2105 = vmatprep.subr.mxu0 0.0
      %2106 = vmatpush1.msra.mxu0 0.0
      %2107 = vmatprep.subr.mxu0 0.0
      %2108 = vmatpush1.msra.mxu0 0.0
      %2109 = vmatprep.subr.mxu0 0.0
      %2110 = vmatpush1.msra.mxu0 0.0
      %2111 = vmatprep.subr.mxu0 0.0
      %2112 = vmatpush1.msra.mxu0 0.0
      %2113 = vmatprep.subr.mxu0 0.0
      %2114 = vmatpush1.msra.mxu0 0.0
      %2115 = vmatprep.subr.mxu0 0.0
      %2116 = vmatpush1.msra.mxu0 0.0
      %2117 = vmatprep.subr.mxu0 0.0
      %2118 = vmatpush1.msra.mxu0 0.0
      %2119 = vmatprep.subr.mxu0 0.0
      %2120 = vmatpush1.msra.mxu0 0.0
      %2121 = vmatprep.subr.mxu0 0.0
      %2122 = vmatpush1.msra.mxu0 0.0
      %2123 = vmatprep.subr.mxu0 0.0
      %2124 = vmatpush1.msra.mxu0 0.0
      %2125 = vmatprep.subr.mxu0 0.0
      %2126 = vmatpush1.msra.mxu0 0.0
      %2127 = vmatprep.subr.mxu0 0.0
      %2128 = vmatpush1.msra.mxu0 0.0
      %2129 = vmatprep.mubr.f32.mxu0 0.0
      %2130 = vmatmul.mubr.f32.gmra.mrb[0].mxu0 %v2054
      %v2131 = vpop.f32.mrb[0].mxu0
      %v2132 = vadd.f32 0.0, %v2131
      %v2133 = vpop.f32.mrb[0].mxu0
      %2134 = vmatprep.mubr.f32.mxu0 0.0
      %2135 = vmatmul.mubr.f32.gmra.mrb[0].mxu0 %v2057
      %v2136 = vpop.f32.mrb[0].mxu0
      %v2137 = vadd.f32 0.0, %v2136
      %v2138 = vpop.f32.mrb[0].mxu0
      %2139 = vmatprep.mubr.f32.mxu0 0.0
      %2140 = vmatmul.mubr.f32.gmra.mrb[0].mxu0 %v2060
      %v2141 = vpop.f32.mrb[0].mxu0
      %v2142 = vadd.f32 0.0, %v2141
      %v2143 = vpop.f32.mrb[0].mxu0
      %2144 = vmatprep.mubr.f32.mxu0 0.0
      %2145 = vmatmul.mubr.f32.gmra.mrb[0].mxu0 %v2063
      %v2146 = vpop.f32.mrb[0].mxu0
      %v2147 = vadd.f32 0.0, %v2146
      %v2148 = vpop.f32.mrb[0].mxu0
      %2149 = vdwg.mxu0
      %2150 = vrot.lane.b32.xlu0 %v1366, 96
      %v2151 = vpop.permute.xlu0 %2150
      %2152 = vrot.lane.b32.xlu0 %v1371, 96
      %v2153 = vpop.permute.xlu0 %2152
      %2154 = vrot.lane.b32.xlu0 %v1376, 96
      %v2155 = vpop.permute.xlu0 %2154
      %2156 = vrot.lane.b32.xlu0 %v1381, 96
      %v2157 = vpop.permute.xlu0 %2156
      %v2163 = vsel %vm508, %v2029, 0
      %v2166 = vsel %vm508, %v2030, 0
      %v2169 = vsel %vm508, %v2031, 0
      %v2172 = vsel %vm508, %v2032, 0
      %2174 = vmatprep.subr.mxu0 0.0
      %2175 = vmatpush1.msra.mxu0 %v2151
      %2176 = vmatprep.subr.mxu0 0.0
      %2177 = vmatpush1.msra.mxu0 %v2153
      %2178 = vmatprep.subr.mxu0 0.0
      %2179 = vmatpush1.msra.mxu0 %v2155
      %2180 = vmatprep.subr.mxu0 0.0
      %2181 = vmatpush1.msra.mxu0 %v2157
      %2182 = vmatprep.subr.mxu0 0.0
      %2183 = vmatpush1.msra.mxu0 0.0
      %2184 = vmatprep.subr.mxu0 0.0
      %2185 = vmatpush1.msra.mxu0 0.0
      %2186 = vmatprep.subr.mxu0 0.0
      %2187 = vmatpush1.msra.mxu0 0.0
      %2188 = vmatprep.subr.mxu0 0.0
      %2189 = vmatpush1.msra.mxu0 0.0
      %2190 = vmatprep.subr.mxu0 0.0
      %2191 = vmatpush1.msra.mxu0 0.0
      %2192 = vmatprep.subr.mxu0 0.0
      %2193 = vmatpush1.msra.mxu0 0.0
      %2194 = vmatprep.subr.mxu0 0.0
      %2195 = vmatpush1.msra.mxu0 0.0
      %2196 = vmatprep.subr.mxu0 0.0
      %2197 = vmatpush1.msra.mxu0 0.0
      %2198 = vmatprep.subr.mxu0 0.0
      %2199 = vmatpush1.msra.mxu0 0.0
      %2200 = vmatprep.subr.mxu0 0.0
      %2201 = vmatpush1.msra.mxu0 0.0
      %2202 = vmatprep.subr.mxu0 0.0
      %2203 = vmatpush1.msra.mxu0 0.0
      %2204 = vmatprep.subr.mxu0 0.0
      %2205 = vmatpush1.msra.mxu0 0.0
      %2206 = vmatprep.subr.mxu0 0.0
      %2207 = vmatpush1.msra.mxu0 0.0
      %2208 = vmatprep.subr.mxu0 0.0
      %2209 = vmatpush1.msra.mxu0 0.0
      %2210 = vmatprep.subr.mxu0 0.0
      %2211 = vmatpush1.msra.mxu0 0.0
      %2212 = vmatprep.subr.mxu0 0.0
      %2213 = vmatpush1.msra.mxu0 0.0
      %2214 = vmatprep.subr.mxu0 0.0
      %2215 = vmatpush1.msra.mxu0 0.0
      %2216 = vmatprep.subr.mxu0 0.0
      %2217 = vmatpush1.msra.mxu0 0.0
      %2218 = vmatprep.subr.mxu0 0.0
      %2219 = vmatpush1.msra.mxu0 0.0
      %2220 = vmatprep.subr.mxu0 0.0
      %2221 = vmatpush1.msra.mxu0 0.0
      %2222 = vmatprep.subr.mxu0 0.0
      %2223 = vmatpush1.msra.mxu0 0.0
      %2224 = vmatprep.subr.mxu0 0.0
      %2225 = vmatpush1.msra.mxu0 0.0
      %2226 = vmatprep.subr.mxu0 0.0
      %2227 = vmatpush1.msra.mxu0 0.0
      %2228 = vmatprep.subr.mxu0 0.0
      %2229 = vmatpush1.msra.mxu0 0.0
      %2230 = vmatprep.subr.mxu0 0.0
      %2231 = vmatpush1.msra.mxu0 0.0
      %2232 = vmatprep.subr.mxu0 0.0
      %2233 = vmatpush1.msra.mxu0 0.0
      %2234 = vmatprep.subr.mxu0 0.0
      %2235 = vmatpush1.msra.mxu0 0.0
      %2236 = vmatprep.subr.mxu0 0.0
      %2237 = vmatpush1.msra.mxu0 0.0
      %2238 = vmatprep.mubr.f32.mxu0 0.0
      %2239 = vmatmul.mubr.f32.gmra.mrb[0].mxu0 %v2163
      %v2240 = vpop.f32.mrb[0].mxu0
      %v2241 = vadd.f32 0.0, %v2240
      %v2242 = vpop.f32.mrb[0].mxu0
      %2243 = vmatprep.mubr.f32.mxu0 0.0
      %2244 = vmatmul.mubr.f32.gmra.mrb[0].mxu0 %v2166
      %v2245 = vpop.f32.mrb[0].mxu0
      %v2246 = vadd.f32 0.0, %v2245
      %v2247 = vpop.f32.mrb[0].mxu0
      %2248 = vmatprep.mubr.f32.mxu0 0.0
      %2249 = vmatmul.mubr.f32.gmra.mrb[0].mxu0 %v2169
      %v2250 = vpop.f32.mrb[0].mxu0
      %v2251 = vadd.f32 0.0, %v2250
      %v2252 = vpop.f32.mrb[0].mxu0
      %2253 = vmatprep.mubr.f32.mxu0 0.0
      %2254 = vmatmul.mubr.f32.gmra.mrb[0].mxu0 %v2172
      %v2255 = vpop.f32.mrb[0].mxu0
      %v2256 = vadd.f32 0.0, %v2255
      %v2257 = vpop.f32.mrb[0].mxu0
      %2258 = vdwg.mxu0
      %2259 = vrot.lane.b32.xlu0 %v1386, 96
      %v2260 = vpop.permute.xlu0 %2259
      %2261 = vrot.lane.b32.xlu0 %v1391, 96
      %v2262 = vpop.permute.xlu0 %2261
      %2263 = vrot.lane.b32.xlu0 %v1396, 96
      %v2264 = vpop.permute.xlu0 %2263
      %2265 = vrot.lane.b32.xlu0 %v1401, 96
      %v2266 = vpop.permute.xlu0 %2265
      %v2272 = vsel %vm508, %v2033, 0
      %v2275 = vsel %vm508, %v2034, 0
      %v2278 = vsel %vm508, %v2035, 0
      %v2281 = vsel %vm508, %v2036, 0
      %2283 = vmatprep.subr.mxu0 0.0
      %2284 = vmatpush1.msra.mxu0 %v2260
      %2285 = vmatprep.subr.mxu0 0.0
      %2286 = vmatpush1.msra.mxu0 %v2262
      %2287 = vmatprep.subr.mxu0 0.0
      %2288 = vmatpush1.msra.mxu0 %v2264
      %2289 = vmatprep.subr.mxu0 0.0
      %2290 = vmatpush1.msra.mxu0 %v2266
      %2291 = vmatprep.subr.mxu0 0.0
      %2292 = vmatpush1.msra.mxu0 0.0
      %2293 = vmatprep.subr.mxu0 0.0
      %2294 = vmatpush1.msra.mxu0 0.0
      %2295 = vmatprep.subr.mxu0 0.0
      %2296 = vmatpush1.msra.mxu0 0.0
      %2297 = vmatprep.subr.mxu0 0.0
      %2298 = vmatpush1.msra.mxu0 0.0
      %2299 = vmatprep.subr.mxu0 0.0
      %2300 = vmatpush1.msra.mxu0 0.0
      %2301 = vmatprep.subr.mxu0 0.0
      %2302 = vmatpush1.msra.mxu0 0.0
      %2303 = vmatprep.subr.mxu0 0.0
      %2304 = vmatpush1.msra.mxu0 0.0
      %2305 = vmatprep.subr.mxu0 0.0
      %2306 = vmatpush1.msra.mxu0 0.0
      %2307 = vmatprep.subr.mxu0 0.0
      %2308 = vmatpush1.msra.mxu0 0.0
      %2309 = vmatprep.subr.mxu0 0.0
      %2310 = vmatpush1.msra.mxu0 0.0
      %2311 = vmatprep.subr.mxu0 0.0
      %2312 = vmatpush1.msra.mxu0 0.0
      %2313 = vmatprep.subr.mxu0 0.0
      %2314 = vmatpush1.msra.mxu0 0.0
      %2315 = vmatprep.subr.mxu0 0.0
      %2316 = vmatpush1.msra.mxu0 0.0
      %2317 = vmatprep.subr.mxu0 0.0
      %2318 = vmatpush1.msra.mxu0 0.0
      %2319 = vmatprep.subr.mxu0 0.0
      %2320 = vmatpush1.msra.mxu0 0.0
      %2321 = vmatprep.subr.mxu0 0.0
      %2322 = vmatpush1.msra.mxu0 0.0
      %2323 = vmatprep.subr.mxu0 0.0
      %2324 = vmatpush1.msra.mxu0 0.0
      %2325 = vmatprep.subr.mxu0 0.0
      %2326 = vmatpush1.msra.mxu0 0.0
      %2327 = vmatprep.subr.mxu0 0.0
      %2328 = vmatpush1.msra.mxu0 0.0
      %2329 = vmatprep.subr.mxu0 0.0
      %2330 = vmatpush1.msra.mxu0 0.0
      %2331 = vmatprep.subr.mxu0 0.0
      %2332 = vmatpush1.msra.mxu0 0.0
      %2333 = vmatprep.subr.mxu0 0.0
      %2334 = vmatpush1.msra.mxu0 0.0
      %2335 = vmatprep.subr.mxu0 0.0
      %2336 = vmatpush1.msra.mxu0 0.0
      %2337 = vmatprep.subr.mxu0 0.0
      %2338 = vmatpush1.msra.mxu0 0.0
      %2339 = vmatprep.subr.mxu0 0.0
      %2340 = vmatpush1.msra.mxu0 0.0
      %2341 = vmatprep.subr.mxu0 0.0
      %2342 = vmatpush1.msra.mxu0 0.0
      %2343 = vmatprep.subr.mxu0 0.0
      %2344 = vmatpush1.msra.mxu0 0.0
      %2345 = vmatprep.subr.mxu0 0.0
      %2346 = vmatpush1.msra.mxu0 0.0
      %2347 = vmatprep.mubr.f32.mxu0 0.0
      %2348 = vmatmul.mubr.f32.gmra.mrb[0].mxu0 %v2272
      %v2349 = vpop.f32.mrb[0].mxu0
      %v2350 = vadd.f32 0.0, %v2349
      %v2351 = vpop.f32.mrb[0].mxu0
      %2352 = vmatprep.mubr.f32.mxu0 0.0
      %2353 = vmatmul.mubr.f32.gmra.mrb[0].mxu0 %v2275
      %v2354 = vpop.f32.mrb[0].mxu0
      %v2355 = vadd.f32 0.0, %v2354
      %v2356 = vpop.f32.mrb[0].mxu0
      %2357 = vmatprep.mubr.f32.mxu0 0.0
      %2358 = vmatmul.mubr.f32.gmra.mrb[0].mxu0 %v2278
      %v2359 = vpop.f32.mrb[0].mxu0
      %v2360 = vadd.f32 0.0, %v2359
      %v2361 = vpop.f32.mrb[0].mxu0
      %2362 = vmatprep.mubr.f32.mxu0 0.0
      %2363 = vmatmul.mubr.f32.gmra.mrb[0].mxu0 %v2281
      %v2364 = vpop.f32.mrb[0].mxu0
      %v2365 = vadd.f32 0.0, %v2364
      %v2366 = vpop.f32.mrb[0].mxu0
      %2367 = vdwg.mxu0
      %2368 = vrot.lane.b32.xlu0 %v1406, 96
      %v2369 = vpop.permute.xlu0 %2368
      %2370 = vrot.lane.b32.xlu0 %v1411, 96
      %v2371 = vpop.permute.xlu0 %2370
      %2372 = vrot.lane.b32.xlu0 %v1416, 96
      %v2373 = vpop.permute.xlu0 %2372
      %2374 = vrot.lane.b32.xlu0 %v1421, 96
      %v2375 = vpop.permute.xlu0 %2374
      %v2381 = vsel %vm508, %v2037, 0
      %v2384 = vsel %vm508, %v2038, 0
      %v2387 = vsel %vm508, %v2039, 0
      %v2390 = vsel %vm508, %v2040, 0
      %2392 = vmatprep.subr.mxu0 0.0
      %2393 = vmatpush1.msra.mxu0 %v2369
      %2394 = vmatprep.subr.mxu0 0.0
      %2395 = vmatpush1.msra.mxu0 %v2371
      %2396 = vmatprep.subr.mxu0 0.0
      %2397 = vmatpush1.msra.mxu0 %v2373
      %2398 = vmatprep.subr.mxu0 0.0
      %2399 = vmatpush1.msra.mxu0 %v2375
      %2400 = vmatprep.subr.mxu0 0.0
      %2401 = vmatpush1.msra.mxu0 0.0
      %2402 = vmatprep.subr.mxu0 0.0
      %2403 = vmatpush1.msra.mxu0 0.0
      %2404 = vmatprep.subr.mxu0 0.0
      %2405 = vmatpush1.msra.mxu0 0.0
      %2406 = vmatprep.subr.mxu0 0.0
      %2407 = vmatpush1.msra.mxu0 0.0
      %2408 = vmatprep.subr.mxu0 0.0
      %2409 = vmatpush1.msra.mxu0 0.0
      %2410 = vmatprep.subr.mxu0 0.0
      %2411 = vmatpush1.msra.mxu0 0.0
      %2412 = vmatprep.subr.mxu0 0.0
      %2413 = vmatpush1.msra.mxu0 0.0
      %2414 = vmatprep.subr.mxu0 0.0
      %2415 = vmatpush1.msra.mxu0 0.0
      %2416 = vmatprep.subr.mxu0 0.0
      %2417 = vmatpush1.msra.mxu0 0.0
      %2418 = vmatprep.subr.mxu0 0.0
      %2419 = vmatpush1.msra.mxu0 0.0
      %2420 = vmatprep.subr.mxu0 0.0
      %2421 = vmatpush1.msra.mxu0 0.0
      %2422 = vmatprep.subr.mxu0 0.0
      %2423 = vmatpush1.msra.mxu0 0.0
      %2424 = vmatprep.subr.mxu0 0.0
      %2425 = vmatpush1.msra.mxu0 0.0
      %2426 = vmatprep.subr.mxu0 0.0
      %2427 = vmatpush1.msra.mxu0 0.0
      %2428 = vmatprep.subr.mxu0 0.0
      %2429 = vmatpush1.msra.mxu0 0.0
      %2430 = vmatprep.subr.mxu0 0.0
      %2431 = vmatpush1.msra.mxu0 0.0
      %2432 = vmatprep.subr.mxu0 0.0
      %2433 = vmatpush1.msra.mxu0 0.0
      %2434 = vmatprep.subr.mxu0 0.0
      %2435 = vmatpush1.msra.mxu0 0.0
      %2436 = vmatprep.subr.mxu0 0.0
      %2437 = vmatpush1.msra.mxu0 0.0
      %2438 = vmatprep.subr.mxu0 0.0
      %2439 = vmatpush1.msra.mxu0 0.0
      %2440 = vmatprep.subr.mxu0 0.0
      %2441 = vmatpush1.msra.mxu0 0.0
      %2442 = vmatprep.subr.mxu0 0.0
      %2443 = vmatpush1.msra.mxu0 0.0
      %2444 = vmatprep.subr.mxu0 0.0
      %2445 = vmatpush1.msra.mxu0 0.0
      %2446 = vmatprep.subr.mxu0 0.0
      %2447 = vmatpush1.msra.mxu0 0.0
      %2448 = vmatprep.subr.mxu0 0.0
      %2449 = vmatpush1.msra.mxu0 0.0
      %2450 = vmatprep.subr.mxu0 0.0
      %2451 = vmatpush1.msra.mxu0 0.0
      %2452 = vmatprep.subr.mxu0 0.0
      %2453 = vmatpush1.msra.mxu0 0.0
      %2454 = vmatprep.subr.mxu0 0.0
      %2455 = vmatpush1.msra.mxu0 0.0
      %2456 = vmatprep.mubr.f32.mxu0 0.0
      %2457 = vmatmul.mubr.f32.gmra.mrb[0].mxu0 %v2381
      %v2458 = vpop.f32.mrb[0].mxu0
      %v2459 = vadd.f32 0.0, %v2458
      %v2460 = vpop.f32.mrb[0].mxu0
      %2461 = vmatprep.mubr.f32.mxu0 0.0
      %2462 = vmatmul.mubr.f32.gmra.mrb[0].mxu0 %v2384
      %v2463 = vpop.f32.mrb[0].mxu0
      %v2464 = vadd.f32 0.0, %v2463
      %v2465 = vpop.f32.mrb[0].mxu0
      %2466 = vmatprep.mubr.f32.mxu0 0.0
      %2467 = vmatmul.mubr.f32.gmra.mrb[0].mxu0 %v2387
      %v2468 = vpop.f32.mrb[0].mxu0
      %v2469 = vadd.f32 0.0, %v2468
      %v2470 = vpop.f32.mrb[0].mxu0
      %2471 = vmatprep.mubr.f32.mxu0 0.0
      %2472 = vmatmul.mubr.f32.gmra.mrb[0].mxu0 %v2390
      %v2473 = vpop.f32.mrb[0].mxu0
      %v2474 = vadd.f32 0.0, %v2473
      %v2475 = vpop.f32.mrb[0].mxu0
      %2476 = vdwg.mxu0
      %s2477 = scalar_lea.vmem %s12, 32
      %v2478 = vld [vmem:[%s2477] sm:$0xff]
      %v2479 = vld [vmem:[%s2477 + $0x8] sm:$0xff]
      %v2480 = vld [vmem:[%s2477 + $0x10] sm:$0xff]
      %v2481 = vld [vmem:[%s2477 + $0x18] sm:$0xff]
      %2482 = vrot.lane.b32.xlu0 %v1142, 112
      %v2483 = vpop.permute.xlu0 %2482
      %2484 = vrot.lane.b32.xlu0 %v1147, 112
      %v2485 = vpop.permute.xlu0 %2484
      %2486 = vrot.lane.b32.xlu0 %v1152, 112
      %v2487 = vpop.permute.xlu0 %2486
      %2488 = vrot.lane.b32.xlu0 %v1157, 112
      %v2489 = vpop.permute.xlu0 %2488
      %2490 = vrot.lane.b32.xlu0 %v1346, 112
      %v2491 = vpop.permute.xlu0 %2490
      %2492 = vrot.lane.b32.xlu0 %v1351, 112
      %v2493 = vpop.permute.xlu0 %2492
      %2494 = vrot.lane.b32.xlu0 %v1356, 112
      %v2495 = vpop.permute.xlu0 %2494
      %2496 = vrot.lane.b32.xlu0 %v1361, 112
      %v2497 = vpop.permute.xlu0 %2496
      %v2498 = vsel %vm1428, %v2483, 0
      %v2500 = vsel %vm1428, %v2485, 0
      %v2502 = vsel %vm1428, %v2487, 0
      %v2504 = vsel %vm1428, %v2489, 0
      %v2506 = vsel %vm1428, %v2491, 0
      %v2508 = vsel %vm1428, %v2493, 0
      %v2510 = vsel %vm1428, %v2495, 0
      %v2512 = vsel %vm1428, %v2497, 0
      %2514 = vmatprep.subr.mxu0 0.0
      %2515 = vmatpush1.xpose.msra.mxu0 %v2506
      %2516 = vmatprep.subr.mxu0 0.0
      %2517 = vmatpush1.xpose.msra.mxu0 %v2508
      %2518 = vmatprep.subr.mxu0 0.0
      %2519 = vmatpush1.xpose.msra.mxu0 %v2510
      %2520 = vmatprep.subr.mxu0 0.0
      %2521 = vmatpush1.xpose.msra.mxu0 %v2512
      %2522 = vmatprep.subr.mxu0 0.0
      %2523 = vmatpush1.xpose.msra.mxu0 0.0
      %2524 = vmatprep.subr.mxu0 0.0
      %2525 = vmatpush1.xpose.msra.mxu0 0.0
      %2526 = vmatprep.subr.mxu0 0.0
      %2527 = vmatpush1.xpose.msra.mxu0 0.0
      %2528 = vmatprep.subr.mxu0 0.0
      %2529 = vmatpush1.xpose.msra.mxu0 0.0
      %2530 = vmatprep.subr.mxu0 0.0
      %2531 = vmatpush1.xpose.msra.mxu0 0.0
      %2532 = vmatprep.subr.mxu0 0.0
      %2533 = vmatpush1.xpose.msra.mxu0 0.0
      %2534 = vmatprep.subr.mxu0 0.0
      %2535 = vmatpush1.xpose.msra.mxu0 0.0
      %2536 = vmatprep.subr.mxu0 0.0
      %2537 = vmatpush1.xpose.msra.mxu0 0.0
      %2538 = vmatprep.subr.mxu0 0.0
      %2539 = vmatpush1.xpose.msra.mxu0 0.0
      %2540 = vmatprep.subr.mxu0 0.0
      %2541 = vmatpush1.xpose.msra.mxu0 0.0
      %2542 = vmatprep.subr.mxu0 0.0
      %2543 = vmatpush1.xpose.msra.mxu0 0.0
      %2544 = vmatprep.subr.mxu0 0.0
      %2545 = vmatpush1.xpose.msra.mxu0 0.0
      %2546 = vmatprep.subr.mxu0 0.0
      %2547 = vmatpush1.xpose.msra.mxu0 0.0
      %2548 = vmatprep.subr.mxu0 0.0
      %2549 = vmatpush1.xpose.msra.mxu0 0.0
      %2550 = vmatprep.subr.mxu0 0.0
      %2551 = vmatpush1.xpose.msra.mxu0 0.0
      %2552 = vmatprep.subr.mxu0 0.0
      %2553 = vmatpush1.xpose.msra.mxu0 0.0
      %2554 = vmatprep.subr.mxu0 0.0
      %2555 = vmatpush1.xpose.msra.mxu0 0.0
      %2556 = vmatprep.subr.mxu0 0.0
      %2557 = vmatpush1.xpose.msra.mxu0 0.0
      %2558 = vmatprep.subr.mxu0 0.0
      %2559 = vmatpush1.xpose.msra.mxu0 0.0
      %2560 = vmatprep.subr.mxu0 0.0
      %2561 = vmatpush1.xpose.msra.mxu0 0.0
      %2562 = vmatprep.subr.mxu0 0.0
      %2563 = vmatpush1.xpose.msra.mxu0 0.0
      %2564 = vmatprep.subr.mxu0 0.0
      %2565 = vmatpush1.xpose.msra.mxu0 0.0
      %2566 = vmatprep.subr.mxu0 0.0
      %2567 = vmatpush1.xpose.msra.mxu0 0.0
      %2568 = vmatprep.subr.mxu0 0.0
      %2569 = vmatpush1.xpose.msra.mxu0 0.0
      %2570 = vmatprep.subr.mxu0 0.0
      %2571 = vmatpush1.xpose.msra.mxu0 0.0
      %2572 = vmatprep.subr.mxu0 0.0
      %2573 = vmatpush1.xpose.msra.mxu0 0.0
      %2574 = vmatprep.subr.mxu0 0.0
      %2575 = vmatpush1.xpose.msra.mxu0 0.0
      %2576 = vmatprep.subr.mxu0 0.0
      %2577 = vmatpush1.xpose.msra.mxu0 0.0
      %2578 = vmatprep.mubr.f32.mxu0 0.0
      %2579 = vmatmul.mubr.f32.gmra.mrb[0].mxu0 %v2498
      %v2580 = vpop.f32.mrb[0].mxu0
      %v2581 = vadd.f32 %v2478, %v2580
      %v2582 = vpop.f32.mrb[0].mxu0
      %2583 = vmatprep.mubr.f32.mxu0 0.0
      %2584 = vmatmul.mubr.f32.gmra.mrb[0].mxu0 %v2500
      %v2585 = vpop.f32.mrb[0].mxu0
      %v2586 = vadd.f32 %v2479, %v2585
      %v2587 = vpop.f32.mrb[0].mxu0
      %2588 = vmatprep.mubr.f32.mxu0 0.0
      %2589 = vmatmul.mubr.f32.gmra.mrb[0].mxu0 %v2502
      %v2590 = vpop.f32.mrb[0].mxu0
      %v2591 = vadd.f32 %v2480, %v2590
      %v2592 = vpop.f32.mrb[0].mxu0
      %2593 = vmatprep.mubr.f32.mxu0 0.0
      %2594 = vmatmul.mubr.f32.gmra.mrb[0].mxu0 %v2504
      %v2595 = vpop.f32.mrb[0].mxu0
      %v2596 = vadd.f32 %v2481, %v2595
      %v2597 = vpop.f32.mrb[0].mxu0
      %2598 = vdwg.mxu0
      %2599 = vrot.lane.b32.xlu0 %v1162, 112
      %v2600 = vpop.permute.xlu0 %2599
      %2601 = vrot.lane.b32.xlu0 %v1167, 112
      %v2602 = vpop.permute.xlu0 %2601
      %2603 = vrot.lane.b32.xlu0 %v1172, 112
      %v2604 = vpop.permute.xlu0 %2603
      %2605 = vrot.lane.b32.xlu0 %v1177, 112
      %v2606 = vpop.permute.xlu0 %2605
      %2607 = vrot.lane.b32.xlu0 %v1366, 112
      %v2608 = vpop.permute.xlu0 %2607
      %2609 = vrot.lane.b32.xlu0 %v1371, 112
      %v2610 = vpop.permute.xlu0 %2609
      %2611 = vrot.lane.b32.xlu0 %v1376, 112
      %v2612 = vpop.permute.xlu0 %2611
      %2613 = vrot.lane.b32.xlu0 %v1381, 112
      %v2614 = vpop.permute.xlu0 %2613
      %v2615 = vsel %vm1428, %v2600, 0
      %v2617 = vsel %vm1428, %v2602, 0
      %v2619 = vsel %vm1428, %v2604, 0
      %v2621 = vsel %vm1428, %v2606, 0
      %v2623 = vsel %vm1428, %v2608, 0
      %v2625 = vsel %vm1428, %v2610, 0
      %v2627 = vsel %vm1428, %v2612, 0
      %v2629 = vsel %vm1428, %v2614, 0
      %2631 = vmatprep.subr.mxu0 0.0
      %2632 = vmatpush1.xpose.msra.mxu0 %v2623
      %2633 = vmatprep.subr.mxu0 0.0
      %2634 = vmatpush1.xpose.msra.mxu0 %v2625
      %2635 = vmatprep.subr.mxu0 0.0
      %2636 = vmatpush1.xpose.msra.mxu0 %v2627
      %2637 = vmatprep.subr.mxu0 0.0
      %2638 = vmatpush1.xpose.msra.mxu0 %v2629
      %2639 = vmatprep.subr.mxu0 0.0
      %2640 = vmatpush1.xpose.msra.mxu0 0.0
      %2641 = vmatprep.subr.mxu0 0.0
      %2642 = vmatpush1.xpose.msra.mxu0 0.0
      %2643 = vmatprep.subr.mxu0 0.0
      %2644 = vmatpush1.xpose.msra.mxu0 0.0
      %2645 = vmatprep.subr.mxu0 0.0
      %2646 = vmatpush1.xpose.msra.mxu0 0.0
      %2647 = vmatprep.subr.mxu0 0.0
      %2648 = vmatpush1.xpose.msra.mxu0 0.0
      %2649 = vmatprep.subr.mxu0 0.0
      %2650 = vmatpush1.xpose.msra.mxu0 0.0
      %2651 = vmatprep.subr.mxu0 0.0
      %2652 = vmatpush1.xpose.msra.mxu0 0.0
      %2653 = vmatprep.subr.mxu0 0.0
      %2654 = vmatpush1.xpose.msra.mxu0 0.0
      %2655 = vmatprep.subr.mxu0 0.0
      %2656 = vmatpush1.xpose.msra.mxu0 0.0
      %2657 = vmatprep.subr.mxu0 0.0
      %2658 = vmatpush1.xpose.msra.mxu0 0.0
      %2659 = vmatprep.subr.mxu0 0.0
      %2660 = vmatpush1.xpose.msra.mxu0 0.0
      %2661 = vmatprep.subr.mxu0 0.0
      %2662 = vmatpush1.xpose.msra.mxu0 0.0
      %2663 = vmatprep.subr.mxu0 0.0
      %2664 = vmatpush1.xpose.msra.mxu0 0.0
      %2665 = vmatprep.subr.mxu0 0.0
      %2666 = vmatpush1.xpose.msra.mxu0 0.0
      %2667 = vmatprep.subr.mxu0 0.0
      %2668 = vmatpush1.xpose.msra.mxu0 0.0
      %2669 = vmatprep.subr.mxu0 0.0
      %2670 = vmatpush1.xpose.msra.mxu0 0.0
      %2671 = vmatprep.subr.mxu0 0.0
      %2672 = vmatpush1.xpose.msra.mxu0 0.0
      %2673 = vmatprep.subr.mxu0 0.0
      %2674 = vmatpush1.xpose.msra.mxu0 0.0
      %2675 = vmatprep.subr.mxu0 0.0
      %2676 = vmatpush1.xpose.msra.mxu0 0.0
      %2677 = vmatprep.subr.mxu0 0.0
      %2678 = vmatpush1.xpose.msra.mxu0 0.0
      %2679 = vmatprep.subr.mxu0 0.0
      %2680 = vmatpush1.xpose.msra.mxu0 0.0
      %2681 = vmatprep.subr.mxu0 0.0
      %2682 = vmatpush1.xpose.msra.mxu0 0.0
      %2683 = vmatprep.subr.mxu0 0.0
      %2684 = vmatpush1.xpose.msra.mxu0 0.0
      %2685 = vmatprep.subr.mxu0 0.0
      %2686 = vmatpush1.xpose.msra.mxu0 0.0
      %2687 = vmatprep.subr.mxu0 0.0
      %2688 = vmatpush1.xpose.msra.mxu0 0.0
      %2689 = vmatprep.subr.mxu0 0.0
      %2690 = vmatpush1.xpose.msra.mxu0 0.0
      %2691 = vmatprep.subr.mxu0 0.0
      %2692 = vmatpush1.xpose.msra.mxu0 0.0
      %2693 = vmatprep.subr.mxu0 0.0
      %2694 = vmatpush1.xpose.msra.mxu0 0.0
      %2695 = vmatprep.mubr.f32.mxu0 0.0
      %2696 = vmatmul.mubr.f32.gmra.mrb[0].mxu0 %v2615
      %v2697 = vpop.f32.mrb[0].mxu0
      %v2698 = vadd.f32 %v2478, %v2697
      %v2699 = vpop.f32.mrb[0].mxu0
      %2700 = vmatprep.mubr.f32.mxu0 0.0
      %2701 = vmatmul.mubr.f32.gmra.mrb[0].mxu0 %v2617
      %v2702 = vpop.f32.mrb[0].mxu0
      %v2703 = vadd.f32 %v2479, %v2702
      %v2704 = vpop.f32.mrb[0].mxu0
      %2705 = vmatprep.mubr.f32.mxu0 0.0
      %2706 = vmatmul.mubr.f32.gmra.mrb[0].mxu0 %v2619
      %v2707 = vpop.f32.mrb[0].mxu0
      %v2708 = vadd.f32 %v2480, %v2707
      %v2709 = vpop.f32.mrb[0].mxu0
      %2710 = vmatprep.mubr.f32.mxu0 0.0
      %2711 = vmatmul.mubr.f32.gmra.mrb[0].mxu0 %v2621
      %v2712 = vpop.f32.mrb[0].mxu0
      %v2713 = vadd.f32 %v2481, %v2712
      %v2714 = vpop.f32.mrb[0].mxu0
      %2715 = vdwg.mxu0
      %2716 = vrot.lane.b32.xlu0 %v1182, 112
      %v2717 = vpop.permute.xlu0 %2716
      %2718 = vrot.lane.b32.xlu0 %v1187, 112
      %v2719 = vpop.permute.xlu0 %2718
      %2720 = vrot.lane.b32.xlu0 %v1192, 112
      %v2721 = vpop.permute.xlu0 %2720
      %2722 = vrot.lane.b32.xlu0 %v1197, 112
      %v2723 = vpop.permute.xlu0 %2722
      %2724 = vrot.lane.b32.xlu0 %v1386, 112
      %v2725 = vpop.permute.xlu0 %2724
      %2726 = vrot.lane.b32.xlu0 %v1391, 112
      %v2727 = vpop.permute.xlu0 %2726
      %2728 = vrot.lane.b32.xlu0 %v1396, 112
      %v2729 = vpop.permute.xlu0 %2728
      %2730 = vrot.lane.b32.xlu0 %v1401, 112
      %v2731 = vpop.permute.xlu0 %2730
      %v2732 = vsel %vm1428, %v2717, 0
      %v2734 = vsel %vm1428, %v2719, 0
      %v2736 = vsel %vm1428, %v2721, 0
      %v2738 = vsel %vm1428, %v2723, 0
      %v2740 = vsel %vm1428, %v2725, 0
      %v2742 = vsel %vm1428, %v2727, 0
      %v2744 = vsel %vm1428, %v2729, 0
      %v2746 = vsel %vm1428, %v2731, 0
      %2748 = vmatprep.subr.mxu0 0.0
      %2749 = vmatpush1.xpose.msra.mxu0 %v2740
      %2750 = vmatprep.subr.mxu0 0.0
      %2751 = vmatpush1.xpose.msra.mxu0 %v2742
      %2752 = vmatprep.subr.mxu0 0.0
      %2753 = vmatpush1.xpose.msra.mxu0 %v2744
      %2754 = vmatprep.subr.mxu0 0.0
      %2755 = vmatpush1.xpose.msra.mxu0 %v2746
      %2756 = vmatprep.subr.mxu0 0.0
      %2757 = vmatpush1.xpose.msra.mxu0 0.0
      %2758 = vmatprep.subr.mxu0 0.0
      %2759 = vmatpush1.xpose.msra.mxu0 0.0
      %2760 = vmatprep.subr.mxu0 0.0
      %2761 = vmatpush1.xpose.msra.mxu0 0.0
      %2762 = vmatprep.subr.mxu0 0.0
      %2763 = vmatpush1.xpose.msra.mxu0 0.0
      %2764 = vmatprep.subr.mxu0 0.0
      %2765 = vmatpush1.xpose.msra.mxu0 0.0
      %2766 = vmatprep.subr.mxu0 0.0
      %2767 = vmatpush1.xpose.msra.mxu0 0.0
      %2768 = vmatprep.subr.mxu0 0.0
      %2769 = vmatpush1.xpose.msra.mxu0 0.0
      %2770 = vmatprep.subr.mxu0 0.0
      %2771 = vmatpush1.xpose.msra.mxu0 0.0
      %2772 = vmatprep.subr.mxu0 0.0
      %2773 = vmatpush1.xpose.msra.mxu0 0.0
      %2774 = vmatprep.subr.mxu0 0.0
      %2775 = vmatpush1.xpose.msra.mxu0 0.0
      %2776 = vmatprep.subr.mxu0 0.0
      %2777 = vmatpush1.xpose.msra.mxu0 0.0
      %2778 = vmatprep.subr.mxu0 0.0
      %2779 = vmatpush1.xpose.msra.mxu0 0.0
      %2780 = vmatprep.subr.mxu0 0.0
      %2781 = vmatpush1.xpose.msra.mxu0 0.0
      %2782 = vmatprep.subr.mxu0 0.0
      %2783 = vmatpush1.xpose.msra.mxu0 0.0
      %2784 = vmatprep.subr.mxu0 0.0
      %2785 = vmatpush1.xpose.msra.mxu0 0.0
      %2786 = vmatprep.subr.mxu0 0.0
      %2787 = vmatpush1.xpose.msra.mxu0 0.0
      %2788 = vmatprep.subr.mxu0 0.0
      %2789 = vmatpush1.xpose.msra.mxu0 0.0
      %2790 = vmatprep.subr.mxu0 0.0
      %2791 = vmatpush1.xpose.msra.mxu0 0.0
      %2792 = vmatprep.subr.mxu0 0.0
      %2793 = vmatpush1.xpose.msra.mxu0 0.0
      %2794 = vmatprep.subr.mxu0 0.0
      %2795 = vmatpush1.xpose.msra.mxu0 0.0
      %2796 = vmatprep.subr.mxu0 0.0
      %2797 = vmatpush1.xpose.msra.mxu0 0.0
      %2798 = vmatprep.subr.mxu0 0.0
      %2799 = vmatpush1.xpose.msra.mxu0 0.0
      %2800 = vmatprep.subr.mxu0 0.0
      %2801 = vmatpush1.xpose.msra.mxu0 0.0
      %2802 = vmatprep.subr.mxu0 0.0
      %2803 = vmatpush1.xpose.msra.mxu0 0.0
      %2804 = vmatprep.subr.mxu0 0.0
      %2805 = vmatpush1.xpose.msra.mxu0 0.0
      %2806 = vmatprep.subr.mxu0 0.0
      %2807 = vmatpush1.xpose.msra.mxu0 0.0
      %2808 = vmatprep.subr.mxu0 0.0
      %2809 = vmatpush1.xpose.msra.mxu0 0.0
      %2810 = vmatprep.subr.mxu0 0.0
      %2811 = vmatpush1.xpose.msra.mxu0 0.0
      %2812 = vmatprep.mubr.f32.mxu0 0.0
      %2813 = vmatmul.mubr.f32.gmra.mrb[0].mxu0 %v2732
      %v2814 = vpop.f32.mrb[0].mxu0
      %v2815 = vadd.f32 %v2478, %v2814
      %v2816 = vpop.f32.mrb[0].mxu0
      %2817 = vmatprep.mubr.f32.mxu0 0.0
      %2818 = vmatmul.mubr.f32.gmra.mrb[0].mxu0 %v2734
      %v2819 = vpop.f32.mrb[0].mxu0
      %v2820 = vadd.f32 %v2479, %v2819
      %v2821 = vpop.f32.mrb[0].mxu0
      %2822 = vmatprep.mubr.f32.mxu0 0.0
      %2823 = vmatmul.mubr.f32.gmra.mrb[0].mxu0 %v2736
      %v2824 = vpop.f32.mrb[0].mxu0
      %v2825 = vadd.f32 %v2480, %v2824
      %v2826 = vpop.f32.mrb[0].mxu0
      %2827 = vmatprep.mubr.f32.mxu0 0.0
      %2828 = vmatmul.mubr.f32.gmra.mrb[0].mxu0 %v2738
      %v2829 = vpop.f32.mrb[0].mxu0
      %v2830 = vadd.f32 %v2481, %v2829
      %v2831 = vpop.f32.mrb[0].mxu0
      %2832 = vdwg.mxu0
      %2833 = vrot.lane.b32.xlu0 %v1202, 112
      %v2834 = vpop.permute.xlu0 %2833
      %2835 = vrot.lane.b32.xlu0 %v1207, 112
      %v2836 = vpop.permute.xlu0 %2835
      %2837 = vrot.lane.b32.xlu0 %v1212, 112
      %v2838 = vpop.permute.xlu0 %2837
      %2839 = vrot.lane.b32.xlu0 %v1217, 112
      %v2840 = vpop.permute.xlu0 %2839
      %2841 = vrot.lane.b32.xlu0 %v1406, 112
      %v2842 = vpop.permute.xlu0 %2841
      %2843 = vrot.lane.b32.xlu0 %v1411, 112
      %v2844 = vpop.permute.xlu0 %2843
      %2845 = vrot.lane.b32.xlu0 %v1416, 112
      %v2846 = vpop.permute.xlu0 %2845
      %2847 = vrot.lane.b32.xlu0 %v1421, 112
      %v2848 = vpop.permute.xlu0 %2847
      %v2849 = vsel %vm1428, %v2834, 0
      %v2851 = vsel %vm1428, %v2836, 0
      %v2853 = vsel %vm1428, %v2838, 0
      %v2855 = vsel %vm1428, %v2840, 0
      %v2857 = vsel %vm1428, %v2842, 0
      %v2859 = vsel %vm1428, %v2844, 0
      %v2861 = vsel %vm1428, %v2846, 0
      %v2863 = vsel %vm1428, %v2848, 0
      %2865 = vmatprep.subr.mxu0 0.0
      %2866 = vmatpush1.xpose.msra.mxu0 %v2857
      %2867 = vmatprep.subr.mxu0 0.0
      %2868 = vmatpush1.xpose.msra.mxu0 %v2859
      %2869 = vmatprep.subr.mxu0 0.0
      %2870 = vmatpush1.xpose.msra.mxu0 %v2861
      %2871 = vmatprep.subr.mxu0 0.0
      %2872 = vmatpush1.xpose.msra.mxu0 %v2863
      %2873 = vmatprep.subr.mxu0 0.0
      %2874 = vmatpush1.xpose.msra.mxu0 0.0
      %2875 = vmatprep.subr.mxu0 0.0
      %2876 = vmatpush1.xpose.msra.mxu0 0.0
      %2877 = vmatprep.subr.mxu0 0.0
      %2878 = vmatpush1.xpose.msra.mxu0 0.0
      %2879 = vmatprep.subr.mxu0 0.0
      %2880 = vmatpush1.xpose.msra.mxu0 0.0
      %2881 = vmatprep.subr.mxu0 0.0
      %2882 = vmatpush1.xpose.msra.mxu0 0.0
      %2883 = vmatprep.subr.mxu0 0.0
      %2884 = vmatpush1.xpose.msra.mxu0 0.0
      %2885 = vmatprep.subr.mxu0 0.0
      %2886 = vmatpush1.xpose.msra.mxu0 0.0
      %2887 = vmatprep.subr.mxu0 0.0
      %2888 = vmatpush1.xpose.msra.mxu0 0.0
      %2889 = vmatprep.subr.mxu0 0.0
      %2890 = vmatpush1.xpose.msra.mxu0 0.0
      %2891 = vmatprep.subr.mxu0 0.0
      %2892 = vmatpush1.xpose.msra.mxu0 0.0
      %2893 = vmatprep.subr.mxu0 0.0
      %2894 = vmatpush1.xpose.msra.mxu0 0.0
      %2895 = vmatprep.subr.mxu0 0.0
      %2896 = vmatpush1.xpose.msra.mxu0 0.0
      %2897 = vmatprep.subr.mxu0 0.0
      %2898 = vmatpush1.xpose.msra.mxu0 0.0
      %2899 = vmatprep.subr.mxu0 0.0
      %2900 = vmatpush1.xpose.msra.mxu0 0.0
      %2901 = vmatprep.subr.mxu0 0.0
      %2902 = vmatpush1.xpose.msra.mxu0 0.0
      %2903 = vmatprep.subr.mxu0 0.0
      %2904 = vmatpush1.xpose.msra.mxu0 0.0
      %2905 = vmatprep.subr.mxu0 0.0
      %2906 = vmatpush1.xpose.msra.mxu0 0.0
      %2907 = vmatprep.subr.mxu0 0.0
      %2908 = vmatpush1.xpose.msra.mxu0 0.0
      %2909 = vmatprep.subr.mxu0 0.0
      %2910 = vmatpush1.xpose.msra.mxu0 0.0
      %2911 = vmatprep.subr.mxu0 0.0
      %2912 = vmatpush1.xpose.msra.mxu0 0.0
      %2913 = vmatprep.subr.mxu0 0.0
      %2914 = vmatpush1.xpose.msra.mxu0 0.0
      %2915 = vmatprep.subr.mxu0 0.0
      %2916 = vmatpush1.xpose.msra.mxu0 0.0
      %2917 = vmatprep.subr.mxu0 0.0
      %2918 = vmatpush1.xpose.msra.mxu0 0.0
      %2919 = vmatprep.subr.mxu0 0.0
      %2920 = vmatpush1.xpose.msra.mxu0 0.0
      %2921 = vmatprep.subr.mxu0 0.0
      %2922 = vmatpush1.xpose.msra.mxu0 0.0
      %2923 = vmatprep.subr.mxu0 0.0
      %2924 = vmatpush1.xpose.msra.mxu0 0.0
      %2925 = vmatprep.subr.mxu0 0.0
      %2926 = vmatpush1.xpose.msra.mxu0 0.0
      %2927 = vmatprep.subr.mxu0 0.0
      %2928 = vmatpush1.xpose.msra.mxu0 0.0
      %2929 = vmatprep.mubr.f32.mxu0 0.0
      %2930 = vmatmul.mubr.f32.gmra.mrb[0].mxu0 %v2849
      %v2931 = vpop.f32.mrb[0].mxu0
      %v2932 = vadd.f32 %v2478, %v2931
      %v2933 = vpop.f32.mrb[0].mxu0
      %2934 = vmatprep.mubr.f32.mxu0 0.0
      %2935 = vmatmul.mubr.f32.gmra.mrb[0].mxu0 %v2851
      %v2936 = vpop.f32.mrb[0].mxu0
      %v2937 = vadd.f32 %v2479, %v2936
      %v2938 = vpop.f32.mrb[0].mxu0
      %2939 = vmatprep.mubr.f32.mxu0 0.0
      %2940 = vmatmul.mubr.f32.gmra.mrb[0].mxu0 %v2853
      %v2941 = vpop.f32.mrb[0].mxu0
      %v2942 = vadd.f32 %v2480, %v2941
      %v2943 = vpop.f32.mrb[0].mxu0
      %2944 = vmatprep.mubr.f32.mxu0 0.0
      %2945 = vmatmul.mubr.f32.gmra.mrb[0].mxu0 %v2855
      %v2946 = vpop.f32.mrb[0].mxu0
      %v2947 = vadd.f32 %v2481, %v2946
      %v2948 = vpop.f32.mrb[0].mxu0
      %2949 = vdwg.mxu0
      %v2950 = vsel %vm508, %v2581, -inf
      %2951 = vmax.xlane.f32.xlu0 %v2950
      %v2952 = vpop.xlane.xlu0 %2951
      %v2953 = vsel %vm508, %v2586, -inf
      %2954 = vmax.xlane.f32.xlu0 %v2953
      %v2955 = vpop.xlane.xlu0 %2954
      %v2956 = vsel %vm508, %v2591, -inf
      %2957 = vmax.xlane.f32.xlu0 %v2956
      %v2958 = vpop.xlane.xlu0 %2957
      %v2959 = vsel %vm508, %v2596, -inf
      %2960 = vmax.xlane.f32.xlu0 %v2959
      %v2961 = vpop.xlane.xlu0 %2960
      %v2962 = vsel %vm508, %v2698, -inf
      %2963 = vmax.xlane.f32.xlu0 %v2962
      %v2964 = vpop.xlane.xlu0 %2963
      %v2965 = vsel %vm508, %v2703, -inf
      %2966 = vmax.xlane.f32.xlu0 %v2965
      %v2967 = vpop.xlane.xlu0 %2966
      %v2968 = vsel %vm508, %v2708, -inf
      %2969 = vmax.xlane.f32.xlu0 %v2968
      %v2970 = vpop.xlane.xlu0 %2969
      %v2971 = vsel %vm508, %v2713, -inf
      %2972 = vmax.xlane.f32.xlu0 %v2971
      %v2973 = vpop.xlane.xlu0 %2972
      %v2974 = vsel %vm508, %v2815, -inf
      %2975 = vmax.xlane.f32.xlu0 %v2974
      %v2976 = vpop.xlane.xlu0 %2975
      %v2977 = vsel %vm508, %v2820, -inf
      %2978 = vmax.xlane.f32.xlu0 %v2977
      %v2979 = vpop.xlane.xlu0 %2978
      %v2980 = vsel %vm508, %v2825, -inf
      %2981 = vmax.xlane.f32.xlu0 %v2980
      %v2982 = vpop.xlane.xlu0 %2981
      %v2983 = vsel %vm508, %v2830, -inf
      %2984 = vmax.xlane.f32.xlu0 %v2983
      %v2985 = vpop.xlane.xlu0 %2984
      %v2986 = vsel %vm508, %v2932, -inf
      %2987 = vmax.xlane.f32.xlu0 %v2986
      %v2988 = vpop.xlane.xlu0 %2987
      %v2989 = vsel %vm508, %v2937, -inf
      %2990 = vmax.xlane.f32.xlu0 %v2989
      %v2991 = vpop.xlane.xlu0 %2990
      %v2992 = vsel %vm508, %v2942, -inf
      %2993 = vmax.xlane.f32.xlu0 %v2992
      %v2994 = vpop.xlane.xlu0 %2993
      %v2995 = vsel %vm508, %v2947, -inf
      %2996 = vmax.xlane.f32.xlu0 %v2995
      %v2997 = vpop.xlane.xlu0 %2996
      %v2998 = vsub.f32 %v2581, %v2952
      %v2999 = vsub.f32 %v2586, %v2955
      %v3000 = vsub.f32 %v2591, %v2958
      %v3001 = vsub.f32 %v2596, %v2961
      %v3002 = vsub.f32 %v2698, %v2964
      %v3003 = vsub.f32 %v2703, %v2967
      %v3004 = vsub.f32 %v2708, %v2970
      %v3005 = vsub.f32 %v2713, %v2973
      %v3006 = vsub.f32 %v2815, %v2976
      %v3007 = vsub.f32 %v2820, %v2979
      %v3008 = vsub.f32 %v2825, %v2982
      %v3009 = vsub.f32 %v2830, %v2985
      %v3010 = vsub.f32 %v2932, %v2988
      %v3011 = vsub.f32 %v2937, %v2991
      %v3012 = vsub.f32 %v2942, %v2994
      %v3013 = vsub.f32 %v2947, %v2997
      %v3014 = vmul.f32 %v2998, 1.442695
      %v3015 = vpow.pop %v3014
      %v3016 = vmul.f32 %v2999, 1.442695
      %v3017 = vpow.pop %v3016
      %v3018 = vmul.f32 %v3000, 1.442695
      %v3019 = vpow.pop %v3018
      %v3020 = vmul.f32 %v3001, 1.442695
      %v3021 = vpow.pop %v3020
      %v3022 = vmul.f32 %v3002, 1.442695
      %v3023 = vpow.pop %v3022
      %v3024 = vmul.f32 %v3003, 1.442695
      %v3025 = vpow.pop %v3024
      %v3026 = vmul.f32 %v3004, 1.442695
      %v3027 = vpow.pop %v3026
      %v3028 = vmul.f32 %v3005, 1.442695
      %v3029 = vpow.pop %v3028
      %v3030 = vmul.f32 %v3006, 1.442695
      %v3031 = vpow.pop %v3030
      %v3032 = vmul.f32 %v3007, 1.442695
      %v3033 = vpow.pop %v3032
      %v3034 = vmul.f32 %v3008, 1.442695
      %v3035 = vpow.pop %v3034
      %v3036 = vmul.f32 %v3009, 1.442695
      %v3037 = vpow.pop %v3036
      %v3038 = vmul.f32 %v3010, 1.442695
      %v3039 = vpow.pop %v3038
      %v3040 = vmul.f32 %v3011, 1.442695
      %v3041 = vpow.pop %v3040
      %v3042 = vmul.f32 %v3012, 1.442695
      %v3043 = vpow.pop %v3042
      %v3044 = vmul.f32 %v3013, 1.442695
      %v3045 = vpow.pop %v3044
      %v3046 = vsel %vm508, %v3015, 0.0
      %3047 = vadd.xlane.f32.xlu0 %v3046
      %v3048 = vpop.xlane.xlu0 %3047
      %v3049 = vsel %vm508, %v3017, 0.0
      %3050 = vadd.xlane.f32.xlu0 %v3049
      %v3051 = vpop.xlane.xlu0 %3050
      %v3052 = vsel %vm508, %v3019, 0.0
      %3053 = vadd.xlane.f32.xlu0 %v3052
      %v3054 = vpop.xlane.xlu0 %3053
      %v3055 = vsel %vm508, %v3021, 0.0
      %3056 = vadd.xlane.f32.xlu0 %v3055
      %v3057 = vpop.xlane.xlu0 %3056
      %v3058 = vsel %vm508, %v3023, 0.0
      %3059 = vadd.xlane.f32.xlu0 %v3058
      %v3060 = vpop.xlane.xlu0 %3059
      %v3061 = vsel %vm508, %v3025, 0.0
      %3062 = vadd.xlane.f32.xlu0 %v3061
      %v3063 = vpop.xlane.xlu0 %3062
      %v3064 = vsel %vm508, %v3027, 0.0
      %3065 = vadd.xlane.f32.xlu0 %v3064
      %v3066 = vpop.xlane.xlu0 %3065
      %v3067 = vsel %vm508, %v3029, 0.0
      %3068 = vadd.xlane.f32.xlu0 %v3067
      %v3069 = vpop.xlane.xlu0 %3068
      %v3070 = vsel %vm508, %v3031, 0.0
      %3071 = vadd.xlane.f32.xlu0 %v3070
      %v3072 = vpop.xlane.xlu0 %3071
      %v3073 = vsel %vm508, %v3033, 0.0
      %3074 = vadd.xlane.f32.xlu0 %v3073
      %v3075 = vpop.xlane.xlu0 %3074
      %v3076 = vsel %vm508, %v3035, 0.0
      %3077 = vadd.xlane.f32.xlu0 %v3076
      %v3078 = vpop.xlane.xlu0 %3077
      %v3079 = vsel %vm508, %v3037, 0.0
      %3080 = vadd.xlane.f32.xlu0 %v3079
      %v3081 = vpop.xlane.xlu0 %3080
      %v3082 = vsel %vm508, %v3039, 0.0
      %3083 = vadd.xlane.f32.xlu0 %v3082
      %v3084 = vpop.xlane.xlu0 %3083
      %v3085 = vsel %vm508, %v3041, 0.0
      %3086 = vadd.xlane.f32.xlu0 %v3085
      %v3087 = vpop.xlane.xlu0 %3086
      %v3088 = vsel %vm508, %v3043, 0.0
      %3089 = vadd.xlane.f32.xlu0 %v3088
      %v3090 = vpop.xlane.xlu0 %3089
      %v3091 = vsel %vm508, %v3045, 0.0
      %3092 = vadd.xlane.f32.xlu0 %v3091
      %v3093 = vpop.xlane.xlu0 %3092
      %v3094 = vrcp.pop %v3048
      %v3095 = vrcp.pop %v3051
      %v3096 = vrcp.pop %v3054
      %v3097 = vrcp.pop %v3057
      %v3098 = vrcp.pop %v3060
      %v3099 = vrcp.pop %v3063
      %v3100 = vrcp.pop %v3066
      %v3101 = vrcp.pop %v3069
      %v3102 = vrcp.pop %v3072
      %v3103 = vrcp.pop %v3075
      %v3104 = vrcp.pop %v3078
      %v3105 = vrcp.pop %v3081
      %v3106 = vrcp.pop %v3084
      %v3107 = vrcp.pop %v3087
      %v3108 = vrcp.pop %v3090
      %v3109 = vrcp.pop %v3093
      %v3110 = vmul.f32 %v3015, %v3094
      %v3111 = vmul.f32 %v3017, %v3095
      %v3112 = vmul.f32 %v3019, %v3096
      %v3113 = vmul.f32 %v3021, %v3097
      %v3114 = vmul.f32 %v3023, %v3098
      %v3115 = vmul.f32 %v3025, %v3099
      %v3116 = vmul.f32 %v3027, %v3100
      %v3117 = vmul.f32 %v3029, %v3101
      %v3118 = vmul.f32 %v3031, %v3102
      %v3119 = vmul.f32 %v3033, %v3103
      %v3120 = vmul.f32 %v3035, %v3104
      %v3121 = vmul.f32 %v3037, %v3105
      %v3122 = vmul.f32 %v3039, %v3106
      %v3123 = vmul.f32 %v3041, %v3107
      %v3124 = vmul.f32 %v3043, %v3108
      %v3125 = vmul.f32 %v3045, %v3109
      %3126 = vrot.lane.b32.xlu0 %v1346, 80
      %v3127 = vpop.permute.xlu0 %3126
      %3128 = vrot.lane.b32.xlu0 %v1351, 80
      %v3129 = vpop.permute.xlu0 %3128
      %3130 = vrot.lane.b32.xlu0 %v1356, 80
      %v3131 = vpop.permute.xlu0 %3130
      %3132 = vrot.lane.b32.xlu0 %v1361, 80
      %v3133 = vpop.permute.xlu0 %3132
      %v3139 = vsel %vm508, %v3110, 0
      %v3142 = vsel %vm508, %v3111, 0
      %v3145 = vsel %vm508, %v3112, 0
      %v3148 = vsel %vm508, %v3113, 0
      %3150 = vmatprep.subr.mxu0 0.0
      %3151 = vmatpush1.msra.mxu0 %v3127
      %3152 = vmatprep.subr.mxu0 0.0
      %3153 = vmatpush1.msra.mxu0 %v3129
      %3154 = vmatprep.subr.mxu0 0.0
      %3155 = vmatpush1.msra.mxu0 %v3131
      %3156 = vmatprep.subr.mxu0 0.0
      %3157 = vmatpush1.msra.mxu0 %v3133
      %3158 = vmatprep.subr.mxu0 0.0
      %3159 = vmatpush1.msra.mxu0 0.0
      %3160 = vmatprep.subr.mxu0 0.0
      %3161 = vmatpush1.msra.mxu0 0.0
      %3162 = vmatprep.subr.mxu0 0.0
      %3163 = vmatpush1.msra.mxu0 0.0
      %3164 = vmatprep.subr.mxu0 0.0
      %3165 = vmatpush1.msra.mxu0 0.0
      %3166 = vmatprep.subr.mxu0 0.0
      %3167 = vmatpush1.msra.mxu0 0.0
      %3168 = vmatprep.subr.mxu0 0.0
      %3169 = vmatpush1.msra.mxu0 0.0
      %3170 = vmatprep.subr.mxu0 0.0
      %3171 = vmatpush1.msra.mxu0 0.0
      %3172 = vmatprep.subr.mxu0 0.0
      %3173 = vmatpush1.msra.mxu0 0.0
      %3174 = vmatprep.subr.mxu0 0.0
      %3175 = vmatpush1.msra.mxu0 0.0
      %3176 = vmatprep.subr.mxu0 0.0
      %3177 = vmatpush1.msra.mxu0 0.0
      %3178 = vmatprep.subr.mxu0 0.0
      %3179 = vmatpush1.msra.mxu0 0.0
      %3180 = vmatprep.subr.mxu0 0.0
      %3181 = vmatpush1.msra.mxu0 0.0
      %3182 = vmatprep.subr.mxu0 0.0
      %3183 = vmatpush1.msra.mxu0 0.0
      %3184 = vmatprep.subr.mxu0 0.0
      %3185 = vmatpush1.msra.mxu0 0.0
      %3186 = vmatprep.subr.mxu0 0.0
      %3187 = vmatpush1.msra.mxu0 0.0
      %3188 = vmatprep.subr.mxu0 0.0
      %3189 = vmatpush1.msra.mxu0 0.0
      %3190 = vmatprep.subr.mxu0 0.0
      %3191 = vmatpush1.msra.mxu0 0.0
      %3192 = vmatprep.subr.mxu0 0.0
      %3193 = vmatpush1.msra.mxu0 0.0
      %3194 = vmatprep.subr.mxu0 0.0
      %3195 = vmatpush1.msra.mxu0 0.0
      %3196 = vmatprep.subr.mxu0 0.0
      %3197 = vmatpush1.msra.mxu0 0.0
      %3198 = vmatprep.subr.mxu0 0.0
      %3199 = vmatpush1.msra.mxu0 0.0
      %3200 = vmatprep.subr.mxu0 0.0
      %3201 = vmatpush1.msra.mxu0 0.0
      %3202 = vmatprep.subr.mxu0 0.0
      %3203 = vmatpush1.msra.mxu0 0.0
      %3204 = vmatprep.subr.mxu0 0.0
      %3205 = vmatpush1.msra.mxu0 0.0
      %3206 = vmatprep.subr.mxu0 0.0
      %3207 = vmatpush1.msra.mxu0 0.0
      %3208 = vmatprep.subr.mxu0 0.0
      %3209 = vmatpush1.msra.mxu0 0.0
      %3210 = vmatprep.subr.mxu0 0.0
      %3211 = vmatpush1.msra.mxu0 0.0
      %3212 = vmatprep.subr.mxu0 0.0
      %3213 = vmatpush1.msra.mxu0 0.0
      %3214 = vmatprep.mubr.f32.mxu0 0.0
      %3215 = vmatmul.mubr.f32.gmra.mrb[0].mxu0 %v3139
      %v3216 = vpop.f32.mrb[0].mxu0
      %v3217 = vadd.f32 0.0, %v3216
      %v3218 = vpop.f32.mrb[0].mxu0
      %3219 = vmatprep.mubr.f32.mxu0 0.0
      %3220 = vmatmul.mubr.f32.gmra.mrb[0].mxu0 %v3142
      %v3221 = vpop.f32.mrb[0].mxu0
      %v3222 = vadd.f32 0.0, %v3221
      %v3223 = vpop.f32.mrb[0].mxu0
      %3224 = vmatprep.mubr.f32.mxu0 0.0
      %3225 = vmatmul.mubr.f32.gmra.mrb[0].mxu0 %v3145
      %v3226 = vpop.f32.mrb[0].mxu0
      %v3227 = vadd.f32 0.0, %v3226
      %v3228 = vpop.f32.mrb[0].mxu0
      %3229 = vmatprep.mubr.f32.mxu0 0.0
      %3230 = vmatmul.mubr.f32.gmra.mrb[0].mxu0 %v3148
      %v3231 = vpop.f32.mrb[0].mxu0
      %v3232 = vadd.f32 0.0, %v3231
      %v3233 = vpop.f32.mrb[0].mxu0
      %3234 = vdwg.mxu0
      %3235 = vrot.lane.b32.xlu0 %v1366, 80
      %v3236 = vpop.permute.xlu0 %3235
      %3237 = vrot.lane.b32.xlu0 %v1371, 80
      %v3238 = vpop.permute.xlu0 %3237
      %3239 = vrot.lane.b32.xlu0 %v1376, 80
      %v3240 = vpop.permute.xlu0 %3239
      %3241 = vrot.lane.b32.xlu0 %v1381, 80
      %v3242 = vpop.permute.xlu0 %3241
      %v3248 = vsel %vm508, %v3114, 0
      %v3251 = vsel %vm508, %v3115, 0
      %v3254 = vsel %vm508, %v3116, 0
      %v3257 = vsel %vm508, %v3117, 0
      %3259 = vmatprep.subr.mxu0 0.0
      %3260 = vmatpush1.msra.mxu0 %v3236
      %3261 = vmatprep.subr.mxu0 0.0
      %3262 = vmatpush1.msra.mxu0 %v3238
      %3263 = vmatprep.subr.mxu0 0.0
      %3264 = vmatpush1.msra.mxu0 %v3240
      %3265 = vmatprep.subr.mxu0 0.0
      %3266 = vmatpush1.msra.mxu0 %v3242
      %3267 = vmatprep.subr.mxu0 0.0
      %3268 = vmatpush1.msra.mxu0 0.0
      %3269 = vmatprep.subr.mxu0 0.0
      %3270 = vmatpush1.msra.mxu0 0.0
      %3271 = vmatprep.subr.mxu0 0.0
      %3272 = vmatpush1.msra.mxu0 0.0
      %3273 = vmatprep.subr.mxu0 0.0
      %3274 = vmatpush1.msra.mxu0 0.0
      %3275 = vmatprep.subr.mxu0 0.0
      %3276 = vmatpush1.msra.mxu0 0.0
      %3277 = vmatprep.subr.mxu0 0.0
      %3278 = vmatpush1.msra.mxu0 0.0
      %3279 = vmatprep.subr.mxu0 0.0
      %3280 = vmatpush1.msra.mxu0 0.0
      %3281 = vmatprep.subr.mxu0 0.0
      %3282 = vmatpush1.msra.mxu0 0.0
      %3283 = vmatprep.subr.mxu0 0.0
      %3284 = vmatpush1.msra.mxu0 0.0
      %3285 = vmatprep.subr.mxu0 0.0
      %3286 = vmatpush1.msra.mxu0 0.0
      %3287 = vmatprep.subr.mxu0 0.0
      %3288 = vmatpush1.msra.mxu0 0.0
      %3289 = vmatprep.subr.mxu0 0.0
      %3290 = vmatpush1.msra.mxu0 0.0
      %3291 = vmatprep.subr.mxu0 0.0
      %3292 = vmatpush1.msra.mxu0 0.0
      %3293 = vmatprep.subr.mxu0 0.0
      %3294 = vmatpush1.msra.mxu0 0.0
      %3295 = vmatprep.subr.mxu0 0.0
      %3296 = vmatpush1.msra.mxu0 0.0
      %3297 = vmatprep.subr.mxu0 0.0
      %3298 = vmatpush1.msra.mxu0 0.0
      %3299 = vmatprep.subr.mxu0 0.0
      %3300 = vmatpush1.msra.mxu0 0.0
      %3301 = vmatprep.subr.mxu0 0.0
      %3302 = vmatpush1.msra.mxu0 0.0
      %3303 = vmatprep.subr.mxu0 0.0
      %3304 = vmatpush1.msra.mxu0 0.0
      %3305 = vmatprep.subr.mxu0 0.0
      %3306 = vmatpush1.msra.mxu0 0.0
      %3307 = vmatprep.subr.mxu0 0.0
      %3308 = vmatpush1.msra.mxu0 0.0
      %3309 = vmatprep.subr.mxu0 0.0
      %3310 = vmatpush1.msra.mxu0 0.0
      %3311 = vmatprep.subr.mxu0 0.0
      %3312 = vmatpush1.msra.mxu0 0.0
      %3313 = vmatprep.subr.mxu0 0.0
      %3314 = vmatpush1.msra.mxu0 0.0
      %3315 = vmatprep.subr.mxu0 0.0
      %3316 = vmatpush1.msra.mxu0 0.0
      %3317 = vmatprep.subr.mxu0 0.0
      %3318 = vmatpush1.msra.mxu0 0.0
      %3319 = vmatprep.subr.mxu0 0.0
      %3320 = vmatpush1.msra.mxu0 0.0
      %3321 = vmatprep.subr.mxu0 0.0
      %3322 = vmatpush1.msra.mxu0 0.0
      %3323 = vmatprep.mubr.f32.mxu0 0.0
      %3324 = vmatmul.mubr.f32.gmra.mrb[0].mxu0 %v3248
      %v3325 = vpop.f32.mrb[0].mxu0
      %v3326 = vadd.f32 0.0, %v3325
      %v3327 = vpop.f32.mrb[0].mxu0
      %3328 = vmatprep.mubr.f32.mxu0 0.0
      %3329 = vmatmul.mubr.f32.gmra.mrb[0].mxu0 %v3251
      %v3330 = vpop.f32.mrb[0].mxu0
      %v3331 = vadd.f32 0.0, %v3330
      %v3332 = vpop.f32.mrb[0].mxu0
      %3333 = vmatprep.mubr.f32.mxu0 0.0
      %3334 = vmatmul.mubr.f32.gmra.mrb[0].mxu0 %v3254
      %v3335 = vpop.f32.mrb[0].mxu0
      %v3336 = vadd.f32 0.0, %v3335
      %v3337 = vpop.f32.mrb[0].mxu0
      %3338 = vmatprep.mubr.f32.mxu0 0.0
      %3339 = vmatmul.mubr.f32.gmra.mrb[0].mxu0 %v3257
      %v3340 = vpop.f32.mrb[0].mxu0
      %v3341 = vadd.f32 0.0, %v3340
      %v3342 = vpop.f32.mrb[0].mxu0
      %3343 = vdwg.mxu0
      %3344 = vrot.lane.b32.xlu0 %v1386, 80
      %v3345 = vpop.permute.xlu0 %3344
      %3346 = vrot.lane.b32.xlu0 %v1391, 80
      %v3347 = vpop.permute.xlu0 %3346
      %3348 = vrot.lane.b32.xlu0 %v1396, 80
      %v3349 = vpop.permute.xlu0 %3348
      %3350 = vrot.lane.b32.xlu0 %v1401, 80
      %v3351 = vpop.permute.xlu0 %3350
      %v3357 = vsel %vm508, %v3118, 0
      %v3360 = vsel %vm508, %v3119, 0
      %v3363 = vsel %vm508, %v3120, 0
      %v3366 = vsel %vm508, %v3121, 0
      %3368 = vmatprep.subr.mxu0 0.0
      %3369 = vmatpush1.msra.mxu0 %v3345
      %3370 = vmatprep.subr.mxu0 0.0
      %3371 = vmatpush1.msra.mxu0 %v3347
      %3372 = vmatprep.subr.mxu0 0.0
      %3373 = vmatpush1.msra.mxu0 %v3349
      %3374 = vmatprep.subr.mxu0 0.0
      %3375 = vmatpush1.msra.mxu0 %v3351
      %3376 = vmatprep.subr.mxu0 0.0
      %3377 = vmatpush1.msra.mxu0 0.0
      %3378 = vmatprep.subr.mxu0 0.0
      %3379 = vmatpush1.msra.mxu0 0.0
      %3380 = vmatprep.subr.mxu0 0.0
      %3381 = vmatpush1.msra.mxu0 0.0
      %3382 = vmatprep.subr.mxu0 0.0
      %3383 = vmatpush1.msra.mxu0 0.0
      %3384 = vmatprep.subr.mxu0 0.0
      %3385 = vmatpush1.msra.mxu0 0.0
      %3386 = vmatprep.subr.mxu0 0.0
      %3387 = vmatpush1.msra.mxu0 0.0
      %3388 = vmatprep.subr.mxu0 0.0
      %3389 = vmatpush1.msra.mxu0 0.0
      %3390 = vmatprep.subr.mxu0 0.0
      %3391 = vmatpush1.msra.mxu0 0.0
      %3392 = vmatprep.subr.mxu0 0.0
      %3393 = vmatpush1.msra.mxu0 0.0
      %3394 = vmatprep.subr.mxu0 0.0
      %3395 = vmatpush1.msra.mxu0 0.0
      %3396 = vmatprep.subr.mxu0 0.0
      %3397 = vmatpush1.msra.mxu0 0.0
      %3398 = vmatprep.subr.mxu0 0.0
      %3399 = vmatpush1.msra.mxu0 0.0
      %3400 = vmatprep.subr.mxu0 0.0
      %3401 = vmatpush1.msra.mxu0 0.0
      %3402 = vmatprep.subr.mxu0 0.0
      %3403 = vmatpush1.msra.mxu0 0.0
      %3404 = vmatprep.subr.mxu0 0.0
      %3405 = vmatpush1.msra.mxu0 0.0
      %3406 = vmatprep.subr.mxu0 0.0
      %3407 = vmatpush1.msra.mxu0 0.0
      %3408 = vmatprep.subr.mxu0 0.0
      %3409 = vmatpush1.msra.mxu0 0.0
      %3410 = vmatprep.subr.mxu0 0.0
      %3411 = vmatpush1.msra.mxu0 0.0
      %3412 = vmatprep.subr.mxu0 0.0
      %3413 = vmatpush1.msra.mxu0 0.0
      %3414 = vmatprep.subr.mxu0 0.0
      %3415 = vmatpush1.msra.mxu0 0.0
      %3416 = vmatprep.subr.mxu0 0.0
      %3417 = vmatpush1.msra.mxu0 0.0
      %3418 = vmatprep.subr.mxu0 0.0
      %3419 = vmatpush1.msra.mxu0 0.0
      %3420 = vmatprep.subr.mxu0 0.0
      %3421 = vmatpush1.msra.mxu0 0.0
      %3422 = vmatprep.subr.mxu0 0.0
      %3423 = vmatpush1.msra.mxu0 0.0
      %3424 = vmatprep.subr.mxu0 0.0
      %3425 = vmatpush1.msra.mxu0 0.0
      %3426 = vmatprep.subr.mxu0 0.0
      %3427 = vmatpush1.msra.mxu0 0.0
      %3428 = vmatprep.subr.mxu0 0.0
      %3429 = vmatpush1.msra.mxu0 0.0
      %3430 = vmatprep.subr.mxu0 0.0
      %3431 = vmatpush1.msra.mxu0 0.0
      %3432 = vmatprep.mubr.f32.mxu0 0.0
      %3433 = vmatmul.mubr.f32.gmra.mrb[0].mxu0 %v3357
      %v3434 = vpop.f32.mrb[0].mxu0
      %v3435 = vadd.f32 0.0, %v3434
      %v3436 = vpop.f32.mrb[0].mxu0
      %3437 = vmatprep.mubr.f32.mxu0 0.0
      %3438 = vmatmul.mubr.f32.gmra.mrb[0].mxu0 %v3360
      %v3439 = vpop.f32.mrb[0].mxu0
      %v3440 = vadd.f32 0.0, %v3439
      %v3441 = vpop.f32.mrb[0].mxu0
      %3442 = vmatprep.mubr.f32.mxu0 0.0
      %3443 = vmatmul.mubr.f32.gmra.mrb[0].mxu0 %v3363
      %v3444 = vpop.f32.mrb[0].mxu0
      %v3445 = vadd.f32 0.0, %v3444
      %v3446 = vpop.f32.mrb[0].mxu0
      %3447 = vmatprep.mubr.f32.mxu0 0.0
      %3448 = vmatmul.mubr.f32.gmra.mrb[0].mxu0 %v3366
      %v3449 = vpop.f32.mrb[0].mxu0
      %v3450 = vadd.f32 0.0, %v3449
      %v3451 = vpop.f32.mrb[0].mxu0
      %3452 = vdwg.mxu0
      %3453 = vrot.lane.b32.xlu0 %v1406, 80
      %v3454 = vpop.permute.xlu0 %3453
      %3455 = vrot.lane.b32.xlu0 %v1411, 80
      %v3456 = vpop.permute.xlu0 %3455
      %3457 = vrot.lane.b32.xlu0 %v1416, 80
      %v3458 = vpop.permute.xlu0 %3457
      %3459 = vrot.lane.b32.xlu0 %v1421, 80
      %v3460 = vpop.permute.xlu0 %3459
      %v3466 = vsel %vm508, %v3122, 0
      %v3469 = vsel %vm508, %v3123, 0
      %v3472 = vsel %vm508, %v3124, 0
      %v3475 = vsel %vm508, %v3125, 0
      %3477 = vmatprep.subr.mxu0 0.0
      %3478 = vmatpush1.msra.mxu0 %v3454
      %3479 = vmatprep.subr.mxu0 0.0
      %3480 = vmatpush1.msra.mxu0 %v3456
      %3481 = vmatprep.subr.mxu0 0.0
      %3482 = vmatpush1.msra.mxu0 %v3458
      %3483 = vmatprep.subr.mxu0 0.0
      %3484 = vmatpush1.msra.mxu0 %v3460
      %3485 = vmatprep.subr.mxu0 0.0
      %3486 = vmatpush1.msra.mxu0 0.0
      %3487 = vmatprep.subr.mxu0 0.0
      %3488 = vmatpush1.msra.mxu0 0.0
      %3489 = vmatprep.subr.mxu0 0.0
      %3490 = vmatpush1.msra.mxu0 0.0
      %3491 = vmatprep.subr.mxu0 0.0
      %3492 = vmatpush1.msra.mxu0 0.0
      %3493 = vmatprep.subr.mxu0 0.0
      %3494 = vmatpush1.msra.mxu0 0.0
      %3495 = vmatprep.subr.mxu0 0.0
      %3496 = vmatpush1.msra.mxu0 0.0
      %3497 = vmatprep.subr.mxu0 0.0
      %3498 = vmatpush1.msra.mxu0 0.0
      %3499 = vmatprep.subr.mxu0 0.0
      %3500 = vmatpush1.msra.mxu0 0.0
      %3501 = vmatprep.subr.mxu0 0.0
      %3502 = vmatpush1.msra.mxu0 0.0
      %3503 = vmatprep.subr.mxu0 0.0
      %3504 = vmatpush1.msra.mxu0 0.0
      %3505 = vmatprep.subr.mxu0 0.0
      %3506 = vmatpush1.msra.mxu0 0.0
      %3507 = vmatprep.subr.mxu0 0.0
      %3508 = vmatpush1.msra.mxu0 0.0
      %3509 = vmatprep.subr.mxu0 0.0
      %3510 = vmatpush1.msra.mxu0 0.0
      %3511 = vmatprep.subr.mxu0 0.0
      %3512 = vmatpush1.msra.mxu0 0.0
      %3513 = vmatprep.subr.mxu0 0.0
      %3514 = vmatpush1.msra.mxu0 0.0
      %3515 = vmatprep.subr.mxu0 0.0
      %3516 = vmatpush1.msra.mxu0 0.0
      %3517 = vmatprep.subr.mxu0 0.0
      %3518 = vmatpush1.msra.mxu0 0.0
      %3519 = vmatprep.subr.mxu0 0.0
      %3520 = vmatpush1.msra.mxu0 0.0
      %3521 = vmatprep.subr.mxu0 0.0
      %3522 = vmatpush1.msra.mxu0 0.0
      %3523 = vmatprep.subr.mxu0 0.0
      %3524 = vmatpush1.msra.mxu0 0.0
      %3525 = vmatprep.subr.mxu0 0.0
      %3526 = vmatpush1.msra.mxu0 0.0
      %3527 = vmatprep.subr.mxu0 0.0
      %3528 = vmatpush1.msra.mxu0 0.0
      %3529 = vmatprep.subr.mxu0 0.0
      %3530 = vmatpush1.msra.mxu0 0.0
      %3531 = vmatprep.subr.mxu0 0.0
      %3532 = vmatpush1.msra.mxu0 0.0
      %3533 = vmatprep.subr.mxu0 0.0
      %3534 = vmatpush1.msra.mxu0 0.0
      %3535 = vmatprep.subr.mxu0 0.0
      %3536 = vmatpush1.msra.mxu0 0.0
      %3537 = vmatprep.subr.mxu0 0.0
      %3538 = vmatpush1.msra.mxu0 0.0
      %3539 = vmatprep.subr.mxu0 0.0
      %3540 = vmatpush1.msra.mxu0 0.0
      %3541 = vmatprep.mubr.f32.mxu0 0.0
      %3542 = vmatmul.mubr.f32.gmra.mrb[0].mxu0 %v3466
      %v3543 = vpop.f32.mrb[0].mxu0
      %v3544 = vadd.f32 0.0, %v3543
      %v3545 = vpop.f32.mrb[0].mxu0
      %3546 = vmatprep.mubr.f32.mxu0 0.0
      %3547 = vmatmul.mubr.f32.gmra.mrb[0].mxu0 %v3469
      %v3548 = vpop.f32.mrb[0].mxu0
      %v3549 = vadd.f32 0.0, %v3548
      %v3550 = vpop.f32.mrb[0].mxu0
      %3551 = vmatprep.mubr.f32.mxu0 0.0
      %3552 = vmatmul.mubr.f32.gmra.mrb[0].mxu0 %v3472
      %v3553 = vpop.f32.mrb[0].mxu0
      %v3554 = vadd.f32 0.0, %v3553
      %v3555 = vpop.f32.mrb[0].mxu0
      %3556 = vmatprep.mubr.f32.mxu0 0.0
      %3557 = vmatmul.mubr.f32.gmra.mrb[0].mxu0 %v3475
      %v3558 = vpop.f32.mrb[0].mxu0
      %v3559 = vadd.f32 0.0, %v3558
      %v3560 = vpop.f32.mrb[0].mxu0
      %3561 = vdwg.mxu0
      %3578 = vrot.lane.b32.xlu0 %v3217, 16
      %v3579 = vpop.permute.xlu0 %3578
      %3580 = vrot.lane.b32.xlu0 %v3222, 16
      %v3581 = vpop.permute.xlu0 %3580
      %3582 = vrot.lane.b32.xlu0 %v3227, 16
      %v3583 = vpop.permute.xlu0 %3582
      %3584 = vrot.lane.b32.xlu0 %v3232, 16
      %v3585 = vpop.permute.xlu0 %3584
      %3586 = vrot.lane.b32.xlu0 %v3326, 16
      %v3587 = vpop.permute.xlu0 %3586
      %3588 = vrot.lane.b32.xlu0 %v3331, 16
      %v3589 = vpop.permute.xlu0 %3588
      %3590 = vrot.lane.b32.xlu0 %v3336, 16
      %v3591 = vpop.permute.xlu0 %3590
      %3592 = vrot.lane.b32.xlu0 %v3341, 16
      %v3593 = vpop.permute.xlu0 %3592
      %3594 = vrot.lane.b32.xlu0 %v3435, 16
      %v3595 = vpop.permute.xlu0 %3594
      %3596 = vrot.lane.b32.xlu0 %v3440, 16
      %v3597 = vpop.permute.xlu0 %3596
      %3598 = vrot.lane.b32.xlu0 %v3445, 16
      %v3599 = vpop.permute.xlu0 %3598
      %3600 = vrot.lane.b32.xlu0 %v3450, 16
      %v3601 = vpop.permute.xlu0 %3600
      %3602 = vrot.lane.b32.xlu0 %v3544, 16
      %v3603 = vpop.permute.xlu0 %3602
      %3604 = vrot.lane.b32.xlu0 %v3549, 16
      %v3605 = vpop.permute.xlu0 %3604
      %3606 = vrot.lane.b32.xlu0 %v3554, 16
      %v3607 = vpop.permute.xlu0 %3606
      %3608 = vrot.lane.b32.xlu0 %v3559, 16
      %v3609 = vpop.permute.xlu0 %3608
      %v3626 = vsel %vm1428, %v2132, %v3579
      %v3627 = vsel %vm1428, %v2137, %v3581
      %v3628 = vsel %vm1428, %v2142, %v3583
      %v3629 = vsel %vm1428, %v2147, %v3585
      %v3630 = vsel %vm1428, %v2241, %v3587
      %v3631 = vsel %vm1428, %v2246, %v3589
      %v3632 = vsel %vm1428, %v2251, %v3591
      %v3633 = vsel %vm1428, %v2256, %v3593
      %v3634 = vsel %vm1428, %v2350, %v3595
      %v3635 = vsel %vm1428, %v2355, %v3597
      %v3636 = vsel %vm1428, %v2360, %v3599
      %v3637 = vsel %vm1428, %v2365, %v3601
      %v3638 = vsel %vm1428, %v2459, %v3603
      %v3639 = vsel %vm1428, %v2464, %v3605
      %v3640 = vsel %vm1428, %v2469, %v3607
      %v3641 = vsel %vm1428, %v2474, %v3609
      %v3642 = vld [vmem:[%s10] sm:$0xff]
      %v3643 = vld [vmem:[%s10 + $0x8] sm:$0xff]
      %v3644 = vld [vmem:[%s10 + $0x10] sm:$0xff]
      %v3645 = vld [vmem:[%s10 + $0x18] sm:$0xff]
      %v3646 = vld [vmem:[%s11] sm:$0x1]
      %v3648 = vlaneseq
      %v3649 = vshrl.u32 %v3648, 7
      %v3650 = vsub.s32 0, %v3649
      %v3651 = vrot.slane %v3646, %v3650
      %v3654 = vsel %vm508, %v3626, 0
      %v3657 = vsel %vm508, %v3627, 0
      %v3660 = vsel %vm508, %v3628, 0
      %v3663 = vsel %vm508, %v3629, 0
      %v3666 = vsel %vm508, %v3630, 0
      %v3669 = vsel %vm508, %v3631, 0
      %v3672 = vsel %vm508, %v3632, 0
      %v3675 = vsel %vm508, %v3633, 0
      %v3678 = vsel %vm508, %v3634, 0
      %v3681 = vsel %vm508, %v3635, 0
      %v3684 = vsel %vm508, %v3636, 0
      %v3687 = vsel %vm508, %v3637, 0
      %v3690 = vsel %vm508, %v3638, 0
      %v3693 = vsel %vm508, %v3639, 0
      %v3696 = vsel %vm508, %v3640, 0
      %v3699 = vsel %vm508, %v3641, 0
      %3701 = vmatprep.subr.mxu0 0.0
      %3702 = vmatpush1.msra.mxu0 %v3642
      %3703 = vmatprep.subr.mxu0 0.0
      %3704 = vmatpush1.msra.mxu0 %v3643
      %3705 = vmatprep.subr.mxu0 0.0
      %3706 = vmatpush1.msra.mxu0 %v3644
      %3707 = vmatprep.subr.mxu0 0.0
      %3708 = vmatpush1.msra.mxu0 %v3645
      %3709 = vmatprep.subr.mxu0 0.0
      %3710 = vmatpush1.msra.mxu0 0.0
      %3711 = vmatprep.subr.mxu0 0.0
      %3712 = vmatpush1.msra.mxu0 0.0
      %3713 = vmatprep.subr.mxu0 0.0
      %3714 = vmatpush1.msra.mxu0 0.0
      %3715 = vmatprep.subr.mxu0 0.0
      %3716 = vmatpush1.msra.mxu0 0.0
      %3717 = vmatprep.subr.mxu0 0.0
      %3718 = vmatpush1.msra.mxu0 0.0
      %3719 = vmatprep.subr.mxu0 0.0
      %3720 = vmatpush1.msra.mxu0 0.0
      %3721 = vmatprep.subr.mxu0 0.0
      %3722 = vmatpush1.msra.mxu0 0.0
      %3723 = vmatprep.subr.mxu0 0.0
      %3724 = vmatpush1.msra.mxu0 0.0
      %3725 = vmatprep.subr.mxu0 0.0
      %3726 = vmatpush1.msra.mxu0 0.0
      %3727 = vmatprep.subr.mxu0 0.0
      %3728 = vmatpush1.msra.mxu0 0.0
      %3729 = vmatprep.subr.mxu0 0.0
      %3730 = vmatpush1.msra.mxu0 0.0
      %3731 = vmatprep.subr.mxu0 0.0
      %3732 = vmatpush1.msra.mxu0 0.0
      %3733 = vmatprep.subr.mxu0 0.0
      %3734 = vmatpush1.msra.mxu0 0.0
      %3735 = vmatprep.subr.mxu0 0.0
      %3736 = vmatpush1.msra.mxu0 0.0
      %3737 = vmatprep.subr.mxu0 0.0
      %3738 = vmatpush1.msra.mxu0 0.0
      %3739 = vmatprep.subr.mxu0 0.0
      %3740 = vmatpush1.msra.mxu0 0.0
      %3741 = vmatprep.subr.mxu0 0.0
      %3742 = vmatpush1.msra.mxu0 0.0
      %3743 = vmatprep.subr.mxu0 0.0
      %3744 = vmatpush1.msra.mxu0 0.0
      %3745 = vmatprep.subr.mxu0 0.0
      %3746 = vmatpush1.msra.mxu0 0.0
      %3747 = vmatprep.subr.mxu0 0.0
      %3748 = vmatpush1.msra.mxu0 0.0
      %3749 = vmatprep.subr.mxu0 0.0
      %3750 = vmatpush1.msra.mxu0 0.0
      %3751 = vmatprep.subr.mxu0 0.0
      %3752 = vmatpush1.msra.mxu0 0.0
      %3753 = vmatprep.subr.mxu0 0.0
      %3754 = vmatpush1.msra.mxu0 0.0
      %3755 = vmatprep.subr.mxu0 0.0
      %3756 = vmatpush1.msra.mxu0 0.0
      %3757 = vmatprep.subr.mxu0 0.0
      %3758 = vmatpush1.msra.mxu0 0.0
      %3759 = vmatprep.subr.mxu0 0.0
      %3760 = vmatpush1.msra.mxu0 0.0
      %3761 = vmatprep.subr.mxu0 0.0
      %3762 = vmatpush1.msra.mxu0 0.0
      %3763 = vmatprep.subr.mxu0 0.0
      %3764 = vmatpush1.msra.mxu0 0.0
      %3765 = vmatprep.mubr.f32.mxu0 0.0
      %3766 = vmatmul.mubr.f32.gmra.mrb[0].mxu0 %v3654
      %v3767 = vpop.f32.mrb[0].mxu0
      %v3768 = vadd.f32 %v3651, %v3767
      %v3769 = vpop.f32.mrb[0].mxu0
      %3770 = vmatprep.mubr.f32.mxu0 0.0
      %3771 = vmatmul.mubr.f32.gmra.mrb[0].mxu0 %v3657
      %v3772 = vpop.f32.mrb[0].mxu0
      %v3773 = vadd.f32 %v3651, %v3772
      %v3774 = vpop.f32.mrb[0].mxu0
      %3775 = vmatprep.mubr.f32.mxu0 0.0
      %3776 = vmatmul.mubr.f32.gmra.mrb[0].mxu0 %v3660
      %v3777 = vpop.f32.mrb[0].mxu0
      %v3778 = vadd.f32 %v3651, %v3777
      %v3779 = vpop.f32.mrb[0].mxu0
      %3780 = vmatprep.mubr.f32.mxu0 0.0
      %3781 = vmatmul.mubr.f32.gmra.mrb[0].mxu0 %v3663
      %v3782 = vpop.f32.mrb[0].mxu0
      %v3783 = vadd.f32 %v3651, %v3782
      %v3784 = vpop.f32.mrb[0].mxu0
      %3785 = vmatprep.mubr.f32.mxu0 0.0
      %3786 = vmatmul.mubr.f32.gmra.mrb[0].mxu0 %v3666
      %v3787 = vpop.f32.mrb[0].mxu0
      %v3788 = vadd.f32 %v3651, %v3787
      %v3789 = vpop.f32.mrb[0].mxu0
      %3790 = vmatprep.mubr.f32.mxu0 0.0
      %3791 = vmatmul.mubr.f32.gmra.mrb[0].mxu0 %v3669
      %v3792 = vpop.f32.mrb[0].mxu0
      %v3793 = vadd.f32 %v3651, %v3792
      %v3794 = vpop.f32.mrb[0].mxu0
      %3795 = vmatprep.mubr.f32.mxu0 0.0
      %3796 = vmatmul.mubr.f32.gmra.mrb[0].mxu0 %v3672
      %v3797 = vpop.f32.mrb[0].mxu0
      %v3798 = vadd.f32 %v3651, %v3797
      %v3799 = vpop.f32.mrb[0].mxu0
      %3800 = vmatprep.mubr.f32.mxu0 0.0
      %3801 = vmatmul.mubr.f32.gmra.mrb[0].mxu0 %v3675
      %v3802 = vpop.f32.mrb[0].mxu0
      %v3803 = vadd.f32 %v3651, %v3802
      %v3804 = vpop.f32.mrb[0].mxu0
      %3805 = vmatprep.mubr.f32.mxu0 0.0
      %3806 = vmatmul.mubr.f32.gmra.mrb[0].mxu0 %v3678
      %v3807 = vpop.f32.mrb[0].mxu0
      %v3808 = vadd.f32 %v3651, %v3807
      %v3809 = vpop.f32.mrb[0].mxu0
      %3810 = vmatprep.mubr.f32.mxu0 0.0
      %3811 = vmatmul.mubr.f32.gmra.mrb[0].mxu0 %v3681
      %v3812 = vpop.f32.mrb[0].mxu0
      %v3813 = vadd.f32 %v3651, %v3812
      %v3814 = vpop.f32.mrb[0].mxu0
      %3815 = vmatprep.mubr.f32.mxu0 0.0
      %3816 = vmatmul.mubr.f32.gmra.mrb[0].mxu0 %v3684
      %v3817 = vpop.f32.mrb[0].mxu0
      %v3818 = vadd.f32 %v3651, %v3817
      %v3819 = vpop.f32.mrb[0].mxu0
      %3820 = vmatprep.mubr.f32.mxu0 0.0
      %3821 = vmatmul.mubr.f32.gmra.mrb[0].mxu0 %v3687
      %v3822 = vpop.f32.mrb[0].mxu0
      %v3823 = vadd.f32 %v3651, %v3822
      %v3824 = vpop.f32.mrb[0].mxu0
      %3825 = vmatprep.mubr.f32.mxu0 0.0
      %3826 = vmatmul.mubr.f32.gmra.mrb[0].mxu0 %v3690
      %v3827 = vpop.f32.mrb[0].mxu0
      %v3828 = vadd.f32 %v3651, %v3827
      %v3829 = vpop.f32.mrb[0].mxu0
      %3830 = vmatprep.mubr.f32.mxu0 0.0
      %3831 = vmatmul.mubr.f32.gmra.mrb[0].mxu0 %v3693
      %v3832 = vpop.f32.mrb[0].mxu0
      %v3833 = vadd.f32 %v3651, %v3832
      %v3834 = vpop.f32.mrb[0].mxu0
      %3835 = vmatprep.mubr.f32.mxu0 0.0
      %3836 = vmatmul.mubr.f32.gmra.mrb[0].mxu0 %v3696
      %v3837 = vpop.f32.mrb[0].mxu0
      %v3838 = vadd.f32 %v3651, %v3837
      %v3839 = vpop.f32.mrb[0].mxu0
      %3840 = vmatprep.mubr.f32.mxu0 0.0
      %3841 = vmatmul.mubr.f32.gmra.mrb[0].mxu0 %v3699
      %v3842 = vpop.f32.mrb[0].mxu0
      %v3843 = vadd.f32 %v3651, %v3842
      %v3844 = vpop.f32.mrb[0].mxu0
      %3845 = vdwg.mxu0
      %v3846 = vadd.f32 %v474, %v3768
      %v3847 = vadd.f32 %v475, %v3773
      %v3848 = vadd.f32 %v476, %v3778
      %v3849 = vadd.f32 %v477, %v3783
      %v3850 = vadd.f32 %v478, %v3788
      %v3851 = vadd.f32 %v479, %v3793
      %v3852 = vadd.f32 %v480, %v3798
      %v3853 = vadd.f32 %v481, %v3803
      %v3854 = vadd.f32 %v482, %v3808
      %v3855 = vadd.f32 %v483, %v3813
      %v3856 = vadd.f32 %v484, %v3818
      %v3857 = vadd.f32 %v485, %v3823
      %v3858 = vadd.f32 %v486, %v3828
      %v3859 = vadd.f32 %v487, %v3833
      %v3860 = vadd.f32 %v488, %v3838
      %v3861 = vadd.f32 %v489, %v3843
      %3862 = vst.msk [vmem:[%s472] sm:$0xff] %vm508, %v3846
      %3863 = vst.msk [vmem:[%s472 + $0x8] sm:$0xff] %vm508, %v3847
      %3864 = vst.msk [vmem:[%s472 + $0x10] sm:$0xff] %vm508, %v3848
      %3865 = vst.msk [vmem:[%s472 + $0x18] sm:$0xff] %vm508, %v3849
      %3866 = vst.msk [vmem:[%s472 + $0x20] sm:$0xff] %vm508, %v3850
      %3867 = vst.msk [vmem:[%s472 + $0x28] sm:$0xff] %vm508, %v3851
      %3868 = vst.msk [vmem:[%s472 + $0x30] sm:$0xff] %vm508, %v3852
      %3869 = vst.msk [vmem:[%s472 + $0x38] sm:$0xff] %vm508, %v3853
      %3870 = vst.msk [vmem:[%s472 + $0x40] sm:$0xff] %vm508, %v3854
      %3871 = vst.msk [vmem:[%s472 + $0x48] sm:$0xff] %vm508, %v3855
      %3872 = vst.msk [vmem:[%s472 + $0x50] sm:$0xff] %vm508, %v3856
      %3873 = vst.msk [vmem:[%s472 + $0x58] sm:$0xff] %vm508, %v3857
      %3874 = vst.msk [vmem:[%s472 + $0x60] sm:$0xff] %vm508, %v3858
      %3875 = vst.msk [vmem:[%s472 + $0x68] sm:$0xff] %vm508, %v3859
      %3876 = vst.msk [vmem:[%s472 + $0x70] sm:$0xff] %vm508, %v3860
      %3877 = vst.msk [vmem:[%s472 + $0x78] sm:$0xff] %vm508, %v3861
      %s3878 = smul.u32 4, %s24
      %p3879 = scmp.lt.s32.totalorder %s3878, 7
      %s3880 = scalar_select %p3879, %s3878, 7
      %s3881 = smul.addr %s3880, 4
      %s3882 = smul.addr %s3881, 8
      %s3883 = scalar_lea.vmem %s13, %s3882
      // Predicated region
      $region73: #{_lambda_.4} parent=71 // pred_check
        %p3884 = pneg %p325
      $region74: #{_lambda_.4} parent=71 // pred_check_branch
        %3886 = sbr.rel (%p3884) target = $region76
      $region75: #{_lambda_.4} parent=71 // pred_region
        %s3887 = smul.u32 4, %s24
      $region76: #{_lambda_.4} parent=71 // pred_fallthru
        _
    $region72: #{_lambda_.4} parent=5 // pred_fallthru
      _
    %p3888 = scmp.le.s32.totalorder 2, %s19
    // Predicated region
    $region77: #{_lambda_.4} parent=5 // pred_check
      %p3889 = pneg %p3888
    $region78: #{_lambda_.4} parent=5 // pred_check_branch
      %3891 = sbr.rel (%p3889) target = $region80
    $region79: #{_lambda_.4} parent=5 // pred_region
      %s3892 = ssub.s32 %s19, 2
      // Predicated region
      $region81: #{_lambda_.4} parent=79 // pred_check
        %p3893 = pneg %p331
      $region82: #{_lambda_.4} parent=79 // pred_check_branch
        %3895 = sbr.rel (%p3893) target = $region84
      $region83: #{_lambda_.4} parent=79 // pred_region
        %s3896 = smul.u32 4, %s25
        %p3897 = scmp.lt.s32.totalorder %s3896, 7
        %s3898 = scalar_select %p3897, %s3896, 7
        %s3899 = smul.addr %s3898, 4
        %s3900 = smul.addr %s3899, 8
        %s3901 = scalar_lea.vmem %s13, %s3900
      $region84: #{_lambda_.4} parent=79 // pred_fallthru
        _
    $region80: #{_lambda_.4} parent=5 // pred_fallthru
      _
  $region6: #{_lambda_.4} parent=0 // loop_footer
    %s23 = sadd.s32 1, %s19
  $region7: #{_lambda_.4} parent=0 // loop_footer_branch
    %18 = sbr.rel target = $region3
  $region8: #{_lambda_.4} parent=0 // loop_exit
    _

// kernel: _lambda_.3
$region0: #{_lambda_.3}
  #allocation0 [shape = 'u32[]', space=smem, size = 0x4, offset = 0x4, fixed_abs, tag = 'smem constant byte address 0x4 - core index']
  #allocation1 [shape = 'u32[144,128]{1,0:T(1,128)}', space=vmem, size = 0x12000, scoped, tag = 'internal scratch']
  %s0 = inlined_call_operand.vmem [shape: f32[8,32,32], index: 0, kind: input, shape index: {}]
  %s1 = inlined_call_operand.vmem [shape: f32[1,32], index: 1, kind: input, shape index: {}]
  %s2 = inlined_call_operand.vmem [shape: f32[1,32], index: 2, kind: input, shape index: {}]
  %s3 = inlined_call_operand.vmem [shape: f32[32,96], index: 3, kind: input, shape index: {}]
  %s4 = inlined_call_operand.vmem [shape: f32[1,96], index: 4, kind: input, shape index: {}]
  %s5 = inlined_call_operand.vmem [shape: f32[32,32], index: 5, kind: input, shape index: {}]
  %s6 = inlined_call_operand.vmem [shape: f32[1,32], index: 6, kind: input, shape index: {}]
  %s7 = inlined_call_operand.vmem [shape: f32[2,32,32], index: 7, kind: input, shape index: {}]
  %s8 = inlined_call_operand.vmem [shape: f32[8,32,32], index: 8, kind: output, shape index: {}]
  %s9 = sld [smem:[#allocation0]]
  $region65: #{_lambda_.3} parent=0
    _
  %s11 = ssub.s32 1, %s9
  %s12 = scalar_select 0, %s11, %s9
  loop: start=0, step=1, limit=4
  $region2: #{_lambda_.3} parent=0 // loop_pre_header
    _
  $region3: #{_lambda_.3} parent=0 // loop_header
    %s14 = sphi 0, %s18
    %p15 = scmp.ge.s32.totalorder %s14, 4
    %s24 = sphi 0, %s26
    %s27 = sphi 0, %s24
    %s28 = sphi 0, %s27
    %s44 = sphi 0, %s28
    %s48 = sphi 0, %s48
    %s50 = sphi 0, %s48
    %s51 = sphi 0, %s50
    %s65 = sphi 0, %s51
    %s69 = sphi 0, %s69
    %s71 = sphi 0, %s69
    %s72 = sphi 0, %s71
    %s86 = sphi 0, %s72
    %s90 = sphi 0, %s90
    %s92 = sphi 0, %s90
    %s93 = sphi 0, %s92
    %s107 = sphi 0, %s93
    %s111 = sphi 0, %s111
    %s113 = sphi 0, %s111
    %s114 = sphi 0, %s113
    %s128 = sphi 0, %s114
    %s132 = sphi 0, %s132
    %s134 = sphi 0, %s132
    %s135 = sphi 0, %s134
    %s149 = sphi 0, %s135
    %s153 = sphi 0, %s153
    %s155 = sphi 0, %s153
    %s156 = sphi 0, %s155
    %s170 = sphi 0, %s156
    %s174 = sphi 0, %s174
    %s176 = sphi 0, %s174
    %s177 = sphi 0, %s176
    %s191 = sphi 0, %s177
    %s197 = sphi 0, %s199
    %s200 = sphi 0, %s197
    %s201 = sphi 0, %s200
    %s217 = sphi 0, %s201
  $region4: #{_lambda_.3} parent=0 // loop_header_branch
    %17 = sbr.rel (%p15) target = $region8
  $region5: #{_lambda_.3} parent=0 // loop_body
    %s19 = ssub.s32 %s14, 1
    %s20 = ssub.s32 %s14, 2
    %s21 = sadd.s32 %s14, 1
    %s22 = ssub.s32 %s14, %s21
    %p23 = scmp.eq.s32.totalorder %s22, 0
    %s25 = sadd.s32 %s24, 1
    %s26 = scalar_select %p23, %s24, %s25
    %p29 = pneg %p23
    %p30 = scmp.eq.s32.totalorder %s14, 1
    %p31 = por %p29, %p30
    %p32 = scmp.ne.s32.totalorder %s24, %s27
    %p33 = scmp.eq.s32.totalorder %s14, 0
    %p34 = por %p32, %p33
    %p35 = scmp.ne.s32.totalorder %s24, %s27
    %p36 = scmp.eq.s32.totalorder %s19, 1
    %p37 = por %p35, %p36
    %p38 = scmp.ne.s32.totalorder %s27, %s28
    %p39 = scmp.eq.s32.totalorder %s19, 0
    %p40 = por %p38, %p39
    %p41 = scmp.ne.s32.totalorder %s27, %s28
    %p42 = scmp.eq.s32.totalorder %s20, 1
    %p43 = por %p41, %p42
    %p45 = scmp.ne.s32.totalorder %s28, %s44
    %p46 = scmp.eq.s32.totalorder %s20, 0
    %p47 = por %p45, %p46
    %s49 = sadd.s32 %s48, 1
    %p52 = scmp.eq.s32.totalorder %s14, 1
    %p53 = scmp.ne.s32.totalorder %s48, %s50
    %p54 = scmp.eq.s32.totalorder %s14, 0
    %p55 = por %p53, %p54
    %p56 = scmp.ne.s32.totalorder %s48, %s50
    %p57 = scmp.eq.s32.totalorder %s19, 1
    %p58 = por %p56, %p57
    %p59 = scmp.ne.s32.totalorder %s50, %s51
    %p60 = scmp.eq.s32.totalorder %s19, 0
    %p61 = por %p59, %p60
    %p62 = scmp.ne.s32.totalorder %s50, %s51
    %p63 = scmp.eq.s32.totalorder %s20, 1
    %p64 = por %p62, %p63
    %p66 = scmp.ne.s32.totalorder %s51, %s65
    %p67 = scmp.eq.s32.totalorder %s20, 0
    %p68 = por %p66, %p67
    %s70 = sadd.s32 %s69, 1
    %p73 = scmp.eq.s32.totalorder %s14, 1
    %p74 = scmp.ne.s32.totalorder %s69, %s71
    %p75 = scmp.eq.s32.totalorder %s14, 0
    %p76 = por %p74, %p75
    %p77 = scmp.ne.s32.totalorder %s69, %s71
    %p78 = scmp.eq.s32.totalorder %s19, 1
    %p79 = por %p77, %p78
    %p80 = scmp.ne.s32.totalorder %s71, %s72
    %p81 = scmp.eq.s32.totalorder %s19, 0
    %p82 = por %p80, %p81
    %p83 = scmp.ne.s32.totalorder %s71, %s72
    %p84 = scmp.eq.s32.totalorder %s20, 1
    %p85 = por %p83, %p84
    %p87 = scmp.ne.s32.totalorder %s72, %s86
    %p88 = scmp.eq.s32.totalorder %s20, 0
    %p89 = por %p87, %p88
    %s91 = sadd.s32 %s90, 1
    %p94 = scmp.eq.s32.totalorder %s14, 1
    %p95 = scmp.ne.s32.totalorder %s90, %s92
    %p96 = scmp.eq.s32.totalorder %s14, 0
    %p97 = por %p95, %p96
    %p98 = scmp.ne.s32.totalorder %s90, %s92
    %p99 = scmp.eq.s32.totalorder %s19, 1
    %p100 = por %p98, %p99
    %p101 = scmp.ne.s32.totalorder %s92, %s93
    %p102 = scmp.eq.s32.totalorder %s19, 0
    %p103 = por %p101, %p102
    %p104 = scmp.ne.s32.totalorder %s92, %s93
    %p105 = scmp.eq.s32.totalorder %s20, 1
    %p106 = por %p104, %p105
    %p108 = scmp.ne.s32.totalorder %s93, %s107
    %p109 = scmp.eq.s32.totalorder %s20, 0
    %p110 = por %p108, %p109
    %s112 = sadd.s32 %s111, 1
    %p115 = scmp.eq.s32.totalorder %s14, 1
    %p116 = scmp.ne.s32.totalorder %s111, %s113
    %p117 = scmp.eq.s32.totalorder %s14, 0
    %p118 = por %p116, %p117
    %p119 = scmp.ne.s32.totalorder %s111, %s113
    %p120 = scmp.eq.s32.totalorder %s19, 1
    %p121 = por %p119, %p120
    %p122 = scmp.ne.s32.totalorder %s113, %s114
    %p123 = scmp.eq.s32.totalorder %s19, 0
    %p124 = por %p122, %p123
    %p125 = scmp.ne.s32.totalorder %s113, %s114
    %p126 = scmp.eq.s32.totalorder %s20, 1
    %p127 = por %p125, %p126
    %p129 = scmp.ne.s32.totalorder %s114, %s128
    %p130 = scmp.eq.s32.totalorder %s20, 0
    %p131 = por %p129, %p130
    %s133 = sadd.s32 %s132, 1
    %p136 = scmp.eq.s32.totalorder %s14, 1
    %p137 = scmp.ne.s32.totalorder %s132, %s134
    %p138 = scmp.eq.s32.totalorder %s14, 0
    %p139 = por %p137, %p138
    %p140 = scmp.ne.s32.totalorder %s132, %s134
    %p141 = scmp.eq.s32.totalorder %s19, 1
    %p142 = por %p140, %p141
    %p143 = scmp.ne.s32.totalorder %s134, %s135
    %p144 = scmp.eq.s32.totalorder %s19, 0
    %p145 = por %p143, %p144
    %p146 = scmp.ne.s32.totalorder %s134, %s135
    %p147 = scmp.eq.s32.totalorder %s20, 1
    %p148 = por %p146, %p147
    %p150 = scmp.ne.s32.totalorder %s135, %s149
    %p151 = scmp.eq.s32.totalorder %s20, 0
    %p152 = por %p150, %p151
    %s154 = sadd.s32 %s153, 1
    %p157 = scmp.eq.s32.totalorder %s14, 1
    %p158 = scmp.ne.s32.totalorder %s153, %s155
    %p159 = scmp.eq.s32.totalorder %s14, 0
    %p160 = por %p158, %p159
    %p161 = scmp.ne.s32.totalorder %s153, %s155
    %p162 = scmp.eq.s32.totalorder %s19, 1
    %p163 = por %p161, %p162
    %p164 = scmp.ne.s32.totalorder %s155, %s156
    %p165 = scmp.eq.s32.totalorder %s19, 0
    %p166 = por %p164, %p165
    %p167 = scmp.ne.s32.totalorder %s155, %s156
    %p168 = scmp.eq.s32.totalorder %s20, 1
    %p169 = por %p167, %p168
    %p171 = scmp.ne.s32.totalorder %s156, %s170
    %p172 = scmp.eq.s32.totalorder %s20, 0
    %p173 = por %p171, %p172
    %s175 = sadd.s32 %s174, 1
    %p178 = scmp.eq.s32.totalorder %s14, 1
    %p179 = scmp.ne.s32.totalorder %s174, %s176
    %p180 = scmp.eq.s32.totalorder %s14, 0
    %p181 = por %p179, %p180
    %p182 = scmp.ne.s32.totalorder %s174, %s176
    %p183 = scmp.eq.s32.totalorder %s19, 1
    %p184 = por %p182, %p183
    %p185 = scmp.ne.s32.totalorder %s176, %s177
    %p186 = scmp.eq.s32.totalorder %s19, 0
    %p187 = por %p185, %p186
    %p188 = scmp.ne.s32.totalorder %s176, %s177
    %p189 = scmp.eq.s32.totalorder %s20, 1
    %p190 = por %p188, %p189
    %p192 = scmp.ne.s32.totalorder %s177, %s191
    %p193 = scmp.eq.s32.totalorder %s20, 0
    %p194 = por %p192, %p193
    %s195 = ssub.s32 %s14, %s21
    %p196 = scmp.eq.s32.totalorder %s195, 0
    %s198 = sadd.s32 %s197, 1
    %s199 = scalar_select %p196, %s197, %s198
    %p202 = pneg %p196
    %p203 = scmp.eq.s32.totalorder %s14, 1
    %p204 = por %p202, %p203
    %p205 = scmp.ne.s32.totalorder %s197, %s200
    %p206 = scmp.eq.s32.totalorder %s14, 0
    %p207 = por %p205, %p206
    %p208 = scmp.ne.s32.totalorder %s197, %s200
    %p209 = scmp.eq.s32.totalorder %s19, 1
    %p210 = por %p208, %p209
    %p211 = scmp.ne.s32.totalorder %s200, %s201
    %p212 = scmp.eq.s32.totalorder %s19, 0
    %p213 = por %p211, %p212
    %p214 = scmp.ne.s32.totalorder %s200, %s201
    %p215 = scmp.eq.s32.totalorder %s20, 1
    %p216 = por %p214, %p215
    %p218 = scmp.ne.s32.totalorder %s201, %s217
    %p219 = scmp.eq.s32.totalorder %s20, 0
    %p220 = por %p218, %p219
    %p221 = scmp.le.s32.totalorder 1, %s14
    %p222 = scmp.lt.s32.totalorder %s14, 3
    %p223 = pnand %p221, %p222
    %p224 = pneg %p223
    // Predicated region
    $region9: #{_lambda_.3} parent=5 // pred_check
      _
    $region10: #{_lambda_.3} parent=5 // pred_check_branch
      %226 = sbr.rel (%p223) target = $region12
    $region11: #{_lambda_.3} parent=5 // pred_region
      %s227 = ssub.s32 %s14, 1
      // Predicated region
      $region13: #{_lambda_.3} parent=11 // pred_check
        %p228 = pneg %p61
      $region14: #{_lambda_.3} parent=11 // pred_check_branch
        %230 = sbr.rel (%p228) target = $region16
      $region15: #{_lambda_.3} parent=11 // pred_region
        _
      $region16: #{_lambda_.3} parent=11 // pred_fallthru
        _
      // Predicated region
      $region17: #{_lambda_.3} parent=11 // pred_check
        %p231 = pneg %p82
      $region18: #{_lambda_.3} parent=11 // pred_check_branch
        %233 = sbr.rel (%p231) target = $region20
      $region19: #{_lambda_.3} parent=11 // pred_region
        _
      $region20: #{_lambda_.3} parent=11 // pred_fallthru
        _
      // Predicated region
      $region21: #{_lambda_.3} parent=11 // pred_check
        %p234 = pneg %p103
      $region22: #{_lambda_.3} parent=11 // pred_check_branch
        %236 = sbr.rel (%p234) target = $region24
      $region23: #{_lambda_.3} parent=11 // pred_region
        _
      $region24: #{_lambda_.3} parent=11 // pred_fallthru
        _
      // Predicated region
      $region25: #{_lambda_.3} parent=11 // pred_check
        %p237 = pneg %p124
      $region26: #{_lambda_.3} parent=11 // pred_check_branch
        %239 = sbr.rel (%p237) target = $region28
      $region27: #{_lambda_.3} parent=11 // pred_region
        _
      $region28: #{_lambda_.3} parent=11 // pred_fallthru
        _
      // Predicated region
      $region29: #{_lambda_.3} parent=11 // pred_check
        %p240 = pneg %p145
      $region30: #{_lambda_.3} parent=11 // pred_check_branch
        %242 = sbr.rel (%p240) target = $region32
      $region31: #{_lambda_.3} parent=11 // pred_region
        _
      $region32: #{_lambda_.3} parent=11 // pred_fallthru
        _
      // Predicated region
      $region33: #{_lambda_.3} parent=11 // pred_check
        %p243 = pneg %p166
      $region34: #{_lambda_.3} parent=11 // pred_check_branch
        %245 = sbr.rel (%p243) target = $region36
      $region35: #{_lambda_.3} parent=11 // pred_region
        _
      $region36: #{_lambda_.3} parent=11 // pred_fallthru
        _
      // Predicated region
      $region37: #{_lambda_.3} parent=11 // pred_check
        %p246 = pneg %p187
      $region38: #{_lambda_.3} parent=11 // pred_check_branch
        %248 = sbr.rel (%p246) target = $region40
      $region39: #{_lambda_.3} parent=11 // pred_region
        _
      $region40: #{_lambda_.3} parent=11 // pred_fallthru
        _
    $region12: #{_lambda_.3} parent=5 // pred_fallthru
      _
    %p249 = scmp.lt.s32.totalorder %s14, 2
    // Predicated region
    $region41: #{_lambda_.3} parent=5 // pred_check
      %p250 = pneg %p249
    $region42: #{_lambda_.3} parent=5 // pred_check_branch
      %252 = sbr.rel (%p250) target = $region44
    $region43: #{_lambda_.3} parent=5 // pred_region
      // Predicated region
      $region45: #{_lambda_.3} parent=43 // pred_check
        %p253 = pneg %p34
      $region46: #{_lambda_.3} parent=43 // pred_check_branch
        %255 = sbr.rel (%p253) target = $region48
      $region47: #{_lambda_.3} parent=43 // pred_region
        %s256 = smul.u32 4, %s14
        %p257 = scmp.lt.s32.totalorder %s256, 7
        %s258 = scalar_select %p257, %s256, 7
        %s259 = smul.addr %s258, 4
        %s260 = smul.addr %s259, 8
        %s261 = scalar_lea.vmem %s0, %s260
        %s262 = smul.u32 4, %s14
      $region48: #{_lambda_.3} parent=43 // pred_fallthru
        _
    $region44: #{_lambda_.3} parent=5 // pred_fallthru
      _
    %p263 = scmp.le.s32.totalorder 1, %s14
    %p264 = scmp.lt.s32.totalorder %s14, 3
    %p265 = pnand %p263, %p264
    %p266 = pneg %p265
    // Predicated region
    $region49: #{_lambda_.3} parent=5 // pred_check
      _
    $region50: #{_lambda_.3} parent=5 // pred_check_branch
      %268 = sbr.rel (%p265) target = $region52
    $region51: #{_lambda_.3} parent=5 // pred_region
      %s269 = ssub.s32 %s14, 1
      %s270 = smul.u32 4, %s19
      %p271 = scmp.lt.s32.totalorder %s270, 7
      %s272 = scalar_select %p271, %s270, 7
      %s273 = smul.addr %s272, 4
      %s274 = smul.addr %s273, 8
      %s275 = scalar_lea.vmem %s0, %s274
      %p276 = pneg %p40
      %p277 = pneg %p37
      %p278 = pneg %p61
      %p279 = pneg %p58
      %p280 = pneg %p82
      %p281 = pneg %p79
      %p282 = pneg %p103
      %p283 = pneg %p100
      %p284 = pneg %p124
      %p285 = pneg %p121
      %p286 = pneg %p145
      %p287 = pneg %p142
      %p288 = pneg %p166
      %p289 = pneg %p163
      %p290 = pneg %p187
      %p291 = pneg %p184
      %p292 = pneg %p213
      %p293 = pneg %p210
      %s294 = smul.u32 4, %s19
      %p295 = scmp.lt.s32.totalorder %s294, 7
      %s296 = scalar_select %p295, %s294, 7
      %s297 = smul.addr %s296, 4
      %s298 = smul.addr %s297, 8
      %s299 = scalar_lea.vmem %s8, %s298
      %s300 = smul.u32 4, %s19
      %p301 = scmp.lt.s32.totalorder %s300, 7
      %s302 = scalar_select %p301, %s300, 7
      %s303 = smul.addr %s302, 4
      %s304 = smul.addr %s303, 8
      %s305 = scalar_lea.vmem %s0, %s304
      %s306 = smul.u32 4, %s19
      %s307 = smul.u32 4, %s19
      %p308 = scmp.lt.s32.totalorder %s307, 7
      %s309 = scalar_select %p308, %s307, 7
      %s310 = smul.addr %s309, 4
      %s311 = smul.addr %s310, 8
      %s312 = scalar_lea.vmem %s8, %s311
      %s313 = smul.u32 4, %s19
      %v314 = vld [vmem:[%s305] sm:$0xff]
      %v315 = vld [vmem:[%s305 + $0x8] sm:$0xff]
      %v316 = vld [vmem:[%s305 + $0x10] sm:$0xff]
      %v317 = vld [vmem:[%s305 + $0x18] sm:$0xff]
      %v318 = vld [vmem:[%s305 + $0x20] sm:$0xff]
      %v319 = vld [vmem:[%s305 + $0x28] sm:$0xff]
      %v320 = vld [vmem:[%s305 + $0x30] sm:$0xff]
      %v321 = vld [vmem:[%s305 + $0x38] sm:$0xff]
      %v322 = vld [vmem:[%s305 + $0x40] sm:$0xff]
      %v323 = vld [vmem:[%s305 + $0x48] sm:$0xff]
      %v324 = vld [vmem:[%s305 + $0x50] sm:$0xff]
      %v325 = vld [vmem:[%s305 + $0x58] sm:$0xff]
      %v326 = vld [vmem:[%s305 + $0x60] sm:$0xff]
      %v327 = vld [vmem:[%s305 + $0x68] sm:$0xff]
      %v328 = vld [vmem:[%s305 + $0x70] sm:$0xff]
      %v329 = vld [vmem:[%s305 + $0x78] sm:$0xff]
      %v330 = vld [vmem:[%s1] sm:$0x1]
      %v331 = vld [vmem:[%s2] sm:$0x1]
      %vm332 = vcmask 261120
      %v333 = vsel %vm332, %v314, 0.0
      %334 = vadd.xlane.f32.xlu0 %v333
      %v335 = vpop.xlane.xlu0 %334
      %v336 = vsel %vm332, %v315, 0.0
      %337 = vadd.xlane.f32.xlu0 %v336
      %v338 = vpop.xlane.xlu0 %337
      %v339 = vsel %vm332, %v316, 0.0
      %340 = vadd.xlane.f32.xlu0 %v339
      %v341 = vpop.xlane.xlu0 %340
      %v342 = vsel %vm332, %v317, 0.0
      %343 = vadd.xlane.f32.xlu0 %v342
      %v344 = vpop.xlane.xlu0 %343
      %v345 = vsel %vm332, %v318, 0.0
      %346 = vadd.xlane.f32.xlu0 %v345
      %v347 = vpop.xlane.xlu0 %346
      %v348 = vsel %vm332, %v319, 0.0
      %349 = vadd.xlane.f32.xlu0 %v348
      %v350 = vpop.xlane.xlu0 %349
      %v351 = vsel %vm332, %v320, 0.0
      %352 = vadd.xlane.f32.xlu0 %v351
      %v353 = vpop.xlane.xlu0 %352
      %v354 = vsel %vm332, %v321, 0.0
      %355 = vadd.xlane.f32.xlu0 %v354
      %v356 = vpop.xlane.xlu0 %355
      %v357 = vsel %vm332, %v322, 0.0
      %358 = vadd.xlane.f32.xlu0 %v357
      %v359 = vpop.xlane.xlu0 %358
      %v360 = vsel %vm332, %v323, 0.0
      %361 = vadd.xlane.f32.xlu0 %v360
      %v362 = vpop.xlane.xlu0 %361
      %v363 = vsel %vm332, %v324, 0.0
      %364 = vadd.xlane.f32.xlu0 %v363
      %v365 = vpop.xlane.xlu0 %364
      %v366 = vsel %vm332, %v325, 0.0
      %367 = vadd.xlane.f32.xlu0 %v366
      %v368 = vpop.xlane.xlu0 %367
      %v369 = vsel %vm332, %v326, 0.0
      %370 = vadd.xlane.f32.xlu0 %v369
      %v371 = vpop.xlane.xlu0 %370
      %v372 = vsel %vm332, %v327, 0.0
      %373 = vadd.xlane.f32.xlu0 %v372
      %v374 = vpop.xlane.xlu0 %373
      %v375 = vsel %vm332, %v328, 0.0
      %376 = vadd.xlane.f32.xlu0 %v375
      %v377 = vpop.xlane.xlu0 %376
      %v378 = vsel %vm332, %v329, 0.0
      %379 = vadd.xlane.f32.xlu0 %v378
      %v380 = vpop.xlane.xlu0 %379
      %v381 = vrcp.pop 32.0
      %v382 = vmul.f32 %v335, %v381
      %v383 = vmul.f32 %v338, %v381
      %v384 = vmul.f32 %v341, %v381
      %v385 = vmul.f32 %v344, %v381
      %v386 = vmul.f32 %v347, %v381
      %v387 = vmul.f32 %v350, %v381
      %v388 = vmul.f32 %v353, %v381
      %v389 = vmul.f32 %v356, %v381
      %v390 = vmul.f32 %v359, %v381
      %v391 = vmul.f32 %v362, %v381
      %v392 = vmul.f32 %v365, %v381
      %v393 = vmul.f32 %v368, %v381
      %v394 = vmul.f32 %v371, %v381
      %v395 = vmul.f32 %v374, %v381
      %v396 = vmul.f32 %v377, %v381
      %v397 = vmul.f32 %v380, %v381
      %v398 = vsub.f32 %v314, %v382
      %v399 = vsub.f32 %v315, %v383
      %v400 = vsub.f32 %v316, %v384
      %v401 = vsub.f32 %v317, %v385
      %v402 = vsub.f32 %v318, %v386
      %v403 = vsub.f32 %v319, %v387
      %v404 = vsub.f32 %v320, %v388
      %v405 = vsub.f32 %v321, %v389
      %v406 = vsub.f32 %v322, %v390
      %v407 = vsub.f32 %v323, %v391
      %v408 = vsub.f32 %v324, %v392
      %v409 = vsub.f32 %v325, %v393
      %v410 = vsub.f32 %v326, %v394
      %v411 = vsub.f32 %v327, %v395
      %v412 = vsub.f32 %v328, %v396
      %v413 = vsub.f32 %v329, %v397
      %v414 = vmul.f32 %v398, %v398
      %v415 = vmul.f32 %v399, %v399
      %v416 = vmul.f32 %v400, %v400
      %v417 = vmul.f32 %v401, %v401
      %v418 = vmul.f32 %v402, %v402
      %v419 = vmul.f32 %v403, %v403
      %v420 = vmul.f32 %v404, %v404
      %v421 = vmul.f32 %v405, %v405
      %v422 = vmul.f32 %v406, %v406
      %v423 = vmul.f32 %v407, %v407
      %v424 = vmul.f32 %v408, %v408
      %v425 = vmul.f32 %v409, %v409
      %v426 = vmul.f32 %v410, %v410
      %v427 = vmul.f32 %v411, %v411
      %v428 = vmul.f32 %v412, %v412
      %v429 = vmul.f32 %v413, %v413
      %v430 = vsel %vm332, %v414, 0.0
      %431 = vadd.xlane.f32.xlu0 %v430
      %v432 = vpop.xlane.xlu0 %431
      %v433 = vsel %vm332, %v415, 0.0
      %434 = vadd.xlane.f32.xlu0 %v433
      %v435 = vpop.xlane.xlu0 %434
      %v436 = vsel %vm332, %v416, 0.0
      %437 = vadd.xlane.f32.xlu0 %v436
      %v438 = vpop.xlane.xlu0 %437
      %v439 = vsel %vm332, %v417, 0.0
      %440 = vadd.xlane.f32.xlu0 %v439
      %v441 = vpop.xlane.xlu0 %440
      %v442 = vsel %vm332, %v418, 0.0
      %443 = vadd.xlane.f32.xlu0 %v442
      %v444 = vpop.xlane.xlu0 %443
      %v445 = vsel %vm332, %v419, 0.0
      %446 = vadd.xlane.f32.xlu0 %v445
      %v447 = vpop.xlane.xlu0 %446
      %v448 = vsel %vm332, %v420, 0.0
      %449 = vadd.xlane.f32.xlu0 %v448
      %v450 = vpop.xlane.xlu0 %449
      %v451 = vsel %vm332, %v421, 0.0
      %452 = vadd.xlane.f32.xlu0 %v451
      %v453 = vpop.xlane.xlu0 %452
      %v454 = vsel %vm332, %v422, 0.0
      %455 = vadd.xlane.f32.xlu0 %v454
      %v456 = vpop.xlane.xlu0 %455
      %v457 = vsel %vm332, %v423, 0.0
      %458 = vadd.xlane.f32.xlu0 %v457
      %v459 = vpop.xlane.xlu0 %458
      %v460 = vsel %vm332, %v424, 0.0
      %461 = vadd.xlane.f32.xlu0 %v460
      %v462 = vpop.xlane.xlu0 %461
      %v463 = vsel %vm332, %v425, 0.0
      %464 = vadd.xlane.f32.xlu0 %v463
      %v465 = vpop.xlane.xlu0 %464
      %v466 = vsel %vm332, %v426, 0.0
      %467 = vadd.xlane.f32.xlu0 %v466
      %v468 = vpop.xlane.xlu0 %467
      %v469 = vsel %vm332, %v427, 0.0
      %470 = vadd.xlane.f32.xlu0 %v469
      %v471 = vpop.xlane.xlu0 %470
      %v472 = vsel %vm332, %v428, 0.0
      %473 = vadd.xlane.f32.xlu0 %v472
      %v474 = vpop.xlane.xlu0 %473
      %v475 = vsel %vm332, %v429, 0.0
      %476 = vadd.xlane.f32.xlu0 %v475
      %v477 = vpop.xlane.xlu0 %476
      %v478 = vmul.f32 %v432, %v381
      %v479 = vmul.f32 %v435, %v381
      %v480 = vmul.f32 %v438, %v381
      %v481 = vmul.f32 %v441, %v381
      %v482 = vmul.f32 %v444, %v381
      %v483 = vmul.f32 %v447, %v381
      %v484 = vmul.f32 %v450, %v381
      %v485 = vmul.f32 %v453, %v381
      %v486 = vmul.f32 %v456, %v381
      %v487 = vmul.f32 %v459, %v381
      %v488 = vmul.f32 %v462, %v381
      %v489 = vmul.f32 %v465, %v381
      %v490 = vmul.f32 %v468, %v381
      %v491 = vmul.f32 %v471, %v381
      %v492 = vmul.f32 %v474, %v381
      %v493 = vmul.f32 %v477, %v381
      %v494 = vadd.f32 %v478, 1e-05
      %v495 = vadd.f32 %v479, 1e-05
      %v496 = vadd.f32 %v480, 1e-05
      %v497 = vadd.f32 %v481, 1e-05
      %v498 = vadd.f32 %v482, 1e-05
      %v499 = vadd.f32 %v483, 1e-05
      %v500 = vadd.f32 %v484, 1e-05
      %v501 = vadd.f32 %v485, 1e-05
      %v502 = vadd.f32 %v486, 1e-05
      %v503 = vadd.f32 %v487, 1e-05
      %v504 = vadd.f32 %v488, 1e-05
      %v505 = vadd.f32 %v489, 1e-05
      %v506 = vadd.f32 %v490, 1e-05
      %v507 = vadd.f32 %v491, 1e-05
      %v508 = vadd.f32 %v492, 1e-05
      %v509 = vadd.f32 %v493, 1e-05
      %v510 = vrsqrt.pop %v494
      %v511 = vrsqrt.pop %v495
      %v512 = vrsqrt.pop %v496
      %v513 = vrsqrt.pop %v497
      %v514 = vrsqrt.pop %v498
      %v515 = vrsqrt.pop %v499
      %v516 = vrsqrt.pop %v500
      %v517 = vrsqrt.pop %v501
      %v518 = vrsqrt.pop %v502
      %v519 = vrsqrt.pop %v503
      %v520 = vrsqrt.pop %v504
      %v521 = vrsqrt.pop %v505
      %v522 = vrsqrt.pop %v506
      %v523 = vrsqrt.pop %v507
      %v524 = vrsqrt.pop %v508
      %v525 = vrsqrt.pop %v509
      %v526 = vmul.f32 %v398, %v510
      %v527 = vmul.f32 %v399, %v511
      %v528 = vmul.f32 %v400, %v512
      %v529 = vmul.f32 %v401, %v513
      %v530 = vmul.f32 %v402, %v514
      %v531 = vmul.f32 %v403, %v515
      %v532 = vmul.f32 %v404, %v516
      %v533 = vmul.f32 %v405, %v517
      %v534 = vmul.f32 %v406, %v518
      %v535 = vmul.f32 %v407, %v519
      %v536 = vmul.f32 %v408, %v520
      %v537 = vmul.f32 %v409, %v521
      %v538 = vmul.f32 %v410, %v522
      %v539 = vmul.f32 %v411, %v523
      %v540 = vmul.f32 %v412, %v524
      %v541 = vmul.f32 %v413, %v525
      %v543 = vlaneseq
      %v544 = vshrl.u32 %v543, 7
      %v545 = vsub.s32 0, %v544
      %v546 = vrot.slane %v330, %v545
      %v548 = vmul.f32 %v526, %v546
      %v549 = vmul.f32 %v527, %v546
      %v550 = vmul.f32 %v528, %v546
      %v551 = vmul.f32 %v529, %v546
      %v552 = vmul.f32 %v530, %v546
      %v553 = vmul.f32 %v531, %v546
      %v554 = vmul.f32 %v532, %v546
      %v555 = vmul.f32 %v533, %v546
      %v556 = vmul.f32 %v534, %v546
      %v557 = vmul.f32 %v535, %v546
      %v558 = vmul.f32 %v536, %v546
      %v559 = vmul.f32 %v537, %v546
      %v560 = vmul.f32 %v538, %v546
      %v561 = vmul.f32 %v539, %v546
      %v562 = vmul.f32 %v540, %v546
      %v563 = vmul.f32 %v541, %v546
      %v565 = vlaneseq
      %v566 = vshrl.u32 %v565, 7
      %v567 = vsub.s32 0, %v566
      %v568 = vrot.slane %v331, %v567
      %v570 = vadd.f32 %v548, %v568
      %v571 = vadd.f32 %v549, %v568
      %v572 = vadd.f32 %v550, %v568
      %v573 = vadd.f32 %v551, %v568
      %v574 = vadd.f32 %v552, %v568
      %v575 = vadd.f32 %v553, %v568
      %v576 = vadd.f32 %v554, %v568
      %v577 = vadd.f32 %v555, %v568
      %v578 = vadd.f32 %v556, %v568
      %v579 = vadd.f32 %v557, %v568
      %v580 = vadd.f32 %v558, %v568
      %v581 = vadd.f32 %v559, %v568
      %v582 = vadd.f32 %v560, %v568
      %v583 = vadd.f32 %v561, %v568
      %v584 = vadd.f32 %v562, %v568
      %v585 = vadd.f32 %v563, %v568
      %v586 = vld [vmem:[%s3] sm:$0xff]
      %v587 = vld [vmem:[%s3 + $0x8] sm:$0xff]
      %v588 = vld [vmem:[%s3 + $0x10] sm:$0xff]
      %v589 = vld [vmem:[%s3 + $0x18] sm:$0xff]
      %v590 = vld [vmem:[%s4] sm:$0x1]
      %v592 = vlaneseq
      %v593 = vshrl.u32 %v592, 7
      %v594 = vsub.s32 0, %v593
      %v595 = vrot.slane %v590, %v594
      %v598 = vsel %vm332, %v570, 0
      %v601 = vsel %vm332, %v571, 0
      %v604 = vsel %vm332, %v572, 0
      %v607 = vsel %vm332, %v573, 0
      %v610 = vsel %vm332, %v574, 0
      %v613 = vsel %vm332, %v575, 0
      %v616 = vsel %vm332, %v576, 0
      %v619 = vsel %vm332, %v577, 0
      %v622 = vsel %vm332, %v578, 0
      %v625 = vsel %vm332, %v579, 0
      %v628 = vsel %vm332, %v580, 0
      %v631 = vsel %vm332, %v581, 0
      %v634 = vsel %vm332, %v582, 0
      %v637 = vsel %vm332, %v583, 0
      %v640 = vsel %vm332, %v584, 0
      %v643 = vsel %vm332, %v585, 0
      %645 = vmatprep.subr.mxu0 0.0
      %646 = vmatpush1.msra.mxu0 %v586
      %647 = vmatprep.subr.mxu0 0.0
      %648 = vmatpush1.msra.mxu0 %v587
      %649 = vmatprep.subr.mxu0 0.0
      %650 = vmatpush1.msra.mxu0 %v588
      %651 = vmatprep.subr.mxu0 0.0
      %652 = vmatpush1.msra.mxu0 %v589
      %653 = vmatprep.subr.mxu0 0.0
      %654 = vmatpush1.msra.mxu0 0.0
      %655 = vmatprep.subr.mxu0 0.0
      %656 = vmatpush1.msra.mxu0 0.0
      %657 = vmatprep.subr.mxu0 0.0
      %658 = vmatpush1.msra.mxu0 0.0
      %659 = vmatprep.subr.mxu0 0.0
      %660 = vmatpush1.msra.mxu0 0.0
      %661 = vmatprep.subr.mxu0 0.0
      %662 = vmatpush1.msra.mxu0 0.0
      %663 = vmatprep.subr.mxu0 0.0
      %664 = vmatpush1.msra.mxu0 0.0
      %665 = vmatprep.subr.mxu0 0.0
      %666 = vmatpush1.msra.mxu0 0.0
      %667 = vmatprep.subr.mxu0 0.0
      %668 = vmatpush1.msra.mxu0 0.0
      %669 = vmatprep.subr.mxu0 0.0
      %670 = vmatpush1.msra.mxu0 0.0
      %671 = vmatprep.subr.mxu0 0.0
      %672 = vmatpush1.msra.mxu0 0.0
      %673 = vmatprep.subr.mxu0 0.0
      %674 = vmatpush1.msra.mxu0 0.0
      %675 = vmatprep.subr.mxu0 0.0
      %676 = vmatpush1.msra.mxu0 0.0
      %677 = vmatprep.subr.mxu0 0.0
      %678 = vmatpush1.msra.mxu0 0.0
      %679 = vmatprep.subr.mxu0 0.0
      %680 = vmatpush1.msra.mxu0 0.0
      %681 = vmatprep.subr.mxu0 0.0
      %682 = vmatpush1.msra.mxu0 0.0
      %683 = vmatprep.subr.mxu0 0.0
      %684 = vmatpush1.msra.mxu0 0.0
      %685 = vmatprep.subr.mxu0 0.0
      %686 = vmatpush1.msra.mxu0 0.0
      %687 = vmatprep.subr.mxu0 0.0
      %688 = vmatpush1.msra.mxu0 0.0
      %689 = vmatprep.subr.mxu0 0.0
      %690 = vmatpush1.msra.mxu0 0.0
      %691 = vmatprep.subr.mxu0 0.0
      %692 = vmatpush1.msra.mxu0 0.0
      %693 = vmatprep.subr.mxu0 0.0
      %694 = vmatpush1.msra.mxu0 0.0
      %695 = vmatprep.subr.mxu0 0.0
      %696 = vmatpush1.msra.mxu0 0.0
      %697 = vmatprep.subr.mxu0 0.0
      %698 = vmatpush1.msra.mxu0 0.0
      %699 = vmatprep.subr.mxu0 0.0
      %700 = vmatpush1.msra.mxu0 0.0
      %701 = vmatprep.subr.mxu0 0.0
      %702 = vmatpush1.msra.mxu0 0.0
      %703 = vmatprep.subr.mxu0 0.0
      %704 = vmatpush1.msra.mxu0 0.0
      %705 = vmatprep.subr.mxu0 0.0
      %706 = vmatpush1.msra.mxu0 0.0
      %707 = vmatprep.subr.mxu0 0.0
      %708 = vmatpush1.msra.mxu0 0.0
      %709 = vmatprep.mubr.f32.mxu0 0.0
      %710 = vmatmul.mubr.f32.gmra.mrb[0].mxu0 %v598
      %v711 = vpop.f32.mrb[0].mxu0
      %v712 = vadd.f32 %v595, %v711
      %v713 = vpop.f32.mrb[0].mxu0
      %714 = vmatprep.mubr.f32.mxu0 0.0
      %715 = vmatmul.mubr.f32.gmra.mrb[0].mxu0 %v601
      %v716 = vpop.f32.mrb[0].mxu0
      %v717 = vadd.f32 %v595, %v716
      %v718 = vpop.f32.mrb[0].mxu0
      %719 = vmatprep.mubr.f32.mxu0 0.0
      %720 = vmatmul.mubr.f32.gmra.mrb[0].mxu0 %v604
      %v721 = vpop.f32.mrb[0].mxu0
      %v722 = vadd.f32 %v595, %v721
      %v723 = vpop.f32.mrb[0].mxu0
      %724 = vmatprep.mubr.f32.mxu0 0.0
      %725 = vmatmul.mubr.f32.gmra.mrb[0].mxu0 %v607
      %v726 = vpop.f32.mrb[0].mxu0
      %v727 = vadd.f32 %v595, %v726
      %v728 = vpop.f32.mrb[0].mxu0
      %729 = vmatprep.mubr.f32.mxu0 0.0
      %730 = vmatmul.mubr.f32.gmra.mrb[0].mxu0 %v610
      %v731 = vpop.f32.mrb[0].mxu0
      %v732 = vadd.f32 %v595, %v731
      %v733 = vpop.f32.mrb[0].mxu0
      %734 = vmatprep.mubr.f32.mxu0 0.0
      %735 = vmatmul.mubr.f32.gmra.mrb[0].mxu0 %v613
      %v736 = vpop.f32.mrb[0].mxu0
      %v737 = vadd.f32 %v595, %v736
      %v738 = vpop.f32.mrb[0].mxu0
      %739 = vmatprep.mubr.f32.mxu0 0.0
      %740 = vmatmul.mubr.f32.gmra.mrb[0].mxu0 %v616
      %v741 = vpop.f32.mrb[0].mxu0
      %v742 = vadd.f32 %v595, %v741
      %v743 = vpop.f32.mrb[0].mxu0
      %744 = vmatprep.mubr.f32.mxu0 0.0
      %745 = vmatmul.mubr.f32.gmra.mrb[0].mxu0 %v619
      %v746 = vpop.f32.mrb[0].mxu0
      %v747 = vadd.f32 %v595, %v746
      %v748 = vpop.f32.mrb[0].mxu0
      %749 = vmatprep.mubr.f32.mxu0 0.0
      %750 = vmatmul.mubr.f32.gmra.mrb[0].mxu0 %v622
      %v751 = vpop.f32.mrb[0].mxu0
      %v752 = vadd.f32 %v595, %v751
      %v753 = vpop.f32.mrb[0].mxu0
      %754 = vmatprep.mubr.f32.mxu0 0.0
      %755 = vmatmul.mubr.f32.gmra.mrb[0].mxu0 %v625
      %v756 = vpop.f32.mrb[0].mxu0
      %v757 = vadd.f32 %v595, %v756
      %v758 = vpop.f32.mrb[0].mxu0
      %759 = vmatprep.mubr.f32.mxu0 0.0
      %760 = vmatmul.mubr.f32.gmra.mrb[0].mxu0 %v628
      %v761 = vpop.f32.mrb[0].mxu0
      %v762 = vadd.f32 %v595, %v761
      %v763 = vpop.f32.mrb[0].mxu0
      %764 = vmatprep.mubr.f32.mxu0 0.0
      %765 = vmatmul.mubr.f32.gmra.mrb[0].mxu0 %v631
      %v766 = vpop.f32.mrb[0].mxu0
      %v767 = vadd.f32 %v595, %v766
      %v768 = vpop.f32.mrb[0].mxu0
      %769 = vmatprep.mubr.f32.mxu0 0.0
      %770 = vmatmul.mubr.f32.gmra.mrb[0].mxu0 %v634
      %v771 = vpop.f32.mrb[0].mxu0
      %v772 = vadd.f32 %v595, %v771
      %v773 = vpop.f32.mrb[0].mxu0
      %774 = vmatprep.mubr.f32.mxu0 0.0
      %775 = vmatmul.mubr.f32.gmra.mrb[0].mxu0 %v637
      %v776 = vpop.f32.mrb[0].mxu0
      %v777 = vadd.f32 %v595, %v776
      %v778 = vpop.f32.mrb[0].mxu0
      %779 = vmatprep.mubr.f32.mxu0 0.0
      %780 = vmatmul.mubr.f32.gmra.mrb[0].mxu0 %v640
      %v781 = vpop.f32.mrb[0].mxu0
      %v782 = vadd.f32 %v595, %v781
      %v783 = vpop.f32.mrb[0].mxu0
      %784 = vmatprep.mubr.f32.mxu0 0.0
      %785 = vmatmul.mubr.f32.gmra.mrb[0].mxu0 %v643
      %v786 = vpop.f32.mrb[0].mxu0
      %v787 = vadd.f32 %v595, %v786
      %v788 = vpop.f32.mrb[0].mxu0
      %789 = vdwg.mxu0
      %v790 = vld [vmem:[%s7] sm:$0xff]
      %v791 = vld [vmem:[%s7 + $0x8] sm:$0xff]
      %v792 = vld [vmem:[%s7 + $0x10] sm:$0xff]
      %v793 = vld [vmem:[%s7 + $0x18] sm:$0xff]
      %798 = vrot.lane.b32.xlu0 %v712, 96
      %v799 = vpop.permute.xlu0 %798
      %800 = vrot.lane.b32.xlu0 %v717, 96
      %v801 = vpop.permute.xlu0 %800
      %802 = vrot.lane.b32.xlu0 %v722, 96
      %v803 = vpop.permute.xlu0 %802
      %804 = vrot.lane.b32.xlu0 %v727, 96
      %v805 = vpop.permute.xlu0 %804
      %vm806 = vcmask 130048
      %v807 = vsel %vm806, %v712, 0
      %v809 = vsel %vm806, %v717, 0
      %v811 = vsel %vm806, %v722, 0
      %v813 = vsel %vm806, %v727, 0
      %v815 = vsel %vm806, %v799, 0
      %v817 = vsel %vm806, %v801, 0
      %v819 = vsel %vm806, %v803, 0
      %v821 = vsel %vm806, %v805, 0
      %823 = vmatprep.subr.mxu0 0.0
      %824 = vmatpush1.xpose.msra.mxu0 %v815
      %825 = vmatprep.subr.mxu0 0.0
      %826 = vmatpush1.xpose.msra.mxu0 %v817
      %827 = vmatprep.subr.mxu0 0.0
      %828 = vmatpush1.xpose.msra.mxu0 %v819
      %829 = vmatprep.subr.mxu0 0.0
      %830 = vmatpush1.xpose.msra.mxu0 %v821
      %831 = vmatprep.subr.mxu0 0.0
      %832 = vmatpush1.xpose.msra.mxu0 0.0
      %833 = vmatprep.subr.mxu0 0.0
      %834 = vmatpush1.xpose.msra.mxu0 0.0
      %835 = vmatprep.subr.mxu0 0.0
      %836 = vmatpush1.xpose.msra.mxu0 0.0
      %837 = vmatprep.subr.mxu0 0.0
      %838 = vmatpush1.xpose.msra.mxu0 0.0
      %839 = vmatprep.subr.mxu0 0.0
      %840 = vmatpush1.xpose.msra.mxu0 0.0
      %841 = vmatprep.subr.mxu0 0.0
      %842 = vmatpush1.xpose.msra.mxu0 0.0
      %843 = vmatprep.subr.mxu0 0.0
      %844 = vmatpush1.xpose.msra.mxu0 0.0
      %845 = vmatprep.subr.mxu0 0.0
      %846 = vmatpush1.xpose.msra.mxu0 0.0
      %847 = vmatprep.subr.mxu0 0.0
      %848 = vmatpush1.xpose.msra.mxu0 0.0
      %849 = vmatprep.subr.mxu0 0.0
      %850 = vmatpush1.xpose.msra.mxu0 0.0
      %851 = vmatprep.subr.mxu0 0.0
      %852 = vmatpush1.xpose.msra.mxu0 0.0
      %853 = vmatprep.subr.mxu0 0.0
      %854 = vmatpush1.xpose.msra.mxu0 0.0
      %855 = vmatprep.subr.mxu0 0.0
      %856 = vmatpush1.xpose.msra.mxu0 0.0
      %857 = vmatprep.subr.mxu0 0.0
      %858 = vmatpush1.xpose.msra.mxu0 0.0
      %859 = vmatprep.subr.mxu0 0.0
      %860 = vmatpush1.xpose.msra.mxu0 0.0
      %861 = vmatprep.subr.mxu0 0.0
      %862 = vmatpush1.xpose.msra.mxu0 0.0
      %863 = vmatprep.subr.mxu0 0.0
      %864 = vmatpush1.xpose.msra.mxu0 0.0
      %865 = vmatprep.subr.mxu0 0.0
      %866 = vmatpush1.xpose.msra.mxu0 0.0
      %867 = vmatprep.subr.mxu0 0.0
      %868 = vmatpush1.xpose.msra.mxu0 0.0
      %869 = vmatprep.subr.mxu0 0.0
      %870 = vmatpush1.xpose.msra.mxu0 0.0
      %871 = vmatprep.subr.mxu0 0.0
      %872 = vmatpush1.xpose.msra.mxu0 0.0
      %873 = vmatprep.subr.mxu0 0.0
      %874 = vmatpush1.xpose.msra.mxu0 0.0
      %875 = vmatprep.subr.mxu0 0.0
      %876 = vmatpush1.xpose.msra.mxu0 0.0
      %877 = vmatprep.subr.mxu0 0.0
      %878 = vmatpush1.xpose.msra.mxu0 0.0
      %879 = vmatprep.subr.mxu0 0.0
      %880 = vmatpush1.xpose.msra.mxu0 0.0
      %881 = vmatprep.subr.mxu0 0.0
      %882 = vmatpush1.xpose.msra.mxu0 0.0
      %883 = vmatprep.subr.mxu0 0.0
      %884 = vmatpush1.xpose.msra.mxu0 0.0
      %885 = vmatprep.subr.mxu0 0.0
      %886 = vmatpush1.xpose.msra.mxu0 0.0
      %887 = vmatprep.mubr.f32.mxu0 0.0
      %888 = vmatmul.mubr.f32.gmra.mrb[0].mxu0 %v807
      %v889 = vpop.f32.mrb[0].mxu0
      %v890 = vadd.f32 %v790, %v889
      %v891 = vpop.f32.mrb[0].mxu0
      %892 = vmatprep.mubr.f32.mxu0 0.0
      %893 = vmatmul.mubr.f32.gmra.mrb[0].mxu0 %v809
      %v894 = vpop.f32.mrb[0].mxu0
      %v895 = vadd.f32 %v791, %v894
      %v896 = vpop.f32.mrb[0].mxu0
      %897 = vmatprep.mubr.f32.mxu0 0.0
      %898 = vmatmul.mubr.f32.gmra.mrb[0].mxu0 %v811
      %v899 = vpop.f32.mrb[0].mxu0
      %v900 = vadd.f32 %v792, %v899
      %v901 = vpop.f32.mrb[0].mxu0
      %902 = vmatprep.mubr.f32.mxu0 0.0
      %903 = vmatmul.mubr.f32.gmra.mrb[0].mxu0 %v813
      %v904 = vpop.f32.mrb[0].mxu0
      %v905 = vadd.f32 %v793, %v904
      %v906 = vpop.f32.mrb[0].mxu0
      %907 = vdwg.mxu0
      %912 = vrot.lane.b32.xlu0 %v732, 96
      %v913 = vpop.permute.xlu0 %912
      %914 = vrot.lane.b32.xlu0 %v737, 96
      %v915 = vpop.permute.xlu0 %914
      %916 = vrot.lane.b32.xlu0 %v742, 96
      %v917 = vpop.permute.xlu0 %916
      %918 = vrot.lane.b32.xlu0 %v747, 96
      %v919 = vpop.permute.xlu0 %918
      %v920 = vsel %vm806, %v732, 0
      %v922 = vsel %vm806, %v737, 0
      %v924 = vsel %vm806, %v742, 0
      %v926 = vsel %vm806, %v747, 0
      %v928 = vsel %vm806, %v913, 0
      %v930 = vsel %vm806, %v915, 0
      %v932 = vsel %vm806, %v917, 0
      %v934 = vsel %vm806, %v919, 0
      %936 = vmatprep.subr.mxu0 0.0
      %937 = vmatpush1.xpose.msra.mxu0 %v928
      %938 = vmatprep.subr.mxu0 0.0
      %939 = vmatpush1.xpose.msra.mxu0 %v930
      %940 = vmatprep.subr.mxu0 0.0
      %941 = vmatpush1.xpose.msra.mxu0 %v932
      %942 = vmatprep.subr.mxu0 0.0
      %943 = vmatpush1.xpose.msra.mxu0 %v934
      %944 = vmatprep.subr.mxu0 0.0
      %945 = vmatpush1.xpose.msra.mxu0 0.0
      %946 = vmatprep.subr.mxu0 0.0
      %947 = vmatpush1.xpose.msra.mxu0 0.0
      %948 = vmatprep.subr.mxu0 0.0
      %949 = vmatpush1.xpose.msra.mxu0 0.0
      %950 = vmatprep.subr.mxu0 0.0
      %951 = vmatpush1.xpose.msra.mxu0 0.0
      %952 = vmatprep.subr.mxu0 0.0
      %953 = vmatpush1.xpose.msra.mxu0 0.0
      %954 = vmatprep.subr.mxu0 0.0
      %955 = vmatpush1.xpose.msra.mxu0 0.0
      %956 = vmatprep.subr.mxu0 0.0
      %957 = vmatpush1.xpose.msra.mxu0 0.0
      %958 = vmatprep.subr.mxu0 0.0
      %959 = vmatpush1.xpose.msra.mxu0 0.0
      %960 = vmatprep.subr.mxu0 0.0
      %961 = vmatpush1.xpose.msra.mxu0 0.0
      %962 = vmatprep.subr.mxu0 0.0
      %963 = vmatpush1.xpose.msra.mxu0 0.0
      %964 = vmatprep.subr.mxu0 0.0
      %965 = vmatpush1.xpose.msra.mxu0 0.0
      %966 = vmatprep.subr.mxu0 0.0
      %967 = vmatpush1.xpose.msra.mxu0 0.0
      %968 = vmatprep.subr.mxu0 0.0
      %969 = vmatpush1.xpose.msra.mxu0 0.0
      %970 = vmatprep.subr.mxu0 0.0
      %971 = vmatpush1.xpose.msra.mxu0 0.0
      %972 = vmatprep.subr.mxu0 0.0
      %973 = vmatpush1.xpose.msra.mxu0 0.0
      %974 = vmatprep.subr.mxu0 0.0
      %975 = vmatpush1.xpose.msra.mxu0 0.0
      %976 = vmatprep.subr.mxu0 0.0
      %977 = vmatpush1.xpose.msra.mxu0 0.0
      %978 = vmatprep.subr.mxu0 0.0
      %979 = vmatpush1.xpose.msra.mxu0 0.0
      %980 = vmatprep.subr.mxu0 0.0
      %981 = vmatpush1.xpose.msra.mxu0 0.0
      %982 = vmatprep.subr.mxu0 0.0
      %983 = vmatpush1.xpose.msra.mxu0 0.0
      %984 = vmatprep.subr.mxu0 0.0
      %985 = vmatpush1.xpose.msra.mxu0 0.0
      %986 = vmatprep.subr.mxu0 0.0
      %987 = vmatpush1.xpose.msra.mxu0 0.0
      %988 = vmatprep.subr.mxu0 0.0
      %989 = vmatpush1.xpose.msra.mxu0 0.0
      %990 = vmatprep.subr.mxu0 0.0
      %991 = vmatpush1.xpose.msra.mxu0 0.0
      %992 = vmatprep.subr.mxu0 0.0
      %993 = vmatpush1.xpose.msra.mxu0 0.0
      %994 = vmatprep.subr.mxu0 0.0
      %995 = vmatpush1.xpose.msra.mxu0 0.0
      %996 = vmatprep.subr.mxu0 0.0
      %997 = vmatpush1.xpose.msra.mxu0 0.0
      %998 = vmatprep.subr.mxu0 0.0
      %999 = vmatpush1.xpose.msra.mxu0 0.0
      %1000 = vmatprep.mubr.f32.mxu0 0.0
      %1001 = vmatmul.mubr.f32.gmra.mrb[0].mxu0 %v920
      %v1002 = vpop.f32.mrb[0].mxu0
      %v1003 = vadd.f32 %v790, %v1002
      %v1004 = vpop.f32.mrb[0].mxu0
      %1005 = vmatprep.mubr.f32.mxu0 0.0
      %1006 = vmatmul.mubr.f32.gmra.mrb[0].mxu0 %v922
      %v1007 = vpop.f32.mrb[0].mxu0
      %v1008 = vadd.f32 %v791, %v1007
      %v1009 = vpop.f32.mrb[0].mxu0
      %1010 = vmatprep.mubr.f32.mxu0 0.0
      %1011 = vmatmul.mubr.f32.gmra.mrb[0].mxu0 %v924
      %v1012 = vpop.f32.mrb[0].mxu0
      %v1013 = vadd.f32 %v792, %v1012
      %v1014 = vpop.f32.mrb[0].mxu0
      %1015 = vmatprep.mubr.f32.mxu0 0.0
      %1016 = vmatmul.mubr.f32.gmra.mrb[0].mxu0 %v926
      %v1017 = vpop.f32.mrb[0].mxu0
      %v1018 = vadd.f32 %v793, %v1017
      %v1019 = vpop.f32.mrb[0].mxu0
      %1020 = vdwg.mxu0
      %1025 = vrot.lane.b32.xlu0 %v752, 96
      %v1026 = vpop.permute.xlu0 %1025
      %1027 = vrot.lane.b32.xlu0 %v757, 96
      %v1028 = vpop.permute.xlu0 %1027
      %1029 = vrot.lane.b32.xlu0 %v762, 96
      %v1030 = vpop.permute.xlu0 %1029
      %1031 = vrot.lane.b32.xlu0 %v767, 96
      %v1032 = vpop.permute.xlu0 %1031
      %v1033 = vsel %vm806, %v752, 0
      %v1035 = vsel %vm806, %v757, 0
      %v1037 = vsel %vm806, %v762, 0
      %v1039 = vsel %vm806, %v767, 0
      %v1041 = vsel %vm806, %v1026, 0
      %v1043 = vsel %vm806, %v1028, 0
      %v1045 = vsel %vm806, %v1030, 0
      %v1047 = vsel %vm806, %v1032, 0
      %1049 = vmatprep.subr.mxu0 0.0
      %1050 = vmatpush1.xpose.msra.mxu0 %v1041
      %1051 = vmatprep.subr.mxu0 0.0
      %1052 = vmatpush1.xpose.msra.mxu0 %v1043
      %1053 = vmatprep.subr.mxu0 0.0
      %1054 = vmatpush1.xpose.msra.mxu0 %v1045
      %1055 = vmatprep.subr.mxu0 0.0
      %1056 = vmatpush1.xpose.msra.mxu0 %v1047
      %1057 = vmatprep.subr.mxu0 0.0
      %1058 = vmatpush1.xpose.msra.mxu0 0.0
      %1059 = vmatprep.subr.mxu0 0.0
      %1060 = vmatpush1.xpose.msra.mxu0 0.0
      %1061 = vmatprep.subr.mxu0 0.0
      %1062 = vmatpush1.xpose.msra.mxu0 0.0
      %1063 = vmatprep.subr.mxu0 0.0
      %1064 = vmatpush1.xpose.msra.mxu0 0.0
      %1065 = vmatprep.subr.mxu0 0.0
      %1066 = vmatpush1.xpose.msra.mxu0 0.0
      %1067 = vmatprep.subr.mxu0 0.0
      %1068 = vmatpush1.xpose.msra.mxu0 0.0
      %1069 = vmatprep.subr.mxu0 0.0
      %1070 = vmatpush1.xpose.msra.mxu0 0.0
      %1071 = vmatprep.subr.mxu0 0.0
      %1072 = vmatpush1.xpose.msra.mxu0 0.0
      %1073 = vmatprep.subr.mxu0 0.0
      %1074 = vmatpush1.xpose.msra.mxu0 0.0
      %1075 = vmatprep.subr.mxu0 0.0
      %1076 = vmatpush1.xpose.msra.mxu0 0.0
      %1077 = vmatprep.subr.mxu0 0.0
      %1078 = vmatpush1.xpose.msra.mxu0 0.0
      %1079 = vmatprep.subr.mxu0 0.0
      %1080 = vmatpush1.xpose.msra.mxu0 0.0
      %1081 = vmatprep.subr.mxu0 0.0
      %1082 = vmatpush1.xpose.msra.mxu0 0.0
      %1083 = vmatprep.subr.mxu0 0.0
      %1084 = vmatpush1.xpose.msra.mxu0 0.0
      %1085 = vmatprep.subr.mxu0 0.0
      %1086 = vmatpush1.xpose.msra.mxu0 0.0
      %1087 = vmatprep.subr.mxu0 0.0
      %1088 = vmatpush1.xpose.msra.mxu0 0.0
      %1089 = vmatprep.subr.mxu0 0.0
      %1090 = vmatpush1.xpose.msra.mxu0 0.0
      %1091 = vmatprep.subr.mxu0 0.0
      %1092 = vmatpush1.xpose.msra.mxu0 0.0
      %1093 = vmatprep.subr.mxu0 0.0
      %1094 = vmatpush1.xpose.msra.mxu0 0.0
      %1095 = vmatprep.subr.mxu0 0.0
      %1096 = vmatpush1.xpose.msra.mxu0 0.0
      %1097 = vmatprep.subr.mxu0 0.0
      %1098 = vmatpush1.xpose.msra.mxu0 0.0
      %1099 = vmatprep.subr.mxu0 0.0
      %1100 = vmatpush1.xpose.msra.mxu0 0.0
      %1101 = vmatprep.subr.mxu0 0.0
      %1102 = vmatpush1.xpose.msra.mxu0 0.0
      %1103 = vmatprep.subr.mxu0 0.0
      %1104 = vmatpush1.xpose.msra.mxu0 0.0
      %1105 = vmatprep.subr.mxu0 0.0
      %1106 = vmatpush1.xpose.msra.mxu0 0.0
      %1107 = vmatprep.subr.mxu0 0.0
      %1108 = vmatpush1.xpose.msra.mxu0 0.0
      %1109 = vmatprep.subr.mxu0 0.0
      %1110 = vmatpush1.xpose.msra.mxu0 0.0
      %1111 = vmatprep.subr.mxu0 0.0
      %1112 = vmatpush1.xpose.msra.mxu0 0.0
      %1113 = vmatprep.mubr.f32.mxu0 0.0
      %1114 = vmatmul.mubr.f32.gmra.mrb[0].mxu0 %v1033
      %v1115 = vpop.f32.mrb[0].mxu0
      %v1116 = vadd.f32 %v790, %v1115
      %v1117 = vpop.f32.mrb[0].mxu0
      %1118 = vmatprep.mubr.f32.mxu0 0.0
      %1119 = vmatmul.mubr.f32.gmra.mrb[0].mxu0 %v1035
      %v1120 = vpop.f32.mrb[0].mxu0
      %v1121 = vadd.f32 %v791, %v1120
      %v1122 = vpop.f32.mrb[0].mxu0
      %1123 = vmatprep.mubr.f32.mxu0 0.0
      %1124 = vmatmul.mubr.f32.gmra.mrb[0].mxu0 %v1037
      %v1125 = vpop.f32.mrb[0].mxu0
      %v1126 = vadd.f32 %v792, %v1125
      %v1127 = vpop.f32.mrb[0].mxu0
      %1128 = vmatprep.mubr.f32.mxu0 0.0
      %1129 = vmatmul.mubr.f32.gmra.mrb[0].mxu0 %v1039
      %v1130 = vpop.f32.mrb[0].mxu0
      %v1131 = vadd.f32 %v793, %v1130
      %v1132 = vpop.f32.mrb[0].mxu0
      %1133 = vdwg.mxu0
      %1138 = vrot.lane.b32.xlu0 %v772, 96
      %v1139 = vpop.permute.xlu0 %1138
      %1140 = vrot.lane.b32.xlu0 %v777, 96
      %v1141 = vpop.permute.xlu0 %1140
      %1142 = vrot.lane.b32.xlu0 %v782, 96
      %v1143 = vpop.permute.xlu0 %1142
      %1144 = vrot.lane.b32.xlu0 %v787, 96
      %v1145 = vpop.permute.xlu0 %1144
      %v1146 = vsel %vm806, %v772, 0
      %v1148 = vsel %vm806, %v777, 0
      %v1150 = vsel %vm806, %v782, 0
      %v1152 = vsel %vm806, %v787, 0
      %v1154 = vsel %vm806, %v1139, 0
      %v1156 = vsel %vm806, %v1141, 0
      %v1158 = vsel %vm806, %v1143, 0
      %v1160 = vsel %vm806, %v1145, 0
      %1162 = vmatprep.subr.mxu0 0.0
      %1163 = vmatpush1.xpose.msra.mxu0 %v1154
      %1164 = vmatprep.subr.mxu0 0.0
      %1165 = vmatpush1.xpose.msra.mxu0 %v1156
      %1166 = vmatprep.subr.mxu0 0.0
      %1167 = vmatpush1.xpose.msra.mxu0 %v1158
      %1168 = vmatprep.subr.mxu0 0.0
      %1169 = vmatpush1.xpose.msra.mxu0 %v1160
      %1170 = vmatprep.subr.mxu0 0.0
      %1171 = vmatpush1.xpose.msra.mxu0 0.0
      %1172 = vmatprep.subr.mxu0 0.0
      %1173 = vmatpush1.xpose.msra.mxu0 0.0
      %1174 = vmatprep.subr.mxu0 0.0
      %1175 = vmatpush1.xpose.msra.mxu0 0.0
      %1176 = vmatprep.subr.mxu0 0.0
      %1177 = vmatpush1.xpose.msra.mxu0 0.0
      %1178 = vmatprep.subr.mxu0 0.0
      %1179 = vmatpush1.xpose.msra.mxu0 0.0
      %1180 = vmatprep.subr.mxu0 0.0
      %1181 = vmatpush1.xpose.msra.mxu0 0.0
      %1182 = vmatprep.subr.mxu0 0.0
      %1183 = vmatpush1.xpose.msra.mxu0 0.0
      %1184 = vmatprep.subr.mxu0 0.0
      %1185 = vmatpush1.xpose.msra.mxu0 0.0
      %1186 = vmatprep.subr.mxu0 0.0
      %1187 = vmatpush1.xpose.msra.mxu0 0.0
      %1188 = vmatprep.subr.mxu0 0.0
      %1189 = vmatpush1.xpose.msra.mxu0 0.0
      %1190 = vmatprep.subr.mxu0 0.0
      %1191 = vmatpush1.xpose.msra.mxu0 0.0
      %1192 = vmatprep.subr.mxu0 0.0
      %1193 = vmatpush1.xpose.msra.mxu0 0.0
      %1194 = vmatprep.subr.mxu0 0.0
      %1195 = vmatpush1.xpose.msra.mxu0 0.0
      %1196 = vmatprep.subr.mxu0 0.0
      %1197 = vmatpush1.xpose.msra.mxu0 0.0
      %1198 = vmatprep.subr.mxu0 0.0
      %1199 = vmatpush1.xpose.msra.mxu0 0.0
      %1200 = vmatprep.subr.mxu0 0.0
      %1201 = vmatpush1.xpose.msra.mxu0 0.0
      %1202 = vmatprep.subr.mxu0 0.0
      %1203 = vmatpush1.xpose.msra.mxu0 0.0
      %1204 = vmatprep.subr.mxu0 0.0
      %1205 = vmatpush1.xpose.msra.mxu0 0.0
      %1206 = vmatprep.subr.mxu0 0.0
      %1207 = vmatpush1.xpose.msra.mxu0 0.0
      %1208 = vmatprep.subr.mxu0 0.0
      %1209 = vmatpush1.xpose.msra.mxu0 0.0
      %1210 = vmatprep.subr.mxu0 0.0
      %1211 = vmatpush1.xpose.msra.mxu0 0.0
      %1212 = vmatprep.subr.mxu0 0.0
      %1213 = vmatpush1.xpose.msra.mxu0 0.0
      %1214 = vmatprep.subr.mxu0 0.0
      %1215 = vmatpush1.xpose.msra.mxu0 0.0
      %1216 = vmatprep.subr.mxu0 0.0
      %1217 = vmatpush1.xpose.msra.mxu0 0.0
      %1218 = vmatprep.subr.mxu0 0.0
      %1219 = vmatpush1.xpose.msra.mxu0 0.0
      %1220 = vmatprep.subr.mxu0 0.0
      %1221 = vmatpush1.xpose.msra.mxu0 0.0
      %1222 = vmatprep.subr.mxu0 0.0
      %1223 = vmatpush1.xpose.msra.mxu0 0.0
      %1224 = vmatprep.subr.mxu0 0.0
      %1225 = vmatpush1.xpose.msra.mxu0 0.0
      %1226 = vmatprep.mubr.f32.mxu0 0.0
      %1227 = vmatmul.mubr.f32.gmra.mrb[0].mxu0 %v1146
      %v1228 = vpop.f32.mrb[0].mxu0
      %v1229 = vadd.f32 %v790, %v1228
      %v1230 = vpop.f32.mrb[0].mxu0
      %1231 = vmatprep.mubr.f32.mxu0 0.0
      %1232 = vmatmul.mubr.f32.gmra.mrb[0].mxu0 %v1148
      %v1233 = vpop.f32.mrb[0].mxu0
      %v1234 = vadd.f32 %v791, %v1233
      %v1235 = vpop.f32.mrb[0].mxu0
      %1236 = vmatprep.mubr.f32.mxu0 0.0
      %1237 = vmatmul.mubr.f32.gmra.mrb[0].mxu0 %v1150
      %v1238 = vpop.f32.mrb[0].mxu0
      %v1239 = vadd.f32 %v792, %v1238
      %v1240 = vpop.f32.mrb[0].mxu0
      %1241 = vmatprep.mubr.f32.mxu0 0.0
      %1242 = vmatmul.mubr.f32.gmra.mrb[0].mxu0 %v1152
      %v1243 = vpop.f32.mrb[0].mxu0
      %v1244 = vadd.f32 %v793, %v1243
      %v1245 = vpop.f32.mrb[0].mxu0
      %1246 = vdwg.mxu0
      %v1247 = vsel %vm332, %v890, -inf
      %1248 = vmax.xlane.f32.xlu0 %v1247
      %v1249 = vpop.xlane.xlu0 %1248
      %v1250 = vsel %vm332, %v895, -inf
      %1251 = vmax.xlane.f32.xlu0 %v1250
      %v1252 = vpop.xlane.xlu0 %1251
      %v1253 = vsel %vm332, %v900, -inf
      %1254 = vmax.xlane.f32.xlu0 %v1253
      %v1255 = vpop.xlane.xlu0 %1254
      %v1256 = vsel %vm332, %v905, -inf
      %1257 = vmax.xlane.f32.xlu0 %v1256
      %v1258 = vpop.xlane.xlu0 %1257
      %v1259 = vsel %vm332, %v1003, -inf
      %1260 = vmax.xlane.f32.xlu0 %v1259
      %v1261 = vpop.xlane.xlu0 %1260
      %v1262 = vsel %vm332, %v1008, -inf
      %1263 = vmax.xlane.f32.xlu0 %v1262
      %v1264 = vpop.xlane.xlu0 %1263
      %v1265 = vsel %vm332, %v1013, -inf
      %1266 = vmax.xlane.f32.xlu0 %v1265
      %v1267 = vpop.xlane.xlu0 %1266
      %v1268 = vsel %vm332, %v1018, -inf
      %1269 = vmax.xlane.f32.xlu0 %v1268
      %v1270 = vpop.xlane.xlu0 %1269
      %v1271 = vsel %vm332, %v1116, -inf
      %1272 = vmax.xlane.f32.xlu0 %v1271
      %v1273 = vpop.xlane.xlu0 %1272
      %v1274 = vsel %vm332, %v1121, -inf
      %1275 = vmax.xlane.f32.xlu0 %v1274
      %v1276 = vpop.xlane.xlu0 %1275
      %v1277 = vsel %vm332, %v1126, -inf
      %1278 = vmax.xlane.f32.xlu0 %v1277
      %v1279 = vpop.xlane.xlu0 %1278
      %v1280 = vsel %vm332, %v1131, -inf
      %1281 = vmax.xlane.f32.xlu0 %v1280
      %v1282 = vpop.xlane.xlu0 %1281
      %v1283 = vsel %vm332, %v1229, -inf
      %1284 = vmax.xlane.f32.xlu0 %v1283
      %v1285 = vpop.xlane.xlu0 %1284
      %v1286 = vsel %vm332, %v1234, -inf
      %1287 = vmax.xlane.f32.xlu0 %v1286
      %v1288 = vpop.xlane.xlu0 %1287
      %v1289 = vsel %vm332, %v1239, -inf
      %1290 = vmax.xlane.f32.xlu0 %v1289
      %v1291 = vpop.xlane.xlu0 %1290
      %v1292 = vsel %vm332, %v1244, -inf
      %1293 = vmax.xlane.f32.xlu0 %v1292
      %v1294 = vpop.xlane.xlu0 %1293
      %v1295 = vsub.f32 %v890, %v1249
      %v1296 = vsub.f32 %v895, %v1252
      %v1297 = vsub.f32 %v900, %v1255
      %v1298 = vsub.f32 %v905, %v1258
      %v1299 = vsub.f32 %v1003, %v1261
      %v1300 = vsub.f32 %v1008, %v1264
      %v1301 = vsub.f32 %v1013, %v1267
      %v1302 = vsub.f32 %v1018, %v1270
      %v1303 = vsub.f32 %v1116, %v1273
      %v1304 = vsub.f32 %v1121, %v1276
      %v1305 = vsub.f32 %v1126, %v1279
      %v1306 = vsub.f32 %v1131, %v1282
      %v1307 = vsub.f32 %v1229, %v1285
      %v1308 = vsub.f32 %v1234, %v1288
      %v1309 = vsub.f32 %v1239, %v1291
      %v1310 = vsub.f32 %v1244, %v1294
      %v1311 = vmul.f32 %v1295, 1.442695
      %v1312 = vpow.pop %v1311
      %v1313 = vmul.f32 %v1296, 1.442695
      %v1314 = vpow.pop %v1313
      %v1315 = vmul.f32 %v1297, 1.442695
      %v1316 = vpow.pop %v1315
      %v1317 = vmul.f32 %v1298, 1.442695
      %v1318 = vpow.pop %v1317
      %v1319 = vmul.f32 %v1299, 1.442695
      %v1320 = vpow.pop %v1319
      %v1321 = vmul.f32 %v1300, 1.442695
      %v1322 = vpow.pop %v1321
      %v1323 = vmul.f32 %v1301, 1.442695
      %v1324 = vpow.pop %v1323
      %v1325 = vmul.f32 %v1302, 1.442695
      %v1326 = vpow.pop %v1325
      %v1327 = vmul.f32 %v1303, 1.442695
      %v1328 = vpow.pop %v1327
      %v1329 = vmul.f32 %v1304, 1.442695
      %v1330 = vpow.pop %v1329
      %v1331 = vmul.f32 %v1305, 1.442695
      %v1332 = vpow.pop %v1331
      %v1333 = vmul.f32 %v1306, 1.442695
      %v1334 = vpow.pop %v1333
      %v1335 = vmul.f32 %v1307, 1.442695
      %v1336 = vpow.pop %v1335
      %v1337 = vmul.f32 %v1308, 1.442695
      %v1338 = vpow.pop %v1337
      %v1339 = vmul.f32 %v1309, 1.442695
      %v1340 = vpow.pop %v1339
      %v1341 = vmul.f32 %v1310, 1.442695
      %v1342 = vpow.pop %v1341
      %v1343 = vsel %vm332, %v1312, 0.0
      %1344 = vadd.xlane.f32.xlu0 %v1343
      %v1345 = vpop.xlane.xlu0 %1344
      %v1346 = vsel %vm332, %v1314, 0.0
      %1347 = vadd.xlane.f32.xlu0 %v1346
      %v1348 = vpop.xlane.xlu0 %1347
      %v1349 = vsel %vm332, %v1316, 0.0
      %1350 = vadd.xlane.f32.xlu0 %v1349
      %v1351 = vpop.xlane.xlu0 %1350
      %v1352 = vsel %vm332, %v1318, 0.0
      %1353 = vadd.xlane.f32.xlu0 %v1352
      %v1354 = vpop.xlane.xlu0 %1353
      %v1355 = vsel %vm332, %v1320, 0.0
      %1356 = vadd.xlane.f32.xlu0 %v1355
      %v1357 = vpop.xlane.xlu0 %1356
      %v1358 = vsel %vm332, %v1322, 0.0
      %1359 = vadd.xlane.f32.xlu0 %v1358
      %v1360 = vpop.xlane.xlu0 %1359
      %v1361 = vsel %vm332, %v1324, 0.0
      %1362 = vadd.xlane.f32.xlu0 %v1361
      %v1363 = vpop.xlane.xlu0 %1362
      %v1364 = vsel %vm332, %v1326, 0.0
      %1365 = vadd.xlane.f32.xlu0 %v1364
      %v1366 = vpop.xlane.xlu0 %1365
      %v1367 = vsel %vm332, %v1328, 0.0
      %1368 = vadd.xlane.f32.xlu0 %v1367
      %v1369 = vpop.xlane.xlu0 %1368
      %v1370 = vsel %vm332, %v1330, 0.0
      %1371 = vadd.xlane.f32.xlu0 %v1370
      %v1372 = vpop.xlane.xlu0 %1371
      %v1373 = vsel %vm332, %v1332, 0.0
      %1374 = vadd.xlane.f32.xlu0 %v1373
      %v1375 = vpop.xlane.xlu0 %1374
      %v1376 = vsel %vm332, %v1334, 0.0
      %1377 = vadd.xlane.f32.xlu0 %v1376
      %v1378 = vpop.xlane.xlu0 %1377
      %v1379 = vsel %vm332, %v1336, 0.0
      %1380 = vadd.xlane.f32.xlu0 %v1379
      %v1381 = vpop.xlane.xlu0 %1380
      %v1382 = vsel %vm332, %v1338, 0.0
      %1383 = vadd.xlane.f32.xlu0 %v1382
      %v1384 = vpop.xlane.xlu0 %1383
      %v1385 = vsel %vm332, %v1340, 0.0
      %1386 = vadd.xlane.f32.xlu0 %v1385
      %v1387 = vpop.xlane.xlu0 %1386
      %v1388 = vsel %vm332, %v1342, 0.0
      %1389 = vadd.xlane.f32.xlu0 %v1388
      %v1390 = vpop.xlane.xlu0 %1389
      %v1391 = vrcp.pop %v1345
      %v1392 = vrcp.pop %v1348
      %v1393 = vrcp.pop %v1351
      %v1394 = vrcp.pop %v1354
      %v1395 = vrcp.pop %v1357
      %v1396 = vrcp.pop %v1360
      %v1397 = vrcp.pop %v1363
      %v1398 = vrcp.pop %v1366
      %v1399 = vrcp.pop %v1369
      %v1400 = vrcp.pop %v1372
      %v1401 = vrcp.pop %v1375
      %v1402 = vrcp.pop %v1378
      %v1403 = vrcp.pop %v1381
      %v1404 = vrcp.pop %v1384
      %v1405 = vrcp.pop %v1387
      %v1406 = vrcp.pop %v1390
      %v1407 = vmul.f32 %v1312, %v1391
      %v1408 = vmul.f32 %v1314, %v1392
      %v1409 = vmul.f32 %v1316, %v1393
      %v1410 = vmul.f32 %v1318, %v1394
      %v1411 = vmul.f32 %v1320, %v1395
      %v1412 = vmul.f32 %v1322, %v1396
      %v1413 = vmul.f32 %v1324, %v1397
      %v1414 = vmul.f32 %v1326, %v1398
      %v1415 = vmul.f32 %v1328, %v1399
      %v1416 = vmul.f32 %v1330, %v1400
      %v1417 = vmul.f32 %v1332, %v1401
      %v1418 = vmul.f32 %v1334, %v1402
      %v1419 = vmul.f32 %v1336, %v1403
      %v1420 = vmul.f32 %v1338, %v1404
      %v1421 = vmul.f32 %v1340, %v1405
      %v1422 = vmul.f32 %v1342, %v1406
      %1423 = vrot.lane.b32.xlu0 %v712, 64
      %v1424 = vpop.permute.xlu0 %1423
      %1425 = vrot.lane.b32.xlu0 %v717, 64
      %v1426 = vpop.permute.xlu0 %1425
      %1427 = vrot.lane.b32.xlu0 %v722, 64
      %v1428 = vpop.permute.xlu0 %1427
      %1429 = vrot.lane.b32.xlu0 %v727, 64
      %v1430 = vpop.permute.xlu0 %1429
      %v1436 = vsel %vm332, %v1407, 0
      %v1439 = vsel %vm332, %v1408, 0
      %v1442 = vsel %vm332, %v1409, 0
      %v1445 = vsel %vm332, %v1410, 0
      %1447 = vmatprep.subr.mxu0 0.0
      %1448 = vmatpush1.msra.mxu0 %v1424
      %1449 = vmatprep.subr.mxu0 0.0
      %1450 = vmatpush1.msra.mxu0 %v1426
      %1451 = vmatprep.subr.mxu0 0.0
      %1452 = vmatpush1.msra.mxu0 %v1428
      %1453 = vmatprep.subr.mxu0 0.0
      %1454 = vmatpush1.msra.mxu0 %v1430
      %1455 = vmatprep.subr.mxu0 0.0
      %1456 = vmatpush1.msra.mxu0 0.0
      %1457 = vmatprep.subr.mxu0 0.0
      %1458 = vmatpush1.msra.mxu0 0.0
      %1459 = vmatprep.subr.mxu0 0.0
      %1460 = vmatpush1.msra.mxu0 0.0
      %1461 = vmatprep.subr.mxu0 0.0
      %1462 = vmatpush1.msra.mxu0 0.0
      %1463 = vmatprep.subr.mxu0 0.0
      %1464 = vmatpush1.msra.mxu0 0.0
      %1465 = vmatprep.subr.mxu0 0.0
      %1466 = vmatpush1.msra.mxu0 0.0
      %1467 = vmatprep.subr.mxu0 0.0
      %1468 = vmatpush1.msra.mxu0 0.0
      %1469 = vmatprep.subr.mxu0 0.0
      %1470 = vmatpush1.msra.mxu0 0.0
      %1471 = vmatprep.subr.mxu0 0.0
      %1472 = vmatpush1.msra.mxu0 0.0
      %1473 = vmatprep.subr.mxu0 0.0
      %1474 = vmatpush1.msra.mxu0 0.0
      %1475 = vmatprep.subr.mxu0 0.0
      %1476 = vmatpush1.msra.mxu0 0.0
      %1477 = vmatprep.subr.mxu0 0.0
      %1478 = vmatpush1.msra.mxu0 0.0
      %1479 = vmatprep.subr.mxu0 0.0
      %1480 = vmatpush1.msra.mxu0 0.0
      %1481 = vmatprep.subr.mxu0 0.0
      %1482 = vmatpush1.msra.mxu0 0.0
      %1483 = vmatprep.subr.mxu0 0.0
      %1484 = vmatpush1.msra.mxu0 0.0
      %1485 = vmatprep.subr.mxu0 0.0
      %1486 = vmatpush1.msra.mxu0 0.0
      %1487 = vmatprep.subr.mxu0 0.0
      %1488 = vmatpush1.msra.mxu0 0.0
      %1489 = vmatprep.subr.mxu0 0.0
      %1490 = vmatpush1.msra.mxu0 0.0
      %1491 = vmatprep.subr.mxu0 0.0
      %1492 = vmatpush1.msra.mxu0 0.0
      %1493 = vmatprep.subr.mxu0 0.0
      %1494 = vmatpush1.msra.mxu0 0.0
      %1495 = vmatprep.subr.mxu0 0.0
      %1496 = vmatpush1.msra.mxu0 0.0
      %1497 = vmatprep.subr.mxu0 0.0
      %1498 = vmatpush1.msra.mxu0 0.0
      %1499 = vmatprep.subr.mxu0 0.0
      %1500 = vmatpush1.msra.mxu0 0.0
      %1501 = vmatprep.subr.mxu0 0.0
      %1502 = vmatpush1.msra.mxu0 0.0
      %1503 = vmatprep.subr.mxu0 0.0
      %1504 = vmatpush1.msra.mxu0 0.0
      %1505 = vmatprep.subr.mxu0 0.0
      %1506 = vmatpush1.msra.mxu0 0.0
      %1507 = vmatprep.subr.mxu0 0.0
      %1508 = vmatpush1.msra.mxu0 0.0
      %1509 = vmatprep.subr.mxu0 0.0
      %1510 = vmatpush1.msra.mxu0 0.0
      %1511 = vmatprep.mubr.f32.mxu0 0.0
      %1512 = vmatmul.mubr.f32.gmra.mrb[0].mxu0 %v1436
      %v1513 = vpop.f32.mrb[0].mxu0
      %v1514 = vadd.f32 0.0, %v1513
      %v1515 = vpop.f32.mrb[0].mxu0
      %1516 = vmatprep.mubr.f32.mxu0 0.0
      %1517 = vmatmul.mubr.f32.gmra.mrb[0].mxu0 %v1439
      %v1518 = vpop.f32.mrb[0].mxu0
      %v1519 = vadd.f32 0.0, %v1518
      %v1520 = vpop.f32.mrb[0].mxu0
      %1521 = vmatprep.mubr.f32.mxu0 0.0
      %1522 = vmatmul.mubr.f32.gmra.mrb[0].mxu0 %v1442
      %v1523 = vpop.f32.mrb[0].mxu0
      %v1524 = vadd.f32 0.0, %v1523
      %v1525 = vpop.f32.mrb[0].mxu0
      %1526 = vmatprep.mubr.f32.mxu0 0.0
      %1527 = vmatmul.mubr.f32.gmra.mrb[0].mxu0 %v1445
      %v1528 = vpop.f32.mrb[0].mxu0
      %v1529 = vadd.f32 0.0, %v1528
      %v1530 = vpop.f32.mrb[0].mxu0
      %1531 = vdwg.mxu0
      %1532 = vrot.lane.b32.xlu0 %v732, 64
      %v1533 = vpop.permute.xlu0 %1532
      %1534 = vrot.lane.b32.xlu0 %v737, 64
      %v1535 = vpop.permute.xlu0 %1534
      %1536 = vrot.lane.b32.xlu0 %v742, 64
      %v1537 = vpop.permute.xlu0 %1536
      %1538 = vrot.lane.b32.xlu0 %v747, 64
      %v1539 = vpop.permute.xlu0 %1538
      %v1545 = vsel %vm332, %v1411, 0
      %v1548 = vsel %vm332, %v1412, 0
      %v1551 = vsel %vm332, %v1413, 0
      %v1554 = vsel %vm332, %v1414, 0
      %1556 = vmatprep.subr.mxu0 0.0
      %1557 = vmatpush1.msra.mxu0 %v1533
      %1558 = vmatprep.subr.mxu0 0.0
      %1559 = vmatpush1.msra.mxu0 %v1535
      %1560 = vmatprep.subr.mxu0 0.0
      %1561 = vmatpush1.msra.mxu0 %v1537
      %1562 = vmatprep.subr.mxu0 0.0
      %1563 = vmatpush1.msra.mxu0 %v1539
      %1564 = vmatprep.subr.mxu0 0.0
      %1565 = vmatpush1.msra.mxu0 0.0
      %1566 = vmatprep.subr.mxu0 0.0
      %1567 = vmatpush1.msra.mxu0 0.0
      %1568 = vmatprep.subr.mxu0 0.0
      %1569 = vmatpush1.msra.mxu0 0.0
      %1570 = vmatprep.subr.mxu0 0.0
      %1571 = vmatpush1.msra.mxu0 0.0
      %1572 = vmatprep.subr.mxu0 0.0
      %1573 = vmatpush1.msra.mxu0 0.0
      %1574 = vmatprep.subr.mxu0 0.0
      %1575 = vmatpush1.msra.mxu0 0.0
      %1576 = vmatprep.subr.mxu0 0.0
      %1577 = vmatpush1.msra.mxu0 0.0
      %1578 = vmatprep.subr.mxu0 0.0
      %1579 = vmatpush1.msra.mxu0 0.0
      %1580 = vmatprep.subr.mxu0 0.0
      %1581 = vmatpush1.msra.mxu0 0.0
      %1582 = vmatprep.subr.mxu0 0.0
      %1583 = vmatpush1.msra.mxu0 0.0
      %1584 = vmatprep.subr.mxu0 0.0
      %1585 = vmatpush1.msra.mxu0 0.0
      %1586 = vmatprep.subr.mxu0 0.0
      %1587 = vmatpush1.msra.mxu0 0.0
      %1588 = vmatprep.subr.mxu0 0.0
      %1589 = vmatpush1.msra.mxu0 0.0
      %1590 = vmatprep.subr.mxu0 0.0
      %1591 = vmatpush1.msra.mxu0 0.0
      %1592 = vmatprep.subr.mxu0 0.0
      %1593 = vmatpush1.msra.mxu0 0.0
      %1594 = vmatprep.subr.mxu0 0.0
      %1595 = vmatpush1.msra.mxu0 0.0
      %1596 = vmatprep.subr.mxu0 0.0
      %1597 = vmatpush1.msra.mxu0 0.0
      %1598 = vmatprep.subr.mxu0 0.0
      %1599 = vmatpush1.msra.mxu0 0.0
      %1600 = vmatprep.subr.mxu0 0.0
      %1601 = vmatpush1.msra.mxu0 0.0
      %1602 = vmatprep.subr.mxu0 0.0
      %1603 = vmatpush1.msra.mxu0 0.0
      %1604 = vmatprep.subr.mxu0 0.0
      %1605 = vmatpush1.msra.mxu0 0.0
      %1606 = vmatprep.subr.mxu0 0.0
      %1607 = vmatpush1.msra.mxu0 0.0
      %1608 = vmatprep.subr.mxu0 0.0
      %1609 = vmatpush1.msra.mxu0 0.0
      %1610 = vmatprep.subr.mxu0 0.0
      %1611 = vmatpush1.msra.mxu0 0.0
      %1612 = vmatprep.subr.mxu0 0.0
      %1613 = vmatpush1.msra.mxu0 0.0
      %1614 = vmatprep.subr.mxu0 0.0
      %1615 = vmatpush1.msra.mxu0 0.0
      %1616 = vmatprep.subr.mxu0 0.0
      %1617 = vmatpush1.msra.mxu0 0.0
      %1618 = vmatprep.subr.mxu0 0.0
      %1619 = vmatpush1.msra.mxu0 0.0
      %1620 = vmatprep.mubr.f32.mxu0 0.0
      %1621 = vmatmul.mubr.f32.gmra.mrb[0].mxu0 %v1545
      %v1622 = vpop.f32.mrb[0].mxu0
      %v1623 = vadd.f32 0.0, %v1622
      %v1624 = vpop.f32.mrb[0].mxu0
      %1625 = vmatprep.mubr.f32.mxu0 0.0
      %1626 = vmatmul.mubr.f32.gmra.mrb[0].mxu0 %v1548
      %v1627 = vpop.f32.mrb[0].mxu0
      %v1628 = vadd.f32 0.0, %v1627
      %v1629 = vpop.f32.mrb[0].mxu0
      %1630 = vmatprep.mubr.f32.mxu0 0.0
      %1631 = vmatmul.mubr.f32.gmra.mrb[0].mxu0 %v1551
      %v1632 = vpop.f32.mrb[0].mxu0
      %v1633 = vadd.f32 0.0, %v1632
      %v1634 = vpop.f32.mrb[0].mxu0
      %1635 = vmatprep.mubr.f32.mxu0 0.0
      %1636 = vmatmul.mubr.f32.gmra.mrb[0].mxu0 %v1554
      %v1637 = vpop.f32.mrb[0].mxu0
      %v1638 = vadd.f32 0.0, %v1637
      %v1639 = vpop.f32.mrb[0].mxu0
      %1640 = vdwg.mxu0
      %1641 = vrot.lane.b32.xlu0 %v752, 64
      %v1642 = vpop.permute.xlu0 %1641
      %1643 = vrot.lane.b32.xlu0 %v757, 64
      %v1644 = vpop.permute.xlu0 %1643
      %1645 = vrot.lane.b32.xlu0 %v762, 64
      %v1646 = vpop.permute.xlu0 %1645
      %1647 = vrot.lane.b32.xlu0 %v767, 64
      %v1648 = vpop.permute.xlu0 %1647
      %v1654 = vsel %vm332, %v1415, 0
      %v1657 = vsel %vm332, %v1416, 0
      %v1660 = vsel %vm332, %v1417, 0
      %v1663 = vsel %vm332, %v1418, 0
      %1665 = vmatprep.subr.mxu0 0.0
      %1666 = vmatpush1.msra.mxu0 %v1642
      %1667 = vmatprep.subr.mxu0 0.0
      %1668 = vmatpush1.msra.mxu0 %v1644
      %1669 = vmatprep.subr.mxu0 0.0
      %1670 = vmatpush1.msra.mxu0 %v1646
      %1671 = vmatprep.subr.mxu0 0.0
      %1672 = vmatpush1.msra.mxu0 %v1648
      %1673 = vmatprep.subr.mxu0 0.0
      %1674 = vmatpush1.msra.mxu0 0.0
      %1675 = vmatprep.subr.mxu0 0.0
      %1676 = vmatpush1.msra.mxu0 0.0
      %1677 = vmatprep.subr.mxu0 0.0
      %1678 = vmatpush1.msra.mxu0 0.0
      %1679 = vmatprep.subr.mxu0 0.0
      %1680 = vmatpush1.msra.mxu0 0.0
      %1681 = vmatprep.subr.mxu0 0.0
      %1682 = vmatpush1.msra.mxu0 0.0
      %1683 = vmatprep.subr.mxu0 0.0
      %1684 = vmatpush1.msra.mxu0 0.0
      %1685 = vmatprep.subr.mxu0 0.0
      %1686 = vmatpush1.msra.mxu0 0.0
      %1687 = vmatprep.subr.mxu0 0.0
      %1688 = vmatpush1.msra.mxu0 0.0
      %1689 = vmatprep.subr.mxu0 0.0
      %1690 = vmatpush1.msra.mxu0 0.0
      %1691 = vmatprep.subr.mxu0 0.0
      %1692 = vmatpush1.msra.mxu0 0.0
      %1693 = vmatprep.subr.mxu0 0.0
      %1694 = vmatpush1.msra.mxu0 0.0
      %1695 = vmatprep.subr.mxu0 0.0
      %1696 = vmatpush1.msra.mxu0 0.0
      %1697 = vmatprep.subr.mxu0 0.0
      %1698 = vmatpush1.msra.mxu0 0.0
      %1699 = vmatprep.subr.mxu0 0.0
      %1700 = vmatpush1.msra.mxu0 0.0
      %1701 = vmatprep.subr.mxu0 0.0
      %1702 = vmatpush1.msra.mxu0 0.0
      %1703 = vmatprep.subr.mxu0 0.0
      %1704 = vmatpush1.msra.mxu0 0.0
      %1705 = vmatprep.subr.mxu0 0.0
      %1706 = vmatpush1.msra.mxu0 0.0
      %1707 = vmatprep.subr.mxu0 0.0
      %1708 = vmatpush1.msra.mxu0 0.0
      %1709 = vmatprep.subr.mxu0 0.0
      %1710 = vmatpush1.msra.mxu0 0.0
      %1711 = vmatprep.subr.mxu0 0.0
      %1712 = vmatpush1.msra.mxu0 0.0
      %1713 = vmatprep.subr.mxu0 0.0
      %1714 = vmatpush1.msra.mxu0 0.0
      %1715 = vmatprep.subr.mxu0 0.0
      %1716 = vmatpush1.msra.mxu0 0.0
      %1717 = vmatprep.subr.mxu0 0.0
      %1718 = vmatpush1.msra.mxu0 0.0
      %1719 = vmatprep.subr.mxu0 0.0
      %1720 = vmatpush1.msra.mxu0 0.0
      %1721 = vmatprep.subr.mxu0 0.0
      %1722 = vmatpush1.msra.mxu0 0.0
      %1723 = vmatprep.subr.mxu0 0.0
      %1724 = vmatpush1.msra.mxu0 0.0
      %1725 = vmatprep.subr.mxu0 0.0
      %1726 = vmatpush1.msra.mxu0 0.0
      %1727 = vmatprep.subr.mxu0 0.0
      %1728 = vmatpush1.msra.mxu0 0.0
      %1729 = vmatprep.mubr.f32.mxu0 0.0
      %1730 = vmatmul.mubr.f32.gmra.mrb[0].mxu0 %v1654
      %v1731 = vpop.f32.mrb[0].mxu0
      %v1732 = vadd.f32 0.0, %v1731
      %v1733 = vpop.f32.mrb[0].mxu0
      %1734 = vmatprep.mubr.f32.mxu0 0.0
      %1735 = vmatmul.mubr.f32.gmra.mrb[0].mxu0 %v1657
      %v1736 = vpop.f32.mrb[0].mxu0
      %v1737 = vadd.f32 0.0, %v1736
      %v1738 = vpop.f32.mrb[0].mxu0
      %1739 = vmatprep.mubr.f32.mxu0 0.0
      %1740 = vmatmul.mubr.f32.gmra.mrb[0].mxu0 %v1660
      %v1741 = vpop.f32.mrb[0].mxu0
      %v1742 = vadd.f32 0.0, %v1741
      %v1743 = vpop.f32.mrb[0].mxu0
      %1744 = vmatprep.mubr.f32.mxu0 0.0
      %1745 = vmatmul.mubr.f32.gmra.mrb[0].mxu0 %v1663
      %v1746 = vpop.f32.mrb[0].mxu0
      %v1747 = vadd.f32 0.0, %v1746
      %v1748 = vpop.f32.mrb[0].mxu0
      %1749 = vdwg.mxu0
      %1750 = vrot.lane.b32.xlu0 %v772, 64
      %v1751 = vpop.permute.xlu0 %1750
      %1752 = vrot.lane.b32.xlu0 %v777, 64
      %v1753 = vpop.permute.xlu0 %1752
      %1754 = vrot.lane.b32.xlu0 %v782, 64
      %v1755 = vpop.permute.xlu0 %1754
      %1756 = vrot.lane.b32.xlu0 %v787, 64
      %v1757 = vpop.permute.xlu0 %1756
      %v1763 = vsel %vm332, %v1419, 0
      %v1766 = vsel %vm332, %v1420, 0
      %v1769 = vsel %vm332, %v1421, 0
      %v1772 = vsel %vm332, %v1422, 0
      %1774 = vmatprep.subr.mxu0 0.0
      %1775 = vmatpush1.msra.mxu0 %v1751
      %1776 = vmatprep.subr.mxu0 0.0
      %1777 = vmatpush1.msra.mxu0 %v1753
      %1778 = vmatprep.subr.mxu0 0.0
      %1779 = vmatpush1.msra.mxu0 %v1755
      %1780 = vmatprep.subr.mxu0 0.0
      %1781 = vmatpush1.msra.mxu0 %v1757
      %1782 = vmatprep.subr.mxu0 0.0
      %1783 = vmatpush1.msra.mxu0 0.0
      %1784 = vmatprep.subr.mxu0 0.0
      %1785 = vmatpush1.msra.mxu0 0.0
      %1786 = vmatprep.subr.mxu0 0.0
      %1787 = vmatpush1.msra.mxu0 0.0
      %1788 = vmatprep.subr.mxu0 0.0
      %1789 = vmatpush1.msra.mxu0 0.0
      %1790 = vmatprep.subr.mxu0 0.0
      %1791 = vmatpush1.msra.mxu0 0.0
      %1792 = vmatprep.subr.mxu0 0.0
      %1793 = vmatpush1.msra.mxu0 0.0
      %1794 = vmatprep.subr.mxu0 0.0
      %1795 = vmatpush1.msra.mxu0 0.0
      %1796 = vmatprep.subr.mxu0 0.0
      %1797 = vmatpush1.msra.mxu0 0.0
      %1798 = vmatprep.subr.mxu0 0.0
      %1799 = vmatpush1.msra.mxu0 0.0
      %1800 = vmatprep.subr.mxu0 0.0
      %1801 = vmatpush1.msra.mxu0 0.0
      %1802 = vmatprep.subr.mxu0 0.0
      %1803 = vmatpush1.msra.mxu0 0.0
      %1804 = vmatprep.subr.mxu0 0.0
      %1805 = vmatpush1.msra.mxu0 0.0
      %1806 = vmatprep.subr.mxu0 0.0
      %1807 = vmatpush1.msra.mxu0 0.0
      %1808 = vmatprep.subr.mxu0 0.0
      %1809 = vmatpush1.msra.mxu0 0.0
      %1810 = vmatprep.subr.mxu0 0.0
      %1811 = vmatpush1.msra.mxu0 0.0
      %1812 = vmatprep.subr.mxu0 0.0
      %1813 = vmatpush1.msra.mxu0 0.0
      %1814 = vmatprep.subr.mxu0 0.0
      %1815 = vmatpush1.msra.mxu0 0.0
      %1816 = vmatprep.subr.mxu0 0.0
      %1817 = vmatpush1.msra.mxu0 0.0
      %1818 = vmatprep.subr.mxu0 0.0
      %1819 = vmatpush1.msra.mxu0 0.0
      %1820 = vmatprep.subr.mxu0 0.0
      %1821 = vmatpush1.msra.mxu0 0.0
      %1822 = vmatprep.subr.mxu0 0.0
      %1823 = vmatpush1.msra.mxu0 0.0
      %1824 = vmatprep.subr.mxu0 0.0
      %1825 = vmatpush1.msra.mxu0 0.0
      %1826 = vmatprep.subr.mxu0 0.0
      %1827 = vmatpush1.msra.mxu0 0.0
      %1828 = vmatprep.subr.mxu0 0.0
      %1829 = vmatpush1.msra.mxu0 0.0
      %1830 = vmatprep.subr.mxu0 0.0
      %1831 = vmatpush1.msra.mxu0 0.0
      %1832 = vmatprep.subr.mxu0 0.0
      %1833 = vmatpush1.msra.mxu0 0.0
      %1834 = vmatprep.subr.mxu0 0.0
      %1835 = vmatpush1.msra.mxu0 0.0
      %1836 = vmatprep.subr.mxu0 0.0
      %1837 = vmatpush1.msra.mxu0 0.0
      %1838 = vmatprep.mubr.f32.mxu0 0.0
      %1839 = vmatmul.mubr.f32.gmra.mrb[0].mxu0 %v1763
      %v1840 = vpop.f32.mrb[0].mxu0
      %v1841 = vadd.f32 0.0, %v1840
      %v1842 = vpop.f32.mrb[0].mxu0
      %1843 = vmatprep.mubr.f32.mxu0 0.0
      %1844 = vmatmul.mubr.f32.gmra.mrb[0].mxu0 %v1766
      %v1845 = vpop.f32.mrb[0].mxu0
      %v1846 = vadd.f32 0.0, %v1845
      %v1847 = vpop.f32.mrb[0].mxu0
      %1848 = vmatprep.mubr.f32.mxu0 0.0
      %1849 = vmatmul.mubr.f32.gmra.mrb[0].mxu0 %v1769
      %v1850 = vpop.f32.mrb[0].mxu0
      %v1851 = vadd.f32 0.0, %v1850
      %v1852 = vpop.f32.mrb[0].mxu0
      %1853 = vmatprep.mubr.f32.mxu0 0.0
      %1854 = vmatmul.mubr.f32.gmra.mrb[0].mxu0 %v1772
      %v1855 = vpop.f32.mrb[0].mxu0
      %v1856 = vadd.f32 0.0, %v1855
      %v1857 = vpop.f32.mrb[0].mxu0
      %1858 = vdwg.mxu0
      %s1859 = scalar_lea.vmem %s7, 32
      %v1860 = vld [vmem:[%s1859] sm:$0xff]
      %v1861 = vld [vmem:[%s1859 + $0x8] sm:$0xff]
      %v1862 = vld [vmem:[%s1859 + $0x10] sm:$0xff]
      %v1863 = vld [vmem:[%s1859 + $0x18] sm:$0xff]
      %1864 = vrot.lane.b32.xlu0 %v712, 112
      %v1865 = vpop.permute.xlu0 %1864
      %1866 = vrot.lane.b32.xlu0 %v717, 112
      %v1867 = vpop.permute.xlu0 %1866
      %1868 = vrot.lane.b32.xlu0 %v722, 112
      %v1869 = vpop.permute.xlu0 %1868
      %1870 = vrot.lane.b32.xlu0 %v727, 112
      %v1871 = vpop.permute.xlu0 %1870
      %1872 = vrot.lane.b32.xlu0 %v712, 80
      %v1873 = vpop.permute.xlu0 %1872
      %1874 = vrot.lane.b32.xlu0 %v717, 80
      %v1875 = vpop.permute.xlu0 %1874
      %1876 = vrot.lane.b32.xlu0 %v722, 80
      %v1877 = vpop.permute.xlu0 %1876
      %1878 = vrot.lane.b32.xlu0 %v727, 80
      %v1879 = vpop.permute.xlu0 %1878
      %v1880 = vsel %vm806, %v1865, 0
      %v1882 = vsel %vm806, %v1867, 0
      %v1884 = vsel %vm806, %v1869, 0
      %v1886 = vsel %vm806, %v1871, 0
      %v1888 = vsel %vm806, %v1873, 0
      %v1890 = vsel %vm806, %v1875, 0
      %v1892 = vsel %vm806, %v1877, 0
      %v1894 = vsel %vm806, %v1879, 0
      %1896 = vmatprep.subr.mxu0 0.0
      %1897 = vmatpush1.xpose.msra.mxu0 %v1888
      %1898 = vmatprep.subr.mxu0 0.0
      %1899 = vmatpush1.xpose.msra.mxu0 %v1890
      %1900 = vmatprep.subr.mxu0 0.0
      %1901 = vmatpush1.xpose.msra.mxu0 %v1892
      %1902 = vmatprep.subr.mxu0 0.0
      %1903 = vmatpush1.xpose.msra.mxu0 %v1894
      %1904 = vmatprep.subr.mxu0 0.0
      %1905 = vmatpush1.xpose.msra.mxu0 0.0
      %1906 = vmatprep.subr.mxu0 0.0
      %1907 = vmatpush1.xpose.msra.mxu0 0.0
      %1908 = vmatprep.subr.mxu0 0.0
      %1909 = vmatpush1.xpose.msra.mxu0 0.0
      %1910 = vmatprep.subr.mxu0 0.0
      %1911 = vmatpush1.xpose.msra.mxu0 0.0
      %1912 = vmatprep.subr.mxu0 0.0
      %1913 = vmatpush1.xpose.msra.mxu0 0.0
      %1914 = vmatprep.subr.mxu0 0.0
      %1915 = vmatpush1.xpose.msra.mxu0 0.0
      %1916 = vmatprep.subr.mxu0 0.0
      %1917 = vmatpush1.xpose.msra.mxu0 0.0
      %1918 = vmatprep.subr.mxu0 0.0
      %1919 = vmatpush1.xpose.msra.mxu0 0.0
      %1920 = vmatprep.subr.mxu0 0.0
      %1921 = vmatpush1.xpose.msra.mxu0 0.0
      %1922 = vmatprep.subr.mxu0 0.0
      %1923 = vmatpush1.xpose.msra.mxu0 0.0
      %1924 = vmatprep.subr.mxu0 0.0
      %1925 = vmatpush1.xpose.msra.mxu0 0.0
      %1926 = vmatprep.subr.mxu0 0.0
      %1927 = vmatpush1.xpose.msra.mxu0 0.0
      %1928 = vmatprep.subr.mxu0 0.0
      %1929 = vmatpush1.xpose.msra.mxu0 0.0
      %1930 = vmatprep.subr.mxu0 0.0
      %1931 = vmatpush1.xpose.msra.mxu0 0.0
      %1932 = vmatprep.subr.mxu0 0.0
      %1933 = vmatpush1.xpose.msra.mxu0 0.0
      %1934 = vmatprep.subr.mxu0 0.0
      %1935 = vmatpush1.xpose.msra.mxu0 0.0
      %1936 = vmatprep.subr.mxu0 0.0
      %1937 = vmatpush1.xpose.msra.mxu0 0.0
      %1938 = vmatprep.subr.mxu0 0.0
      %1939 = vmatpush1.xpose.msra.mxu0 0.0
      %1940 = vmatprep.subr.mxu0 0.0
      %1941 = vmatpush1.xpose.msra.mxu0 0.0
      %1942 = vmatprep.subr.mxu0 0.0
      %1943 = vmatpush1.xpose.msra.mxu0 0.0
      %1944 = vmatprep.subr.mxu0 0.0
      %1945 = vmatpush1.xpose.msra.mxu0 0.0
      %1946 = vmatprep.subr.mxu0 0.0
      %1947 = vmatpush1.xpose.msra.mxu0 0.0
      %1948 = vmatprep.subr.mxu0 0.0
      %1949 = vmatpush1.xpose.msra.mxu0 0.0
      %1950 = vmatprep.subr.mxu0 0.0
      %1951 = vmatpush1.xpose.msra.mxu0 0.0
      %1952 = vmatprep.subr.mxu0 0.0
      %1953 = vmatpush1.xpose.msra.mxu0 0.0
      %1954 = vmatprep.subr.mxu0 0.0
      %1955 = vmatpush1.xpose.msra.mxu0 0.0
      %1956 = vmatprep.subr.mxu0 0.0
      %1957 = vmatpush1.xpose.msra.mxu0 0.0
      %1958 = vmatprep.subr.mxu0 0.0
      %1959 = vmatpush1.xpose.msra.mxu0 0.0
      %1960 = vmatprep.mubr.f32.mxu0 0.0
      %1961 = vmatmul.mubr.f32.gmra.mrb[0].mxu0 %v1880
      %v1962 = vpop.f32.mrb[0].mxu0
      %v1963 = vadd.f32 %v1860, %v1962
      %v1964 = vpop.f32.mrb[0].mxu0
      %1965 = vmatprep.mubr.f32.mxu0 0.0
      %1966 = vmatmul.mubr.f32.gmra.mrb[0].mxu0 %v1882
      %v1967 = vpop.f32.mrb[0].mxu0
      %v1968 = vadd.f32 %v1861, %v1967
      %v1969 = vpop.f32.mrb[0].mxu0
      %1970 = vmatprep.mubr.f32.mxu0 0.0
      %1971 = vmatmul.mubr.f32.gmra.mrb[0].mxu0 %v1884
      %v1972 = vpop.f32.mrb[0].mxu0
      %v1973 = vadd.f32 %v1862, %v1972
      %v1974 = vpop.f32.mrb[0].mxu0
      %1975 = vmatprep.mubr.f32.mxu0 0.0
      %1976 = vmatmul.mubr.f32.gmra.mrb[0].mxu0 %v1886
      %v1977 = vpop.f32.mrb[0].mxu0
      %v1978 = vadd.f32 %v1863, %v1977
      %v1979 = vpop.f32.mrb[0].mxu0
      %1980 = vdwg.mxu0
      %1981 = vrot.lane.b32.xlu0 %v732, 112
      %v1982 = vpop.permute.xlu0 %1981
      %1983 = vrot.lane.b32.xlu0 %v737, 112
      %v1984 = vpop.permute.xlu0 %1983
      %1985 = vrot.lane.b32.xlu0 %v742, 112
      %v1986 = vpop.permute.xlu0 %1985
      %1987 = vrot.lane.b32.xlu0 %v747, 112
      %v1988 = vpop.permute.xlu0 %1987
      %1989 = vrot.lane.b32.xlu0 %v732, 80
      %v1990 = vpop.permute.xlu0 %1989
      %1991 = vrot.lane.b32.xlu0 %v737, 80
      %v1992 = vpop.permute.xlu0 %1991
      %1993 = vrot.lane.b32.xlu0 %v742, 80
      %v1994 = vpop.permute.xlu0 %1993
      %1995 = vrot.lane.b32.xlu0 %v747, 80
      %v1996 = vpop.permute.xlu0 %1995
      %v1997 = vsel %vm806, %v1982, 0
      %v1999 = vsel %vm806, %v1984, 0
      %v2001 = vsel %vm806, %v1986, 0
      %v2003 = vsel %vm806, %v1988, 0
      %v2005 = vsel %vm806, %v1990, 0
      %v2007 = vsel %vm806, %v1992, 0
      %v2009 = vsel %vm806, %v1994, 0
      %v2011 = vsel %vm806, %v1996, 0
      %2013 = vmatprep.subr.mxu0 0.0
      %2014 = vmatpush1.xpose.msra.mxu0 %v2005
      %2015 = vmatprep.subr.mxu0 0.0
      %2016 = vmatpush1.xpose.msra.mxu0 %v2007
      %2017 = vmatprep.subr.mxu0 0.0
      %2018 = vmatpush1.xpose.msra.mxu0 %v2009
      %2019 = vmatprep.subr.mxu0 0.0
      %2020 = vmatpush1.xpose.msra.mxu0 %v2011
      %2021 = vmatprep.subr.mxu0 0.0
      %2022 = vmatpush1.xpose.msra.mxu0 0.0
      %2023 = vmatprep.subr.mxu0 0.0
      %2024 = vmatpush1.xpose.msra.mxu0 0.0
      %2025 = vmatprep.subr.mxu0 0.0
      %2026 = vmatpush1.xpose.msra.mxu0 0.0
      %2027 = vmatprep.subr.mxu0 0.0
      %2028 = vmatpush1.xpose.msra.mxu0 0.0
      %2029 = vmatprep.subr.mxu0 0.0
      %2030 = vmatpush1.xpose.msra.mxu0 0.0
      %2031 = vmatprep.subr.mxu0 0.0
      %2032 = vmatpush1.xpose.msra.mxu0 0.0
      %2033 = vmatprep.subr.mxu0 0.0
      %2034 = vmatpush1.xpose.msra.mxu0 0.0
      %2035 = vmatprep.subr.mxu0 0.0
      %2036 = vmatpush1.xpose.msra.mxu0 0.0
      %2037 = vmatprep.subr.mxu0 0.0
      %2038 = vmatpush1.xpose.msra.mxu0 0.0
      %2039 = vmatprep.subr.mxu0 0.0
      %2040 = vmatpush1.xpose.msra.mxu0 0.0
      %2041 = vmatprep.subr.mxu0 0.0
      %2042 = vmatpush1.xpose.msra.mxu0 0.0
      %2043 = vmatprep.subr.mxu0 0.0
      %2044 = vmatpush1.xpose.msra.mxu0 0.0
      %2045 = vmatprep.subr.mxu0 0.0
      %2046 = vmatpush1.xpose.msra.mxu0 0.0
      %2047 = vmatprep.subr.mxu0 0.0
      %2048 = vmatpush1.xpose.msra.mxu0 0.0
      %2049 = vmatprep.subr.mxu0 0.0
      %2050 = vmatpush1.xpose.msra.mxu0 0.0
      %2051 = vmatprep.subr.mxu0 0.0
      %2052 = vmatpush1.xpose.msra.mxu0 0.0
      %2053 = vmatprep.subr.mxu0 0.0
      %2054 = vmatpush1.xpose.msra.mxu0 0.0
      %2055 = vmatprep.subr.mxu0 0.0
      %2056 = vmatpush1.xpose.msra.mxu0 0.0
      %2057 = vmatprep.subr.mxu0 0.0
      %2058 = vmatpush1.xpose.msra.mxu0 0.0
      %2059 = vmatprep.subr.mxu0 0.0
      %2060 = vmatpush1.xpose.msra.mxu0 0.0
      %2061 = vmatprep.subr.mxu0 0.0
      %2062 = vmatpush1.xpose.msra.mxu0 0.0
      %2063 = vmatprep.subr.mxu0 0.0
      %2064 = vmatpush1.xpose.msra.mxu0 0.0
      %2065 = vmatprep.subr.mxu0 0.0
      %2066 = vmatpush1.xpose.msra.mxu0 0.0
      %2067 = vmatprep.subr.mxu0 0.0
      %2068 = vmatpush1.xpose.msra.mxu0 0.0
      %2069 = vmatprep.subr.mxu0 0.0
      %2070 = vmatpush1.xpose.msra.mxu0 0.0
      %2071 = vmatprep.subr.mxu0 0.0
      %2072 = vmatpush1.xpose.msra.mxu0 0.0
      %2073 = vmatprep.subr.mxu0 0.0
      %2074 = vmatpush1.xpose.msra.mxu0 0.0
      %2075 = vmatprep.subr.mxu0 0.0
      %2076 = vmatpush1.xpose.msra.mxu0 0.0
      %2077 = vmatprep.mubr.f32.mxu0 0.0
      %2078 = vmatmul.mubr.f32.gmra.mrb[0].mxu0 %v1997
      %v2079 = vpop.f32.mrb[0].mxu0
      %v2080 = vadd.f32 %v1860, %v2079
      %v2081 = vpop.f32.mrb[0].mxu0
      %2082 = vmatprep.mubr.f32.mxu0 0.0
      %2083 = vmatmul.mubr.f32.gmra.mrb[0].mxu0 %v1999
      %v2084 = vpop.f32.mrb[0].mxu0
      %v2085 = vadd.f32 %v1861, %v2084
      %v2086 = vpop.f32.mrb[0].mxu0
      %2087 = vmatprep.mubr.f32.mxu0 0.0
      %2088 = vmatmul.mubr.f32.gmra.mrb[0].mxu0 %v2001
      %v2089 = vpop.f32.mrb[0].mxu0
      %v2090 = vadd.f32 %v1862, %v2089
      %v2091 = vpop.f32.mrb[0].mxu0
      %2092 = vmatprep.mubr.f32.mxu0 0.0
      %2093 = vmatmul.mubr.f32.gmra.mrb[0].mxu0 %v2003
      %v2094 = vpop.f32.mrb[0].mxu0
      %v2095 = vadd.f32 %v1863, %v2094
      %v2096 = vpop.f32.mrb[0].mxu0
      %2097 = vdwg.mxu0
      %2098 = vrot.lane.b32.xlu0 %v752, 112
      %v2099 = vpop.permute.xlu0 %2098
      %2100 = vrot.lane.b32.xlu0 %v757, 112
      %v2101 = vpop.permute.xlu0 %2100
      %2102 = vrot.lane.b32.xlu0 %v762, 112
      %v2103 = vpop.permute.xlu0 %2102
      %2104 = vrot.lane.b32.xlu0 %v767, 112
      %v2105 = vpop.permute.xlu0 %2104
      %2106 = vrot.lane.b32.xlu0 %v752, 80
      %v2107 = vpop.permute.xlu0 %2106
      %2108 = vrot.lane.b32.xlu0 %v757, 80
      %v2109 = vpop.permute.xlu0 %2108
      %2110 = vrot.lane.b32.xlu0 %v762, 80
      %v2111 = vpop.permute.xlu0 %2110
      %2112 = vrot.lane.b32.xlu0 %v767, 80
      %v2113 = vpop.permute.xlu0 %2112
      %v2114 = vsel %vm806, %v2099, 0
      %v2116 = vsel %vm806, %v2101, 0
      %v2118 = vsel %vm806, %v2103, 0
      %v2120 = vsel %vm806, %v2105, 0
      %v2122 = vsel %vm806, %v2107, 0
      %v2124 = vsel %vm806, %v2109, 0
      %v2126 = vsel %vm806, %v2111, 0
      %v2128 = vsel %vm806, %v2113, 0
      %2130 = vmatprep.subr.mxu0 0.0
      %2131 = vmatpush1.xpose.msra.mxu0 %v2122
      %2132 = vmatprep.subr.mxu0 0.0
      %2133 = vmatpush1.xpose.msra.mxu0 %v2124
      %2134 = vmatprep.subr.mxu0 0.0
      %2135 = vmatpush1.xpose.msra.mxu0 %v2126
      %2136 = vmatprep.subr.mxu0 0.0
      %2137 = vmatpush1.xpose.msra.mxu0 %v2128
      %2138 = vmatprep.subr.mxu0 0.0
      %2139 = vmatpush1.xpose.msra.mxu0 0.0
      %2140 = vmatprep.subr.mxu0 0.0
      %2141 = vmatpush1.xpose.msra.mxu0 0.0
      %2142 = vmatprep.subr.mxu0 0.0
      %2143 = vmatpush1.xpose.msra.mxu0 0.0
      %2144 = vmatprep.subr.mxu0 0.0
      %2145 = vmatpush1.xpose.msra.mxu0 0.0
      %2146 = vmatprep.subr.mxu0 0.0
      %2147 = vmatpush1.xpose.msra.mxu0 0.0
      %2148 = vmatprep.subr.mxu0 0.0
      %2149 = vmatpush1.xpose.msra.mxu0 0.0
      %2150 = vmatprep.subr.mxu0 0.0
      %2151 = vmatpush1.xpose.msra.mxu0 0.0
      %2152 = vmatprep.subr.mxu0 0.0
      %2153 = vmatpush1.xpose.msra.mxu0 0.0
      %2154 = vmatprep.subr.mxu0 0.0
      %2155 = vmatpush1.xpose.msra.mxu0 0.0
      %2156 = vmatprep.subr.mxu0 0.0
      %2157 = vmatpush1.xpose.msra.mxu0 0.0
      %2158 = vmatprep.subr.mxu0 0.0
      %2159 = vmatpush1.xpose.msra.mxu0 0.0
      %2160 = vmatprep.subr.mxu0 0.0
      %2161 = vmatpush1.xpose.msra.mxu0 0.0
      %2162 = vmatprep.subr.mxu0 0.0
      %2163 = vmatpush1.xpose.msra.mxu0 0.0
      %2164 = vmatprep.subr.mxu0 0.0
      %2165 = vmatpush1.xpose.msra.mxu0 0.0
      %2166 = vmatprep.subr.mxu0 0.0
      %2167 = vmatpush1.xpose.msra.mxu0 0.0
      %2168 = vmatprep.subr.mxu0 0.0
      %2169 = vmatpush1.xpose.msra.mxu0 0.0
      %2170 = vmatprep.subr.mxu0 0.0
      %2171 = vmatpush1.xpose.msra.mxu0 0.0
      %2172 = vmatprep.subr.mxu0 0.0
      %2173 = vmatpush1.xpose.msra.mxu0 0.0
      %2174 = vmatprep.subr.mxu0 0.0
      %2175 = vmatpush1.xpose.msra.mxu0 0.0
      %2176 = vmatprep.subr.mxu0 0.0
      %2177 = vmatpush1.xpose.msra.mxu0 0.0
      %2178 = vmatprep.subr.mxu0 0.0
      %2179 = vmatpush1.xpose.msra.mxu0 0.0
      %2180 = vmatprep.subr.mxu0 0.0
      %2181 = vmatpush1.xpose.msra.mxu0 0.0
      %2182 = vmatprep.subr.mxu0 0.0
      %2183 = vmatpush1.xpose.msra.mxu0 0.0
      %2184 = vmatprep.subr.mxu0 0.0
      %2185 = vmatpush1.xpose.msra.mxu0 0.0
      %2186 = vmatprep.subr.mxu0 0.0
      %2187 = vmatpush1.xpose.msra.mxu0 0.0
      %2188 = vmatprep.subr.mxu0 0.0
      %2189 = vmatpush1.xpose.msra.mxu0 0.0
      %2190 = vmatprep.subr.mxu0 0.0
      %2191 = vmatpush1.xpose.msra.mxu0 0.0
      %2192 = vmatprep.subr.mxu0 0.0
      %2193 = vmatpush1.xpose.msra.mxu0 0.0
      %2194 = vmatprep.mubr.f32.mxu0 0.0
      %2195 = vmatmul.mubr.f32.gmra.mrb[0].mxu0 %v2114
      %v2196 = vpop.f32.mrb[0].mxu0
      %v2197 = vadd.f32 %v1860, %v2196
      %v2198 = vpop.f32.mrb[0].mxu0
      %2199 = vmatprep.mubr.f32.mxu0 0.0
      %2200 = vmatmul.mubr.f32.gmra.mrb[0].mxu0 %v2116
      %v2201 = vpop.f32.mrb[0].mxu0
      %v2202 = vadd.f32 %v1861, %v2201
      %v2203 = vpop.f32.mrb[0].mxu0
      %2204 = vmatprep.mubr.f32.mxu0 0.0
      %2205 = vmatmul.mubr.f32.gmra.mrb[0].mxu0 %v2118
      %v2206 = vpop.f32.mrb[0].mxu0
      %v2207 = vadd.f32 %v1862, %v2206
      %v2208 = vpop.f32.mrb[0].mxu0
      %2209 = vmatprep.mubr.f32.mxu0 0.0
      %2210 = vmatmul.mubr.f32.gmra.mrb[0].mxu0 %v2120
      %v2211 = vpop.f32.mrb[0].mxu0
      %v2212 = vadd.f32 %v1863, %v2211
      %v2213 = vpop.f32.mrb[0].mxu0
      %2214 = vdwg.mxu0
      %2215 = vrot.lane.b32.xlu0 %v772, 112
      %v2216 = vpop.permute.xlu0 %2215
      %2217 = vrot.lane.b32.xlu0 %v777, 112
      %v2218 = vpop.permute.xlu0 %2217
      %2219 = vrot.lane.b32.xlu0 %v782, 112
      %v2220 = vpop.permute.xlu0 %2219
      %2221 = vrot.lane.b32.xlu0 %v787, 112
      %v2222 = vpop.permute.xlu0 %2221
      %2223 = vrot.lane.b32.xlu0 %v772, 80
      %v2224 = vpop.permute.xlu0 %2223
      %2225 = vrot.lane.b32.xlu0 %v777, 80
      %v2226 = vpop.permute.xlu0 %2225
      %2227 = vrot.lane.b32.xlu0 %v782, 80
      %v2228 = vpop.permute.xlu0 %2227
      %2229 = vrot.lane.b32.xlu0 %v787, 80
      %v2230 = vpop.permute.xlu0 %2229
      %v2231 = vsel %vm806, %v2216, 0
      %v2233 = vsel %vm806, %v2218, 0
      %v2235 = vsel %vm806, %v2220, 0
      %v2237 = vsel %vm806, %v2222, 0
      %v2239 = vsel %vm806, %v2224, 0
      %v2241 = vsel %vm806, %v2226, 0
      %v2243 = vsel %vm806, %v2228, 0
      %v2245 = vsel %vm806, %v2230, 0
      %2247 = vmatprep.subr.mxu0 0.0
      %2248 = vmatpush1.xpose.msra.mxu0 %v2239
      %2249 = vmatprep.subr.mxu0 0.0
      %2250 = vmatpush1.xpose.msra.mxu0 %v2241
      %2251 = vmatprep.subr.mxu0 0.0
      %2252 = vmatpush1.xpose.msra.mxu0 %v2243
      %2253 = vmatprep.subr.mxu0 0.0
      %2254 = vmatpush1.xpose.msra.mxu0 %v2245
      %2255 = vmatprep.subr.mxu0 0.0
      %2256 = vmatpush1.xpose.msra.mxu0 0.0
      %2257 = vmatprep.subr.mxu0 0.0
      %2258 = vmatpush1.xpose.msra.mxu0 0.0
      %2259 = vmatprep.subr.mxu0 0.0
      %2260 = vmatpush1.xpose.msra.mxu0 0.0
      %2261 = vmatprep.subr.mxu0 0.0
      %2262 = vmatpush1.xpose.msra.mxu0 0.0
      %2263 = vmatprep.subr.mxu0 0.0
      %2264 = vmatpush1.xpose.msra.mxu0 0.0
      %2265 = vmatprep.subr.mxu0 0.0
      %2266 = vmatpush1.xpose.msra.mxu0 0.0
      %2267 = vmatprep.subr.mxu0 0.0
      %2268 = vmatpush1.xpose.msra.mxu0 0.0
      %2269 = vmatprep.subr.mxu0 0.0
      %2270 = vmatpush1.xpose.msra.mxu0 0.0
      %2271 = vmatprep.subr.mxu0 0.0
      %2272 = vmatpush1.xpose.msra.mxu0 0.0
      %2273 = vmatprep.subr.mxu0 0.0
      %2274 = vmatpush1.xpose.msra.mxu0 0.0
      %2275 = vmatprep.subr.mxu0 0.0
      %2276 = vmatpush1.xpose.msra.mxu0 0.0
      %2277 = vmatprep.subr.mxu0 0.0
      %2278 = vmatpush1.xpose.msra.mxu0 0.0
      %2279 = vmatprep.subr.mxu0 0.0
      %2280 = vmatpush1.xpose.msra.mxu0 0.0
      %2281 = vmatprep.subr.mxu0 0.0
      %2282 = vmatpush1.xpose.msra.mxu0 0.0
      %2283 = vmatprep.subr.mxu0 0.0
      %2284 = vmatpush1.xpose.msra.mxu0 0.0
      %2285 = vmatprep.subr.mxu0 0.0
      %2286 = vmatpush1.xpose.msra.mxu0 0.0
      %2287 = vmatprep.subr.mxu0 0.0
      %2288 = vmatpush1.xpose.msra.mxu0 0.0
      %2289 = vmatprep.subr.mxu0 0.0
      %2290 = vmatpush1.xpose.msra.mxu0 0.0
      %2291 = vmatprep.subr.mxu0 0.0
      %2292 = vmatpush1.xpose.msra.mxu0 0.0
      %2293 = vmatprep.subr.mxu0 0.0
      %2294 = vmatpush1.xpose.msra.mxu0 0.0
      %2295 = vmatprep.subr.mxu0 0.0
      %2296 = vmatpush1.xpose.msra.mxu0 0.0
      %2297 = vmatprep.subr.mxu0 0.0
      %2298 = vmatpush1.xpose.msra.mxu0 0.0
      %2299 = vmatprep.subr.mxu0 0.0
      %2300 = vmatpush1.xpose.msra.mxu0 0.0
      %2301 = vmatprep.subr.mxu0 0.0
      %2302 = vmatpush1.xpose.msra.mxu0 0.0
      %2303 = vmatprep.subr.mxu0 0.0
      %2304 = vmatpush1.xpose.msra.mxu0 0.0
      %2305 = vmatprep.subr.mxu0 0.0
      %2306 = vmatpush1.xpose.msra.mxu0 0.0
      %2307 = vmatprep.subr.mxu0 0.0
      %2308 = vmatpush1.xpose.msra.mxu0 0.0
      %2309 = vmatprep.subr.mxu0 0.0
      %2310 = vmatpush1.xpose.msra.mxu0 0.0
      %2311 = vmatprep.mubr.f32.mxu0 0.0
      %2312 = vmatmul.mubr.f32.gmra.mrb[0].mxu0 %v2231
      %v2313 = vpop.f32.mrb[0].mxu0
      %v2314 = vadd.f32 %v1860, %v2313
      %v2315 = vpop.f32.mrb[0].mxu0
      %2316 = vmatprep.mubr.f32.mxu0 0.0
      %2317 = vmatmul.mubr.f32.gmra.mrb[0].mxu0 %v2233
      %v2318 = vpop.f32.mrb[0].mxu0
      %v2319 = vadd.f32 %v1861, %v2318
      %v2320 = vpop.f32.mrb[0].mxu0
      %2321 = vmatprep.mubr.f32.mxu0 0.0
      %2322 = vmatmul.mubr.f32.gmra.mrb[0].mxu0 %v2235
      %v2323 = vpop.f32.mrb[0].mxu0
      %v2324 = vadd.f32 %v1862, %v2323
      %v2325 = vpop.f32.mrb[0].mxu0
      %2326 = vmatprep.mubr.f32.mxu0 0.0
      %2327 = vmatmul.mubr.f32.gmra.mrb[0].mxu0 %v2237
      %v2328 = vpop.f32.mrb[0].mxu0
      %v2329 = vadd.f32 %v1863, %v2328
      %v2330 = vpop.f32.mrb[0].mxu0
      %2331 = vdwg.mxu0
      %v2332 = vsel %vm332, %v1963, -inf
      %2333 = vmax.xlane.f32.xlu0 %v2332
      %v2334 = vpop.xlane.xlu0 %2333
      %v2335 = vsel %vm332, %v1968, -inf
      %2336 = vmax.xlane.f32.xlu0 %v2335
      %v2337 = vpop.xlane.xlu0 %2336
      %v2338 = vsel %vm332, %v1973, -inf
      %2339 = vmax.xlane.f32.xlu0 %v2338
      %v2340 = vpop.xlane.xlu0 %2339
      %v2341 = vsel %vm332, %v1978, -inf
      %2342 = vmax.xlane.f32.xlu0 %v2341
      %v2343 = vpop.xlane.xlu0 %2342
      %v2344 = vsel %vm332, %v2080, -inf
      %2345 = vmax.xlane.f32.xlu0 %v2344
      %v2346 = vpop.xlane.xlu0 %2345
      %v2347 = vsel %vm332, %v2085, -inf
      %2348 = vmax.xlane.f32.xlu0 %v2347
      %v2349 = vpop.xlane.xlu0 %2348
      %v2350 = vsel %vm332, %v2090, -inf
      %2351 = vmax.xlane.f32.xlu0 %v2350
      %v2352 = vpop.xlane.xlu0 %2351
      %v2353 = vsel %vm332, %v2095, -inf
      %2354 = vmax.xlane.f32.xlu0 %v2353
      %v2355 = vpop.xlane.xlu0 %2354
      %v2356 = vsel %vm332, %v2197, -inf
      %2357 = vmax.xlane.f32.xlu0 %v2356
      %v2358 = vpop.xlane.xlu0 %2357
      %v2359 = vsel %vm332, %v2202, -inf
      %2360 = vmax.xlane.f32.xlu0 %v2359
      %v2361 = vpop.xlane.xlu0 %2360
      %v2362 = vsel %vm332, %v2207, -inf
      %2363 = vmax.xlane.f32.xlu0 %v2362
      %v2364 = vpop.xlane.xlu0 %2363
      %v2365 = vsel %vm332, %v2212, -inf
      %2366 = vmax.xlane.f32.xlu0 %v2365
      %v2367 = vpop.xlane.xlu0 %2366
      %v2368 = vsel %vm332, %v2314, -inf
      %2369 = vmax.xlane.f32.xlu0 %v2368
      %v2370 = vpop.xlane.xlu0 %2369
      %v2371 = vsel %vm332, %v2319, -inf
      %2372 = vmax.xlane.f32.xlu0 %v2371
      %v2373 = vpop.xlane.xlu0 %2372
      %v2374 = vsel %vm332, %v2324, -inf
      %2375 = vmax.xlane.f32.xlu0 %v2374
      %v2376 = vpop.xlane.xlu0 %2375
      %v2377 = vsel %vm332, %v2329, -inf
      %2378 = vmax.xlane.f32.xlu0 %v2377
      %v2379 = vpop.xlane.xlu0 %2378
      %v2380 = vsub.f32 %v1963, %v2334
      %v2381 = vsub.f32 %v1968, %v2337
      %v2382 = vsub.f32 %v1973, %v2340
      %v2383 = vsub.f32 %v1978, %v2343
      %v2384 = vsub.f32 %v2080, %v2346
      %v2385 = vsub.f32 %v2085, %v2349
      %v2386 = vsub.f32 %v2090, %v2352
      %v2387 = vsub.f32 %v2095, %v2355
      %v2388 = vsub.f32 %v2197, %v2358
      %v2389 = vsub.f32 %v2202, %v2361
      %v2390 = vsub.f32 %v2207, %v2364
      %v2391 = vsub.f32 %v2212, %v2367
      %v2392 = vsub.f32 %v2314, %v2370
      %v2393 = vsub.f32 %v2319, %v2373
      %v2394 = vsub.f32 %v2324, %v2376
      %v2395 = vsub.f32 %v2329, %v2379
      %v2396 = vmul.f32 %v2380, 1.442695
      %v2397 = vpow.pop %v2396
      %v2398 = vmul.f32 %v2381, 1.442695
      %v2399 = vpow.pop %v2398
      %v2400 = vmul.f32 %v2382, 1.442695
      %v2401 = vpow.pop %v2400
      %v2402 = vmul.f32 %v2383, 1.442695
      %v2403 = vpow.pop %v2402
      %v2404 = vmul.f32 %v2384, 1.442695
      %v2405 = vpow.pop %v2404
      %v2406 = vmul.f32 %v2385, 1.442695
      %v2407 = vpow.pop %v2406
      %v2408 = vmul.f32 %v2386, 1.442695
      %v2409 = vpow.pop %v2408
      %v2410 = vmul.f32 %v2387, 1.442695
      %v2411 = vpow.pop %v2410
      %v2412 = vmul.f32 %v2388, 1.442695
      %v2413 = vpow.pop %v2412
      %v2414 = vmul.f32 %v2389, 1.442695
      %v2415 = vpow.pop %v2414
      %v2416 = vmul.f32 %v2390, 1.442695
      %v2417 = vpow.pop %v2416
      %v2418 = vmul.f32 %v2391, 1.442695
      %v2419 = vpow.pop %v2418
      %v2420 = vmul.f32 %v2392, 1.442695
      %v2421 = vpow.pop %v2420
      %v2422 = vmul.f32 %v2393, 1.442695
      %v2423 = vpow.pop %v2422
      %v2424 = vmul.f32 %v2394, 1.442695
      %v2425 = vpow.pop %v2424
      %v2426 = vmul.f32 %v2395, 1.442695
      %v2427 = vpow.pop %v2426
      %v2428 = vsel %vm332, %v2397, 0.0
      %2429 = vadd.xlane.f32.xlu0 %v2428
      %v2430 = vpop.xlane.xlu0 %2429
      %v2431 = vsel %vm332, %v2399, 0.0
      %2432 = vadd.xlane.f32.xlu0 %v2431
      %v2433 = vpop.xlane.xlu0 %2432
      %v2434 = vsel %vm332, %v2401, 0.0
      %2435 = vadd.xlane.f32.xlu0 %v2434
      %v2436 = vpop.xlane.xlu0 %2435
      %v2437 = vsel %vm332, %v2403, 0.0
      %2438 = vadd.xlane.f32.xlu0 %v2437
      %v2439 = vpop.xlane.xlu0 %2438
      %v2440 = vsel %vm332, %v2405, 0.0
      %2441 = vadd.xlane.f32.xlu0 %v2440
      %v2442 = vpop.xlane.xlu0 %2441
      %v2443 = vsel %vm332, %v2407, 0.0
      %2444 = vadd.xlane.f32.xlu0 %v2443
      %v2445 = vpop.xlane.xlu0 %2444
      %v2446 = vsel %vm332, %v2409, 0.0
      %2447 = vadd.xlane.f32.xlu0 %v2446
      %v2448 = vpop.xlane.xlu0 %2447
      %v2449 = vsel %vm332, %v2411, 0.0
      %2450 = vadd.xlane.f32.xlu0 %v2449
      %v2451 = vpop.xlane.xlu0 %2450
      %v2452 = vsel %vm332, %v2413, 0.0
      %2453 = vadd.xlane.f32.xlu0 %v2452
      %v2454 = vpop.xlane.xlu0 %2453
      %v2455 = vsel %vm332, %v2415, 0.0
      %2456 = vadd.xlane.f32.xlu0 %v2455
      %v2457 = vpop.xlane.xlu0 %2456
      %v2458 = vsel %vm332, %v2417, 0.0
      %2459 = vadd.xlane.f32.xlu0 %v2458
      %v2460 = vpop.xlane.xlu0 %2459
      %v2461 = vsel %vm332, %v2419, 0.0
      %2462 = vadd.xlane.f32.xlu0 %v2461
      %v2463 = vpop.xlane.xlu0 %2462
      %v2464 = vsel %vm332, %v2421, 0.0
      %2465 = vadd.xlane.f32.xlu0 %v2464
      %v2466 = vpop.xlane.xlu0 %2465
      %v2467 = vsel %vm332, %v2423, 0.0
      %2468 = vadd.xlane.f32.xlu0 %v2467
      %v2469 = vpop.xlane.xlu0 %2468
      %v2470 = vsel %vm332, %v2425, 0.0
      %2471 = vadd.xlane.f32.xlu0 %v2470
      %v2472 = vpop.xlane.xlu0 %2471
      %v2473 = vsel %vm332, %v2427, 0.0
      %2474 = vadd.xlane.f32.xlu0 %v2473
      %v2475 = vpop.xlane.xlu0 %2474
      %v2476 = vrcp.pop %v2430
      %v2477 = vrcp.pop %v2433
      %v2478 = vrcp.pop %v2436
      %v2479 = vrcp.pop %v2439
      %v2480 = vrcp.pop %v2442
      %v2481 = vrcp.pop %v2445
      %v2482 = vrcp.pop %v2448
      %v2483 = vrcp.pop %v2451
      %v2484 = vrcp.pop %v2454
      %v2485 = vrcp.pop %v2457
      %v2486 = vrcp.pop %v2460
      %v2487 = vrcp.pop %v2463
      %v2488 = vrcp.pop %v2466
      %v2489 = vrcp.pop %v2469
      %v2490 = vrcp.pop %v2472
      %v2491 = vrcp.pop %v2475
      %v2492 = vmul.f32 %v2397, %v2476
      %v2493 = vmul.f32 %v2399, %v2477
      %v2494 = vmul.f32 %v2401, %v2478
      %v2495 = vmul.f32 %v2403, %v2479
      %v2496 = vmul.f32 %v2405, %v2480
      %v2497 = vmul.f32 %v2407, %v2481
      %v2498 = vmul.f32 %v2409, %v2482
      %v2499 = vmul.f32 %v2411, %v2483
      %v2500 = vmul.f32 %v2413, %v2484
      %v2501 = vmul.f32 %v2415, %v2485
      %v2502 = vmul.f32 %v2417, %v2486
      %v2503 = vmul.f32 %v2419, %v2487
      %v2504 = vmul.f32 %v2421, %v2488
      %v2505 = vmul.f32 %v2423, %v2489
      %v2506 = vmul.f32 %v2425, %v2490
      %v2507 = vmul.f32 %v2427, %v2491
      %2508 = vrot.lane.b32.xlu0 %v712, 48
      %v2509 = vpop.permute.xlu0 %2508
      %2510 = vrot.lane.b32.xlu0 %v717, 48
      %v2511 = vpop.permute.xlu0 %2510
      %2512 = vrot.lane.b32.xlu0 %v722, 48
      %v2513 = vpop.permute.xlu0 %2512
      %2514 = vrot.lane.b32.xlu0 %v727, 48
      %v2515 = vpop.permute.xlu0 %2514
      %v2521 = vsel %vm332, %v2492, 0
      %v2524 = vsel %vm332, %v2493, 0
      %v2527 = vsel %vm332, %v2494, 0
      %v2530 = vsel %vm332, %v2495, 0
      %2532 = vmatprep.subr.mxu0 0.0
      %2533 = vmatpush1.msra.mxu0 %v2509
      %2534 = vmatprep.subr.mxu0 0.0
      %2535 = vmatpush1.msra.mxu0 %v2511
      %2536 = vmatprep.subr.mxu0 0.0
      %2537 = vmatpush1.msra.mxu0 %v2513
      %2538 = vmatprep.subr.mxu0 0.0
      %2539 = vmatpush1.msra.mxu0 %v2515
      %2540 = vmatprep.subr.mxu0 0.0
      %2541 = vmatpush1.msra.mxu0 0.0
      %2542 = vmatprep.subr.mxu0 0.0
      %2543 = vmatpush1.msra.mxu0 0.0
      %2544 = vmatprep.subr.mxu0 0.0
      %2545 = vmatpush1.msra.mxu0 0.0
      %2546 = vmatprep.subr.mxu0 0.0
      %2547 = vmatpush1.msra.mxu0 0.0
      %2548 = vmatprep.subr.mxu0 0.0
      %2549 = vmatpush1.msra.mxu0 0.0
      %2550 = vmatprep.subr.mxu0 0.0
      %2551 = vmatpush1.msra.mxu0 0.0
      %2552 = vmatprep.subr.mxu0 0.0
      %2553 = vmatpush1.msra.mxu0 0.0
      %2554 = vmatprep.subr.mxu0 0.0
      %2555 = vmatpush1.msra.mxu0 0.0
      %2556 = vmatprep.subr.mxu0 0.0
      %2557 = vmatpush1.msra.mxu0 0.0
      %2558 = vmatprep.subr.mxu0 0.0
      %2559 = vmatpush1.msra.mxu0 0.0
      %2560 = vmatprep.subr.mxu0 0.0
      %2561 = vmatpush1.msra.mxu0 0.0
      %2562 = vmatprep.subr.mxu0 0.0
      %2563 = vmatpush1.msra.mxu0 0.0
      %2564 = vmatprep.subr.mxu0 0.0
      %2565 = vmatpush1.msra.mxu0 0.0
      %2566 = vmatprep.subr.mxu0 0.0
      %2567 = vmatpush1.msra.mxu0 0.0
      %2568 = vmatprep.subr.mxu0 0.0
      %2569 = vmatpush1.msra.mxu0 0.0
      %2570 = vmatprep.subr.mxu0 0.0
      %2571 = vmatpush1.msra.mxu0 0.0
      %2572 = vmatprep.subr.mxu0 0.0
      %2573 = vmatpush1.msra.mxu0 0.0
      %2574 = vmatprep.subr.mxu0 0.0
      %2575 = vmatpush1.msra.mxu0 0.0
      %2576 = vmatprep.subr.mxu0 0.0
      %2577 = vmatpush1.msra.mxu0 0.0
      %2578 = vmatprep.subr.mxu0 0.0
      %2579 = vmatpush1.msra.mxu0 0.0
      %2580 = vmatprep.subr.mxu0 0.0
      %2581 = vmatpush1.msra.mxu0 0.0
      %2582 = vmatprep.subr.mxu0 0.0
      %2583 = vmatpush1.msra.mxu0 0.0
      %2584 = vmatprep.subr.mxu0 0.0
      %2585 = vmatpush1.msra.mxu0 0.0
      %2586 = vmatprep.subr.mxu0 0.0
      %2587 = vmatpush1.msra.mxu0 0.0
      %2588 = vmatprep.subr.mxu0 0.0
      %2589 = vmatpush1.msra.mxu0 0.0
      %2590 = vmatprep.subr.mxu0 0.0
      %2591 = vmatpush1.msra.mxu0 0.0
      %2592 = vmatprep.subr.mxu0 0.0
      %2593 = vmatpush1.msra.mxu0 0.0
      %2594 = vmatprep.subr.mxu0 0.0
      %2595 = vmatpush1.msra.mxu0 0.0
      %2596 = vmatprep.mubr.f32.mxu0 0.0
      %2597 = vmatmul.mubr.f32.gmra.mrb[0].mxu0 %v2521
      %v2598 = vpop.f32.mrb[0].mxu0
      %v2599 = vadd.f32 0.0, %v2598
      %v2600 = vpop.f32.mrb[0].mxu0
      %2601 = vmatprep.mubr.f32.mxu0 0.0
      %2602 = vmatmul.mubr.f32.gmra.mrb[0].mxu0 %v2524
      %v2603 = vpop.f32.mrb[0].mxu0
      %v2604 = vadd.f32 0.0, %v2603
      %v2605 = vpop.f32.mrb[0].mxu0
      %2606 = vmatprep.mubr.f32.mxu0 0.0
      %2607 = vmatmul.mubr.f32.gmra.mrb[0].mxu0 %v2527
      %v2608 = vpop.f32.mrb[0].mxu0
      %v2609 = vadd.f32 0.0, %v2608
      %v2610 = vpop.f32.mrb[0].mxu0
      %2611 = vmatprep.mubr.f32.mxu0 0.0
      %2612 = vmatmul.mubr.f32.gmra.mrb[0].mxu0 %v2530
      %v2613 = vpop.f32.mrb[0].mxu0
      %v2614 = vadd.f32 0.0, %v2613
      %v2615 = vpop.f32.mrb[0].mxu0
      %2616 = vdwg.mxu0
      %2617 = vrot.lane.b32.xlu0 %v732, 48
      %v2618 = vpop.permute.xlu0 %2617
      %2619 = vrot.lane.b32.xlu0 %v737, 48
      %v2620 = vpop.permute.xlu0 %2619
      %2621 = vrot.lane.b32.xlu0 %v742, 48
      %v2622 = vpop.permute.xlu0 %2621
      %2623 = vrot.lane.b32.xlu0 %v747, 48
      %v2624 = vpop.permute.xlu0 %2623
      %v2630 = vsel %vm332, %v2496, 0
      %v2633 = vsel %vm332, %v2497, 0
      %v2636 = vsel %vm332, %v2498, 0
      %v2639 = vsel %vm332, %v2499, 0
      %2641 = vmatprep.subr.mxu0 0.0
      %2642 = vmatpush1.msra.mxu0 %v2618
      %2643 = vmatprep.subr.mxu0 0.0
      %2644 = vmatpush1.msra.mxu0 %v2620
      %2645 = vmatprep.subr.mxu0 0.0
      %2646 = vmatpush1.msra.mxu0 %v2622
      %2647 = vmatprep.subr.mxu0 0.0
      %2648 = vmatpush1.msra.mxu0 %v2624
      %2649 = vmatprep.subr.mxu0 0.0
      %2650 = vmatpush1.msra.mxu0 0.0
      %2651 = vmatprep.subr.mxu0 0.0
      %2652 = vmatpush1.msra.mxu0 0.0
      %2653 = vmatprep.subr.mxu0 0.0
      %2654 = vmatpush1.msra.mxu0 0.0
      %2655 = vmatprep.subr.mxu0 0.0
      %2656 = vmatpush1.msra.mxu0 0.0
      %2657 = vmatprep.subr.mxu0 0.0
      %2658 = vmatpush1.msra.mxu0 0.0
      %2659 = vmatprep.subr.mxu0 0.0
      %2660 = vmatpush1.msra.mxu0 0.0
      %2661 = vmatprep.subr.mxu0 0.0
      %2662 = vmatpush1.msra.mxu0 0.0
      %2663 = vmatprep.subr.mxu0 0.0
      %2664 = vmatpush1.msra.mxu0 0.0
      %2665 = vmatprep.subr.mxu0 0.0
      %2666 = vmatpush1.msra.mxu0 0.0
      %2667 = vmatprep.subr.mxu0 0.0
      %2668 = vmatpush1.msra.mxu0 0.0
      %2669 = vmatprep.subr.mxu0 0.0
      %2670 = vmatpush1.msra.mxu0 0.0
      %2671 = vmatprep.subr.mxu0 0.0
      %2672 = vmatpush1.msra.mxu0 0.0
      %2673 = vmatprep.subr.mxu0 0.0
      %2674 = vmatpush1.msra.mxu0 0.0
      %2675 = vmatprep.subr.mxu0 0.0
      %2676 = vmatpush1.msra.mxu0 0.0
      %2677 = vmatprep.subr.mxu0 0.0
      %2678 = vmatpush1.msra.mxu0 0.0
      %2679 = vmatprep.subr.mxu0 0.0
      %2680 = vmatpush1.msra.mxu0 0.0
      %2681 = vmatprep.subr.mxu0 0.0
      %2682 = vmatpush1.msra.mxu0 0.0
      %2683 = vmatprep.subr.mxu0 0.0
      %2684 = vmatpush1.msra.mxu0 0.0
      %2685 = vmatprep.subr.mxu0 0.0
      %2686 = vmatpush1.msra.mxu0 0.0
      %2687 = vmatprep.subr.mxu0 0.0
      %2688 = vmatpush1.msra.mxu0 0.0
      %2689 = vmatprep.subr.mxu0 0.0
      %2690 = vmatpush1.msra.mxu0 0.0
      %2691 = vmatprep.subr.mxu0 0.0
      %2692 = vmatpush1.msra.mxu0 0.0
      %2693 = vmatprep.subr.mxu0 0.0
      %2694 = vmatpush1.msra.mxu0 0.0
      %2695 = vmatprep.subr.mxu0 0.0
      %2696 = vmatpush1.msra.mxu0 0.0
      %2697 = vmatprep.subr.mxu0 0.0
      %2698 = vmatpush1.msra.mxu0 0.0
      %2699 = vmatprep.subr.mxu0 0.0
      %2700 = vmatpush1.msra.mxu0 0.0
      %2701 = vmatprep.subr.mxu0 0.0
      %2702 = vmatpush1.msra.mxu0 0.0
      %2703 = vmatprep.subr.mxu0 0.0
      %2704 = vmatpush1.msra.mxu0 0.0
      %2705 = vmatprep.mubr.f32.mxu0 0.0
      %2706 = vmatmul.mubr.f32.gmra.mrb[0].mxu0 %v2630
      %v2707 = vpop.f32.mrb[0].mxu0
      %v2708 = vadd.f32 0.0, %v2707
      %v2709 = vpop.f32.mrb[0].mxu0
      %2710 = vmatprep.mubr.f32.mxu0 0.0
      %2711 = vmatmul.mubr.f32.gmra.mrb[0].mxu0 %v2633
      %v2712 = vpop.f32.mrb[0].mxu0
      %v2713 = vadd.f32 0.0, %v2712
      %v2714 = vpop.f32.mrb[0].mxu0
      %2715 = vmatprep.mubr.f32.mxu0 0.0
      %2716 = vmatmul.mubr.f32.gmra.mrb[0].mxu0 %v2636
      %v2717 = vpop.f32.mrb[0].mxu0
      %v2718 = vadd.f32 0.0, %v2717
      %v2719 = vpop.f32.mrb[0].mxu0
      %2720 = vmatprep.mubr.f32.mxu0 0.0
      %2721 = vmatmul.mubr.f32.gmra.mrb[0].mxu0 %v2639
      %v2722 = vpop.f32.mrb[0].mxu0
      %v2723 = vadd.f32 0.0, %v2722
      %v2724 = vpop.f32.mrb[0].mxu0
      %2725 = vdwg.mxu0
      %2726 = vrot.lane.b32.xlu0 %v752, 48
      %v2727 = vpop.permute.xlu0 %2726
      %2728 = vrot.lane.b32.xlu0 %v757, 48
      %v2729 = vpop.permute.xlu0 %2728
      %2730 = vrot.lane.b32.xlu0 %v762, 48
      %v2731 = vpop.permute.xlu0 %2730
      %2732 = vrot.lane.b32.xlu0 %v767, 48
      %v2733 = vpop.permute.xlu0 %2732
      %v2739 = vsel %vm332, %v2500, 0
      %v2742 = vsel %vm332, %v2501, 0
      %v2745 = vsel %vm332, %v2502, 0
      %v2748 = vsel %vm332, %v2503, 0
      %2750 = vmatprep.subr.mxu0 0.0
      %2751 = vmatpush1.msra.mxu0 %v2727
      %2752 = vmatprep.subr.mxu0 0.0
      %2753 = vmatpush1.msra.mxu0 %v2729
      %2754 = vmatprep.subr.mxu0 0.0
      %2755 = vmatpush1.msra.mxu0 %v2731
      %2756 = vmatprep.subr.mxu0 0.0
      %2757 = vmatpush1.msra.mxu0 %v2733
      %2758 = vmatprep.subr.mxu0 0.0
      %2759 = vmatpush1.msra.mxu0 0.0
      %2760 = vmatprep.subr.mxu0 0.0
      %2761 = vmatpush1.msra.mxu0 0.0
      %2762 = vmatprep.subr.mxu0 0.0
      %2763 = vmatpush1.msra.mxu0 0.0
      %2764 = vmatprep.subr.mxu0 0.0
      %2765 = vmatpush1.msra.mxu0 0.0
      %2766 = vmatprep.subr.mxu0 0.0
      %2767 = vmatpush1.msra.mxu0 0.0
      %2768 = vmatprep.subr.mxu0 0.0
      %2769 = vmatpush1.msra.mxu0 0.0
      %2770 = vmatprep.subr.mxu0 0.0
      %2771 = vmatpush1.msra.mxu0 0.0
      %2772 = vmatprep.subr.mxu0 0.0
      %2773 = vmatpush1.msra.mxu0 0.0
      %2774 = vmatprep.subr.mxu0 0.0
      %2775 = vmatpush1.msra.mxu0 0.0
      %2776 = vmatprep.subr.mxu0 0.0
      %2777 = vmatpush1.msra.mxu0 0.0
      %2778 = vmatprep.subr.mxu0 0.0
      %2779 = vmatpush1.msra.mxu0 0.0
      %2780 = vmatprep.subr.mxu0 0.0
      %2781 = vmatpush1.msra.mxu0 0.0
      %2782 = vmatprep.subr.mxu0 0.0
      %2783 = vmatpush1.msra.mxu0 0.0
      %2784 = vmatprep.subr.mxu0 0.0
      %2785 = vmatpush1.msra.mxu0 0.0
      %2786 = vmatprep.subr.mxu0 0.0
      %2787 = vmatpush1.msra.mxu0 0.0
      %2788 = vmatprep.subr.mxu0 0.0
      %2789 = vmatpush1.msra.mxu0 0.0
      %2790 = vmatprep.subr.mxu0 0.0
      %2791 = vmatpush1.msra.mxu0 0.0
      %2792 = vmatprep.subr.mxu0 0.0
      %2793 = vmatpush1.msra.mxu0 0.0
      %2794 = vmatprep.subr.mxu0 0.0
      %2795 = vmatpush1.msra.mxu0 0.0
      %2796 = vmatprep.subr.mxu0 0.0
      %2797 = vmatpush1.msra.mxu0 0.0
      %2798 = vmatprep.subr.mxu0 0.0
      %2799 = vmatpush1.msra.mxu0 0.0
      %2800 = vmatprep.subr.mxu0 0.0
      %2801 = vmatpush1.msra.mxu0 0.0
      %2802 = vmatprep.subr.mxu0 0.0
      %2803 = vmatpush1.msra.mxu0 0.0
      %2804 = vmatprep.subr.mxu0 0.0
      %2805 = vmatpush1.msra.mxu0 0.0
      %2806 = vmatprep.subr.mxu0 0.0
      %2807 = vmatpush1.msra.mxu0 0.0
      %2808 = vmatprep.subr.mxu0 0.0
      %2809 = vmatpush1.msra.mxu0 0.0
      %2810 = vmatprep.subr.mxu0 0.0
      %2811 = vmatpush1.msra.mxu0 0.0
      %2812 = vmatprep.subr.mxu0 0.0
      %2813 = vmatpush1.msra.mxu0 0.0
      %2814 = vmatprep.mubr.f32.mxu0 0.0
      %2815 = vmatmul.mubr.f32.gmra.mrb[0].mxu0 %v2739
      %v2816 = vpop.f32.mrb[0].mxu0
      %v2817 = vadd.f32 0.0, %v2816
      %v2818 = vpop.f32.mrb[0].mxu0
      %2819 = vmatprep.mubr.f32.mxu0 0.0
      %2820 = vmatmul.mubr.f32.gmra.mrb[0].mxu0 %v2742
      %v2821 = vpop.f32.mrb[0].mxu0
      %v2822 = vadd.f32 0.0, %v2821
      %v2823 = vpop.f32.mrb[0].mxu0
      %2824 = vmatprep.mubr.f32.mxu0 0.0
      %2825 = vmatmul.mubr.f32.gmra.mrb[0].mxu0 %v2745
      %v2826 = vpop.f32.mrb[0].mxu0
      %v2827 = vadd.f32 0.0, %v2826
      %v2828 = vpop.f32.mrb[0].mxu0
      %2829 = vmatprep.mubr.f32.mxu0 0.0
      %2830 = vmatmul.mubr.f32.gmra.mrb[0].mxu0 %v2748
      %v2831 = vpop.f32.mrb[0].mxu0
      %v2832 = vadd.f32 0.0, %v2831
      %v2833 = vpop.f32.mrb[0].mxu0
      %2834 = vdwg.mxu0
      %2835 = vrot.lane.b32.xlu0 %v772, 48
      %v2836 = vpop.permute.xlu0 %2835
      %2837 = vrot.lane.b32.xlu0 %v777, 48
      %v2838 = vpop.permute.xlu0 %2837
      %2839 = vrot.lane.b32.xlu0 %v782, 48
      %v2840 = vpop.permute.xlu0 %2839
      %2841 = vrot.lane.b32.xlu0 %v787, 48
      %v2842 = vpop.permute.xlu0 %2841
      %v2848 = vsel %vm332, %v2504, 0
      %v2851 = vsel %vm332, %v2505, 0
      %v2854 = vsel %vm332, %v2506, 0
      %v2857 = vsel %vm332, %v2507, 0
      %2859 = vmatprep.subr.mxu0 0.0
      %2860 = vmatpush1.msra.mxu0 %v2836
      %2861 = vmatprep.subr.mxu0 0.0
      %2862 = vmatpush1.msra.mxu0 %v2838
      %2863 = vmatprep.subr.mxu0 0.0
      %2864 = vmatpush1.msra.mxu0 %v2840
      %2865 = vmatprep.subr.mxu0 0.0
      %2866 = vmatpush1.msra.mxu0 %v2842
      %2867 = vmatprep.subr.mxu0 0.0
      %2868 = vmatpush1.msra.mxu0 0.0
      %2869 = vmatprep.subr.mxu0 0.0
      %2870 = vmatpush1.msra.mxu0 0.0
      %2871 = vmatprep.subr.mxu0 0.0
      %2872 = vmatpush1.msra.mxu0 0.0
      %2873 = vmatprep.subr.mxu0 0.0
      %2874 = vmatpush1.msra.mxu0 0.0
      %2875 = vmatprep.subr.mxu0 0.0
      %2876 = vmatpush1.msra.mxu0 0.0
      %2877 = vmatprep.subr.mxu0 0.0
      %2878 = vmatpush1.msra.mxu0 0.0
      %2879 = vmatprep.subr.mxu0 0.0
      %2880 = vmatpush1.msra.mxu0 0.0
      %2881 = vmatprep.subr.mxu0 0.0
      %2882 = vmatpush1.msra.mxu0 0.0
      %2883 = vmatprep.subr.mxu0 0.0
      %2884 = vmatpush1.msra.mxu0 0.0
      %2885 = vmatprep.subr.mxu0 0.0
      %2886 = vmatpush1.msra.mxu0 0.0
      %2887 = vmatprep.subr.mxu0 0.0
      %2888 = vmatpush1.msra.mxu0 0.0
      %2889 = vmatprep.subr.mxu0 0.0
      %2890 = vmatpush1.msra.mxu0 0.0
      %2891 = vmatprep.subr.mxu0 0.0
      %2892 = vmatpush1.msra.mxu0 0.0
      %2893 = vmatprep.subr.mxu0 0.0
      %2894 = vmatpush1.msra.mxu0 0.0
      %2895 = vmatprep.subr.mxu0 0.0
      %2896 = vmatpush1.msra.mxu0 0.0
      %2897 = vmatprep.subr.mxu0 0.0
      %2898 = vmatpush1.msra.mxu0 0.0
      %2899 = vmatprep.subr.mxu0 0.0
      %2900 = vmatpush1.msra.mxu0 0.0
      %2901 = vmatprep.subr.mxu0 0.0
      %2902 = vmatpush1.msra.mxu0 0.0
      %2903 = vmatprep.subr.mxu0 0.0
      %2904 = vmatpush1.msra.mxu0 0.0
      %2905 = vmatprep.subr.mxu0 0.0
      %2906 = vmatpush1.msra.mxu0 0.0
      %2907 = vmatprep.subr.mxu0 0.0
      %2908 = vmatpush1.msra.mxu0 0.0
      %2909 = vmatprep.subr.mxu0 0.0
      %2910 = vmatpush1.msra.mxu0 0.0
      %2911 = vmatprep.subr.mxu0 0.0
      %2912 = vmatpush1.msra.mxu0 0.0
      %2913 = vmatprep.subr.mxu0 0.0
      %2914 = vmatpush1.msra.mxu0 0.0
      %2915 = vmatprep.subr.mxu0 0.0
      %2916 = vmatpush1.msra.mxu0 0.0
      %2917 = vmatprep.subr.mxu0 0.0
      %2918 = vmatpush1.msra.mxu0 0.0
      %2919 = vmatprep.subr.mxu0 0.0
      %2920 = vmatpush1.msra.mxu0 0.0
      %2921 = vmatprep.subr.mxu0 0.0
      %2922 = vmatpush1.msra.mxu0 0.0
      %2923 = vmatprep.mubr.f32.mxu0 0.0
      %2924 = vmatmul.mubr.f32.gmra.mrb[0].mxu0 %v2848
      %v2925 = vpop.f32.mrb[0].mxu0
      %v2926 = vadd.f32 0.0, %v2925
      %v2927 = vpop.f32.mrb[0].mxu0
      %2928 = vmatprep.mubr.f32.mxu0 0.0
      %2929 = vmatmul.mubr.f32.gmra.mrb[0].mxu0 %v2851
      %v2930 = vpop.f32.mrb[0].mxu0
      %v2931 = vadd.f32 0.0, %v2930
      %v2932 = vpop.f32.mrb[0].mxu0
      %2933 = vmatprep.mubr.f32.mxu0 0.0
      %2934 = vmatmul.mubr.f32.gmra.mrb[0].mxu0 %v2854
      %v2935 = vpop.f32.mrb[0].mxu0
      %v2936 = vadd.f32 0.0, %v2935
      %v2937 = vpop.f32.mrb[0].mxu0
      %2938 = vmatprep.mubr.f32.mxu0 0.0
      %2939 = vmatmul.mubr.f32.gmra.mrb[0].mxu0 %v2857
      %v2940 = vpop.f32.mrb[0].mxu0
      %v2941 = vadd.f32 0.0, %v2940
      %v2942 = vpop.f32.mrb[0].mxu0
      %2943 = vdwg.mxu0
      %2960 = vrot.lane.b32.xlu0 %v2599, 16
      %v2961 = vpop.permute.xlu0 %2960
      %2962 = vrot.lane.b32.xlu0 %v2604, 16
      %v2963 = vpop.permute.xlu0 %2962
      %2964 = vrot.lane.b32.xlu0 %v2609, 16
      %v2965 = vpop.permute.xlu0 %2964
      %2966 = vrot.lane.b32.xlu0 %v2614, 16
      %v2967 = vpop.permute.xlu0 %2966
      %2968 = vrot.lane.b32.xlu0 %v2708, 16
      %v2969 = vpop.permute.xlu0 %2968
      %2970 = vrot.lane.b32.xlu0 %v2713, 16
      %v2971 = vpop.permute.xlu0 %2970
      %2972 = vrot.lane.b32.xlu0 %v2718, 16
      %v2973 = vpop.permute.xlu0 %2972
      %2974 = vrot.lane.b32.xlu0 %v2723, 16
      %v2975 = vpop.permute.xlu0 %2974
      %2976 = vrot.lane.b32.xlu0 %v2817, 16
      %v2977 = vpop.permute.xlu0 %2976
      %2978 = vrot.lane.b32.xlu0 %v2822, 16
      %v2979 = vpop.permute.xlu0 %2978
      %2980 = vrot.lane.b32.xlu0 %v2827, 16
      %v2981 = vpop.permute.xlu0 %2980
      %2982 = vrot.lane.b32.xlu0 %v2832, 16
      %v2983 = vpop.permute.xlu0 %2982
      %2984 = vrot.lane.b32.xlu0 %v2926, 16
      %v2985 = vpop.permute.xlu0 %2984
      %2986 = vrot.lane.b32.xlu0 %v2931, 16
      %v2987 = vpop.permute.xlu0 %2986
      %2988 = vrot.lane.b32.xlu0 %v2936, 16
      %v2989 = vpop.permute.xlu0 %2988
      %2990 = vrot.lane.b32.xlu0 %v2941, 16
      %v2991 = vpop.permute.xlu0 %2990
      %v3008 = vsel %vm806, %v1514, %v2961
      %v3009 = vsel %vm806, %v1519, %v2963
      %v3010 = vsel %vm806, %v1524, %v2965
      %v3011 = vsel %vm806, %v1529, %v2967
      %v3012 = vsel %vm806, %v1623, %v2969
      %v3013 = vsel %vm806, %v1628, %v2971
      %v3014 = vsel %vm806, %v1633, %v2973
      %v3015 = vsel %vm806, %v1638, %v2975
      %v3016 = vsel %vm806, %v1732, %v2977
      %v3017 = vsel %vm806, %v1737, %v2979
      %v3018 = vsel %vm806, %v1742, %v2981
      %v3019 = vsel %vm806, %v1747, %v2983
      %v3020 = vsel %vm806, %v1841, %v2985
      %v3021 = vsel %vm806, %v1846, %v2987
      %v3022 = vsel %vm806, %v1851, %v2989
      %v3023 = vsel %vm806, %v1856, %v2991
      %v3024 = vld [vmem:[%s5] sm:$0xff]
      %v3025 = vld [vmem:[%s5 + $0x8] sm:$0xff]
      %v3026 = vld [vmem:[%s5 + $0x10] sm:$0xff]
      %v3027 = vld [vmem:[%s5 + $0x18] sm:$0xff]
      %v3028 = vld [vmem:[%s6] sm:$0x1]
      %v3030 = vlaneseq
      %v3031 = vshrl.u32 %v3030, 7
      %v3032 = vsub.s32 0, %v3031
      %v3033 = vrot.slane %v3028, %v3032
      %v3036 = vsel %vm332, %v3008, 0
      %v3039 = vsel %vm332, %v3009, 0
      %v3042 = vsel %vm332, %v3010, 0
      %v3045 = vsel %vm332, %v3011, 0
      %v3048 = vsel %vm332, %v3012, 0
      %v3051 = vsel %vm332, %v3013, 0
      %v3054 = vsel %vm332, %v3014, 0
      %v3057 = vsel %vm332, %v3015, 0
      %v3060 = vsel %vm332, %v3016, 0
      %v3063 = vsel %vm332, %v3017, 0
      %v3066 = vsel %vm332, %v3018, 0
      %v3069 = vsel %vm332, %v3019, 0
      %v3072 = vsel %vm332, %v3020, 0
      %v3075 = vsel %vm332, %v3021, 0
      %v3078 = vsel %vm332, %v3022, 0
      %v3081 = vsel %vm332, %v3023, 0
      %3083 = vmatprep.subr.mxu0 0.0
      %3084 = vmatpush1.msra.mxu0 %v3024
      %3085 = vmatprep.subr.mxu0 0.0
      %3086 = vmatpush1.msra.mxu0 %v3025
      %3087 = vmatprep.subr.mxu0 0.0
      %3088 = vmatpush1.msra.mxu0 %v3026
      %3089 = vmatprep.subr.mxu0 0.0
      %3090 = vmatpush1.msra.mxu0 %v3027
      %3091 = vmatprep.subr.mxu0 0.0
      %3092 = vmatpush1.msra.mxu0 0.0
      %3093 = vmatprep.subr.mxu0 0.0
      %3094 = vmatpush1.msra.mxu0 0.0
      %3095 = vmatprep.subr.mxu0 0.0
      %3096 = vmatpush1.msra.mxu0 0.0
      %3097 = vmatprep.subr.mxu0 0.0
      %3098 = vmatpush1.msra.mxu0 0.0
      %3099 = vmatprep.subr.mxu0 0.0
      %3100 = vmatpush1.msra.mxu0 0.0
      %3101 = vmatprep.subr.mxu0 0.0
      %3102 = vmatpush1.msra.mxu0 0.0
      %3103 = vmatprep.subr.mxu0 0.0
      %3104 = vmatpush1.msra.mxu0 0.0
      %3105 = vmatprep.subr.mxu0 0.0
      %3106 = vmatpush1.msra.mxu0 0.0
      %3107 = vmatprep.subr.mxu0 0.0
      %3108 = vmatpush1.msra.mxu0 0.0
      %3109 = vmatprep.subr.mxu0 0.0
      %3110 = vmatpush1.msra.mxu0 0.0
      %3111 = vmatprep.subr.mxu0 0.0
      %3112 = vmatpush1.msra.mxu0 0.0
      %3113 = vmatprep.subr.mxu0 0.0
      %3114 = vmatpush1.msra.mxu0 0.0
      %3115 = vmatprep.subr.mxu0 0.0
      %3116 = vmatpush1.msra.mxu0 0.0
      %3117 = vmatprep.subr.mxu0 0.0
      %3118 = vmatpush1.msra.mxu0 0.0
      %3119 = vmatprep.subr.mxu0 0.0
      %3120 = vmatpush1.msra.mxu0 0.0
      %3121 = vmatprep.subr.mxu0 0.0
      %3122 = vmatpush1.msra.mxu0 0.0
      %3123 = vmatprep.subr.mxu0 0.0
      %3124 = vmatpush1.msra.mxu0 0.0
      %3125 = vmatprep.subr.mxu0 0.0
      %3126 = vmatpush1.msra.mxu0 0.0
      %3127 = vmatprep.subr.mxu0 0.0
      %3128 = vmatpush1.msra.mxu0 0.0
      %3129 = vmatprep.subr.mxu0 0.0
      %3130 = vmatpush1.msra.mxu0 0.0
      %3131 = vmatprep.subr.mxu0 0.0
      %3132 = vmatpush1.msra.mxu0 0.0
      %3133 = vmatprep.subr.mxu0 0.0
      %3134 = vmatpush1.msra.mxu0 0.0
      %3135 = vmatprep.subr.mxu0 0.0
      %3136 = vmatpush1.msra.mxu0 0.0
      %3137 = vmatprep.subr.mxu0 0.0
      %3138 = vmatpush1.msra.mxu0 0.0
      %3139 = vmatprep.subr.mxu0 0.0
      %3140 = vmatpush1.msra.mxu0 0.0
      %3141 = vmatprep.subr.mxu0 0.0
      %3142 = vmatpush1.msra.mxu0 0.0
      %3143 = vmatprep.subr.mxu0 0.0
      %3144 = vmatpush1.msra.mxu0 0.0
      %3145 = vmatprep.subr.mxu0 0.0
      %3146 = vmatpush1.msra.mxu0 0.0
      %3147 = vmatprep.mubr.f32.mxu0 0.0
      %3148 = vmatmul.mubr.f32.gmra.mrb[0].mxu0 %v3036
      %v3149 = vpop.f32.mrb[0].mxu0
      %v3150 = vadd.f32 %v3033, %v3149
      %v3151 = vpop.f32.mrb[0].mxu0
      %3152 = vmatprep.mubr.f32.mxu0 0.0
      %3153 = vmatmul.mubr.f32.gmra.mrb[0].mxu0 %v3039
      %v3154 = vpop.f32.mrb[0].mxu0
      %v3155 = vadd.f32 %v3033, %v3154
      %v3156 = vpop.f32.mrb[0].mxu0
      %3157 = vmatprep.mubr.f32.mxu0 0.0
      %3158 = vmatmul.mubr.f32.gmra.mrb[0].mxu0 %v3042
      %v3159 = vpop.f32.mrb[0].mxu0
      %v3160 = vadd.f32 %v3033, %v3159
      %v3161 = vpop.f32.mrb[0].mxu0
      %3162 = vmatprep.mubr.f32.mxu0 0.0
      %3163 = vmatmul.mubr.f32.gmra.mrb[0].mxu0 %v3045
      %v3164 = vpop.f32.mrb[0].mxu0
      %v3165 = vadd.f32 %v3033, %v3164
      %v3166 = vpop.f32.mrb[0].mxu0
      %3167 = vmatprep.mubr.f32.mxu0 0.0
      %3168 = vmatmul.mubr.f32.gmra.mrb[0].mxu0 %v3048
      %v3169 = vpop.f32.mrb[0].mxu0
      %v3170 = vadd.f32 %v3033, %v3169
      %v3171 = vpop.f32.mrb[0].mxu0
      %3172 = vmatprep.mubr.f32.mxu0 0.0
      %3173 = vmatmul.mubr.f32.gmra.mrb[0].mxu0 %v3051
      %v3174 = vpop.f32.mrb[0].mxu0
      %v3175 = vadd.f32 %v3033, %v3174
      %v3176 = vpop.f32.mrb[0].mxu0
      %3177 = vmatprep.mubr.f32.mxu0 0.0
      %3178 = vmatmul.mubr.f32.gmra.mrb[0].mxu0 %v3054
      %v3179 = vpop.f32.mrb[0].mxu0
      %v3180 = vadd.f32 %v3033, %v3179
      %v3181 = vpop.f32.mrb[0].mxu0
      %3182 = vmatprep.mubr.f32.mxu0 0.0
      %3183 = vmatmul.mubr.f32.gmra.mrb[0].mxu0 %v3057
      %v3184 = vpop.f32.mrb[0].mxu0
      %v3185 = vadd.f32 %v3033, %v3184
      %v3186 = vpop.f32.mrb[0].mxu0
      %3187 = vmatprep.mubr.f32.mxu0 0.0
      %3188 = vmatmul.mubr.f32.gmra.mrb[0].mxu0 %v3060
      %v3189 = vpop.f32.mrb[0].mxu0
      %v3190 = vadd.f32 %v3033, %v3189
      %v3191 = vpop.f32.mrb[0].mxu0
      %3192 = vmatprep.mubr.f32.mxu0 0.0
      %3193 = vmatmul.mubr.f32.gmra.mrb[0].mxu0 %v3063
      %v3194 = vpop.f32.mrb[0].mxu0
      %v3195 = vadd.f32 %v3033, %v3194
      %v3196 = vpop.f32.mrb[0].mxu0
      %3197 = vmatprep.mubr.f32.mxu0 0.0
      %3198 = vmatmul.mubr.f32.gmra.mrb[0].mxu0 %v3066
      %v3199 = vpop.f32.mrb[0].mxu0
      %v3200 = vadd.f32 %v3033, %v3199
      %v3201 = vpop.f32.mrb[0].mxu0
      %3202 = vmatprep.mubr.f32.mxu0 0.0
      %3203 = vmatmul.mubr.f32.gmra.mrb[0].mxu0 %v3069
      %v3204 = vpop.f32.mrb[0].mxu0
      %v3205 = vadd.f32 %v3033, %v3204
      %v3206 = vpop.f32.mrb[0].mxu0
      %3207 = vmatprep.mubr.f32.mxu0 0.0
      %3208 = vmatmul.mubr.f32.gmra.mrb[0].mxu0 %v3072
      %v3209 = vpop.f32.mrb[0].mxu0
      %v3210 = vadd.f32 %v3033, %v3209
      %v3211 = vpop.f32.mrb[0].mxu0
      %3212 = vmatprep.mubr.f32.mxu0 0.0
      %3213 = vmatmul.mubr.f32.gmra.mrb[0].mxu0 %v3075
      %v3214 = vpop.f32.mrb[0].mxu0
      %v3215 = vadd.f32 %v3033, %v3214
      %v3216 = vpop.f32.mrb[0].mxu0
      %3217 = vmatprep.mubr.f32.mxu0 0.0
      %3218 = vmatmul.mubr.f32.gmra.mrb[0].mxu0 %v3078
      %v3219 = vpop.f32.mrb[0].mxu0
      %v3220 = vadd.f32 %v3033, %v3219
      %v3221 = vpop.f32.mrb[0].mxu0
      %3222 = vmatprep.mubr.f32.mxu0 0.0
      %3223 = vmatmul.mubr.f32.gmra.mrb[0].mxu0 %v3081
      %v3224 = vpop.f32.mrb[0].mxu0
      %v3225 = vadd.f32 %v3033, %v3224
      %v3226 = vpop.f32.mrb[0].mxu0
      %3227 = vdwg.mxu0
      %v3228 = vadd.f32 %v314, %v3150
      %v3229 = vadd.f32 %v315, %v3155
      %v3230 = vadd.f32 %v316, %v3160
      %v3231 = vadd.f32 %v317, %v3165
      %v3232 = vadd.f32 %v318, %v3170
      %v3233 = vadd.f32 %v319, %v3175
      %v3234 = vadd.f32 %v320, %v3180
      %v3235 = vadd.f32 %v321, %v3185
      %v3236 = vadd.f32 %v322, %v3190
      %v3237 = vadd.f32 %v323, %v3195
      %v3238 = vadd.f32 %v324, %v3200
      %v3239 = vadd.f32 %v325, %v3205
      %v3240 = vadd.f32 %v326, %v3210
      %v3241 = vadd.f32 %v327, %v3215
      %v3242 = vadd.f32 %v328, %v3220
      %v3243 = vadd.f32 %v329, %v3225
      %3244 = vst.msk [vmem:[%s312] sm:$0xff] %vm332, %v3228
      %3245 = vst.msk [vmem:[%s312 + $0x8] sm:$0xff] %vm332, %v3229
      %3246 = vst.msk [vmem:[%s312 + $0x10] sm:$0xff] %vm332, %v3230
      %3247 = vst.msk [vmem:[%s312 + $0x18] sm:$0xff] %vm332, %v3231
      %3248 = vst.msk [vmem:[%s312 + $0x20] sm:$0xff] %vm332, %v3232
      %3249 = vst.msk [vmem:[%s312 + $0x28] sm:$0xff] %vm332, %v3233
      %3250 = vst.msk [vmem:[%s312 + $0x30] sm:$0xff] %vm332, %v3234
      %3251 = vst.msk [vmem:[%s312 + $0x38] sm:$0xff] %vm332, %v3235
      %3252 = vst.msk [vmem:[%s312 + $0x40] sm:$0xff] %vm332, %v3236
      %3253 = vst.msk [vmem:[%s312 + $0x48] sm:$0xff] %vm332, %v3237
      %3254 = vst.msk [vmem:[%s312 + $0x50] sm:$0xff] %vm332, %v3238
      %3255 = vst.msk [vmem:[%s312 + $0x58] sm:$0xff] %vm332, %v3239
      %3256 = vst.msk [vmem:[%s312 + $0x60] sm:$0xff] %vm332, %v3240
      %3257 = vst.msk [vmem:[%s312 + $0x68] sm:$0xff] %vm332, %v3241
      %3258 = vst.msk [vmem:[%s312 + $0x70] sm:$0xff] %vm332, %v3242
      %3259 = vst.msk [vmem:[%s312 + $0x78] sm:$0xff] %vm332, %v3243
      %s3260 = smul.u32 4, %s19
      %p3261 = scmp.lt.s32.totalorder %s3260, 7
      %s3262 = scalar_select %p3261, %s3260, 7
      %s3263 = smul.addr %s3262, 4
      %s3264 = smul.addr %s3263, 8
      %s3265 = scalar_lea.vmem %s8, %s3264
      // Predicated region
      $region53: #{_lambda_.3} parent=51 // pred_check
        %p3266 = pneg %p210
      $region54: #{_lambda_.3} parent=51 // pred_check_branch
        %3268 = sbr.rel (%p3266) target = $region56
      $region55: #{_lambda_.3} parent=51 // pred_region
        %s3269 = smul.u32 4, %s19
      $region56: #{_lambda_.3} parent=51 // pred_fallthru
        _
    $region52: #{_lambda_.3} parent=5 // pred_fallthru
      _
    %p3270 = scmp.le.s32.totalorder 2, %s14
    // Predicated region
    $region57: #{_lambda_.3} parent=5 // pred_check
      %p3271 = pneg %p3270
    $region58: #{_lambda_.3} parent=5 // pred_check_branch
      %3273 = sbr.rel (%p3271) target = $region60
    $region59: #{_lambda_.3} parent=5 // pred_region
      %s3274 = ssub.s32 %s14, 2
      // Predicated region
      $region61: #{_lambda_.3} parent=59 // pred_check
        %p3275 = pneg %p216
      $region62: #{_lambda_.3} parent=59 // pred_check_branch
        %3277 = sbr.rel (%p3275) target = $region64
      $region63: #{_lambda_.3} parent=59 // pred_region
        %s3278 = smul.u32 4, %s20
        %p3279 = scmp.lt.s32.totalorder %s3278, 7
        %s3280 = scalar_select %p3279, %s3278, 7
        %s3281 = smul.addr %s3280, 4
        %s3282 = smul.addr %s3281, 8
        %s3283 = scalar_lea.vmem %s8, %s3282
      $region64: #{_lambda_.3} parent=59 // pred_fallthru
        _
    $region60: #{_lambda_.3} parent=5 // pred_fallthru
      _
  $region6: #{_lambda_.3} parent=0 // loop_footer
    %s18 = sadd.s32 1, %s14
  $region7: #{_lambda_.3} parent=0 // loop_footer_branch
    %13 = sbr.rel target = $region3
  $region8: #{_lambda_.3} parent=0 // loop_exit
    _

// kernel: _lambda_.5
$region0: #{_lambda_.5}
  #allocation0 [shape = 'u32[]', space=smem, size = 0x4, offset = 0x4, fixed_abs, tag = 'smem constant byte address 0x4 - core index']
  #allocation1 [shape = 'u32[144,128]{1,0:T(1,128)}', space=vmem, size = 0x12000, scoped, tag = 'internal scratch']
  %s0 = inlined_call_operand.vmem [shape: f32[256,32], index: 0, kind: input, shape index: {}]
  %s1 = inlined_call_operand.vmem [shape: f32[1,32], index: 1, kind: input, shape index: {}]
  %s2 = inlined_call_operand.vmem [shape: f32[1,32], index: 2, kind: input, shape index: {}]
  %s3 = inlined_call_operand.vmem [shape: f32[32,64], index: 3, kind: input, shape index: {}]
  %s4 = inlined_call_operand.vmem [shape: f32[1,64], index: 4, kind: input, shape index: {}]
  %s5 = inlined_call_operand.vmem [shape: f32[64,32], index: 5, kind: input, shape index: {}]
  %s6 = inlined_call_operand.vmem [shape: f32[1,32], index: 6, kind: input, shape index: {}]
  %s7 = inlined_call_operand.hbm [shape: f32[256,32], index: 7, kind: output, shape index: {}]
  %s8 = sld [smem:[#allocation0]]
  $region61: #{_lambda_.5} parent=0
    _
  %s10 = ssub.s32 1, %s8
  %s11 = scalar_select 0, %s10, %s8
  $region1: #{_lambda_.5} parent=0
    #allocation2 [shape = 'u8[131072]{0}', space=vmem, size = 0x20000, scoped, tag = 'output window, operand 0']
    #allocation3 [shape = 's32[2]{0}', space=sflag, size = 0x8, scoped, tag = 'scoped memory for _lambda_.5']
    %12 = vsyncpa [#allocation3], 0
    %s13 = scalar_lea.sflag [#allocation3], 1
    %14 = vsyncpa %s13, 0
    loop: start=0, step=1, limit=4
    $region2: #{_lambda_.5} parent=1 // loop_pre_header
      _
    $region3: #{_lambda_.5} parent=1 // loop_header
      %s16 = sphi 0, %s20
      %p17 = scmp.ge.s32.totalorder %s16, 4
      %s26 = sphi 0, %s28
      %s29 = sphi 0, %s26
      %s30 = sphi 0, %s29
      %s46 = sphi 0, %s30
      %s50 = sphi 0, %s50
      %s52 = sphi 0, %s50
      %s53 = sphi 0, %s52
      %s67 = sphi 0, %s53
      %s71 = sphi 0, %s71
      %s73 = sphi 0, %s71
      %s74 = sphi 0, %s73
      %s88 = sphi 0, %s74
      %s92 = sphi 0, %s92
      %s94 = sphi 0, %s92
      %s95 = sphi 0, %s94
      %s109 = sphi 0, %s95
      %s113 = sphi 0, %s113
      %s115 = sphi 0, %s113
      %s116 = sphi 0, %s115
      %s130 = sphi 0, %s116
      %s134 = sphi 0, %s134
      %s136 = sphi 0, %s134
      %s137 = sphi 0, %s136
      %s151 = sphi 0, %s137
      %s155 = sphi 0, %s155
      %s157 = sphi 0, %s155
      %s158 = sphi 0, %s157
      %s172 = sphi 0, %s158
      %s178 = sphi 0, %s180
      %s181 = sphi 0, %s178
      %s182 = sphi 0, %s181
      %s198 = sphi 0, %s182
    $region4: #{_lambda_.5} parent=1 // loop_header_branch
      %19 = sbr.rel (%p17) target = $region8
    $region5: #{_lambda_.5} parent=1 // loop_body
      %s21 = ssub.s32 %s16, 1
      %s22 = ssub.s32 %s16, 2
      %s23 = sadd.s32 %s16, 1
      %s24 = ssub.s32 %s16, %s23
      %p25 = scmp.eq.s32.totalorder %s24, 0
      %s27 = sadd.s32 %s26, 1
      %s28 = scalar_select %p25, %s26, %s27
      %p31 = pneg %p25
      %p32 = scmp.eq.s32.totalorder %s16, 1
      %p33 = por %p31, %p32
      %p34 = scmp.ne.s32.totalorder %s26, %s29
      %p35 = scmp.eq.s32.totalorder %s16, 0
      %p36 = por %p34, %p35
      %p37 = scmp.ne.s32.totalorder %s26, %s29
      %p38 = scmp.eq.s32.totalorder %s21, 1
      %p39 = por %p37, %p38
      %p40 = scmp.ne.s32.totalorder %s29, %s30
      %p41 = scmp.eq.s32.totalorder %s21, 0
      %p42 = por %p40, %p41
      %p43 = scmp.ne.s32.totalorder %s29, %s30
      %p44 = scmp.eq.s32.totalorder %s22, 1
      %p45 = por %p43, %p44
      %p47 = scmp.ne.s32.totalorder %s30, %s46
      %p48 = scmp.eq.s32.totalorder %s22, 0
      %p49 = por %p47, %p48
      %s51 = sadd.s32 %s50, 1
      %p54 = scmp.eq.s32.totalorder %s16, 1
      %p55 = scmp.ne.s32.totalorder %s50, %s52
      %p56 = scmp.eq.s32.totalorder %s16, 0
      %p57 = por %p55, %p56
      %p58 = scmp.ne.s32.totalorder %s50, %s52
      %p59 = scmp.eq.s32.totalorder %s21, 1
      %p60 = por %p58, %p59
      %p61 = scmp.ne.s32.totalorder %s52, %s53
      %p62 = scmp.eq.s32.totalorder %s21, 0
      %p63 = por %p61, %p62
      %p64 = scmp.ne.s32.totalorder %s52, %s53
      %p65 = scmp.eq.s32.totalorder %s22, 1
      %p66 = por %p64, %p65
      %p68 = scmp.ne.s32.totalorder %s53, %s67
      %p69 = scmp.eq.s32.totalorder %s22, 0
      %p70 = por %p68, %p69
      %s72 = sadd.s32 %s71, 1
      %p75 = scmp.eq.s32.totalorder %s16, 1
      %p76 = scmp.ne.s32.totalorder %s71, %s73
      %p77 = scmp.eq.s32.totalorder %s16, 0
      %p78 = por %p76, %p77
      %p79 = scmp.ne.s32.totalorder %s71, %s73
      %p80 = scmp.eq.s32.totalorder %s21, 1
      %p81 = por %p79, %p80
      %p82 = scmp.ne.s32.totalorder %s73, %s74
      %p83 = scmp.eq.s32.totalorder %s21, 0
      %p84 = por %p82, %p83
      %p85 = scmp.ne.s32.totalorder %s73, %s74
      %p86 = scmp.eq.s32.totalorder %s22, 1
      %p87 = por %p85, %p86
      %p89 = scmp.ne.s32.totalorder %s74, %s88
      %p90 = scmp.eq.s32.totalorder %s22, 0
      %p91 = por %p89, %p90
      %s93 = sadd.s32 %s92, 1
      %p96 = scmp.eq.s32.totalorder %s16, 1
      %p97 = scmp.ne.s32.totalorder %s92, %s94
      %p98 = scmp.eq.s32.totalorder %s16, 0
      %p99 = por %p97, %p98
      %p100 = scmp.ne.s32.totalorder %s92, %s94
      %p101 = scmp.eq.s32.totalorder %s21, 1
      %p102 = por %p100, %p101
      %p103 = scmp.ne.s32.totalorder %s94, %s95
      %p104 = scmp.eq.s32.totalorder %s21, 0
      %p105 = por %p103, %p104
      %p106 = scmp.ne.s32.totalorder %s94, %s95
      %p107 = scmp.eq.s32.totalorder %s22, 1
      %p108 = por %p106, %p107
      %p110 = scmp.ne.s32.totalorder %s95, %s109
      %p111 = scmp.eq.s32.totalorder %s22, 0
      %p112 = por %p110, %p111
      %s114 = sadd.s32 %s113, 1
      %p117 = scmp.eq.s32.totalorder %s16, 1
      %p118 = scmp.ne.s32.totalorder %s113, %s115
      %p119 = scmp.eq.s32.totalorder %s16, 0
      %p120 = por %p118, %p119
      %p121 = scmp.ne.s32.totalorder %s113, %s115
      %p122 = scmp.eq.s32.totalorder %s21, 1
      %p123 = por %p121, %p122
      %p124 = scmp.ne.s32.totalorder %s115, %s116
      %p125 = scmp.eq.s32.totalorder %s21, 0
      %p126 = por %p124, %p125
      %p127 = scmp.ne.s32.totalorder %s115, %s116
      %p128 = scmp.eq.s32.totalorder %s22, 1
      %p129 = por %p127, %p128
      %p131 = scmp.ne.s32.totalorder %s116, %s130
      %p132 = scmp.eq.s32.totalorder %s22, 0
      %p133 = por %p131, %p132
      %s135 = sadd.s32 %s134, 1
      %p138 = scmp.eq.s32.totalorder %s16, 1
      %p139 = scmp.ne.s32.totalorder %s134, %s136
      %p140 = scmp.eq.s32.totalorder %s16, 0
      %p141 = por %p139, %p140
      %p142 = scmp.ne.s32.totalorder %s134, %s136
      %p143 = scmp.eq.s32.totalorder %s21, 1
      %p144 = por %p142, %p143
      %p145 = scmp.ne.s32.totalorder %s136, %s137
      %p146 = scmp.eq.s32.totalorder %s21, 0
      %p147 = por %p145, %p146
      %p148 = scmp.ne.s32.totalorder %s136, %s137
      %p149 = scmp.eq.s32.totalorder %s22, 1
      %p150 = por %p148, %p149
      %p152 = scmp.ne.s32.totalorder %s137, %s151
      %p153 = scmp.eq.s32.totalorder %s22, 0
      %p154 = por %p152, %p153
      %s156 = sadd.s32 %s155, 1
      %p159 = scmp.eq.s32.totalorder %s16, 1
      %p160 = scmp.ne.s32.totalorder %s155, %s157
      %p161 = scmp.eq.s32.totalorder %s16, 0
      %p162 = por %p160, %p161
      %p163 = scmp.ne.s32.totalorder %s155, %s157
      %p164 = scmp.eq.s32.totalorder %s21, 1
      %p165 = por %p163, %p164
      %p166 = scmp.ne.s32.totalorder %s157, %s158
      %p167 = scmp.eq.s32.totalorder %s21, 0
      %p168 = por %p166, %p167
      %p169 = scmp.ne.s32.totalorder %s157, %s158
      %p170 = scmp.eq.s32.totalorder %s22, 1
      %p171 = por %p169, %p170
      %p173 = scmp.ne.s32.totalorder %s158, %s172
      %p174 = scmp.eq.s32.totalorder %s22, 0
      %p175 = por %p173, %p174
      %s176 = ssub.s32 %s16, %s23
      %p177 = scmp.eq.s32.totalorder %s176, 0
      %s179 = sadd.s32 %s178, 1
      %s180 = scalar_select %p177, %s178, %s179
      %p183 = pneg %p177
      %p184 = scmp.eq.s32.totalorder %s16, 1
      %p185 = por %p183, %p184
      %p186 = scmp.ne.s32.totalorder %s178, %s181
      %p187 = scmp.eq.s32.totalorder %s16, 0
      %p188 = por %p186, %p187
      %p189 = scmp.ne.s32.totalorder %s178, %s181
      %p190 = scmp.eq.s32.totalorder %s21, 1
      %p191 = por %p189, %p190
      %p192 = scmp.ne.s32.totalorder %s181, %s182
      %p193 = scmp.eq.s32.totalorder %s21, 0
      %p194 = por %p192, %p193
      %p195 = scmp.ne.s32.totalorder %s181, %s182
      %p196 = scmp.eq.s32.totalorder %s22, 1
      %p197 = por %p195, %p196
      %p199 = scmp.ne.s32.totalorder %s182, %s198
      %p200 = scmp.eq.s32.totalorder %s22, 0
      %p201 = por %p199, %p200
      %p202 = scmp.le.s32.totalorder 1, %s16
      %p203 = scmp.lt.s32.totalorder %s16, 3
      %p204 = pnand %p202, %p203
      %p205 = pneg %p204
      // Predicated region
      $region9: #{_lambda_.5} parent=5 // pred_check
        _
      $region10: #{_lambda_.5} parent=5 // pred_check_branch
        %207 = sbr.rel (%p204) target = $region12
      $region11: #{_lambda_.5} parent=5 // pred_region
        %s208 = ssub.s32 %s16, 1
        // Predicated region
        $region13: #{_lambda_.5} parent=11 // pred_check
          %p209 = pneg %p63
        $region14: #{_lambda_.5} parent=11 // pred_check_branch
          %211 = sbr.rel (%p209) target = $region16
        $region15: #{_lambda_.5} parent=11 // pred_region
          _
        $region16: #{_lambda_.5} parent=11 // pred_fallthru
          _
        // Predicated region
        $region17: #{_lambda_.5} parent=11 // pred_check
          %p212 = pneg %p84
        $region18: #{_lambda_.5} parent=11 // pred_check_branch
          %214 = sbr.rel (%p212) target = $region20
        $region19: #{_lambda_.5} parent=11 // pred_region
          _
        $region20: #{_lambda_.5} parent=11 // pred_fallthru
          _
        // Predicated region
        $region21: #{_lambda_.5} parent=11 // pred_check
          %p215 = pneg %p105
        $region22: #{_lambda_.5} parent=11 // pred_check_branch
          %217 = sbr.rel (%p215) target = $region24
        $region23: #{_lambda_.5} parent=11 // pred_region
          _
        $region24: #{_lambda_.5} parent=11 // pred_fallthru
          _
        // Predicated region
        $region25: #{_lambda_.5} parent=11 // pred_check
          %p218 = pneg %p126
        $region26: #{_lambda_.5} parent=11 // pred_check_branch
          %220 = sbr.rel (%p218) target = $region28
        $region27: #{_lambda_.5} parent=11 // pred_region
          _
        $region28: #{_lambda_.5} parent=11 // pred_fallthru
          _
        // Predicated region
        $region29: #{_lambda_.5} parent=11 // pred_check
          %p221 = pneg %p147
        $region30: #{_lambda_.5} parent=11 // pred_check_branch
          %223 = sbr.rel (%p221) target = $region32
        $region31: #{_lambda_.5} parent=11 // pred_region
          _
        $region32: #{_lambda_.5} parent=11 // pred_fallthru
          _
        // Predicated region
        $region33: #{_lambda_.5} parent=11 // pred_check
          %p224 = pneg %p168
        $region34: #{_lambda_.5} parent=11 // pred_check_branch
          %226 = sbr.rel (%p224) target = $region36
        $region35: #{_lambda_.5} parent=11 // pred_region
          _
        $region36: #{_lambda_.5} parent=11 // pred_fallthru
          _
      $region12: #{_lambda_.5} parent=5 // pred_fallthru
        _
      %p227 = scmp.lt.s32.totalorder %s16, 2
      // Predicated region
      $region37: #{_lambda_.5} parent=5 // pred_check
        %p228 = pneg %p227
      $region38: #{_lambda_.5} parent=5 // pred_check_branch
        %230 = sbr.rel (%p228) target = $region40
      $region39: #{_lambda_.5} parent=5 // pred_region
        // Predicated region
        $region41: #{_lambda_.5} parent=39 // pred_check
          %p231 = pneg %p36
        $region42: #{_lambda_.5} parent=39 // pred_check_branch
          %233 = sbr.rel (%p231) target = $region44
        $region43: #{_lambda_.5} parent=39 // pred_region
          %s234 = smul.u32 16, %s16
          %p235 = scmp.lt.s32.totalorder %s234, 31
          %s236 = scalar_select %p235, %s234, 31
          %s237 = smul.addr %s236, 8
          %s238 = scalar_lea.vmem %s0, %s237
          %s239 = smul.u32 16, %s16
        $region44: #{_lambda_.5} parent=39 // pred_fallthru
          _
      $region40: #{_lambda_.5} parent=5 // pred_fallthru
        _
      %p240 = scmp.le.s32.totalorder 1, %s16
      %p241 = scmp.lt.s32.totalorder %s16, 3
      %p242 = pnand %p240, %p241
      %p243 = pneg %p242
      // Predicated region
      $region45: #{_lambda_.5} parent=5 // pred_check
        _
      $region46: #{_lambda_.5} parent=5 // pred_check_branch
        %245 = sbr.rel (%p242) target = $region48
      $region47: #{_lambda_.5} parent=5 // pred_region
        %s246 = ssub.s32 %s16, 1
        %s247 = smul.u32 16, %s21
        %p248 = scmp.lt.s32.totalorder %s247, 31
        %s249 = scalar_select %p248, %s247, 31
        %s250 = smul.addr %s249, 8
        %s251 = scalar_lea.vmem %s0, %s250
        %p252 = pneg %p42
        %p253 = pneg %p39
        %p254 = pneg %p63
        %p255 = pneg %p60
        %p256 = pneg %p84
        %p257 = pneg %p81
        %p258 = pneg %p105
        %p259 = pneg %p102
        %p260 = pneg %p126
        %p261 = pneg %p123
        %p262 = pneg %p147
        %p263 = pneg %p144
        %p264 = pneg %p168
        %p265 = pneg %p165
        %p266 = pneg %p194
        %p267 = pneg %p191
        %s268 = sand.u32 %s181, 1
        %s269 = scalar_lea.sflag [#allocation3], %s268
        %s270 = sand.u32 %s181, 1
        %s271 = smul.addr %s270, 128
        %s272 = scalar_lea.vmem [#allocation2], %s271
        %s273 = smul.u32 16, %s21
        %p274 = scmp.lt.s32.totalorder %s273, 31
        %s275 = scalar_select %p274, %s273, 31
        %s276 = smul.addr %s275, 8
        %s277 = scalar_lea.vmem %s0, %s276
        %s278 = smul.u32 16, %s21
        %s279 = smul.u32 16, %s21
        %v280 = vld [vmem:[%s277] sm:$0xff]
        %v281 = vld [vmem:[%s277 + $0x8] sm:$0xff]
        %v282 = vld [vmem:[%s277 + $0x10] sm:$0xff]
        %v283 = vld [vmem:[%s277 + $0x18] sm:$0xff]
        %v284 = vld [vmem:[%s277 + $0x20] sm:$0xff]
        %v285 = vld [vmem:[%s277 + $0x28] sm:$0xff]
        %v286 = vld [vmem:[%s277 + $0x30] sm:$0xff]
        %v287 = vld [vmem:[%s277 + $0x38] sm:$0xff]
        %v288 = vld [vmem:[%s277 + $0x40] sm:$0xff]
        %v289 = vld [vmem:[%s277 + $0x48] sm:$0xff]
        %v290 = vld [vmem:[%s277 + $0x50] sm:$0xff]
        %v291 = vld [vmem:[%s277 + $0x58] sm:$0xff]
        %v292 = vld [vmem:[%s277 + $0x60] sm:$0xff]
        %v293 = vld [vmem:[%s277 + $0x68] sm:$0xff]
        %v294 = vld [vmem:[%s277 + $0x70] sm:$0xff]
        %v295 = vld [vmem:[%s277 + $0x78] sm:$0xff]
        %v296 = vld [vmem:[%s1] sm:$0x1]
        %v297 = vld [vmem:[%s2] sm:$0x1]
        %vm298 = vcmask 261120
        %v299 = vsel %vm298, %v280, 0.0
        %300 = vadd.xlane.f32.xlu0 %v299
        %v301 = vpop.xlane.xlu0 %300
        %v302 = vsel %vm298, %v281, 0.0
        %303 = vadd.xlane.f32.xlu0 %v302
        %v304 = vpop.xlane.xlu0 %303
        %v305 = vsel %vm298, %v282, 0.0
        %306 = vadd.xlane.f32.xlu0 %v305
        %v307 = vpop.xlane.xlu0 %306
        %v308 = vsel %vm298, %v283, 0.0
        %309 = vadd.xlane.f32.xlu0 %v308
        %v310 = vpop.xlane.xlu0 %309
        %v311 = vsel %vm298, %v284, 0.0
        %312 = vadd.xlane.f32.xlu0 %v311
        %v313 = vpop.xlane.xlu0 %312
        %v314 = vsel %vm298, %v285, 0.0
        %315 = vadd.xlane.f32.xlu0 %v314
        %v316 = vpop.xlane.xlu0 %315
        %v317 = vsel %vm298, %v286, 0.0
        %318 = vadd.xlane.f32.xlu0 %v317
        %v319 = vpop.xlane.xlu0 %318
        %v320 = vsel %vm298, %v287, 0.0
        %321 = vadd.xlane.f32.xlu0 %v320
        %v322 = vpop.xlane.xlu0 %321
        %v323 = vsel %vm298, %v288, 0.0
        %324 = vadd.xlane.f32.xlu0 %v323
        %v325 = vpop.xlane.xlu0 %324
        %v326 = vsel %vm298, %v289, 0.0
        %327 = vadd.xlane.f32.xlu0 %v326
        %v328 = vpop.xlane.xlu0 %327
        %v329 = vsel %vm298, %v290, 0.0
        %330 = vadd.xlane.f32.xlu0 %v329
        %v331 = vpop.xlane.xlu0 %330
        %v332 = vsel %vm298, %v291, 0.0
        %333 = vadd.xlane.f32.xlu0 %v332
        %v334 = vpop.xlane.xlu0 %333
        %v335 = vsel %vm298, %v292, 0.0
        %336 = vadd.xlane.f32.xlu0 %v335
        %v337 = vpop.xlane.xlu0 %336
        %v338 = vsel %vm298, %v293, 0.0
        %339 = vadd.xlane.f32.xlu0 %v338
        %v340 = vpop.xlane.xlu0 %339
        %v341 = vsel %vm298, %v294, 0.0
        %342 = vadd.xlane.f32.xlu0 %v341
        %v343 = vpop.xlane.xlu0 %342
        %v344 = vsel %vm298, %v295, 0.0
        %345 = vadd.xlane.f32.xlu0 %v344
        %v346 = vpop.xlane.xlu0 %345
        %v347 = vrcp.pop 32.0
        %v348 = vmul.f32 %v301, %v347
        %v349 = vmul.f32 %v304, %v347
        %v350 = vmul.f32 %v307, %v347
        %v351 = vmul.f32 %v310, %v347
        %v352 = vmul.f32 %v313, %v347
        %v353 = vmul.f32 %v316, %v347
        %v354 = vmul.f32 %v319, %v347
        %v355 = vmul.f32 %v322, %v347
        %v356 = vmul.f32 %v325, %v347
        %v357 = vmul.f32 %v328, %v347
        %v358 = vmul.f32 %v331, %v347
        %v359 = vmul.f32 %v334, %v347
        %v360 = vmul.f32 %v337, %v347
        %v361 = vmul.f32 %v340, %v347
        %v362 = vmul.f32 %v343, %v347
        %v363 = vmul.f32 %v346, %v347
        %v364 = vsub.f32 %v280, %v348
        %v365 = vsub.f32 %v281, %v349
        %v366 = vsub.f32 %v282, %v350
        %v367 = vsub.f32 %v283, %v351
        %v368 = vsub.f32 %v284, %v352
        %v369 = vsub.f32 %v285, %v353
        %v370 = vsub.f32 %v286, %v354
        %v371 = vsub.f32 %v287, %v355
        %v372 = vsub.f32 %v288, %v356
        %v373 = vsub.f32 %v289, %v357
        %v374 = vsub.f32 %v290, %v358
        %v375 = vsub.f32 %v291, %v359
        %v376 = vsub.f32 %v292, %v360
        %v377 = vsub.f32 %v293, %v361
        %v378 = vsub.f32 %v294, %v362
        %v379 = vsub.f32 %v295, %v363
        %v380 = vmul.f32 %v364, %v364
        %v381 = vmul.f32 %v365, %v365
        %v382 = vmul.f32 %v366, %v366
        %v383 = vmul.f32 %v367, %v367
        %v384 = vmul.f32 %v368, %v368
        %v385 = vmul.f32 %v369, %v369
        %v386 = vmul.f32 %v370, %v370
        %v387 = vmul.f32 %v371, %v371
        %v388 = vmul.f32 %v372, %v372
        %v389 = vmul.f32 %v373, %v373
        %v390 = vmul.f32 %v374, %v374
        %v391 = vmul.f32 %v375, %v375
        %v392 = vmul.f32 %v376, %v376
        %v393 = vmul.f32 %v377, %v377
        %v394 = vmul.f32 %v378, %v378
        %v395 = vmul.f32 %v379, %v379
        %v396 = vsel %vm298, %v380, 0.0
        %397 = vadd.xlane.f32.xlu0 %v396
        %v398 = vpop.xlane.xlu0 %397
        %v399 = vsel %vm298, %v381, 0.0
        %400 = vadd.xlane.f32.xlu0 %v399
        %v401 = vpop.xlane.xlu0 %400
        %v402 = vsel %vm298, %v382, 0.0
        %403 = vadd.xlane.f32.xlu0 %v402
        %v404 = vpop.xlane.xlu0 %403
        %v405 = vsel %vm298, %v383, 0.0
        %406 = vadd.xlane.f32.xlu0 %v405
        %v407 = vpop.xlane.xlu0 %406
        %v408 = vsel %vm298, %v384, 0.0
        %409 = vadd.xlane.f32.xlu0 %v408
        %v410 = vpop.xlane.xlu0 %409
        %v411 = vsel %vm298, %v385, 0.0
        %412 = vadd.xlane.f32.xlu0 %v411
        %v413 = vpop.xlane.xlu0 %412
        %v414 = vsel %vm298, %v386, 0.0
        %415 = vadd.xlane.f32.xlu0 %v414
        %v416 = vpop.xlane.xlu0 %415
        %v417 = vsel %vm298, %v387, 0.0
        %418 = vadd.xlane.f32.xlu0 %v417
        %v419 = vpop.xlane.xlu0 %418
        %v420 = vsel %vm298, %v388, 0.0
        %421 = vadd.xlane.f32.xlu0 %v420
        %v422 = vpop.xlane.xlu0 %421
        %v423 = vsel %vm298, %v389, 0.0
        %424 = vadd.xlane.f32.xlu0 %v423
        %v425 = vpop.xlane.xlu0 %424
        %v426 = vsel %vm298, %v390, 0.0
        %427 = vadd.xlane.f32.xlu0 %v426
        %v428 = vpop.xlane.xlu0 %427
        %v429 = vsel %vm298, %v391, 0.0
        %430 = vadd.xlane.f32.xlu0 %v429
        %v431 = vpop.xlane.xlu0 %430
        %v432 = vsel %vm298, %v392, 0.0
        %433 = vadd.xlane.f32.xlu0 %v432
        %v434 = vpop.xlane.xlu0 %433
        %v435 = vsel %vm298, %v393, 0.0
        %436 = vadd.xlane.f32.xlu0 %v435
        %v437 = vpop.xlane.xlu0 %436
        %v438 = vsel %vm298, %v394, 0.0
        %439 = vadd.xlane.f32.xlu0 %v438
        %v440 = vpop.xlane.xlu0 %439
        %v441 = vsel %vm298, %v395, 0.0
        %442 = vadd.xlane.f32.xlu0 %v441
        %v443 = vpop.xlane.xlu0 %442
        %v444 = vmul.f32 %v398, %v347
        %v445 = vmul.f32 %v401, %v347
        %v446 = vmul.f32 %v404, %v347
        %v447 = vmul.f32 %v407, %v347
        %v448 = vmul.f32 %v410, %v347
        %v449 = vmul.f32 %v413, %v347
        %v450 = vmul.f32 %v416, %v347
        %v451 = vmul.f32 %v419, %v347
        %v452 = vmul.f32 %v422, %v347
        %v453 = vmul.f32 %v425, %v347
        %v454 = vmul.f32 %v428, %v347
        %v455 = vmul.f32 %v431, %v347
        %v456 = vmul.f32 %v434, %v347
        %v457 = vmul.f32 %v437, %v347
        %v458 = vmul.f32 %v440, %v347
        %v459 = vmul.f32 %v443, %v347
        %v460 = vadd.f32 %v444, 1e-05
        %v461 = vadd.f32 %v445, 1e-05
        %v462 = vadd.f32 %v446, 1e-05
        %v463 = vadd.f32 %v447, 1e-05
        %v464 = vadd.f32 %v448, 1e-05
        %v465 = vadd.f32 %v449, 1e-05
        %v466 = vadd.f32 %v450, 1e-05
        %v467 = vadd.f32 %v451, 1e-05
        %v468 = vadd.f32 %v452, 1e-05
        %v469 = vadd.f32 %v453, 1e-05
        %v470 = vadd.f32 %v454, 1e-05
        %v471 = vadd.f32 %v455, 1e-05
        %v472 = vadd.f32 %v456, 1e-05
        %v473 = vadd.f32 %v457, 1e-05
        %v474 = vadd.f32 %v458, 1e-05
        %v475 = vadd.f32 %v459, 1e-05
        %v476 = vrsqrt.pop %v460
        %v477 = vrsqrt.pop %v461
        %v478 = vrsqrt.pop %v462
        %v479 = vrsqrt.pop %v463
        %v480 = vrsqrt.pop %v464
        %v481 = vrsqrt.pop %v465
        %v482 = vrsqrt.pop %v466
        %v483 = vrsqrt.pop %v467
        %v484 = vrsqrt.pop %v468
        %v485 = vrsqrt.pop %v469
        %v486 = vrsqrt.pop %v470
        %v487 = vrsqrt.pop %v471
        %v488 = vrsqrt.pop %v472
        %v489 = vrsqrt.pop %v473
        %v490 = vrsqrt.pop %v474
        %v491 = vrsqrt.pop %v475
        %v492 = vmul.f32 %v364, %v476
        %v493 = vmul.f32 %v365, %v477
        %v494 = vmul.f32 %v366, %v478
        %v495 = vmul.f32 %v367, %v479
        %v496 = vmul.f32 %v368, %v480
        %v497 = vmul.f32 %v369, %v481
        %v498 = vmul.f32 %v370, %v482
        %v499 = vmul.f32 %v371, %v483
        %v500 = vmul.f32 %v372, %v484
        %v501 = vmul.f32 %v373, %v485
        %v502 = vmul.f32 %v374, %v486
        %v503 = vmul.f32 %v375, %v487
        %v504 = vmul.f32 %v376, %v488
        %v505 = vmul.f32 %v377, %v489
        %v506 = vmul.f32 %v378, %v490
        %v507 = vmul.f32 %v379, %v491
        %v509 = vlaneseq
        %v510 = vshrl.u32 %v509, 7
        %v511 = vsub.s32 0, %v510
        %v512 = vrot.slane %v296, %v511
        %v514 = vmul.f32 %v492, %v512
        %v515 = vmul.f32 %v493, %v512
        %v516 = vmul.f32 %v494, %v512
        %v517 = vmul.f32 %v495, %v512
        %v518 = vmul.f32 %v496, %v512
        %v519 = vmul.f32 %v497, %v512
        %v520 = vmul.f32 %v498, %v512
        %v521 = vmul.f32 %v499, %v512
        %v522 = vmul.f32 %v500, %v512
        %v523 = vmul.f32 %v501, %v512
        %v524 = vmul.f32 %v502, %v512
        %v525 = vmul.f32 %v503, %v512
        %v526 = vmul.f32 %v504, %v512
        %v527 = vmul.f32 %v505, %v512
        %v528 = vmul.f32 %v506, %v512
        %v529 = vmul.f32 %v507, %v512
        %v531 = vlaneseq
        %v532 = vshrl.u32 %v531, 7
        %v533 = vsub.s32 0, %v532
        %v534 = vrot.slane %v297, %v533
        %v536 = vadd.f32 %v514, %v534
        %v537 = vadd.f32 %v515, %v534
        %v538 = vadd.f32 %v516, %v534
        %v539 = vadd.f32 %v517, %v534
        %v540 = vadd.f32 %v518, %v534
        %v541 = vadd.f32 %v519, %v534
        %v542 = vadd.f32 %v520, %v534
        %v543 = vadd.f32 %v521, %v534
        %v544 = vadd.f32 %v522, %v534
        %v545 = vadd.f32 %v523, %v534
        %v546 = vadd.f32 %v524, %v534
        %v547 = vadd.f32 %v525, %v534
        %v548 = vadd.f32 %v526, %v534
        %v549 = vadd.f32 %v527, %v534
        %v550 = vadd.f32 %v528, %v534
        %v551 = vadd.f32 %v529, %v534
        %v552 = vld [vmem:[%s3] sm:$0xff]
        %v553 = vld [vmem:[%s3 + $0x8] sm:$0xff]
        %v554 = vld [vmem:[%s3 + $0x10] sm:$0xff]
        %v555 = vld [vmem:[%s3 + $0x18] sm:$0xff]
        %v556 = vld [vmem:[%s4] sm:$0x1]
        %v558 = vlaneseq
        %v559 = vshrl.u32 %v558, 7
        %v560 = vsub.s32 0, %v559
        %v561 = vrot.slane %v556, %v560
        %v564 = vsel %vm298, %v536, 0
        %v567 = vsel %vm298, %v537, 0
        %v570 = vsel %vm298, %v538, 0
        %v573 = vsel %vm298, %v539, 0
        %v576 = vsel %vm298, %v540, 0
        %v579 = vsel %vm298, %v541, 0
        %v582 = vsel %vm298, %v542, 0
        %v585 = vsel %vm298, %v543, 0
        %v588 = vsel %vm298, %v544, 0
        %v591 = vsel %vm298, %v545, 0
        %v594 = vsel %vm298, %v546, 0
        %v597 = vsel %vm298, %v547, 0
        %v600 = vsel %vm298, %v548, 0
        %v603 = vsel %vm298, %v549, 0
        %v606 = vsel %vm298, %v550, 0
        %v609 = vsel %vm298, %v551, 0
        %611 = vmatprep.subr.mxu0 0.0
        %612 = vmatpush1.msra.mxu0 %v552
        %613 = vmatprep.subr.mxu0 0.0
        %614 = vmatpush1.msra.mxu0 %v553
        %615 = vmatprep.subr.mxu0 0.0
        %616 = vmatpush1.msra.mxu0 %v554
        %617 = vmatprep.subr.mxu0 0.0
        %618 = vmatpush1.msra.mxu0 %v555
        %619 = vmatprep.subr.mxu0 0.0
        %620 = vmatpush1.msra.mxu0 0.0
        %621 = vmatprep.subr.mxu0 0.0
        %622 = vmatpush1.msra.mxu0 0.0
        %623 = vmatprep.subr.mxu0 0.0
        %624 = vmatpush1.msra.mxu0 0.0
        %625 = vmatprep.subr.mxu0 0.0
        %626 = vmatpush1.msra.mxu0 0.0
        %627 = vmatprep.subr.mxu0 0.0
        %628 = vmatpush1.msra.mxu0 0.0
        %629 = vmatprep.subr.mxu0 0.0
        %630 = vmatpush1.msra.mxu0 0.0
        %631 = vmatprep.subr.mxu0 0.0
        %632 = vmatpush1.msra.mxu0 0.0
        %633 = vmatprep.subr.mxu0 0.0
        %634 = vmatpush1.msra.mxu0 0.0
        %635 = vmatprep.subr.mxu0 0.0
        %636 = vmatpush1.msra.mxu0 0.0
        %637 = vmatprep.subr.mxu0 0.0
        %638 = vmatpush1.msra.mxu0 0.0
        %639 = vmatprep.subr.mxu0 0.0
        %640 = vmatpush1.msra.mxu0 0.0
        %641 = vmatprep.subr.mxu0 0.0
        %642 = vmatpush1.msra.mxu0 0.0
        %643 = vmatprep.subr.mxu0 0.0
        %644 = vmatpush1.msra.mxu0 0.0
        %645 = vmatprep.subr.mxu0 0.0
        %646 = vmatpush1.msra.mxu0 0.0
        %647 = vmatprep.subr.mxu0 0.0
        %648 = vmatpush1.msra.mxu0 0.0
        %649 = vmatprep.subr.mxu0 0.0
        %650 = vmatpush1.msra.mxu0 0.0
        %651 = vmatprep.subr.mxu0 0.0
        %652 = vmatpush1.msra.mxu0 0.0
        %653 = vmatprep.subr.mxu0 0.0
        %654 = vmatpush1.msra.mxu0 0.0
        %655 = vmatprep.subr.mxu0 0.0
        %656 = vmatpush1.msra.mxu0 0.0
        %657 = vmatprep.subr.mxu0 0.0
        %658 = vmatpush1.msra.mxu0 0.0
        %659 = vmatprep.subr.mxu0 0.0
        %660 = vmatpush1.msra.mxu0 0.0
        %661 = vmatprep.subr.mxu0 0.0
        %662 = vmatpush1.msra.mxu0 0.0
        %663 = vmatprep.subr.mxu0 0.0
        %664 = vmatpush1.msra.mxu0 0.0
        %665 = vmatprep.subr.mxu0 0.0
        %666 = vmatpush1.msra.mxu0 0.0
        %667 = vmatprep.subr.mxu0 0.0
        %668 = vmatpush1.msra.mxu0 0.0
        %669 = vmatprep.subr.mxu0 0.0
        %670 = vmatpush1.msra.mxu0 0.0
        %671 = vmatprep.subr.mxu0 0.0
        %672 = vmatpush1.msra.mxu0 0.0
        %673 = vmatprep.subr.mxu0 0.0
        %674 = vmatpush1.msra.mxu0 0.0
        %675 = vmatprep.mubr.f32.mxu0 0.0
        %676 = vmatmul.mubr.f32.gmra.mrb[0].mxu0 %v564
        %v677 = vpop.f32.mrb[0].mxu0
        %v678 = vadd.f32 %v561, %v677
        %v679 = vpop.f32.mrb[0].mxu0
        %680 = vmatprep.mubr.f32.mxu0 0.0
        %681 = vmatmul.mubr.f32.gmra.mrb[0].mxu0 %v567
        %v682 = vpop.f32.mrb[0].mxu0
        %v683 = vadd.f32 %v561, %v682
        %v684 = vpop.f32.mrb[0].mxu0
        %685 = vmatprep.mubr.f32.mxu0 0.0
        %686 = vmatmul.mubr.f32.gmra.mrb[0].mxu0 %v570
        %v687 = vpop.f32.mrb[0].mxu0
        %v688 = vadd.f32 %v561, %v687
        %v689 = vpop.f32.mrb[0].mxu0
        %690 = vmatprep.mubr.f32.mxu0 0.0
        %691 = vmatmul.mubr.f32.gmra.mrb[0].mxu0 %v573
        %v692 = vpop.f32.mrb[0].mxu0
        %v693 = vadd.f32 %v561, %v692
        %v694 = vpop.f32.mrb[0].mxu0
        %695 = vmatprep.mubr.f32.mxu0 0.0
        %696 = vmatmul.mubr.f32.gmra.mrb[0].mxu0 %v576
        %v697 = vpop.f32.mrb[0].mxu0
        %v698 = vadd.f32 %v561, %v697
        %v699 = vpop.f32.mrb[0].mxu0
        %700 = vmatprep.mubr.f32.mxu0 0.0
        %701 = vmatmul.mubr.f32.gmra.mrb[0].mxu0 %v579
        %v702 = vpop.f32.mrb[0].mxu0
        %v703 = vadd.f32 %v561, %v702
        %v704 = vpop.f32.mrb[0].mxu0
        %705 = vmatprep.mubr.f32.mxu0 0.0
        %706 = vmatmul.mubr.f32.gmra.mrb[0].mxu0 %v582
        %v707 = vpop.f32.mrb[0].mxu0
        %v708 = vadd.f32 %v561, %v707
        %v709 = vpop.f32.mrb[0].mxu0
        %710 = vmatprep.mubr.f32.mxu0 0.0
        %711 = vmatmul.mubr.f32.gmra.mrb[0].mxu0 %v585
        %v712 = vpop.f32.mrb[0].mxu0
        %v713 = vadd.f32 %v561, %v712
        %v714 = vpop.f32.mrb[0].mxu0
        %715 = vmatprep.mubr.f32.mxu0 0.0
        %716 = vmatmul.mubr.f32.gmra.mrb[0].mxu0 %v588
        %v717 = vpop.f32.mrb[0].mxu0
        %v718 = vadd.f32 %v561, %v717
        %v719 = vpop.f32.mrb[0].mxu0
        %720 = vmatprep.mubr.f32.mxu0 0.0
        %721 = vmatmul.mubr.f32.gmra.mrb[0].mxu0 %v591
        %v722 = vpop.f32.mrb[0].mxu0
        %v723 = vadd.f32 %v561, %v722
        %v724 = vpop.f32.mrb[0].mxu0
        %725 = vmatprep.mubr.f32.mxu0 0.0
        %726 = vmatmul.mubr.f32.gmra.mrb[0].mxu0 %v594
        %v727 = vpop.f32.mrb[0].mxu0
        %v728 = vadd.f32 %v561, %v727
        %v729 = vpop.f32.mrb[0].mxu0
        %730 = vmatprep.mubr.f32.mxu0 0.0
        %731 = vmatmul.mubr.f32.gmra.mrb[0].mxu0 %v597
        %v732 = vpop.f32.mrb[0].mxu0
        %v733 = vadd.f32 %v561, %v732
        %v734 = vpop.f32.mrb[0].mxu0
        %735 = vmatprep.mubr.f32.mxu0 0.0
        %736 = vmatmul.mubr.f32.gmra.mrb[0].mxu0 %v600
        %v737 = vpop.f32.mrb[0].mxu0
        %v738 = vadd.f32 %v561, %v737
        %v739 = vpop.f32.mrb[0].mxu0
        %740 = vmatprep.mubr.f32.mxu0 0.0
        %741 = vmatmul.mubr.f32.gmra.mrb[0].mxu0 %v603
        %v742 = vpop.f32.mrb[0].mxu0
        %v743 = vadd.f32 %v561, %v742
        %v744 = vpop.f32.mrb[0].mxu0
        %745 = vmatprep.mubr.f32.mxu0 0.0
        %746 = vmatmul.mubr.f32.gmra.mrb[0].mxu0 %v606
        %v747 = vpop.f32.mrb[0].mxu0
        %v748 = vadd.f32 %v561, %v747
        %v749 = vpop.f32.mrb[0].mxu0
        %750 = vmatprep.mubr.f32.mxu0 0.0
        %751 = vmatmul.mubr.f32.gmra.mrb[0].mxu0 %v609
        %v752 = vpop.f32.mrb[0].mxu0
        %v753 = vadd.f32 %v561, %v752
        %v754 = vpop.f32.mrb[0].mxu0
        %755 = vdwg.mxu0
        %v756 = vmul.f32 %v678, 0.5
        %v757 = vmul.f32 %v683, 0.5
        %v758 = vmul.f32 %v688, 0.5
        %v759 = vmul.f32 %v693, 0.5
        %v760 = vmul.f32 %v698, 0.5
        %v761 = vmul.f32 %v703, 0.5
        %v762 = vmul.f32 %v708, 0.5
        %v763 = vmul.f32 %v713, 0.5
        %v764 = vmul.f32 %v718, 0.5
        %v765 = vmul.f32 %v723, 0.5
        %v766 = vmul.f32 %v728, 0.5
        %v767 = vmul.f32 %v733, 0.5
        %v768 = vmul.f32 %v738, 0.5
        %v769 = vmul.f32 %v743, 0.5
        %v770 = vmul.f32 %v748, 0.5
        %v771 = vmul.f32 %v753, 0.5
        %v772 = vmul.f32 %v678, 0.044715
        %v773 = vmul.f32 %v683, 0.044715
        %v774 = vmul.f32 %v688, 0.044715
        %v775 = vmul.f32 %v693, 0.044715
        %v776 = vmul.f32 %v698, 0.044715
        %v777 = vmul.f32 %v703, 0.044715
        %v778 = vmul.f32 %v708, 0.044715
        %v779 = vmul.f32 %v713, 0.044715
        %v780 = vmul.f32 %v718, 0.044715
        %v781 = vmul.f32 %v723, 0.044715
        %v782 = vmul.f32 %v728, 0.044715
        %v783 = vmul.f32 %v733, 0.044715
        %v784 = vmul.f32 %v738, 0.044715
        %v785 = vmul.f32 %v743, 0.044715
        %v786 = vmul.f32 %v748, 0.044715
        %v787 = vmul.f32 %v753, 0.044715
        %v788 = vmul.f32 %v772, %v678
        %v789 = vmul.f32 %v773, %v683
        %v790 = vmul.f32 %v774, %v688
        %v791 = vmul.f32 %v775, %v693
        %v792 = vmul.f32 %v776, %v698
        %v793 = vmul.f32 %v777, %v703
        %v794 = vmul.f32 %v778, %v708
        %v795 = vmul.f32 %v779, %v713
        %v796 = vmul.f32 %v780, %v718
        %v797 = vmul.f32 %v781, %v723
        %v798 = vmul.f32 %v782, %v728
        %v799 = vmul.f32 %v783, %v733
        %v800 = vmul.f32 %v784, %v738
        %v801 = vmul.f32 %v785, %v743
        %v802 = vmul.f32 %v786, %v748
        %v803 = vmul.f32 %v787, %v753
        %v804 = vmul.f32 %v788, %v678
        %v805 = vmul.f32 %v789, %v683
        %v806 = vmul.f32 %v790, %v688
        %v807 = vmul.f32 %v791, %v693
        %v808 = vmul.f32 %v792, %v698
        %v809 = vmul.f32 %v793, %v703
        %v810 = vmul.f32 %v794, %v708
        %v811 = vmul.f32 %v795, %v713
        %v812 = vmul.f32 %v796, %v718
        %v813 = vmul.f32 %v797, %v723
        %v814 = vmul.f32 %v798, %v728
        %v815 = vmul.f32 %v799, %v733
        %v816 = vmul.f32 %v800, %v738
        %v817 = vmul.f32 %v801, %v743
        %v818 = vmul.f32 %v802, %v748
        %v819 = vmul.f32 %v803, %v753
        %v820 = vadd.f32 %v678, %v804
        %v821 = vadd.f32 %v683, %v805
        %v822 = vadd.f32 %v688, %v806
        %v823 = vadd.f32 %v693, %v807
        %v824 = vadd.f32 %v698, %v808
        %v825 = vadd.f32 %v703, %v809
        %v826 = vadd.f32 %v708, %v810
        %v827 = vadd.f32 %v713, %v811
        %v828 = vadd.f32 %v718, %v812
        %v829 = vadd.f32 %v723, %v813
        %v830 = vadd.f32 %v728, %v814
        %v831 = vadd.f32 %v733, %v815
        %v832 = vadd.f32 %v738, %v816
        %v833 = vadd.f32 %v743, %v817
        %v834 = vadd.f32 %v748, %v818
        %v835 = vadd.f32 %v753, %v819
        %v836 = vmul.f32 %v820, 0.7978846
        %v837 = vmul.f32 %v821, 0.7978846
        %v838 = vmul.f32 %v822, 0.7978846
        %v839 = vmul.f32 %v823, 0.7978846
        %v840 = vmul.f32 %v824, 0.7978846
        %v841 = vmul.f32 %v825, 0.7978846
        %v842 = vmul.f32 %v826, 0.7978846
        %v843 = vmul.f32 %v827, 0.7978846
        %v844 = vmul.f32 %v828, 0.7978846
        %v845 = vmul.f32 %v829, 0.7978846
        %v846 = vmul.f32 %v830, 0.7978846
        %v847 = vmul.f32 %v831, 0.7978846
        %v848 = vmul.f32 %v832, 0.7978846
        %v849 = vmul.f32 %v833, 0.7978846
        %v850 = vmul.f32 %v834, 0.7978846
        %v851 = vmul.f32 %v835, 0.7978846
        %v852 = vtanh.pop %v836
        %v853 = vtanh.pop %v837
        %v854 = vtanh.pop %v838
        %v855 = vtanh.pop %v839
        %v856 = vtanh.pop %v840
        %v857 = vtanh.pop %v841
        %v858 = vtanh.pop %v842
        %v859 = vtanh.pop %v843
        %v860 = vtanh.pop %v844
        %v861 = vtanh.pop %v845
        %v862 = vtanh.pop %v846
        %v863 = vtanh.pop %v847
        %v864 = vtanh.pop %v848
        %v865 = vtanh.pop %v849
        %v866 = vtanh.pop %v850
        %v867 = vtanh.pop %v851
        %v868 = vadd.f32 %v852, 1.0
        %v869 = vadd.f32 %v853, 1.0
        %v870 = vadd.f32 %v854, 1.0
        %v871 = vadd.f32 %v855, 1.0
        %v872 = vadd.f32 %v856, 1.0
        %v873 = vadd.f32 %v857, 1.0
        %v874 = vadd.f32 %v858, 1.0
        %v875 = vadd.f32 %v859, 1.0
        %v876 = vadd.f32 %v860, 1.0
        %v877 = vadd.f32 %v861, 1.0
        %v878 = vadd.f32 %v862, 1.0
        %v879 = vadd.f32 %v863, 1.0
        %v880 = vadd.f32 %v864, 1.0
        %v881 = vadd.f32 %v865, 1.0
        %v882 = vadd.f32 %v866, 1.0
        %v883 = vadd.f32 %v867, 1.0
        %v884 = vmul.f32 %v756, %v868
        %v885 = vmul.f32 %v757, %v869
        %v886 = vmul.f32 %v758, %v870
        %v887 = vmul.f32 %v759, %v871
        %v888 = vmul.f32 %v760, %v872
        %v889 = vmul.f32 %v761, %v873
        %v890 = vmul.f32 %v762, %v874
        %v891 = vmul.f32 %v763, %v875
        %v892 = vmul.f32 %v764, %v876
        %v893 = vmul.f32 %v765, %v877
        %v894 = vmul.f32 %v766, %v878
        %v895 = vmul.f32 %v767, %v879
        %v896 = vmul.f32 %v768, %v880
        %v897 = vmul.f32 %v769, %v881
        %v898 = vmul.f32 %v770, %v882
        %v899 = vmul.f32 %v771, %v883
        %v900 = vld [vmem:[%s5] sm:$0xff]
        %v901 = vld [vmem:[%s5 + $0x8] sm:$0xff]
        %v902 = vld [vmem:[%s5 + $0x10] sm:$0xff]
        %v903 = vld [vmem:[%s5 + $0x18] sm:$0xff]
        %v904 = vld [vmem:[%s5 + $0x20] sm:$0xff]
        %v905 = vld [vmem:[%s5 + $0x28] sm:$0xff]
        %v906 = vld [vmem:[%s5 + $0x30] sm:$0xff]
        %v907 = vld [vmem:[%s5 + $0x38] sm:$0xff]
        %v908 = vld [vmem:[%s6] sm:$0x1]
        %v910 = vlaneseq
        %v911 = vshrl.u32 %v910, 7
        %v912 = vsub.s32 0, %v911
        %v913 = vrot.slane %v908, %v912
        %vm915 = vcmask 523264
        %v917 = vsel %vm915, %v884, 0
        %v920 = vsel %vm915, %v885, 0
        %v923 = vsel %vm915, %v886, 0
        %v926 = vsel %vm915, %v887, 0
        %v929 = vsel %vm915, %v888, 0
        %v932 = vsel %vm915, %v889, 0
        %v935 = vsel %vm915, %v890, 0
        %v938 = vsel %vm915, %v891, 0
        %v941 = vsel %vm915, %v892, 0
        %v944 = vsel %vm915, %v893, 0
        %v947 = vsel %vm915, %v894, 0
        %v950 = vsel %vm915, %v895, 0
        %v953 = vsel %vm915, %v896, 0
        %v956 = vsel %vm915, %v897, 0
        %v959 = vsel %vm915, %v898, 0
        %v962 = vsel %vm915, %v899, 0
        %964 = vmatprep.subr.mxu0 0.0
        %965 = vmatpush1.msra.mxu0 %v900
        %966 = vmatprep.subr.mxu0 0.0
        %967 = vmatpush1.msra.mxu0 %v901
        %968 = vmatprep.subr.mxu0 0.0
        %969 = vmatpush1.msra.mxu0 %v902
        %970 = vmatprep.subr.mxu0 0.0
        %971 = vmatpush1.msra.mxu0 %v903
        %972 = vmatprep.subr.mxu0 0.0
        %973 = vmatpush1.msra.mxu0 %v904
        %974 = vmatprep.subr.mxu0 0.0
        %975 = vmatpush1.msra.mxu0 %v905
        %976 = vmatprep.subr.mxu0 0.0
        %977 = vmatpush1.msra.mxu0 %v906
        %978 = vmatprep.subr.mxu0 0.0
        %979 = vmatpush1.msra.mxu0 %v907
        %980 = vmatprep.subr.mxu0 0.0
        %981 = vmatpush1.msra.mxu0 0.0
        %982 = vmatprep.subr.mxu0 0.0
        %983 = vmatpush1.msra.mxu0 0.0
        %984 = vmatprep.subr.mxu0 0.0
        %985 = vmatpush1.msra.mxu0 0.0
        %986 = vmatprep.subr.mxu0 0.0
        %987 = vmatpush1.msra.mxu0 0.0
        %988 = vmatprep.subr.mxu0 0.0
        %989 = vmatpush1.msra.mxu0 0.0
        %990 = vmatprep.subr.mxu0 0.0
        %991 = vmatpush1.msra.mxu0 0.0
        %992 = vmatprep.subr.mxu0 0.0
        %993 = vmatpush1.msra.mxu0 0.0
        %994 = vmatprep.subr.mxu0 0.0
        %995 = vmatpush1.msra.mxu0 0.0
        %996 = vmatprep.subr.mxu0 0.0
        %997 = vmatpush1.msra.mxu0 0.0
        %998 = vmatprep.subr.mxu0 0.0
        %999 = vmatpush1.msra.mxu0 0.0
        %1000 = vmatprep.subr.mxu0 0.0
        %1001 = vmatpush1.msra.mxu0 0.0
        %1002 = vmatprep.subr.mxu0 0.0
        %1003 = vmatpush1.msra.mxu0 0.0
        %1004 = vmatprep.subr.mxu0 0.0
        %1005 = vmatpush1.msra.mxu0 0.0
        %1006 = vmatprep.subr.mxu0 0.0
        %1007 = vmatpush1.msra.mxu0 0.0
        %1008 = vmatprep.subr.mxu0 0.0
        %1009 = vmatpush1.msra.mxu0 0.0
        %1010 = vmatprep.subr.mxu0 0.0
        %1011 = vmatpush1.msra.mxu0 0.0
        %1012 = vmatprep.subr.mxu0 0.0
        %1013 = vmatpush1.msra.mxu0 0.0
        %1014 = vmatprep.subr.mxu0 0.0
        %1015 = vmatpush1.msra.mxu0 0.0
        %1016 = vmatprep.subr.mxu0 0.0
        %1017 = vmatpush1.msra.mxu0 0.0
        %1018 = vmatprep.subr.mxu0 0.0
        %1019 = vmatpush1.msra.mxu0 0.0
        %1020 = vmatprep.subr.mxu0 0.0
        %1021 = vmatpush1.msra.mxu0 0.0
        %1022 = vmatprep.subr.mxu0 0.0
        %1023 = vmatpush1.msra.mxu0 0.0
        %1024 = vmatprep.subr.mxu0 0.0
        %1025 = vmatpush1.msra.mxu0 0.0
        %1026 = vmatprep.subr.mxu0 0.0
        %1027 = vmatpush1.msra.mxu0 0.0
        %1028 = vmatprep.mubr.f32.mxu0 0.0
        %1029 = vmatmul.mubr.f32.gmra.mrb[0].mxu0 %v917
        %v1030 = vpop.f32.mrb[0].mxu0
        %v1031 = vadd.f32 %v913, %v1030
        %v1032 = vpop.f32.mrb[0].mxu0
        %1033 = vmatprep.mubr.f32.mxu0 0.0
        %1034 = vmatmul.mubr.f32.gmra.mrb[0].mxu0 %v920
        %v1035 = vpop.f32.mrb[0].mxu0
        %v1036 = vadd.f32 %v913, %v1035
        %v1037 = vpop.f32.mrb[0].mxu0
        %1038 = vmatprep.mubr.f32.mxu0 0.0
        %1039 = vmatmul.mubr.f32.gmra.mrb[0].mxu0 %v923
        %v1040 = vpop.f32.mrb[0].mxu0
        %v1041 = vadd.f32 %v913, %v1040
        %v1042 = vpop.f32.mrb[0].mxu0
        %1043 = vmatprep.mubr.f32.mxu0 0.0
        %1044 = vmatmul.mubr.f32.gmra.mrb[0].mxu0 %v926
        %v1045 = vpop.f32.mrb[0].mxu0
        %v1046 = vadd.f32 %v913, %v1045
        %v1047 = vpop.f32.mrb[0].mxu0
        %1048 = vmatprep.mubr.f32.mxu0 0.0
        %1049 = vmatmul.mubr.f32.gmra.mrb[0].mxu0 %v929
        %v1050 = vpop.f32.mrb[0].mxu0
        %v1051 = vadd.f32 %v913, %v1050
        %v1052 = vpop.f32.mrb[0].mxu0
        %1053 = vmatprep.mubr.f32.mxu0 0.0
        %1054 = vmatmul.mubr.f32.gmra.mrb[0].mxu0 %v932
        %v1055 = vpop.f32.mrb[0].mxu0
        %v1056 = vadd.f32 %v913, %v1055
        %v1057 = vpop.f32.mrb[0].mxu0
        %1058 = vmatprep.mubr.f32.mxu0 0.0
        %1059 = vmatmul.mubr.f32.gmra.mrb[0].mxu0 %v935
        %v1060 = vpop.f32.mrb[0].mxu0
        %v1061 = vadd.f32 %v913, %v1060
        %v1062 = vpop.f32.mrb[0].mxu0
        %1063 = vmatprep.mubr.f32.mxu0 0.0
        %1064 = vmatmul.mubr.f32.gmra.mrb[0].mxu0 %v938
        %v1065 = vpop.f32.mrb[0].mxu0
        %v1066 = vadd.f32 %v913, %v1065
        %v1067 = vpop.f32.mrb[0].mxu0
        %1068 = vmatprep.mubr.f32.mxu0 0.0
        %1069 = vmatmul.mubr.f32.gmra.mrb[0].mxu0 %v941
        %v1070 = vpop.f32.mrb[0].mxu0
        %v1071 = vadd.f32 %v913, %v1070
        %v1072 = vpop.f32.mrb[0].mxu0
        %1073 = vmatprep.mubr.f32.mxu0 0.0
        %1074 = vmatmul.mubr.f32.gmra.mrb[0].mxu0 %v944
        %v1075 = vpop.f32.mrb[0].mxu0
        %v1076 = vadd.f32 %v913, %v1075
        %v1077 = vpop.f32.mrb[0].mxu0
        %1078 = vmatprep.mubr.f32.mxu0 0.0
        %1079 = vmatmul.mubr.f32.gmra.mrb[0].mxu0 %v947
        %v1080 = vpop.f32.mrb[0].mxu0
        %v1081 = vadd.f32 %v913, %v1080
        %v1082 = vpop.f32.mrb[0].mxu0
        %1083 = vmatprep.mubr.f32.mxu0 0.0
        %1084 = vmatmul.mubr.f32.gmra.mrb[0].mxu0 %v950
        %v1085 = vpop.f32.mrb[0].mxu0
        %v1086 = vadd.f32 %v913, %v1085
        %v1087 = vpop.f32.mrb[0].mxu0
        %1088 = vmatprep.mubr.f32.mxu0 0.0
        %1089 = vmatmul.mubr.f32.gmra.mrb[0].mxu0 %v953
        %v1090 = vpop.f32.mrb[0].mxu0
        %v1091 = vadd.f32 %v913, %v1090
        %v1092 = vpop.f32.mrb[0].mxu0
        %1093 = vmatprep.mubr.f32.mxu0 0.0
        %1094 = vmatmul.mubr.f32.gmra.mrb[0].mxu0 %v956
        %v1095 = vpop.f32.mrb[0].mxu0
        %v1096 = vadd.f32 %v913, %v1095
        %v1097 = vpop.f32.mrb[0].mxu0
        %1098 = vmatprep.mubr.f32.mxu0 0.0
        %1099 = vmatmul.mubr.f32.gmra.mrb[0].mxu0 %v959
        %v1100 = vpop.f32.mrb[0].mxu0
        %v1101 = vadd.f32 %v913, %v1100
        %v1102 = vpop.f32.mrb[0].mxu0
        %1103 = vmatprep.mubr.f32.mxu0 0.0
        %1104 = vmatmul.mubr.f32.gmra.mrb[0].mxu0 %v962
        %v1105 = vpop.f32.mrb[0].mxu0
        %v1106 = vadd.f32 %v913, %v1105
        %v1107 = vpop.f32.mrb[0].mxu0
        %1108 = vdwg.mxu0
        %v1109 = vadd.f32 %v280, %v1031
        %v1110 = vadd.f32 %v281, %v1036
        %v1111 = vadd.f32 %v282, %v1041
        %v1112 = vadd.f32 %v283, %v1046
        %v1113 = vadd.f32 %v284, %v1051
        %v1114 = vadd.f32 %v285, %v1056
        %v1115 = vadd.f32 %v286, %v1061
        %v1116 = vadd.f32 %v287, %v1066
        %v1117 = vadd.f32 %v288, %v1071
        %v1118 = vadd.f32 %v289, %v1076
        %v1119 = vadd.f32 %v290, %v1081
        %v1120 = vadd.f32 %v291, %v1086
        %v1121 = vadd.f32 %v292, %v1091
        %v1122 = vadd.f32 %v293, %v1096
        %v1123 = vadd.f32 %v294, %v1101
        %v1124 = vadd.f32 %v295, %v1106
        %1125 = vst.msk [vmem:[%s272] sm:$0xff] %vm298, %v1109
        %1126 = vst.msk [vmem:[%s272 + $0x8] sm:$0xff] %vm298, %v1110
        %1127 = vst.msk [vmem:[%s272 + $0x10] sm:$0xff] %vm298, %v1111
        %1128 = vst.msk [vmem:[%s272 + $0x18] sm:$0xff] %vm298, %v1112
        %1129 = vst.msk [vmem:[%s272 + $0x20] sm:$0xff] %vm298, %v1113
        %1130 = vst.msk [vmem:[%s272 + $0x28] sm:$0xff] %vm298, %v1114
        %1131 = vst.msk [vmem:[%s272 + $0x30] sm:$0xff] %vm298, %v1115
        %1132 = vst.msk [vmem:[%s272 + $0x38] sm:$0xff] %vm298, %v1116
        %1133 = vst.msk [vmem:[%s272 + $0x40] sm:$0xff] %vm298, %v1117
        %1134 = vst.msk [vmem:[%s272 + $0x48] sm:$0xff] %vm298, %v1118
        %1135 = vst.msk [vmem:[%s272 + $0x50] sm:$0xff] %vm298, %v1119
        %1136 = vst.msk [vmem:[%s272 + $0x58] sm:$0xff] %vm298, %v1120
        %1137 = vst.msk [vmem:[%s272 + $0x60] sm:$0xff] %vm298, %v1121
        %1138 = vst.msk [vmem:[%s272 + $0x68] sm:$0xff] %vm298, %v1122
        %1139 = vst.msk [vmem:[%s272 + $0x70] sm:$0xff] %vm298, %v1123
        %1140 = vst.msk [vmem:[%s272 + $0x78] sm:$0xff] %vm298, %v1124
        %s1141 = sand.u32 %s181, 1
        %s1142 = scalar_lea.sflag [#allocation3], %s1141
        %s1143 = sand.u32 %s181, 1
        %s1144 = smul.addr %s1143, 128
        %s1145 = scalar_lea.vmem [#allocation2], %s1144
        // Predicated region
        $region49: #{_lambda_.5} parent=47 // pred_check
          %p1146 = pneg %p191
        $region50: #{_lambda_.5} parent=47 // pred_check_branch
          %1148 = sbr.rel (%p1146) target = $region52
        $region51: #{_lambda_.5} parent=47 // pred_region
          %s1149 = smul.u32 16, %s21
          %s1151 = ssub.s32 2048, 2048
          %1152 = vsyncadd %s1142, %s1151
          %s1153 = smul.addr %s1149, 128
          %s1154 = scalar_lea.hbm %s7, %s1153
          %s1155 = sshll.u32 %s1145, 4
          %s1156 = int_to_ptr.vmem [resolvable:$true] %s1155
          %1161 = dma.vmem_to_hbm [thread:$0]  %s1156, 2048, %s1154, %s1142, 128, 128, 8
        $region52: #{_lambda_.5} parent=47 // pred_fallthru
          _
      $region48: #{_lambda_.5} parent=5 // pred_fallthru
        _
      %p1162 = scmp.le.s32.totalorder 2, %s16
      // Predicated region
      $region53: #{_lambda_.5} parent=5 // pred_check
        %p1163 = pneg %p1162
      $region54: #{_lambda_.5} parent=5 // pred_check_branch
        %1165 = sbr.rel (%p1163) target = $region56
      $region55: #{_lambda_.5} parent=5 // pred_region
        %s1166 = ssub.s32 %s16, 2
        // Predicated region
        $region57: #{_lambda_.5} parent=55 // pred_check
          %p1167 = pneg %p197
        $region58: #{_lambda_.5} parent=55 // pred_check_branch
          %1169 = sbr.rel (%p1167) target = $region60
        $region59: #{_lambda_.5} parent=55 // pred_region
          %s1170 = sand.u32 %s182, 1
          %s1171 = scalar_lea.sflag [#allocation3], %s1170
          %s1172 = sand.u32 %s182, 1
          %s1173 = smul.addr %s1172, 128
          %s1174 = scalar_lea.vmem [#allocation2], %s1173
          %1175 = dma.done %s1171, 2048
        $region60: #{_lambda_.5} parent=55 // pred_fallthru
          _
      $region56: #{_lambda_.5} parent=5 // pred_fallthru
        _
    $region6: #{_lambda_.5} parent=1 // loop_footer
      %s20 = sadd.s32 1, %s16
    $region7: #{_lambda_.5} parent=1 // loop_footer_branch
      %15 = sbr.rel target = $region3
    $region8: #{_lambda_.5} parent=1 // loop_exit
      _
    %1176 = vsyncpa [#allocation3], 1
    %s1177 = scalar_lea.sflag [#allocation3], 1
    %1178 = vsyncpa %s1177, 1

</llo_original>
